<compile_context>
chip_gen: v5e
topology: v5e:2x2
jax: 0.10.0
libtpu: 0.0.40
codegen_flags: <defaults>
</compile_context>

<pallas_src>
import functools

import jax
import jax.numpy as jnp
from jax import lax
from jax.experimental import pallas as pl
from jax.experimental.pallas import tpu as pltpu

# ----------------------------- "conf" values ---------------------------------
FRAMES_PER_STATE = 4
IMAGE_HEIGHT = 52
IMAGE_WIDTH = 52
HIDDEN_SIZE = 64
BATCH = 2


def _conv_out(sz, k, s):
    return (sz - k) // s + 1


# Static geometry of the conv chain (valid padding).
OH1, OW1 = _conv_out(IMAGE_HEIGHT, 8, 4), _conv_out(IMAGE_WIDTH, 8, 4)   # 12, 12
OH2, OW2 = _conv_out(OH1, 4, 2), _conv_out(OW1, 4, 2)                    # 5, 5
OH3, OW3 = _conv_out(OH2, 3, 1), _conv_out(OW2, 3, 1)                    # 3, 3
FLAT_SIZE = 50 * OH3 * OW3                                               # 450

# Internal fused-kernel geometry: conv1's output is stored split into the four
# stride-2 phases of conv2, each on a PH x PW grid, so every conv2/conv3 tap is
# a contiguous row shift.
PH, PW = OH1 // 2, OW1 // 2          # 6, 6
GRID = PH * PW                       # 36 rows per sample on the 6x6 grid
LANE = 128                           # lane padding for every channel dim
A1_PAD = 8                           # >= max conv2 row shift (1*PW + 1 = 7)
A2_PAD = 16                          # >= max conv3 row shift (2*PW + 2 = 14)

assert OH1 % 2 == 0 and OW1 % 2 == 0
assert OH2 <= PH and OW2 <= PW and OH3 <= PH and OW3 <= PW
assert A1_PAD >= 1 * PW + 1 and A2_PAD >= 2 * PW + 2


# ------------------------------ Pallas kernel ---------------------------------
def _encoder_kernel(p1_ref, w1_ref, b1_ref, w2_ref, b2_ref, w3_ref, b3_ref,
                    w4_hbm, b4_ref, w5_ref, b5_ref, o_ref,
                    a1_ref, a2_ref, s2_ref, s3_ref, w4_vmem, w4_sem, *, n):
    f32 = jnp.float32
    bf16 = jnp.bfloat16
    R = n * GRID                                  # rows on the per-sample 6x6 grid
    M = o_ref.shape[0]

    # Kick off the fc1-weight DMA immediately; it overlaps the whole conv chain.
    w4_copy = pltpu.make_async_copy(w4_hbm, w4_vmem, w4_sem)
    w4_copy.start()

    def elu(y):
        # ELU(alpha=1); min() keeps exp's argument <= 0 so the dead branch is finite.
        return jnp.where(y > 0.0, y, jnp.exp(jnp.minimum(y, 0.0)) - 1.0)

    # ---- conv1 (8x8, s4) + ELU: ONE GEMM covering all four stride-2 phases ---
    # p1_ref rows are phase-major (ph = py*2+px); within a phase: (sample, Y, X).
    y1 = elu(jnp.dot(p1_ref[...], w1_ref[...], preferred_element_type=f32)
             + b1_ref[...])                                   # (4R, 128) f32
    zeros_a1 = jnp.zeros((A1_PAD, LANE), f32)
    for ph in range(4):
        a1_ref[ph, 0:R, :] = y1[ph * R:(ph + 1) * R, :]
        # zero the shift-overrun tail rows read by conv2's shifted slices
        a1_ref[ph, R:R + A1_PAD, :] = zeros_a1

    # ---- conv2 (4x4, s2) + ELU: 16 taps K-concatenated into one GEMM ---------
    # Stage each shifted tap slice into the bf16 slab; column order matches the
    # (py, px, oy, ox) stacking of w2_ref.
    t = 0
    for py in range(2):
        for px in range(2):
            ph = py * 2 + px
            for oy in range(2):
                for ox in range(2):
                    sh = oy * PW + ox                    # row shift on the 6x6 grid
                    s2_ref[:, t * LANE:(t + 1) * LANE] = (
                        a1_ref[ph, sh:sh + R, :].astype(bf16))
                    t += 1
    y2 = elu(jnp.dot(s2_ref[...], w2_ref[...], preferred_element_type=f32)
             + b2_ref[...])                                   # (R, 128) f32
    a2_ref[0:R, :] = y2
    a2_ref[R:R + A2_PAD, :] = jnp.zeros((A2_PAD, LANE), f32)

    # ---- conv3 (3x3, s1) + ELU: 9 taps K-concatenated into one GEMM ----------
    for i in range(3):
        for j in range(3):
            t = i * 3 + j
            sh = i * PW + j
            s3_ref[:, t * LANE:(t + 1) * LANE] = (
                a2_ref[sh:sh + R, :].astype(bf16))
    y3 = elu(jnp.dot(s3_ref[...], w3_ref[...], preferred_element_type=f32)
             + b3_ref[...])          # rows s*GRID + Y*PW + X valid for Y, X < 3

    # ---- fc1 (450 -> 512) + ELU: single (M, 1152) @ (1152, 512) GEMM ----------
    # Gather the 9 valid (Y, X) positions per sample along the lane axis in the
    # same (Y, X) order used to stack w4.
    zrows = [jnp.zeros((M - n, LANE), f32)] if M > n else []
    blocks = []
    for Y in range(OH3):
        for X in range(OW3):
            r = Y * PW + X
            rows = [y3[s * GRID + r:s * GRID + r + 1, :] for s in range(n)]
            blocks.append(jnp.concatenate(rows + zrows, axis=0))
    x4 = jnp.concatenate(blocks, axis=1).astype(bf16)          # (M, 1152)

    w4_copy.wait()                                             # fc1 weights ready
    y4 = elu(jnp.dot(x4, w4_vmem[...], preferred_element_type=f32)
             + b4_ref[...])                                    # (M, 512)

    # ---- fc2 (512 -> HIDDEN_SIZE): single lane-dense (M, 128) store ----------
    o_ref[...] = (jnp.dot(y4.astype(bf16), w5_ref[...],
                          preferred_element_type=f32) + b5_ref[...])


# ------------------------ wrapper-side data preparation -----------------------
def _conv1_phase_patches(x):
    """x: (N, C, H, W) f32 -> (4*N*GRID, C*64) bf16 conv1 patches, phase-major.

    Uses one lax.conv_general_dilated_patches op; rows are ordered
    (phase=py*2+px, sample, Y, X); the column (patch-channel) ordering is
    whatever conv_general_dilated_patches produces -- w1 is permuted to match
    at prep time.
    """
    n = x.shape[0]
    pat = lax.conv_general_dilated_patches(x, (8, 8), (4, 4), "VALID")  # (n,C*64,12,12)
    p = pat.transpose(0, 2, 3, 1)                                       # (n,12,12,C*64)
    phases = [p[:, py::2, px::2, :].reshape(n * GRID, p.shape[-1])
              for py in range(2) for px in range(2)]
    return jnp.concatenate(phases, axis=0).astype(jnp.bfloat16)


def prep_encoder_params(params):
    """One-time repack of PyTorch-layout weights into padded, bf16 kernel layout."""
    f32, bf16 = jnp.float32, jnp.bfloat16

    def pad(a, shape):
        return jnp.pad(a, [(0, t - s) for s, t in zip(a.shape, shape)])

    c_in = params["conv1_w"].shape[1]

    # conv1: probe conv_general_dilated_patches' channel order once and fold the
    # permutation into the weight packing (rows = patch channels, cols = c_out).
    probe = jnp.arange(c_in * 64, dtype=f32).reshape(1, c_in, 8, 8)
    perm = jnp.round(lax.conv_general_dilated_patches(
        probe, (8, 8), (4, 4), "VALID").reshape(c_in * 64)).astype(jnp.int32)
    w1_cij = params["conv1_w"].reshape(32, c_in * 64).T     # rows in (c, kh, kw) order
    w1 = pad(w1_cij[perm], (c_in * 64, LANE)).astype(bf16)
    b1 = pad(params["conv1_b"], (LANE,)).reshape(1, LANE).astype(f32)

    # conv2: 16 per-tap (c_in, c_out) matrices stacked along K in (py,px,oy,ox)
    # order (matching the kernel's staging-slab column order).
    w2_ij = params["conv2_w"].transpose(2, 3, 1, 0)          # (4, 4, 32, 40)
    blocks = []
    for py in range(2):
        for px in range(2):
            for oy in range(2):
                for ox in range(2):
                    blocks.append(pad(w2_ij[py + 2 * oy, px + 2 * ox], (LANE, LANE)))
    w2 = jnp.concatenate(blocks, axis=0).astype(bf16)        # (2048, 128)
    b2 = pad(params["conv2_b"], (LANE,)).reshape(1, LANE).astype(f32)

    # conv3: 9 per-tap matrices stacked along K in (i, j) order.
    w3_ij = params["conv3_w"].transpose(2, 3, 1, 0)          # (3, 3, 40, 50)
    w3 = jnp.concatenate(
        [pad(w3_ij[i, j], (LANE, LANE)) for i in range(3) for j in range(3)],
        axis=0).astype(bf16)                                 # (1152, 128)
    b3 = pad(params["conv3_b"], (LANE,)).reshape(1, LANE).astype(f32)

    # fc1: 9 per-spatial-position (c, 512) blocks stacked along K in (Y, X)
    # order, matching PyTorch's NCHW x.view(-1, flat_size) flatten order.
    w4_yx = params["fc1_w"].reshape(512, 50, OH3, OW3).transpose(2, 3, 1, 0)
    w4 = jnp.concatenate(
        [pad(w4_yx[Y, X], (LANE, 512)) for Y in range(OH3) for X in range(OW3)],
        axis=0).astype(bf16)                                 # (1152, 512) -> stays in HBM
    b4 = params["fc1_b"].reshape(1, 512).astype(f32)

    # fc2: (HIDDEN, 512) -> (512, 128)
    w5 = pad(params["fc2_w"].T, (512, LANE)).astype(bf16)
    b5 = pad(params["fc2_b"], (LANE,)).reshape(1, LANE).astype(f32)

    return {"w1": w1, "b1": b1, "w2": w2, "b2": b2, "w3": w3, "b3": b3,
            "w4": w4, "b4": b4, "w5": w5, "b5": b5}


def _full_spec(a):
    nd = a.ndim
    return pl.BlockSpec(a.shape, lambda *_: (0,) * nd)


def encoder_forward(prepped, x):
    """x: (N, FRAMES_PER_STATE, IMAGE_HEIGHT, IMAGE_WIDTH) f32 -> (N, HIDDEN_SIZE)."""
    n0 = x.shape[0]
    if n0 % 2:                       # keep n*GRID a multiple of 8 (sublane aligned)
        x = jnp.concatenate([x, jnp.zeros_like(x[:1])], axis=0)
    n = x.shape[0]
    out_rows = max(8, ((n + 7) // 8) * 8)
    p1 = _conv1_phase_patches(x)

    vmem_args = (p1, prepped["w1"], prepped["b1"], prepped["w2"], prepped["b2"],
                 prepped["w3"], prepped["b3"])
    tail_args = (prepped["b4"], prepped["w5"], prepped["b5"])
    args = vmem_args + (prepped["w4"],) + tail_args

    in_specs = ([_full_spec(a) for a in vmem_args]
                + [pl.BlockSpec(memory_space=pl.ANY)]        # fc1 weights stay in HBM
                + [_full_spec(a) for a in tail_args])

    out = pl.pallas_call(
        functools.partial(_encoder_kernel, n=n),
        out_shape=jax.ShapeDtypeStruct((out_rows, LANE), jnp.float32),
        in_specs=in_specs,
        out_specs=pl.BlockSpec((out_rows, LANE), lambda *_: (0, 0)),
        scratch_shapes=[
            pltpu.VMEM((4, n * GRID + A1_PAD, LANE), jnp.float32),   # conv1 out (per phase)
            pltpu.VMEM((n * GRID + A2_PAD, LANE), jnp.float32),      # conv2 out
            pltpu.VMEM((n * GRID, 16 * LANE), jnp.bfloat16),         # conv2 K-concat slab
            pltpu.VMEM((n * GRID, 9 * LANE), jnp.bfloat16),          # conv3 K-concat slab
            pltpu.VMEM((9 * LANE, 512), jnp.bfloat16),               # fc1 weights (DMA dst)
            pltpu.SemaphoreType.DMA,                                 # fc1 weight DMA sem
        ],
        compiler_params=pltpu.CompilerParams(vmem_limit_bytes=32 * 1024 * 1024),
    )(*args)
    return out[:n0, :HIDDEN_SIZE]


# ------------------------------ reference & init ------------------------------
def init_encoder_params(key):
    """Deterministic synthetic parameters with the shapes from Encoder.__init__."""
    ks = jax.random.split(key, 10)

    def w(k, shape, fan_in):
        return (jax.random.normal(k, shape, jnp.float32) / jnp.sqrt(fan_in)).astype(jnp.float32)

    return {
        "conv1_w": w(ks[0], (32, FRAMES_PER_STATE, 8, 8), FRAMES_PER_STATE * 64),
        "conv1_b": w(ks[1], (32,), 8.0),
        "conv2_w": w(ks[2], (40, 32, 4, 4), 32 * 16),
        "conv2_b": w(ks[3], (40,), 8.0),
        "conv3_w": w(ks[4], (50, 40, 3, 3), 40 * 9),
        "conv3_b": w(ks[5], (50,), 8.0),
        "fc1_w": w(ks[6], (512, FLAT_SIZE), FLAT_SIZE),
        "fc1_b": w(ks[7], (512,), 8.0),
        "fc2_w": w(ks[8], (HIDDEN_SIZE, 512), 512),
        "fc2_b": w(ks[9], (HIDDEN_SIZE,), 8.0),
    }


def encoder_reference(params, x):
    """Pure-JAX f32 reference matching the PyTorch module."""
    def elu(v):
        return jnp.where(v > 0.0, v, jnp.exp(jnp.minimum(v, 0.0)) - 1.0)

    def conv(h, w, b, s):
        y = lax.conv_general_dilated(h, w, (s, s), "VALID",
                                     dimension_numbers=("NCHW", "OIHW", "NCHW"))
        return elu(y + b[None, :, None, None])

    h = conv(x, params["conv1_w"], params["conv1_b"], 4)
    h = conv(h, params["conv2_w"], params["conv2_b"], 2)
    h = conv(h, params["conv3_w"], params["conv3_b"], 1)
    h = h.reshape(h.shape[0], -1)                         # x.view(-1, flat_size)
    h = elu(h @ params["fc1_w"].T + params["fc1_b"])
    return h @ params["fc2_w"].T + params["fc2_b"]


# ------------------------------------ main -------------------------------------
if __name__ == "__main__":
    key = jax.random.PRNGKey(0)
    k_params, k_x = jax.random.split(key)

    params = init_encoder_params(k_params)
    prepped = prep_encoder_params(params)
    x = jax.random.normal(
        k_x, (BATCH, FRAMES_PER_STATE, IMAGE_HEIGHT, IMAGE_WIDTH), jnp.float32)

    out = jax.block_until_ready(jax.jit(encoder_forward)(prepped, x))

    assert out.shape == (BATCH, HIDDEN_SIZE), out.shape
    assert bool(jnp.all(jnp.isfinite(out)))

    # Loose tolerance: kernel uses bf16 matmul operands with f32 accumulation.
    ref = encoder_reference(params, x)
    assert bool(jnp.all(jnp.abs(out - ref) <= 0.1 + 0.05 * jnp.abs(ref))), (
        float(jnp.max(jnp.abs(out - ref))))

    print("KERNEL_OK")
</pallas_src>

<mosaic_0001>
module attributes {stable_mosaic.version = 11 : i64} {
  func.func @_encoder_kernel(%arg0: memref<288x256xbf16, #tpu.memory_space<vmem>>, %arg1: memref<256x128xbf16, #tpu.memory_space<vmem>>, %arg2: memref<1x128xf32, #tpu.memory_space<vmem>>, %arg3: memref<2048x128xbf16, #tpu.memory_space<vmem>>, %arg4: memref<1x128xf32, #tpu.memory_space<vmem>>, %arg5: memref<1152x128xbf16, #tpu.memory_space<vmem>>, %arg6: memref<1x128xf32, #tpu.memory_space<vmem>>, %arg7: memref<1152x512xbf16, #tpu.memory_space<any>>, %arg8: memref<1x512xf32, #tpu.memory_space<vmem>>, %arg9: memref<512x128xbf16, #tpu.memory_space<vmem>>, %arg10: memref<1x128xf32, #tpu.memory_space<vmem>>, %arg11: memref<8x128xf32, #tpu.memory_space<vmem>>, %arg12: memref<4x80x128xf32, #tpu.memory_space<vmem>>, %arg13: memref<88x128xf32, #tpu.memory_space<vmem>>, %arg14: memref<72x2048xbf16, #tpu.memory_space<vmem>>, %arg15: memref<72x1152xbf16, #tpu.memory_space<vmem>>, %arg16: memref<1152x512xbf16, #tpu.memory_space<vmem>>, %arg17: memref<!tpu.dma_semaphore, #tpu.memory_space<semaphore_mem>>) attributes {dimension_semantics = [], scalar_prefetch = 0 : i64, scratch_operands = 6 : i64, tpu.core_type = #tpu.core_type<tc>} {
    tpu.enqueue_dma source(%arg7 : memref<1152x512xbf16, #tpu.memory_space<any>>) target(%arg16 : memref<1152x512xbf16, #tpu.memory_space<vmem>>) target_semaphore(%arg17 : memref<!tpu.dma_semaphore, #tpu.memory_space<semaphore_mem>>)
    %c0 = arith.constant 0 : index
    %c0_0 = arith.constant 0 : index
    %0 = vector.load %arg0[%c0, %c0_0] : memref<288x256xbf16, #tpu.memory_space<vmem>>, vector<288x256xbf16>
    %c0_1 = arith.constant 0 : index
    %c0_2 = arith.constant 0 : index
    %1 = vector.load %arg1[%c0_1, %c0_2] : memref<256x128xbf16, #tpu.memory_space<vmem>>, vector<256x128xbf16>
    %cst = arith.constant dense<0.000000e+00> : vector<288x128xf32>
    %2 = tpu.matmul %0, %1, %cst {dimension_numbers = #tpu.dot_dimension_numbers<[1], [0], [0], [1], [0, 0, 1, 1], [], []>} : vector<288x256xbf16>, vector<256x128xbf16>, vector<288x128xf32> -> vector<288x128xf32>
    %c0_3 = arith.constant 0 : index
    %c0_4 = arith.constant 0 : index
    %3 = vector.load %arg2[%c0_3, %c0_4] : memref<1x128xf32, #tpu.memory_space<vmem>>, vector<1x128xf32>
    %4 = vector.broadcast %3 : vector<1x128xf32> to vector<288x128xf32>
    %5 = arith.addf %2, %4 : vector<288x128xf32>
    %cst_5 = arith.constant 0.000000e+00 : f32
    %6 = vector.broadcast %cst_5 : f32 to vector<288x128xf32>
    %7 = arith.cmpf ogt, %5, %6 : vector<288x128xf32>
    %cst_6 = arith.constant 0.000000e+00 : f32
    %8 = vector.broadcast %cst_6 : f32 to vector<288x128xf32>
    %9 = arith.minimumf %5, %8 : vector<288x128xf32>
    %10 = math.exp %9 : vector<288x128xf32>
    %cst_7 = arith.constant 1.000000e+00 : f32
    %11 = vector.broadcast %cst_7 : f32 to vector<288x128xf32>
    %12 = arith.subf %10, %11 : vector<288x128xf32>
    %13 = arith.select %7, %5, %12 : vector<288x128xi1>, vector<288x128xf32>
    %cst_8 = arith.constant 0.000000e+00 : f32
    %14 = vector.broadcast %cst_8 : f32 to vector<8x128xf32>
    %15 = vector.extract_strided_slice %13 {offsets = [0, 0], sizes = [72, 128], strides = [1, 1]} : vector<288x128xf32> to vector<72x128xf32>
    %c0_9 = arith.constant 0 : index
    %c0_10 = arith.constant 0 : index
    %c0_11 = arith.constant 0 : index
    %16 = vector.load %arg12[%c0_9, %c0_10, %c0_11] : memref<4x80x128xf32, #tpu.memory_space<vmem>>, vector<1x72x128xf32>
    %17 = vector.shape_cast %16 : vector<1x72x128xf32> to vector<72x128xf32>
    %18 = vector.shape_cast %15 : vector<72x128xf32> to vector<1x72x128xf32>
    tpu.vector_store %arg12[%c0_9, %c0_10, %c0_11], %18 {strides = array<i32>} : memref<4x80x128xf32, #tpu.memory_space<vmem>>, vector<1x72x128xf32>,
    %c0_12 = arith.constant 0 : index
    %c72 = arith.constant 72 : index
    %c0_13 = arith.constant 0 : index
    %19 = vector.load %arg12[%c0_12, %c72, %c0_13] : memref<4x80x128xf32, #tpu.memory_space<vmem>>, vector<1x8x128xf32>
    %20 = vector.shape_cast %19 : vector<1x8x128xf32> to vector<8x128xf32>
    %21 = vector.shape_cast %14 : vector<8x128xf32> to vector<1x8x128xf32>
    tpu.vector_store %arg12[%c0_12, %c72, %c0_13], %21 {strides = array<i32>} : memref<4x80x128xf32, #tpu.memory_space<vmem>>, vector<1x8x128xf32>,
    %22 = vector.extract_strided_slice %13 {offsets = [72, 0], sizes = [72, 128], strides = [1, 1]} : vector<288x128xf32> to vector<72x128xf32>
    %c1 = arith.constant 1 : index
    %c0_14 = arith.constant 0 : index
    %c0_15 = arith.constant 0 : index
    %23 = vector.load %arg12[%c1, %c0_14, %c0_15] : memref<4x80x128xf32, #tpu.memory_space<vmem>>, vector<1x72x128xf32>
    %24 = vector.shape_cast %23 : vector<1x72x128xf32> to vector<72x128xf32>
    %25 = vector.shape_cast %22 : vector<72x128xf32> to vector<1x72x128xf32>
    tpu.vector_store %arg12[%c1, %c0_14, %c0_15], %25 {strides = array<i32>} : memref<4x80x128xf32, #tpu.memory_space<vmem>>, vector<1x72x128xf32>,
    %c1_16 = arith.constant 1 : index
    %c72_17 = arith.constant 72 : index
    %c0_18 = arith.constant 0 : index
    %26 = vector.load %arg12[%c1_16, %c72_17, %c0_18] : memref<4x80x128xf32, #tpu.memory_space<vmem>>, vector<1x8x128xf32>
    %27 = vector.shape_cast %26 : vector<1x8x128xf32> to vector<8x128xf32>
    %28 = vector.shape_cast %14 : vector<8x128xf32> to vector<1x8x128xf32>
    tpu.vector_store %arg12[%c1_16, %c72_17, %c0_18], %28 {strides = array<i32>} : memref<4x80x128xf32, #tpu.memory_space<vmem>>, vector<1x8x128xf32>,
    %29 = vector.extract_strided_slice %13 {offsets = [144, 0], sizes = [72, 128], strides = [1, 1]} : vector<288x128xf32> to vector<72x128xf32>
    %c2 = arith.constant 2 : index
    %c0_19 = arith.constant 0 : index
    %c0_20 = arith.constant 0 : index
    %30 = vector.load %arg12[%c2, %c0_19, %c0_20] : memref<4x80x128xf32, #tpu.memory_space<vmem>>, vector<1x72x128xf32>
    %31 = vector.shape_cast %30 : vector<1x72x128xf32> to vector<72x128xf32>
    %32 = vector.shape_cast %29 : vector<72x128xf32> to vector<1x72x128xf32>
    tpu.vector_store %arg12[%c2, %c0_19, %c0_20], %32 {strides = array<i32>} : memref<4x80x128xf32, #tpu.memory_space<vmem>>, vector<1x72x128xf32>,
    %c2_21 = arith.constant 2 : index
    %c72_22 = arith.constant 72 : index
    %c0_23 = arith.constant 0 : index
    %33 = vector.load %arg12[%c2_21, %c72_22, %c0_23] : memref<4x80x128xf32, #tpu.memory_space<vmem>>, vector<1x8x128xf32>
    %34 = vector.shape_cast %33 : vector<1x8x128xf32> to vector<8x128xf32>
    %35 = vector.shape_cast %14 : vector<8x128xf32> to vector<1x8x128xf32>
    tpu.vector_store %arg12[%c2_21, %c72_22, %c0_23], %35 {strides = array<i32>} : memref<4x80x128xf32, #tpu.memory_space<vmem>>, vector<1x8x128xf32>,
    %36 = vector.extract_strided_slice %13 {offsets = [216, 0], sizes = [72, 128], strides = [1, 1]} : vector<288x128xf32> to vector<72x128xf32>
    %c3 = arith.constant 3 : index
    %c0_24 = arith.constant 0 : index
    %c0_25 = arith.constant 0 : index
    %37 = vector.load %arg12[%c3, %c0_24, %c0_25] : memref<4x80x128xf32, #tpu.memory_space<vmem>>, vector<1x72x128xf32>
    %38 = vector.shape_cast %37 : vector<1x72x128xf32> to vector<72x128xf32>
    %39 = vector.shape_cast %36 : vector<72x128xf32> to vector<1x72x128xf32>
    tpu.vector_store %arg12[%c3, %c0_24, %c0_25], %39 {strides = array<i32>} : memref<4x80x128xf32, #tpu.memory_space<vmem>>, vector<1x72x128xf32>,
    %c3_26 = arith.constant 3 : index
    %c72_27 = arith.constant 72 : index
    %c0_28 = arith.constant 0 : index
    %40 = vector.load %arg12[%c3_26, %c72_27, %c0_28] : memref<4x80x128xf32, #tpu.memory_space<vmem>>, vector<1x8x128xf32>
    %41 = vector.shape_cast %40 : vector<1x8x128xf32> to vector<8x128xf32>
    %42 = vector.shape_cast %14 : vector<8x128xf32> to vector<1x8x128xf32>
    tpu.vector_store %arg12[%c3_26, %c72_27, %c0_28], %42 {strides = array<i32>} : memref<4x80x128xf32, #tpu.memory_space<vmem>>, vector<1x8x128xf32>,
    %c0_29 = arith.constant 0 : index
    %c0_30 = arith.constant 0 : index
    %c0_31 = arith.constant 0 : index
    %43 = vector.load %arg12[%c0_29, %c0_30, %c0_31] : memref<4x80x128xf32, #tpu.memory_space<vmem>>, vector<1x72x128xf32>
    %44 = vector.shape_cast %43 : vector<1x72x128xf32> to vector<72x128xf32>
    %45 = arith.truncf %44 : vector<72x128xf32> to vector<72x128xbf16>
    %c0_32 = arith.constant 0 : index
    %c0_33 = arith.constant 0 : index
    %46 = vector.load %arg14[%c0_32, %c0_33] : memref<72x2048xbf16, #tpu.memory_space<vmem>>, vector<72x128xbf16>
    tpu.vector_store %arg14[%c0_32, %c0_33], %45 {strides = array<i32>} : memref<72x2048xbf16, #tpu.memory_space<vmem>>, vector<72x128xbf16>,
    %c0_34 = arith.constant 0 : index
    %c1_35 = arith.constant 1 : index
    %c0_36 = arith.constant 0 : index
    %47 = vector.load %arg12[%c0_34, %c1_35, %c0_36] : memref<4x80x128xf32, #tpu.memory_space<vmem>>, vector<1x72x128xf32>
    %48 = vector.shape_cast %47 : vector<1x72x128xf32> to vector<72x128xf32>
    %49 = arith.truncf %48 : vector<72x128xf32> to vector<72x128xbf16>
    %c0_37 = arith.constant 0 : index
    %c128 = arith.constant 128 : index
    %50 = vector.load %arg14[%c0_37, %c128] : memref<72x2048xbf16, #tpu.memory_space<vmem>>, vector<72x128xbf16>
    tpu.vector_store %arg14[%c0_37, %c128], %49 {strides = array<i32>} : memref<72x2048xbf16, #tpu.memory_space<vmem>>, vector<72x128xbf16>,
    %c0_38 = arith.constant 0 : index
    %c6 = arith.constant 6 : index
    %c0_39 = arith.constant 0 : index
    %51 = vector.load %arg12[%c0_38, %c6, %c0_39] : memref<4x80x128xf32, #tpu.memory_space<vmem>>, vector<1x72x128xf32>
    %52 = vector.shape_cast %51 : vector<1x72x128xf32> to vector<72x128xf32>
    %53 = arith.truncf %52 : vector<72x128xf32> to vector<72x128xbf16>
    %c0_40 = arith.constant 0 : index
    %c256 = arith.constant 256 : index
    %54 = vector.load %arg14[%c0_40, %c256] : memref<72x2048xbf16, #tpu.memory_space<vmem>>, vector<72x128xbf16>
    tpu.vector_store %arg14[%c0_40, %c256], %53 {strides = array<i32>} : memref<72x2048xbf16, #tpu.memory_space<vmem>>, vector<72x128xbf16>,
    %c0_41 = arith.constant 0 : index
    %c7 = arith.constant 7 : index
    %c0_42 = arith.constant 0 : index
    %55 = vector.load %arg12[%c0_41, %c7, %c0_42] : memref<4x80x128xf32, #tpu.memory_space<vmem>>, vector<1x72x128xf32>
    %56 = vector.shape_cast %55 : vector<1x72x128xf32> to vector<72x128xf32>
    %57 = arith.truncf %56 : vector<72x128xf32> to vector<72x128xbf16>
    %c0_43 = arith.constant 0 : index
    %c384 = arith.constant 384 : index
    %58 = vector.load %arg14[%c0_43, %c384] : memref<72x2048xbf16, #tpu.memory_space<vmem>>, vector<72x128xbf16>
    tpu.vector_store %arg14[%c0_43, %c384], %57 {strides = array<i32>} : memref<72x2048xbf16, #tpu.memory_space<vmem>>, vector<72x128xbf16>,
    %c1_44 = arith.constant 1 : index
    %c0_45 = arith.constant 0 : index
    %c0_46 = arith.constant 0 : index
    %59 = vector.load %arg12[%c1_44, %c0_45, %c0_46] : memref<4x80x128xf32, #tpu.memory_space<vmem>>, vector<1x72x128xf32>
    %60 = vector.shape_cast %59 : vector<1x72x128xf32> to vector<72x128xf32>
    %61 = arith.truncf %60 : vector<72x128xf32> to vector<72x128xbf16>
    %c0_47 = arith.constant 0 : index
    %c512 = arith.constant 512 : index
    %62 = vector.load %arg14[%c0_47, %c512] : memref<72x2048xbf16, #tpu.memory_space<vmem>>, vector<72x128xbf16>
    tpu.vector_store %arg14[%c0_47, %c512], %61 {strides = array<i32>} : memref<72x2048xbf16, #tpu.memory_space<vmem>>, vector<72x128xbf16>,
    %c1_48 = arith.constant 1 : index
    %c1_49 = arith.constant 1 : index
    %c0_50 = arith.constant 0 : index
    %63 = vector.load %arg12[%c1_48, %c1_49, %c0_50] : memref<4x80x128xf32, #tpu.memory_space<vmem>>, vector<1x72x128xf32>
    %64 = vector.shape_cast %63 : vector<1x72x128xf32> to vector<72x128xf32>
    %65 = arith.truncf %64 : vector<72x128xf32> to vector<72x128xbf16>
    %c0_51 = arith.constant 0 : index
    %c640 = arith.constant 640 : index
    %66 = vector.load %arg14[%c0_51, %c640] : memref<72x2048xbf16, #tpu.memory_space<vmem>>, vector<72x128xbf16>
    tpu.vector_store %arg14[%c0_51, %c640], %65 {strides = array<i32>} : memref<72x2048xbf16, #tpu.memory_space<vmem>>, vector<72x128xbf16>,
    %c1_52 = arith.constant 1 : index
    %c6_53 = arith.constant 6 : index
    %c0_54 = arith.constant 0 : index
    %67 = vector.load %arg12[%c1_52, %c6_53, %c0_54] : memref<4x80x128xf32, #tpu.memory_space<vmem>>, vector<1x72x128xf32>
    %68 = vector.shape_cast %67 : vector<1x72x128xf32> to vector<72x128xf32>
    %69 = arith.truncf %68 : vector<72x128xf32> to vector<72x128xbf16>
    %c0_55 = arith.constant 0 : index
    %c768 = arith.constant 768 : index
    %70 = vector.load %arg14[%c0_55, %c768] : memref<72x2048xbf16, #tpu.memory_space<vmem>>, vector<72x128xbf16>
    tpu.vector_store %arg14[%c0_55, %c768], %69 {strides = array<i32>} : memref<72x2048xbf16, #tpu.memory_space<vmem>>, vector<72x128xbf16>,
    %c1_56 = arith.constant 1 : index
    %c7_57 = arith.constant 7 : index
    %c0_58 = arith.constant 0 : index
    %71 = vector.load %arg12[%c1_56, %c7_57, %c0_58] : memref<4x80x128xf32, #tpu.memory_space<vmem>>, vector<1x72x128xf32>
    %72 = vector.shape_cast %71 : vector<1x72x128xf32> to vector<72x128xf32>
    %73 = arith.truncf %72 : vector<72x128xf32> to vector<72x128xbf16>
    %c0_59 = arith.constant 0 : index
    %c896 = arith.constant 896 : index
    %74 = vector.load %arg14[%c0_59, %c896] : memref<72x2048xbf16, #tpu.memory_space<vmem>>, vector<72x128xbf16>
    tpu.vector_store %arg14[%c0_59, %c896], %73 {strides = array<i32>} : memref<72x2048xbf16, #tpu.memory_space<vmem>>, vector<72x128xbf16>,
    %c2_60 = arith.constant 2 : index
    %c0_61 = arith.constant 0 : index
    %c0_62 = arith.constant 0 : index
    %75 = vector.load %arg12[%c2_60, %c0_61, %c0_62] : memref<4x80x128xf32, #tpu.memory_space<vmem>>, vector<1x72x128xf32>
    %76 = vector.shape_cast %75 : vector<1x72x128xf32> to vector<72x128xf32>
    %77 = arith.truncf %76 : vector<72x128xf32> to vector<72x128xbf16>
    %c0_63 = arith.constant 0 : index
    %c1024 = arith.constant 1024 : index
    %78 = vector.load %arg14[%c0_63, %c1024] : memref<72x2048xbf16, #tpu.memory_space<vmem>>, vector<72x128xbf16>
    tpu.vector_store %arg14[%c0_63, %c1024], %77 {strides = array<i32>} : memref<72x2048xbf16, #tpu.memory_space<vmem>>, vector<72x128xbf16>,
    %c2_64 = arith.constant 2 : index
    %c1_65 = arith.constant 1 : index
    %c0_66 = arith.constant 0 : index
    %79 = vector.load %arg12[%c2_64, %c1_65, %c0_66] : memref<4x80x128xf32, #tpu.memory_space<vmem>>, vector<1x72x128xf32>
    %80 = vector.shape_cast %79 : vector<1x72x128xf32> to vector<72x128xf32>
    %81 = arith.truncf %80 : vector<72x128xf32> to vector<72x128xbf16>
    %c0_67 = arith.constant 0 : index
    %c1152 = arith.constant 1152 : index
    %82 = vector.load %arg14[%c0_67, %c1152] : memref<72x2048xbf16, #tpu.memory_space<vmem>>, vector<72x128xbf16>
    tpu.vector_store %arg14[%c0_67, %c1152], %81 {strides = array<i32>} : memref<72x2048xbf16, #tpu.memory_space<vmem>>, vector<72x128xbf16>,
    %c2_68 = arith.constant 2 : index
    %c6_69 = arith.constant 6 : index
    %c0_70 = arith.constant 0 : index
    %83 = vector.load %arg12[%c2_68, %c6_69, %c0_70] : memref<4x80x128xf32, #tpu.memory_space<vmem>>, vector<1x72x128xf32>
    %84 = vector.shape_cast %83 : vector<1x72x128xf32> to vector<72x128xf32>
    %85 = arith.truncf %84 : vector<72x128xf32> to vector<72x128xbf16>
    %c0_71 = arith.constant 0 : index
    %c1280 = arith.constant 1280 : index
    %86 = vector.load %arg14[%c0_71, %c1280] : memref<72x2048xbf16, #tpu.memory_space<vmem>>, vector<72x128xbf16>
    tpu.vector_store %arg14[%c0_71, %c1280], %85 {strides = array<i32>} : memref<72x2048xbf16, #tpu.memory_space<vmem>>, vector<72x128xbf16>,
    %c2_72 = arith.constant 2 : index
    %c7_73 = arith.constant 7 : index
    %c0_74 = arith.constant 0 : index
    %87 = vector.load %arg12[%c2_72, %c7_73, %c0_74] : memref<4x80x128xf32, #tpu.memory_space<vmem>>, vector<1x72x128xf32>
    %88 = vector.shape_cast %87 : vector<1x72x128xf32> to vector<72x128xf32>
    %89 = arith.truncf %88 : vector<72x128xf32> to vector<72x128xbf16>
    %c0_75 = arith.constant 0 : index
    %c1408 = arith.constant 1408 : index
    %90 = vector.load %arg14[%c0_75, %c1408] : memref<72x2048xbf16, #tpu.memory_space<vmem>>, vector<72x128xbf16>
    tpu.vector_store %arg14[%c0_75, %c1408], %89 {strides = array<i32>} : memref<72x2048xbf16, #tpu.memory_space<vmem>>, vector<72x128xbf16>,
    %c3_76 = arith.constant 3 : index
    %c0_77 = arith.constant 0 : index
    %c0_78 = arith.constant 0 : index
    %91 = vector.load %arg12[%c3_76, %c0_77, %c0_78] : memref<4x80x128xf32, #tpu.memory_space<vmem>>, vector<1x72x128xf32>
    %92 = vector.shape_cast %91 : vector<1x72x128xf32> to vector<72x128xf32>
    %93 = arith.truncf %92 : vector<72x128xf32> to vector<72x128xbf16>
    %c0_79 = arith.constant 0 : index
    %c1536 = arith.constant 1536 : index
    %94 = vector.load %arg14[%c0_79, %c1536] : memref<72x2048xbf16, #tpu.memory_space<vmem>>, vector<72x128xbf16>
    tpu.vector_store %arg14[%c0_79, %c1536], %93 {strides = array<i32>} : memref<72x2048xbf16, #tpu.memory_space<vmem>>, vector<72x128xbf16>,
    %c3_80 = arith.constant 3 : index
    %c1_81 = arith.constant 1 : index
    %c0_82 = arith.constant 0 : index
    %95 = vector.load %arg12[%c3_80, %c1_81, %c0_82] : memref<4x80x128xf32, #tpu.memory_space<vmem>>, vector<1x72x128xf32>
    %96 = vector.shape_cast %95 : vector<1x72x128xf32> to vector<72x128xf32>
    %97 = arith.truncf %96 : vector<72x128xf32> to vector<72x128xbf16>
    %c0_83 = arith.constant 0 : index
    %c1664 = arith.constant 1664 : index
    %98 = vector.load %arg14[%c0_83, %c1664] : memref<72x2048xbf16, #tpu.memory_space<vmem>>, vector<72x128xbf16>
    tpu.vector_store %arg14[%c0_83, %c1664], %97 {strides = array<i32>} : memref<72x2048xbf16, #tpu.memory_space<vmem>>, vector<72x128xbf16>,
    %c3_84 = arith.constant 3 : index
    %c6_85 = arith.constant 6 : index
    %c0_86 = arith.constant 0 : index
    %99 = vector.load %arg12[%c3_84, %c6_85, %c0_86] : memref<4x80x128xf32, #tpu.memory_space<vmem>>, vector<1x72x128xf32>
    %100 = vector.shape_cast %99 : vector<1x72x128xf32> to vector<72x128xf32>
    %101 = arith.truncf %100 : vector<72x128xf32> to vector<72x128xbf16>
    %c0_87 = arith.constant 0 : index
    %c1792 = arith.constant 1792 : index
    %102 = vector.load %arg14[%c0_87, %c1792] : memref<72x2048xbf16, #tpu.memory_space<vmem>>, vector<72x128xbf16>
    tpu.vector_store %arg14[%c0_87, %c1792], %101 {strides = array<i32>} : memref<72x2048xbf16, #tpu.memory_space<vmem>>, vector<72x128xbf16>,
    %c3_88 = arith.constant 3 : index
    %c7_89 = arith.constant 7 : index
    %c0_90 = arith.constant 0 : index
    %103 = vector.load %arg12[%c3_88, %c7_89, %c0_90] : memref<4x80x128xf32, #tpu.memory_space<vmem>>, vector<1x72x128xf32>
    %104 = vector.shape_cast %103 : vector<1x72x128xf32> to vector<72x128xf32>
    %105 = arith.truncf %104 : vector<72x128xf32> to vector<72x128xbf16>
    %c0_91 = arith.constant 0 : index
    %c1920 = arith.constant 1920 : index
    %106 = vector.load %arg14[%c0_91, %c1920] : memref<72x2048xbf16, #tpu.memory_space<vmem>>, vector<72x128xbf16>
    tpu.vector_store %arg14[%c0_91, %c1920], %105 {strides = array<i32>} : memref<72x2048xbf16, #tpu.memory_space<vmem>>, vector<72x128xbf16>,
    %c0_92 = arith.constant 0 : index
    %c0_93 = arith.constant 0 : index
    %107 = vector.load %arg14[%c0_92, %c0_93] : memref<72x2048xbf16, #tpu.memory_space<vmem>>, vector<72x2048xbf16>
    %c0_94 = arith.constant 0 : index
    %c0_95 = arith.constant 0 : index
    %108 = vector.load %arg3[%c0_94, %c0_95] : memref<2048x128xbf16, #tpu.memory_space<vmem>>, vector<2048x128xbf16>
    %cst_96 = arith.constant dense<0.000000e+00> : vector<72x128xf32>
    %109 = tpu.matmul %107, %108, %cst_96 {dimension_numbers = #tpu.dot_dimension_numbers<[1], [0], [0], [1], [0, 0, 1, 1], [], []>} : vector<72x2048xbf16>, vector<2048x128xbf16>, vector<72x128xf32> -> vector<72x128xf32>
    %c0_97 = arith.constant 0 : index
    %c0_98 = arith.constant 0 : index
    %110 = vector.load %arg4[%c0_97, %c0_98] : memref<1x128xf32, #tpu.memory_space<vmem>>, vector<1x128xf32>
    %111 = vector.broadcast %110 : vector<1x128xf32> to vector<72x128xf32>
    %112 = arith.addf %109, %111 : vector<72x128xf32>
    %cst_99 = arith.constant 0.000000e+00 : f32
    %113 = vector.broadcast %cst_99 : f32 to vector<72x128xf32>
    %114 = arith.cmpf ogt, %112, %113 : vector<72x128xf32>
    %cst_100 = arith.constant 0.000000e+00 : f32
    %115 = vector.broadcast %cst_100 : f32 to vector<72x128xf32>
    %116 = arith.minimumf %112, %115 : vector<72x128xf32>
    %117 = math.exp %116 : vector<72x128xf32>
    %cst_101 = arith.constant 1.000000e+00 : f32
    %118 = vector.broadcast %cst_101 : f32 to vector<72x128xf32>
    %119 = arith.subf %117, %118 : vector<72x128xf32>
    %120 = arith.select %114, %112, %119 : vector<72x128xi1>, vector<72x128xf32>
    %c0_102 = arith.constant 0 : index
    %c0_103 = arith.constant 0 : index
    %121 = vector.load %arg13[%c0_102, %c0_103] : memref<88x128xf32, #tpu.memory_space<vmem>>, vector<72x128xf32>
    tpu.vector_store %arg13[%c0_102, %c0_103], %120 {strides = array<i32>} : memref<88x128xf32, #tpu.memory_space<vmem>>, vector<72x128xf32>,
    %cst_104 = arith.constant 0.000000e+00 : f32
    %122 = vector.broadcast %cst_104 : f32 to vector<16x128xf32>
    %c72_105 = arith.constant 72 : index
    %c0_106 = arith.constant 0 : index
    %123 = vector.load %arg13[%c72_105, %c0_106] : memref<88x128xf32, #tpu.memory_space<vmem>>, vector<16x128xf32>
    tpu.vector_store %arg13[%c72_105, %c0_106], %122 {strides = array<i32>} : memref<88x128xf32, #tpu.memory_space<vmem>>, vector<16x128xf32>,
    %c0_107 = arith.constant 0 : index
    %c0_108 = arith.constant 0 : index
    %124 = vector.load %arg13[%c0_107, %c0_108] : memref<88x128xf32, #tpu.memory_space<vmem>>, vector<72x128xf32>
    %125 = arith.truncf %124 : vector<72x128xf32> to vector<72x128xbf16>
    %c0_109 = arith.constant 0 : index
    %c0_110 = arith.constant 0 : index
    %126 = vector.load %arg15[%c0_109, %c0_110] : memref<72x1152xbf16, #tpu.memory_space<vmem>>, vector<72x128xbf16>
    tpu.vector_store %arg15[%c0_109, %c0_110], %125 {strides = array<i32>} : memref<72x1152xbf16, #tpu.memory_space<vmem>>, vector<72x128xbf16>,
    %c1_111 = arith.constant 1 : index
    %c0_112 = arith.constant 0 : index
    %127 = vector.load %arg13[%c1_111, %c0_112] : memref<88x128xf32, #tpu.memory_space<vmem>>, vector<72x128xf32>
    %128 = arith.truncf %127 : vector<72x128xf32> to vector<72x128xbf16>
    %c0_113 = arith.constant 0 : index
    %c128_114 = arith.constant 128 : index
    %129 = vector.load %arg15[%c0_113, %c128_114] : memref<72x1152xbf16, #tpu.memory_space<vmem>>, vector<72x128xbf16>
    tpu.vector_store %arg15[%c0_113, %c128_114], %128 {strides = array<i32>} : memref<72x1152xbf16, #tpu.memory_space<vmem>>, vector<72x128xbf16>,
    %c2_115 = arith.constant 2 : index
    %c0_116 = arith.constant 0 : index
    %130 = vector.load %arg13[%c2_115, %c0_116] : memref<88x128xf32, #tpu.memory_space<vmem>>, vector<72x128xf32>
    %131 = arith.truncf %130 : vector<72x128xf32> to vector<72x128xbf16>
    %c0_117 = arith.constant 0 : index
    %c256_118 = arith.constant 256 : index
    %132 = vector.load %arg15[%c0_117, %c256_118] : memref<72x1152xbf16, #tpu.memory_space<vmem>>, vector<72x128xbf16>
    tpu.vector_store %arg15[%c0_117, %c256_118], %131 {strides = array<i32>} : memref<72x1152xbf16, #tpu.memory_space<vmem>>, vector<72x128xbf16>,
    %c6_119 = arith.constant 6 : index
    %c0_120 = arith.constant 0 : index
    %133 = vector.load %arg13[%c6_119, %c0_120] : memref<88x128xf32, #tpu.memory_space<vmem>>, vector<72x128xf32>
    %134 = arith.truncf %133 : vector<72x128xf32> to vector<72x128xbf16>
    %c0_121 = arith.constant 0 : index
    %c384_122 = arith.constant 384 : index
    %135 = vector.load %arg15[%c0_121, %c384_122] : memref<72x1152xbf16, #tpu.memory_space<vmem>>, vector<72x128xbf16>
    tpu.vector_store %arg15[%c0_121, %c384_122], %134 {strides = array<i32>} : memref<72x1152xbf16, #tpu.memory_space<vmem>>, vector<72x128xbf16>,
    %c7_123 = arith.constant 7 : index
    %c0_124 = arith.constant 0 : index
    %136 = vector.load %arg13[%c7_123, %c0_124] : memref<88x128xf32, #tpu.memory_space<vmem>>, vector<72x128xf32>
    %137 = arith.truncf %136 : vector<72x128xf32> to vector<72x128xbf16>
    %c0_125 = arith.constant 0 : index
    %c512_126 = arith.constant 512 : index
    %138 = vector.load %arg15[%c0_125, %c512_126] : memref<72x1152xbf16, #tpu.memory_space<vmem>>, vector<72x128xbf16>
    tpu.vector_store %arg15[%c0_125, %c512_126], %137 {strides = array<i32>} : memref<72x1152xbf16, #tpu.memory_space<vmem>>, vector<72x128xbf16>,
    %c8 = arith.constant 8 : index
    %c0_127 = arith.constant 0 : index
    %139 = vector.load %arg13[%c8, %c0_127] : memref<88x128xf32, #tpu.memory_space<vmem>>, vector<72x128xf32>
    %140 = arith.truncf %139 : vector<72x128xf32> to vector<72x128xbf16>
    %c0_128 = arith.constant 0 : index
    %c640_129 = arith.constant 640 : index
    %141 = vector.load %arg15[%c0_128, %c640_129] : memref<72x1152xbf16, #tpu.memory_space<vmem>>, vector<72x128xbf16>
    tpu.vector_store %arg15[%c0_128, %c640_129], %140 {strides = array<i32>} : memref<72x1152xbf16, #tpu.memory_space<vmem>>, vector<72x128xbf16>,
    %c12 = arith.constant 12 : index
    %c0_130 = arith.constant 0 : index
    %142 = vector.load %arg13[%c12, %c0_130] : memref<88x128xf32, #tpu.memory_space<vmem>>, vector<72x128xf32>
    %143 = arith.truncf %142 : vector<72x128xf32> to vector<72x128xbf16>
    %c0_131 = arith.constant 0 : index
    %c768_132 = arith.constant 768 : index
    %144 = vector.load %arg15[%c0_131, %c768_132] : memref<72x1152xbf16, #tpu.memory_space<vmem>>, vector<72x128xbf16>
    tpu.vector_store %arg15[%c0_131, %c768_132], %143 {strides = array<i32>} : memref<72x1152xbf16, #tpu.memory_space<vmem>>, vector<72x128xbf16>,
    %c13 = arith.constant 13 : index
    %c0_133 = arith.constant 0 : index
    %145 = vector.load %arg13[%c13, %c0_133] : memref<88x128xf32, #tpu.memory_space<vmem>>, vector<72x128xf32>
    %146 = arith.truncf %145 : vector<72x128xf32> to vector<72x128xbf16>
    %c0_134 = arith.constant 0 : index
    %c896_135 = arith.constant 896 : index
    %147 = vector.load %arg15[%c0_134, %c896_135] : memref<72x1152xbf16, #tpu.memory_space<vmem>>, vector<72x128xbf16>
    tpu.vector_store %arg15[%c0_134, %c896_135], %146 {strides = array<i32>} : memref<72x1152xbf16, #tpu.memory_space<vmem>>, vector<72x128xbf16>,
    %c14 = arith.constant 14 : index
    %c0_136 = arith.constant 0 : index
    %148 = vector.load %arg13[%c14, %c0_136] : memref<88x128xf32, #tpu.memory_space<vmem>>, vector<72x128xf32>
    %149 = arith.truncf %148 : vector<72x128xf32> to vector<72x128xbf16>
    %c0_137 = arith.constant 0 : index
    %c1024_138 = arith.constant 1024 : index
    %150 = vector.load %arg15[%c0_137, %c1024_138] : memref<72x1152xbf16, #tpu.memory_space<vmem>>, vector<72x128xbf16>
    tpu.vector_store %arg15[%c0_137, %c1024_138], %149 {strides = array<i32>} : memref<72x1152xbf16, #tpu.memory_space<vmem>>, vector<72x128xbf16>,
    %c0_139 = arith.constant 0 : index
    %c0_140 = arith.constant 0 : index
    %151 = vector.load %arg15[%c0_139, %c0_140] : memref<72x1152xbf16, #tpu.memory_space<vmem>>, vector<72x1152xbf16>
    %c0_141 = arith.constant 0 : index
    %c0_142 = arith.constant 0 : index
    %152 = vector.load %arg5[%c0_141, %c0_142] : memref<1152x128xbf16, #tpu.memory_space<vmem>>, vector<1152x128xbf16>
    %cst_143 = arith.constant dense<0.000000e+00> : vector<72x128xf32>
    %153 = tpu.matmul %151, %152, %cst_143 {dimension_numbers = #tpu.dot_dimension_numbers<[1], [0], [0], [1], [0, 0, 1, 1], [], []>} : vector<72x1152xbf16>, vector<1152x128xbf16>, vector<72x128xf32> -> vector<72x128xf32>
    %c0_144 = arith.constant 0 : index
    %c0_145 = arith.constant 0 : index
    %154 = vector.load %arg6[%c0_144, %c0_145] : memref<1x128xf32, #tpu.memory_space<vmem>>, vector<1x128xf32>
    %155 = vector.broadcast %154 : vector<1x128xf32> to vector<72x128xf32>
    %156 = arith.addf %153, %155 : vector<72x128xf32>
    %cst_146 = arith.constant 0.000000e+00 : f32
    %157 = vector.broadcast %cst_146 : f32 to vector<72x128xf32>
    %158 = arith.cmpf ogt, %156, %157 : vector<72x128xf32>
    %cst_147 = arith.constant 0.000000e+00 : f32
    %159 = vector.broadcast %cst_147 : f32 to vector<72x128xf32>
    %160 = arith.minimumf %156, %159 : vector<72x128xf32>
    %161 = math.exp %160 : vector<72x128xf32>
    %cst_148 = arith.constant 1.000000e+00 : f32
    %162 = vector.broadcast %cst_148 : f32 to vector<72x128xf32>
    %163 = arith.subf %161, %162 : vector<72x128xf32>
    %164 = arith.select %158, %156, %163 : vector<72x128xi1>, vector<72x128xf32>
    %cst_149 = arith.constant 0.000000e+00 : f32
    %165 = vector.broadcast %cst_149 : f32 to vector<6x128xf32>
    %166 = vector.extract_strided_slice %164 {offsets = [0, 0], sizes = [1, 128], strides = [1, 1]} : vector<72x128xf32> to vector<1x128xf32>
    %167 = vector.extract_strided_slice %164 {offsets = [36, 0], sizes = [1, 128], strides = [1, 1]} : vector<72x128xf32> to vector<1x128xf32>
    %168 = tpu.concatenate %166, %167, %165 in 0 : vector<1x128xf32>, vector<1x128xf32>, vector<6x128xf32> -> vector<8x128xf32>
    %169 = vector.extract_strided_slice %164 {offsets = [1, 0], sizes = [1, 128], strides = [1, 1]} : vector<72x128xf32> to vector<1x128xf32>
    %170 = vector.extract_strided_slice %164 {offsets = [37, 0], sizes = [1, 128], strides = [1, 1]} : vector<72x128xf32> to vector<1x128xf32>
    %171 = tpu.concatenate %169, %170, %165 in 0 : vector<1x128xf32>, vector<1x128xf32>, vector<6x128xf32> -> vector<8x128xf32>
    %172 = vector.extract_strided_slice %164 {offsets = [2, 0], sizes = [1, 128], strides = [1, 1]} : vector<72x128xf32> to vector<1x128xf32>
    %173 = vector.extract_strided_slice %164 {offsets = [38, 0], sizes = [1, 128], strides = [1, 1]} : vector<72x128xf32> to vector<1x128xf32>
    %174 = tpu.concatenate %172, %173, %165 in 0 : vector<1x128xf32>, vector<1x128xf32>, vector<6x128xf32> -> vector<8x128xf32>
    %175 = vector.extract_strided_slice %164 {offsets = [6, 0], sizes = [1, 128], strides = [1, 1]} : vector<72x128xf32> to vector<1x128xf32>
    %176 = vector.extract_strided_slice %164 {offsets = [42, 0], sizes = [1, 128], strides = [1, 1]} : vector<72x128xf32> to vector<1x128xf32>
    %177 = tpu.concatenate %175, %176, %165 in 0 : vector<1x128xf32>, vector<1x128xf32>, vector<6x128xf32> -> vector<8x128xf32>
    %178 = vector.extract_strided_slice %164 {offsets = [7, 0], sizes = [1, 128], strides = [1, 1]} : vector<72x128xf32> to vector<1x128xf32>
    %179 = vector.extract_strided_slice %164 {offsets = [43, 0], sizes = [1, 128], strides = [1, 1]} : vector<72x128xf32> to vector<1x128xf32>
    %180 = tpu.concatenate %178, %179, %165 in 0 : vector<1x128xf32>, vector<1x128xf32>, vector<6x128xf32> -> vector<8x128xf32>
    %181 = vector.extract_strided_slice %164 {offsets = [8, 0], sizes = [1, 128], strides = [1, 1]} : vector<72x128xf32> to vector<1x128xf32>
    %182 = vector.extract_strided_slice %164 {offsets = [44, 0], sizes = [1, 128], strides = [1, 1]} : vector<72x128xf32> to vector<1x128xf32>
    %183 = tpu.concatenate %181, %182, %165 in 0 : vector<1x128xf32>, vector<1x128xf32>, vector<6x128xf32> -> vector<8x128xf32>
    %184 = vector.extract_strided_slice %164 {offsets = [12, 0], sizes = [1, 128], strides = [1, 1]} : vector<72x128xf32> to vector<1x128xf32>
    %185 = vector.extract_strided_slice %164 {offsets = [48, 0], sizes = [1, 128], strides = [1, 1]} : vector<72x128xf32> to vector<1x128xf32>
    %186 = tpu.concatenate %184, %185, %165 in 0 : vector<1x128xf32>, vector<1x128xf32>, vector<6x128xf32> -> vector<8x128xf32>
    %187 = vector.extract_strided_slice %164 {offsets = [13, 0], sizes = [1, 128], strides = [1, 1]} : vector<72x128xf32> to vector<1x128xf32>
    %188 = vector.extract_strided_slice %164 {offsets = [49, 0], sizes = [1, 128], strides = [1, 1]} : vector<72x128xf32> to vector<1x128xf32>
    %189 = tpu.concatenate %187, %188, %165 in 0 : vector<1x128xf32>, vector<1x128xf32>, vector<6x128xf32> -> vector<8x128xf32>
    %190 = vector.extract_strided_slice %164 {offsets = [14, 0], sizes = [1, 128], strides = [1, 1]} : vector<72x128xf32> to vector<1x128xf32>
    %191 = vector.extract_strided_slice %164 {offsets = [50, 0], sizes = [1, 128], strides = [1, 1]} : vector<72x128xf32> to vector<1x128xf32>
    %192 = tpu.concatenate %190, %191, %165 in 0 : vector<1x128xf32>, vector<1x128xf32>, vector<6x128xf32> -> vector<8x128xf32>
    %193 = tpu.concatenate %168, %171, %174, %177, %180, %183, %186, %189, %192 in 1 : vector<8x128xf32>, vector<8x128xf32>, vector<8x128xf32>, vector<8x128xf32>, vector<8x128xf32>, vector<8x128xf32>, vector<8x128xf32>, vector<8x128xf32>, vector<8x128xf32> -> vector<8x1152xf32>
    %194 = arith.truncf %193 : vector<8x1152xf32> to vector<8x1152xbf16>
    tpu.wait_dma2 semaphore(%arg17 : memref<!tpu.dma_semaphore, #tpu.memory_space<semaphore_mem>>) src(%arg7 : memref<1152x512xbf16, #tpu.memory_space<any>>) dst(%arg16 : memref<1152x512xbf16, #tpu.memory_space<vmem>>)
    %c0_150 = arith.constant 0 : index
    %c0_151 = arith.constant 0 : index
    %195 = vector.load %arg16[%c0_150, %c0_151] : memref<1152x512xbf16, #tpu.memory_space<vmem>>, vector<1152x512xbf16>
    %cst_152 = arith.constant dense<0.000000e+00> : vector<8x512xf32>
    %196 = tpu.matmul %194, %195, %cst_152 {dimension_numbers = #tpu.dot_dimension_numbers<[1], [0], [0], [1], [0, 0, 1, 1], [], []>} : vector<8x1152xbf16>, vector<1152x512xbf16>, vector<8x512xf32> -> vector<8x512xf32>
    %c0_153 = arith.constant 0 : index
    %c0_154 = arith.constant 0 : index
    %197 = vector.load %arg8[%c0_153, %c0_154] : memref<1x512xf32, #tpu.memory_space<vmem>>, vector<1x512xf32>
    %198 = vector.broadcast %197 : vector<1x512xf32> to vector<8x512xf32>
    %199 = arith.addf %196, %198 : vector<8x512xf32>
    %cst_155 = arith.constant 0.000000e+00 : f32
    %200 = vector.broadcast %cst_155 : f32 to vector<8x512xf32>
    %201 = arith.cmpf ogt, %199, %200 : vector<8x512xf32>
    %cst_156 = arith.constant 0.000000e+00 : f32
    %202 = vector.broadcast %cst_156 : f32 to vector<8x512xf32>
    %203 = arith.minimumf %199, %202 : vector<8x512xf32>
    %204 = math.exp %203 : vector<8x512xf32>
    %cst_157 = arith.constant 1.000000e+00 : f32
    %205 = vector.broadcast %cst_157 : f32 to vector<8x512xf32>
    %206 = arith.subf %204, %205 : vector<8x512xf32>
    %207 = arith.select %201, %199, %206 : vector<8x512xi1>, vector<8x512xf32>
    %208 = arith.truncf %207 : vector<8x512xf32> to vector<8x512xbf16>
    %c0_158 = arith.constant 0 : index
    %c0_159 = arith.constant 0 : index
    %209 = vector.load %arg9[%c0_158, %c0_159] : memref<512x128xbf16, #tpu.memory_space<vmem>>, vector<512x128xbf16>
    %cst_160 = arith.constant dense<0.000000e+00> : vector<8x128xf32>
    %210 = tpu.matmul %208, %209, %cst_160 {dimension_numbers = #tpu.dot_dimension_numbers<[1], [0], [0], [1], [0, 0, 1, 1], [], []>} : vector<8x512xbf16>, vector<512x128xbf16>, vector<8x128xf32> -> vector<8x128xf32>
    %c0_161 = arith.constant 0 : index
    %c0_162 = arith.constant 0 : index
    %211 = vector.load %arg10[%c0_161, %c0_162] : memref<1x128xf32, #tpu.memory_space<vmem>>, vector<1x128xf32>
    %212 = vector.broadcast %211 : vector<1x128xf32> to vector<8x128xf32>
    %213 = arith.addf %210, %212 : vector<8x128xf32>
    %c0_163 = arith.constant 0 : index
    %c0_164 = arith.constant 0 : index
    %214 = vector.load %arg11[%c0_163, %c0_164] : memref<8x128xf32, #tpu.memory_space<vmem>>, vector<8x128xf32>
    tpu.vector_store %arg11[%c0_163, %c0_164], %213 {strides = array<i32>} : memref<8x128xf32, #tpu.memory_space<vmem>>, vector<8x128xf32>,
    return
  }
}

</mosaic_0001>

<llo_original>
// kernel: encoder_forward.1
$region0: #{encoder_forward.1}
  #allocation0 [shape = 'u32[]', space=smem, size = 0x4, offset = 0x4, fixed_abs, tag = 'smem constant byte address 0x4 - core index']
  #allocation1 [shape = 'u32[72,128]{1,0:T(1,128)}', space=vmem, size = 0x9000, scoped, tag = 'internal scratch']
  #allocation2 [shape = 'f32[4,80,128]{2,1,0:T(8,128)}', space=vmem, size = 0x28000, scoped, tag = 'scratch operand']
  #allocation3 [shape = 'f32[88,128]{1,0:T(8,128)}', space=vmem, size = 0xb000, scoped, tag = 'scratch operand']
  #allocation4 [shape = 'bf16[72,2048]{1,0:T(8,128)(2,1)}', space=vmem, size = 0x48000, scoped, tag = 'scratch operand']
  #allocation5 [shape = 'bf16[72,1152]{1,0:T(8,128)(2,1)}', space=vmem, size = 0x28800, scoped, tag = 'scratch operand']
  #allocation6 [shape = 'bf16[1152,512]{1,0:T(8,128)(2,1)}', space=vmem, size = 0x120000, scoped, tag = 'scratch operand']
  #allocation7 [shape = 's32[1]{0}', space=sflag, size = 0x4, scoped, tag = 'scratch operand']
  #allocation8 [shape = 's32[]', space=sflag, size = 0x4, offset = 0, fixed_abs, tag = 'sflag constant byte address 0x0 - dummy sync flag']
  %s0 = inlined_call_operand.vmem [shape: bf16[288,256], index: 0, kind: input, shape index: {}]
  %s1 = inlined_call_operand.vmem [shape: bf16[256,128], index: 1, kind: input, shape index: {}]
  %s2 = inlined_call_operand.vmem [shape: f32[1,128], index: 2, kind: input, shape index: {}]
  %s3 = inlined_call_operand.vmem [shape: bf16[2048,128], index: 3, kind: input, shape index: {}]
  %s4 = inlined_call_operand.vmem [shape: f32[1,128], index: 4, kind: input, shape index: {}]
  %s5 = inlined_call_operand.vmem [shape: bf16[1152,128], index: 5, kind: input, shape index: {}]
  %s6 = inlined_call_operand.vmem [shape: f32[1,128], index: 6, kind: input, shape index: {}]
  %s7 = inlined_call_operand.vmem [shape: bf16[1152,512], index: 7, kind: input, shape index: {}]
  %s8 = inlined_call_operand.vmem [shape: f32[1,512], index: 8, kind: input, shape index: {}]
  %s9 = inlined_call_operand.vmem [shape: bf16[512,128], index: 9, kind: input, shape index: {}]
  %s10 = inlined_call_operand.vmem [shape: f32[1,128], index: 10, kind: input, shape index: {}]
  %s11 = inlined_call_operand.vmem [shape: f32[8,128], index: 11, kind: output, shape index: {}]
  %s12 = sld [smem:[#allocation0]]
  $region69: #{encoder_forward.1} parent=0
    _
  %s14 = ssub.s32 1, %s12
  %s15 = scalar_select 0, %s14, %s12
  // Predicated region
  $region2: #{encoder_forward.1} parent=0 // pred_check
    _
  $region3: #{encoder_forward.1} parent=0 // pred_check_branch
    %17 = sbr.rel (0) target = $region5
  $region4: #{encoder_forward.1} parent=0 // pred_region
    _
  $region5: #{encoder_forward.1} parent=0 // pred_fallthru
    _
  // Predicated region
  $region6: #{encoder_forward.1} parent=0 // pred_check
    _
  $region7: #{encoder_forward.1} parent=0 // pred_check_branch
    %19 = sbr.rel (0) target = $region9
  $region8: #{encoder_forward.1} parent=0 // pred_region
    _
  $region9: #{encoder_forward.1} parent=0 // pred_fallthru
    _
  // Predicated region
  $region10: #{encoder_forward.1} parent=0 // pred_check
    _
  $region11: #{encoder_forward.1} parent=0 // pred_check_branch
    %21 = sbr.rel (0) target = $region13
  $region12: #{encoder_forward.1} parent=0 // pred_region
    _
  $region13: #{encoder_forward.1} parent=0 // pred_fallthru
    _
  // Predicated region
  $region14: #{encoder_forward.1} parent=0 // pred_check
    _
  $region15: #{encoder_forward.1} parent=0 // pred_check_branch
    %23 = sbr.rel (0) target = $region17
  $region16: #{encoder_forward.1} parent=0 // pred_region
    _
  $region17: #{encoder_forward.1} parent=0 // pred_fallthru
    _
  // Predicated region
  $region18: #{encoder_forward.1} parent=0 // pred_check
    _
  $region19: #{encoder_forward.1} parent=0 // pred_check_branch
    %25 = sbr.rel (0) target = $region21
  $region20: #{encoder_forward.1} parent=0 // pred_region
    _
  $region21: #{encoder_forward.1} parent=0 // pred_fallthru
    _
  // Predicated region
  $region22: #{encoder_forward.1} parent=0 // pred_check
    _
  $region23: #{encoder_forward.1} parent=0 // pred_check_branch
    %27 = sbr.rel (0) target = $region25
  $region24: #{encoder_forward.1} parent=0 // pred_region
    _
  $region25: #{encoder_forward.1} parent=0 // pred_fallthru
    _
  // Predicated region
  $region26: #{encoder_forward.1} parent=0 // pred_check
    _
  $region27: #{encoder_forward.1} parent=0 // pred_check_branch
    %29 = sbr.rel (0) target = $region29
  $region28: #{encoder_forward.1} parent=0 // pred_region
    _
  $region29: #{encoder_forward.1} parent=0 // pred_fallthru
    _
  // Predicated region
  $region30: #{encoder_forward.1} parent=0 // pred_check
    _
  $region31: #{encoder_forward.1} parent=0 // pred_check_branch
    %31 = sbr.rel (0) target = $region33
  $region32: #{encoder_forward.1} parent=0 // pred_region
    _
  $region33: #{encoder_forward.1} parent=0 // pred_fallthru
    _
  // Predicated region
  $region34: #{encoder_forward.1} parent=0 // pred_check
    _
  $region35: #{encoder_forward.1} parent=0 // pred_check_branch
    %33 = sbr.rel (0) target = $region37
  $region36: #{encoder_forward.1} parent=0 // pred_region
    _
  $region37: #{encoder_forward.1} parent=0 // pred_fallthru
    _
  // Predicated region
  $region38: #{encoder_forward.1} parent=0 // pred_check
    _
  $region39: #{encoder_forward.1} parent=0 // pred_check_branch
    %35 = sbr.rel (0) target = $region41
  $region40: #{encoder_forward.1} parent=0 // pred_region
    _
  $region41: #{encoder_forward.1} parent=0 // pred_fallthru
    _
  // Predicated region
  $region42: #{encoder_forward.1} parent=0 // pred_check
    _
  $region43: #{encoder_forward.1} parent=0 // pred_check_branch
    %37 = sbr.rel (0) target = $region45
  $region44: #{encoder_forward.1} parent=0 // pred_region
    loop: start=0, step=1, limit=1
    $region46: #{encoder_forward.1} parent=44 // loop_pre_header
      _
    $region47: #{encoder_forward.1} parent=44 // loop_header
      %s39 = sphi 0, %s43
      %p40 = scmp.ge.s32.totalorder %s39, 1
      %s44 = sphi %s7, %s7
      %s45 = sphi [#allocation6], [#allocation6]
    $region48: #{encoder_forward.1} parent=44 // loop_header_branch
      %42 = sbr.rel (%p40) target = $region52
    $region49: #{encoder_forward.1} parent=44 // loop_body
      %v46 = vld [vmem:[%s44] sm:$0xff]
      %47 = vst [vmem:[%s45] sm:$0xff] %v46
      %v48 = vld [vmem:[%s44 + $0x8] sm:$0xff]
      %49 = vst [vmem:[%s45 + $0x8] sm:$0xff] %v48
      %v50 = vld [vmem:[%s44 + $0x10] sm:$0xff]
      %51 = vst [vmem:[%s45 + $0x10] sm:$0xff] %v50
      %v52 = vld [vmem:[%s44 + $0x18] sm:$0xff]
      %53 = vst [vmem:[%s45 + $0x18] sm:$0xff] %v52
      %v54 = vld [vmem:[%s44 + $0x20] sm:$0xff]
      %55 = vst [vmem:[%s45 + $0x20] sm:$0xff] %v54
      %v56 = vld [vmem:[%s44 + $0x28] sm:$0xff]
      %57 = vst [vmem:[%s45 + $0x28] sm:$0xff] %v56
      %v58 = vld [vmem:[%s44 + $0x30] sm:$0xff]
      %59 = vst [vmem:[%s45 + $0x30] sm:$0xff] %v58
      %v60 = vld [vmem:[%s44 + $0x38] sm:$0xff]
      %61 = vst [vmem:[%s45 + $0x38] sm:$0xff] %v60
      %v62 = vld [vmem:[%s44 + $0x40] sm:$0xff]
      %63 = vst [vmem:[%s45 + $0x40] sm:$0xff] %v62
      %v64 = vld [vmem:[%s44 + $0x48] sm:$0xff]
      %65 = vst [vmem:[%s45 + $0x48] sm:$0xff] %v64
      %v66 = vld [vmem:[%s44 + $0x50] sm:$0xff]
      %67 = vst [vmem:[%s45 + $0x50] sm:$0xff] %v66
      %v68 = vld [vmem:[%s44 + $0x58] sm:$0xff]
      %69 = vst [vmem:[%s45 + $0x58] sm:$0xff] %v68
      %v70 = vld [vmem:[%s44 + $0x60] sm:$0xff]
      %71 = vst [vmem:[%s45 + $0x60] sm:$0xff] %v70
      %v72 = vld [vmem:[%s44 + $0x68] sm:$0xff]
      %73 = vst [vmem:[%s45 + $0x68] sm:$0xff] %v72
      %v74 = vld [vmem:[%s44 + $0x70] sm:$0xff]
      %75 = vst [vmem:[%s45 + $0x70] sm:$0xff] %v74
      %v76 = vld [vmem:[%s44 + $0x78] sm:$0xff]
      %77 = vst [vmem:[%s45 + $0x78] sm:$0xff] %v76
      %v78 = vld [vmem:[%s44 + $0x80] sm:$0xff]
      %79 = vst [vmem:[%s45 + $0x80] sm:$0xff] %v78
      %v80 = vld [vmem:[%s44 + $0x88] sm:$0xff]
      %81 = vst [vmem:[%s45 + $0x88] sm:$0xff] %v80
      %v82 = vld [vmem:[%s44 + $0x90] sm:$0xff]
      %83 = vst [vmem:[%s45 + $0x90] sm:$0xff] %v82
      %v84 = vld [vmem:[%s44 + $0x98] sm:$0xff]
      %85 = vst [vmem:[%s45 + $0x98] sm:$0xff] %v84
      %v86 = vld [vmem:[%s44 + $0xa0] sm:$0xff]
      %87 = vst [vmem:[%s45 + $0xa0] sm:$0xff] %v86
      %v88 = vld [vmem:[%s44 + $0xa8] sm:$0xff]
      %89 = vst [vmem:[%s45 + $0xa8] sm:$0xff] %v88
      %v90 = vld [vmem:[%s44 + $0xb0] sm:$0xff]
      %91 = vst [vmem:[%s45 + $0xb0] sm:$0xff] %v90
      %v92 = vld [vmem:[%s44 + $0xb8] sm:$0xff]
      %93 = vst [vmem:[%s45 + $0xb8] sm:$0xff] %v92
      %v94 = vld [vmem:[%s44 + $0xc0] sm:$0xff]
      %95 = vst [vmem:[%s45 + $0xc0] sm:$0xff] %v94
      %v96 = vld [vmem:[%s44 + $0xc8] sm:$0xff]
      %97 = vst [vmem:[%s45 + $0xc8] sm:$0xff] %v96
      %v98 = vld [vmem:[%s44 + $0xd0] sm:$0xff]
      %99 = vst [vmem:[%s45 + $0xd0] sm:$0xff] %v98
      %v100 = vld [vmem:[%s44 + $0xd8] sm:$0xff]
      %101 = vst [vmem:[%s45 + $0xd8] sm:$0xff] %v100
      %v102 = vld [vmem:[%s44 + $0xe0] sm:$0xff]
      %103 = vst [vmem:[%s45 + $0xe0] sm:$0xff] %v102
      %v104 = vld [vmem:[%s44 + $0xe8] sm:$0xff]
      %105 = vst [vmem:[%s45 + $0xe8] sm:$0xff] %v104
      %v106 = vld [vmem:[%s44 + $0xf0] sm:$0xff]
      %107 = vst [vmem:[%s45 + $0xf0] sm:$0xff] %v106
      %v108 = vld [vmem:[%s44 + $0xf8] sm:$0xff]
      %109 = vst [vmem:[%s45 + $0xf8] sm:$0xff] %v108
      %v110 = vld [vmem:[%s44 + $0x100] sm:$0xff]
      %111 = vst [vmem:[%s45 + $0x100] sm:$0xff] %v110
      %v112 = vld [vmem:[%s44 + $0x108] sm:$0xff]
      %113 = vst [vmem:[%s45 + $0x108] sm:$0xff] %v112
      %v114 = vld [vmem:[%s44 + $0x110] sm:$0xff]
      %115 = vst [vmem:[%s45 + $0x110] sm:$0xff] %v114
      %v116 = vld [vmem:[%s44 + $0x118] sm:$0xff]
      %117 = vst [vmem:[%s45 + $0x118] sm:$0xff] %v116
      %v118 = vld [vmem:[%s44 + $0x120] sm:$0xff]
      %119 = vst [vmem:[%s45 + $0x120] sm:$0xff] %v118
      %v120 = vld [vmem:[%s44 + $0x128] sm:$0xff]
      %121 = vst [vmem:[%s45 + $0x128] sm:$0xff] %v120
      %v122 = vld [vmem:[%s44 + $0x130] sm:$0xff]
      %123 = vst [vmem:[%s45 + $0x130] sm:$0xff] %v122
      %v124 = vld [vmem:[%s44 + $0x138] sm:$0xff]
      %125 = vst [vmem:[%s45 + $0x138] sm:$0xff] %v124
      %v126 = vld [vmem:[%s44 + $0x140] sm:$0xff]
      %127 = vst [vmem:[%s45 + $0x140] sm:$0xff] %v126
      %v128 = vld [vmem:[%s44 + $0x148] sm:$0xff]
      %129 = vst [vmem:[%s45 + $0x148] sm:$0xff] %v128
      %v130 = vld [vmem:[%s44 + $0x150] sm:$0xff]
      %131 = vst [vmem:[%s45 + $0x150] sm:$0xff] %v130
      %v132 = vld [vmem:[%s44 + $0x158] sm:$0xff]
      %133 = vst [vmem:[%s45 + $0x158] sm:$0xff] %v132
      %v134 = vld [vmem:[%s44 + $0x160] sm:$0xff]
      %135 = vst [vmem:[%s45 + $0x160] sm:$0xff] %v134
      %v136 = vld [vmem:[%s44 + $0x168] sm:$0xff]
      %137 = vst [vmem:[%s45 + $0x168] sm:$0xff] %v136
      %v138 = vld [vmem:[%s44 + $0x170] sm:$0xff]
      %139 = vst [vmem:[%s45 + $0x170] sm:$0xff] %v138
      %v140 = vld [vmem:[%s44 + $0x178] sm:$0xff]
      %141 = vst [vmem:[%s45 + $0x178] sm:$0xff] %v140
      %v142 = vld [vmem:[%s44 + $0x180] sm:$0xff]
      %143 = vst [vmem:[%s45 + $0x180] sm:$0xff] %v142
      %v144 = vld [vmem:[%s44 + $0x188] sm:$0xff]
      %145 = vst [vmem:[%s45 + $0x188] sm:$0xff] %v144
      %v146 = vld [vmem:[%s44 + $0x190] sm:$0xff]
      %147 = vst [vmem:[%s45 + $0x190] sm:$0xff] %v146
      %v148 = vld [vmem:[%s44 + $0x198] sm:$0xff]
      %149 = vst [vmem:[%s45 + $0x198] sm:$0xff] %v148
      %v150 = vld [vmem:[%s44 + $0x1a0] sm:$0xff]
      %151 = vst [vmem:[%s45 + $0x1a0] sm:$0xff] %v150
      %v152 = vld [vmem:[%s44 + $0x1a8] sm:$0xff]
      %153 = vst [vmem:[%s45 + $0x1a8] sm:$0xff] %v152
      %v154 = vld [vmem:[%s44 + $0x1b0] sm:$0xff]
      %155 = vst [vmem:[%s45 + $0x1b0] sm:$0xff] %v154
      %v156 = vld [vmem:[%s44 + $0x1b8] sm:$0xff]
      %157 = vst [vmem:[%s45 + $0x1b8] sm:$0xff] %v156
      %v158 = vld [vmem:[%s44 + $0x1c0] sm:$0xff]
      %159 = vst [vmem:[%s45 + $0x1c0] sm:$0xff] %v158
      %v160 = vld [vmem:[%s44 + $0x1c8] sm:$0xff]
      %161 = vst [vmem:[%s45 + $0x1c8] sm:$0xff] %v160
      %v162 = vld [vmem:[%s44 + $0x1d0] sm:$0xff]
      %163 = vst [vmem:[%s45 + $0x1d0] sm:$0xff] %v162
      %v164 = vld [vmem:[%s44 + $0x1d8] sm:$0xff]
      %165 = vst [vmem:[%s45 + $0x1d8] sm:$0xff] %v164
      %v166 = vld [vmem:[%s44 + $0x1e0] sm:$0xff]
      %167 = vst [vmem:[%s45 + $0x1e0] sm:$0xff] %v166
      %v168 = vld [vmem:[%s44 + $0x1e8] sm:$0xff]
      %169 = vst [vmem:[%s45 + $0x1e8] sm:$0xff] %v168
      %v170 = vld [vmem:[%s44 + $0x1f0] sm:$0xff]
      %171 = vst [vmem:[%s45 + $0x1f0] sm:$0xff] %v170
      %v172 = vld [vmem:[%s44 + $0x1f8] sm:$0xff]
      %173 = vst [vmem:[%s45 + $0x1f8] sm:$0xff] %v172
      %v174 = vld [vmem:[%s44 + $0x200] sm:$0xff]
      %175 = vst [vmem:[%s45 + $0x200] sm:$0xff] %v174
      %v176 = vld [vmem:[%s44 + $0x208] sm:$0xff]
      %177 = vst [vmem:[%s45 + $0x208] sm:$0xff] %v176
      %v178 = vld [vmem:[%s44 + $0x210] sm:$0xff]
      %179 = vst [vmem:[%s45 + $0x210] sm:$0xff] %v178
      %v180 = vld [vmem:[%s44 + $0x218] sm:$0xff]
      %181 = vst [vmem:[%s45 + $0x218] sm:$0xff] %v180
      %v182 = vld [vmem:[%s44 + $0x220] sm:$0xff]
      %183 = vst [vmem:[%s45 + $0x220] sm:$0xff] %v182
      %v184 = vld [vmem:[%s44 + $0x228] sm:$0xff]
      %185 = vst [vmem:[%s45 + $0x228] sm:$0xff] %v184
      %v186 = vld [vmem:[%s44 + $0x230] sm:$0xff]
      %187 = vst [vmem:[%s45 + $0x230] sm:$0xff] %v186
      %v188 = vld [vmem:[%s44 + $0x238] sm:$0xff]
      %189 = vst [vmem:[%s45 + $0x238] sm:$0xff] %v188
      %v190 = vld [vmem:[%s44 + $0x240] sm:$0xff]
      %191 = vst [vmem:[%s45 + $0x240] sm:$0xff] %v190
      %v192 = vld [vmem:[%s44 + $0x248] sm:$0xff]
      %193 = vst [vmem:[%s45 + $0x248] sm:$0xff] %v192
      %v194 = vld [vmem:[%s44 + $0x250] sm:$0xff]
      %195 = vst [vmem:[%s45 + $0x250] sm:$0xff] %v194
      %v196 = vld [vmem:[%s44 + $0x258] sm:$0xff]
      %197 = vst [vmem:[%s45 + $0x258] sm:$0xff] %v196
      %v198 = vld [vmem:[%s44 + $0x260] sm:$0xff]
      %199 = vst [vmem:[%s45 + $0x260] sm:$0xff] %v198
      %v200 = vld [vmem:[%s44 + $0x268] sm:$0xff]
      %201 = vst [vmem:[%s45 + $0x268] sm:$0xff] %v200
      %v202 = vld [vmem:[%s44 + $0x270] sm:$0xff]
      %203 = vst [vmem:[%s45 + $0x270] sm:$0xff] %v202
      %v204 = vld [vmem:[%s44 + $0x278] sm:$0xff]
      %205 = vst [vmem:[%s45 + $0x278] sm:$0xff] %v204
      %v206 = vld [vmem:[%s44 + $0x280] sm:$0xff]
      %207 = vst [vmem:[%s45 + $0x280] sm:$0xff] %v206
      %v208 = vld [vmem:[%s44 + $0x288] sm:$0xff]
      %209 = vst [vmem:[%s45 + $0x288] sm:$0xff] %v208
      %v210 = vld [vmem:[%s44 + $0x290] sm:$0xff]
      %211 = vst [vmem:[%s45 + $0x290] sm:$0xff] %v210
      %v212 = vld [vmem:[%s44 + $0x298] sm:$0xff]
      %213 = vst [vmem:[%s45 + $0x298] sm:$0xff] %v212
      %v214 = vld [vmem:[%s44 + $0x2a0] sm:$0xff]
      %215 = vst [vmem:[%s45 + $0x2a0] sm:$0xff] %v214
      %v216 = vld [vmem:[%s44 + $0x2a8] sm:$0xff]
      %217 = vst [vmem:[%s45 + $0x2a8] sm:$0xff] %v216
      %v218 = vld [vmem:[%s44 + $0x2b0] sm:$0xff]
      %219 = vst [vmem:[%s45 + $0x2b0] sm:$0xff] %v218
      %v220 = vld [vmem:[%s44 + $0x2b8] sm:$0xff]
      %221 = vst [vmem:[%s45 + $0x2b8] sm:$0xff] %v220
      %v222 = vld [vmem:[%s44 + $0x2c0] sm:$0xff]
      %223 = vst [vmem:[%s45 + $0x2c0] sm:$0xff] %v222
      %v224 = vld [vmem:[%s44 + $0x2c8] sm:$0xff]
      %225 = vst [vmem:[%s45 + $0x2c8] sm:$0xff] %v224
      %v226 = vld [vmem:[%s44 + $0x2d0] sm:$0xff]
      %227 = vst [vmem:[%s45 + $0x2d0] sm:$0xff] %v226
      %v228 = vld [vmem:[%s44 + $0x2d8] sm:$0xff]
      %229 = vst [vmem:[%s45 + $0x2d8] sm:$0xff] %v228
      %v230 = vld [vmem:[%s44 + $0x2e0] sm:$0xff]
      %231 = vst [vmem:[%s45 + $0x2e0] sm:$0xff] %v230
      %v232 = vld [vmem:[%s44 + $0x2e8] sm:$0xff]
      %233 = vst [vmem:[%s45 + $0x2e8] sm:$0xff] %v232
      %v234 = vld [vmem:[%s44 + $0x2f0] sm:$0xff]
      %235 = vst [vmem:[%s45 + $0x2f0] sm:$0xff] %v234
      %v236 = vld [vmem:[%s44 + $0x2f8] sm:$0xff]
      %237 = vst [vmem:[%s45 + $0x2f8] sm:$0xff] %v236
      %v238 = vld [vmem:[%s44 + $0x300] sm:$0xff]
      %239 = vst [vmem:[%s45 + $0x300] sm:$0xff] %v238
      %v240 = vld [vmem:[%s44 + $0x308] sm:$0xff]
      %241 = vst [vmem:[%s45 + $0x308] sm:$0xff] %v240
      %v242 = vld [vmem:[%s44 + $0x310] sm:$0xff]
      %243 = vst [vmem:[%s45 + $0x310] sm:$0xff] %v242
      %v244 = vld [vmem:[%s44 + $0x318] sm:$0xff]
      %245 = vst [vmem:[%s45 + $0x318] sm:$0xff] %v244
      %v246 = vld [vmem:[%s44 + $0x320] sm:$0xff]
      %247 = vst [vmem:[%s45 + $0x320] sm:$0xff] %v246
      %v248 = vld [vmem:[%s44 + $0x328] sm:$0xff]
      %249 = vst [vmem:[%s45 + $0x328] sm:$0xff] %v248
      %v250 = vld [vmem:[%s44 + $0x330] sm:$0xff]
      %251 = vst [vmem:[%s45 + $0x330] sm:$0xff] %v250
      %v252 = vld [vmem:[%s44 + $0x338] sm:$0xff]
      %253 = vst [vmem:[%s45 + $0x338] sm:$0xff] %v252
      %v254 = vld [vmem:[%s44 + $0x340] sm:$0xff]
      %255 = vst [vmem:[%s45 + $0x340] sm:$0xff] %v254
      %v256 = vld [vmem:[%s44 + $0x348] sm:$0xff]
      %257 = vst [vmem:[%s45 + $0x348] sm:$0xff] %v256
      %v258 = vld [vmem:[%s44 + $0x350] sm:$0xff]
      %259 = vst [vmem:[%s45 + $0x350] sm:$0xff] %v258
      %v260 = vld [vmem:[%s44 + $0x358] sm:$0xff]
      %261 = vst [vmem:[%s45 + $0x358] sm:$0xff] %v260
      %v262 = vld [vmem:[%s44 + $0x360] sm:$0xff]
      %263 = vst [vmem:[%s45 + $0x360] sm:$0xff] %v262
      %v264 = vld [vmem:[%s44 + $0x368] sm:$0xff]
      %265 = vst [vmem:[%s45 + $0x368] sm:$0xff] %v264
      %v266 = vld [vmem:[%s44 + $0x370] sm:$0xff]
      %267 = vst [vmem:[%s45 + $0x370] sm:$0xff] %v266
      %v268 = vld [vmem:[%s44 + $0x378] sm:$0xff]
      %269 = vst [vmem:[%s45 + $0x378] sm:$0xff] %v268
      %v270 = vld [vmem:[%s44 + $0x380] sm:$0xff]
      %271 = vst [vmem:[%s45 + $0x380] sm:$0xff] %v270
      %v272 = vld [vmem:[%s44 + $0x388] sm:$0xff]
      %273 = vst [vmem:[%s45 + $0x388] sm:$0xff] %v272
      %v274 = vld [vmem:[%s44 + $0x390] sm:$0xff]
      %275 = vst [vmem:[%s45 + $0x390] sm:$0xff] %v274
      %v276 = vld [vmem:[%s44 + $0x398] sm:$0xff]
      %277 = vst [vmem:[%s45 + $0x398] sm:$0xff] %v276
      %v278 = vld [vmem:[%s44 + $0x3a0] sm:$0xff]
      %279 = vst [vmem:[%s45 + $0x3a0] sm:$0xff] %v278
      %v280 = vld [vmem:[%s44 + $0x3a8] sm:$0xff]
      %281 = vst [vmem:[%s45 + $0x3a8] sm:$0xff] %v280
      %v282 = vld [vmem:[%s44 + $0x3b0] sm:$0xff]
      %283 = vst [vmem:[%s45 + $0x3b0] sm:$0xff] %v282
      %v284 = vld [vmem:[%s44 + $0x3b8] sm:$0xff]
      %285 = vst [vmem:[%s45 + $0x3b8] sm:$0xff] %v284
      %v286 = vld [vmem:[%s44 + $0x3c0] sm:$0xff]
      %287 = vst [vmem:[%s45 + $0x3c0] sm:$0xff] %v286
      %v288 = vld [vmem:[%s44 + $0x3c8] sm:$0xff]
      %289 = vst [vmem:[%s45 + $0x3c8] sm:$0xff] %v288
      %v290 = vld [vmem:[%s44 + $0x3d0] sm:$0xff]
      %291 = vst [vmem:[%s45 + $0x3d0] sm:$0xff] %v290
      %v292 = vld [vmem:[%s44 + $0x3d8] sm:$0xff]
      %293 = vst [vmem:[%s45 + $0x3d8] sm:$0xff] %v292
      %v294 = vld [vmem:[%s44 + $0x3e0] sm:$0xff]
      %295 = vst [vmem:[%s45 + $0x3e0] sm:$0xff] %v294
      %v296 = vld [vmem:[%s44 + $0x3e8] sm:$0xff]
      %297 = vst [vmem:[%s45 + $0x3e8] sm:$0xff] %v296
      %v298 = vld [vmem:[%s44 + $0x3f0] sm:$0xff]
      %299 = vst [vmem:[%s45 + $0x3f0] sm:$0xff] %v298
      %v300 = vld [vmem:[%s44 + $0x3f8] sm:$0xff]
      %301 = vst [vmem:[%s45 + $0x3f8] sm:$0xff] %v300
      %v302 = vld [vmem:[%s44 + $0x400] sm:$0xff]
      %303 = vst [vmem:[%s45 + $0x400] sm:$0xff] %v302
      %v304 = vld [vmem:[%s44 + $0x408] sm:$0xff]
      %305 = vst [vmem:[%s45 + $0x408] sm:$0xff] %v304
      %v306 = vld [vmem:[%s44 + $0x410] sm:$0xff]
      %307 = vst [vmem:[%s45 + $0x410] sm:$0xff] %v306
      %v308 = vld [vmem:[%s44 + $0x418] sm:$0xff]
      %309 = vst [vmem:[%s45 + $0x418] sm:$0xff] %v308
      %v310 = vld [vmem:[%s44 + $0x420] sm:$0xff]
      %311 = vst [vmem:[%s45 + $0x420] sm:$0xff] %v310
      %v312 = vld [vmem:[%s44 + $0x428] sm:$0xff]
      %313 = vst [vmem:[%s45 + $0x428] sm:$0xff] %v312
      %v314 = vld [vmem:[%s44 + $0x430] sm:$0xff]
      %315 = vst [vmem:[%s45 + $0x430] sm:$0xff] %v314
      %v316 = vld [vmem:[%s44 + $0x438] sm:$0xff]
      %317 = vst [vmem:[%s45 + $0x438] sm:$0xff] %v316
      %v318 = vld [vmem:[%s44 + $0x440] sm:$0xff]
      %319 = vst [vmem:[%s45 + $0x440] sm:$0xff] %v318
      %v320 = vld [vmem:[%s44 + $0x448] sm:$0xff]
      %321 = vst [vmem:[%s45 + $0x448] sm:$0xff] %v320
      %v322 = vld [vmem:[%s44 + $0x450] sm:$0xff]
      %323 = vst [vmem:[%s45 + $0x450] sm:$0xff] %v322
      %v324 = vld [vmem:[%s44 + $0x458] sm:$0xff]
      %325 = vst [vmem:[%s45 + $0x458] sm:$0xff] %v324
      %v326 = vld [vmem:[%s44 + $0x460] sm:$0xff]
      %327 = vst [vmem:[%s45 + $0x460] sm:$0xff] %v326
      %v328 = vld [vmem:[%s44 + $0x468] sm:$0xff]
      %329 = vst [vmem:[%s45 + $0x468] sm:$0xff] %v328
      %v330 = vld [vmem:[%s44 + $0x470] sm:$0xff]
      %331 = vst [vmem:[%s45 + $0x470] sm:$0xff] %v330
      %v332 = vld [vmem:[%s44 + $0x478] sm:$0xff]
      %333 = vst [vmem:[%s45 + $0x478] sm:$0xff] %v332
      %v334 = vld [vmem:[%s44 + $0x480] sm:$0xff]
      %335 = vst [vmem:[%s45 + $0x480] sm:$0xff] %v334
      %v336 = vld [vmem:[%s44 + $0x488] sm:$0xff]
      %337 = vst [vmem:[%s45 + $0x488] sm:$0xff] %v336
      %v338 = vld [vmem:[%s44 + $0x490] sm:$0xff]
      %339 = vst [vmem:[%s45 + $0x490] sm:$0xff] %v338
      %v340 = vld [vmem:[%s44 + $0x498] sm:$0xff]
      %341 = vst [vmem:[%s45 + $0x498] sm:$0xff] %v340
      %v342 = vld [vmem:[%s44 + $0x4a0] sm:$0xff]
      %343 = vst [vmem:[%s45 + $0x4a0] sm:$0xff] %v342
      %v344 = vld [vmem:[%s44 + $0x4a8] sm:$0xff]
      %345 = vst [vmem:[%s45 + $0x4a8] sm:$0xff] %v344
      %v346 = vld [vmem:[%s44 + $0x4b0] sm:$0xff]
      %347 = vst [vmem:[%s45 + $0x4b0] sm:$0xff] %v346
      %v348 = vld [vmem:[%s44 + $0x4b8] sm:$0xff]
      %349 = vst [vmem:[%s45 + $0x4b8] sm:$0xff] %v348
      %v350 = vld [vmem:[%s44 + $0x4c0] sm:$0xff]
      %351 = vst [vmem:[%s45 + $0x4c0] sm:$0xff] %v350
      %v352 = vld [vmem:[%s44 + $0x4c8] sm:$0xff]
      %353 = vst [vmem:[%s45 + $0x4c8] sm:$0xff] %v352
      %v354 = vld [vmem:[%s44 + $0x4d0] sm:$0xff]
      %355 = vst [vmem:[%s45 + $0x4d0] sm:$0xff] %v354
      %v356 = vld [vmem:[%s44 + $0x4d8] sm:$0xff]
      %357 = vst [vmem:[%s45 + $0x4d8] sm:$0xff] %v356
      %v358 = vld [vmem:[%s44 + $0x4e0] sm:$0xff]
      %359 = vst [vmem:[%s45 + $0x4e0] sm:$0xff] %v358
      %v360 = vld [vmem:[%s44 + $0x4e8] sm:$0xff]
      %361 = vst [vmem:[%s45 + $0x4e8] sm:$0xff] %v360
      %v362 = vld [vmem:[%s44 + $0x4f0] sm:$0xff]
      %363 = vst [vmem:[%s45 + $0x4f0] sm:$0xff] %v362
      %v364 = vld [vmem:[%s44 + $0x4f8] sm:$0xff]
      %365 = vst [vmem:[%s45 + $0x4f8] sm:$0xff] %v364
      %v366 = vld [vmem:[%s44 + $0x500] sm:$0xff]
      %367 = vst [vmem:[%s45 + $0x500] sm:$0xff] %v366
      %v368 = vld [vmem:[%s44 + $0x508] sm:$0xff]
      %369 = vst [vmem:[%s45 + $0x508] sm:$0xff] %v368
      %v370 = vld [vmem:[%s44 + $0x510] sm:$0xff]
      %371 = vst [vmem:[%s45 + $0x510] sm:$0xff] %v370
      %v372 = vld [vmem:[%s44 + $0x518] sm:$0xff]
      %373 = vst [vmem:[%s45 + $0x518] sm:$0xff] %v372
      %v374 = vld [vmem:[%s44 + $0x520] sm:$0xff]
      %375 = vst [vmem:[%s45 + $0x520] sm:$0xff] %v374
      %v376 = vld [vmem:[%s44 + $0x528] sm:$0xff]
      %377 = vst [vmem:[%s45 + $0x528] sm:$0xff] %v376
      %v378 = vld [vmem:[%s44 + $0x530] sm:$0xff]
      %379 = vst [vmem:[%s45 + $0x530] sm:$0xff] %v378
      %v380 = vld [vmem:[%s44 + $0x538] sm:$0xff]
      %381 = vst [vmem:[%s45 + $0x538] sm:$0xff] %v380
      %v382 = vld [vmem:[%s44 + $0x540] sm:$0xff]
      %383 = vst [vmem:[%s45 + $0x540] sm:$0xff] %v382
      %v384 = vld [vmem:[%s44 + $0x548] sm:$0xff]
      %385 = vst [vmem:[%s45 + $0x548] sm:$0xff] %v384
      %v386 = vld [vmem:[%s44 + $0x550] sm:$0xff]
      %387 = vst [vmem:[%s45 + $0x550] sm:$0xff] %v386
      %v388 = vld [vmem:[%s44 + $0x558] sm:$0xff]
      %389 = vst [vmem:[%s45 + $0x558] sm:$0xff] %v388
      %v390 = vld [vmem:[%s44 + $0x560] sm:$0xff]
      %391 = vst [vmem:[%s45 + $0x560] sm:$0xff] %v390
      %v392 = vld [vmem:[%s44 + $0x568] sm:$0xff]
      %393 = vst [vmem:[%s45 + $0x568] sm:$0xff] %v392
      %v394 = vld [vmem:[%s44 + $0x570] sm:$0xff]
      %395 = vst [vmem:[%s45 + $0x570] sm:$0xff] %v394
      %v396 = vld [vmem:[%s44 + $0x578] sm:$0xff]
      %397 = vst [vmem:[%s45 + $0x578] sm:$0xff] %v396
      %v398 = vld [vmem:[%s44 + $0x580] sm:$0xff]
      %399 = vst [vmem:[%s45 + $0x580] sm:$0xff] %v398
      %v400 = vld [vmem:[%s44 + $0x588] sm:$0xff]
      %401 = vst [vmem:[%s45 + $0x588] sm:$0xff] %v400
      %v402 = vld [vmem:[%s44 + $0x590] sm:$0xff]
      %403 = vst [vmem:[%s45 + $0x590] sm:$0xff] %v402
      %v404 = vld [vmem:[%s44 + $0x598] sm:$0xff]
      %405 = vst [vmem:[%s45 + $0x598] sm:$0xff] %v404
      %v406 = vld [vmem:[%s44 + $0x5a0] sm:$0xff]
      %407 = vst [vmem:[%s45 + $0x5a0] sm:$0xff] %v406
      %v408 = vld [vmem:[%s44 + $0x5a8] sm:$0xff]
      %409 = vst [vmem:[%s45 + $0x5a8] sm:$0xff] %v408
      %v410 = vld [vmem:[%s44 + $0x5b0] sm:$0xff]
      %411 = vst [vmem:[%s45 + $0x5b0] sm:$0xff] %v410
      %v412 = vld [vmem:[%s44 + $0x5b8] sm:$0xff]
      %413 = vst [vmem:[%s45 + $0x5b8] sm:$0xff] %v412
      %v414 = vld [vmem:[%s44 + $0x5c0] sm:$0xff]
      %415 = vst [vmem:[%s45 + $0x5c0] sm:$0xff] %v414
      %v416 = vld [vmem:[%s44 + $0x5c8] sm:$0xff]
      %417 = vst [vmem:[%s45 + $0x5c8] sm:$0xff] %v416
      %v418 = vld [vmem:[%s44 + $0x5d0] sm:$0xff]
      %419 = vst [vmem:[%s45 + $0x5d0] sm:$0xff] %v418
      %v420 = vld [vmem:[%s44 + $0x5d8] sm:$0xff]
      %421 = vst [vmem:[%s45 + $0x5d8] sm:$0xff] %v420
      %v422 = vld [vmem:[%s44 + $0x5e0] sm:$0xff]
      %423 = vst [vmem:[%s45 + $0x5e0] sm:$0xff] %v422
      %v424 = vld [vmem:[%s44 + $0x5e8] sm:$0xff]
      %425 = vst [vmem:[%s45 + $0x5e8] sm:$0xff] %v424
      %v426 = vld [vmem:[%s44 + $0x5f0] sm:$0xff]
      %427 = vst [vmem:[%s45 + $0x5f0] sm:$0xff] %v426
      %v428 = vld [vmem:[%s44 + $0x5f8] sm:$0xff]
      %429 = vst [vmem:[%s45 + $0x5f8] sm:$0xff] %v428
      %v430 = vld [vmem:[%s44 + $0x600] sm:$0xff]
      %431 = vst [vmem:[%s45 + $0x600] sm:$0xff] %v430
      %v432 = vld [vmem:[%s44 + $0x608] sm:$0xff]
      %433 = vst [vmem:[%s45 + $0x608] sm:$0xff] %v432
      %v434 = vld [vmem:[%s44 + $0x610] sm:$0xff]
      %435 = vst [vmem:[%s45 + $0x610] sm:$0xff] %v434
      %v436 = vld [vmem:[%s44 + $0x618] sm:$0xff]
      %437 = vst [vmem:[%s45 + $0x618] sm:$0xff] %v436
      %v438 = vld [vmem:[%s44 + $0x620] sm:$0xff]
      %439 = vst [vmem:[%s45 + $0x620] sm:$0xff] %v438
      %v440 = vld [vmem:[%s44 + $0x628] sm:$0xff]
      %441 = vst [vmem:[%s45 + $0x628] sm:$0xff] %v440
      %v442 = vld [vmem:[%s44 + $0x630] sm:$0xff]
      %443 = vst [vmem:[%s45 + $0x630] sm:$0xff] %v442
      %v444 = vld [vmem:[%s44 + $0x638] sm:$0xff]
      %445 = vst [vmem:[%s45 + $0x638] sm:$0xff] %v444
      %v446 = vld [vmem:[%s44 + $0x640] sm:$0xff]
      %447 = vst [vmem:[%s45 + $0x640] sm:$0xff] %v446
      %v448 = vld [vmem:[%s44 + $0x648] sm:$0xff]
      %449 = vst [vmem:[%s45 + $0x648] sm:$0xff] %v448
      %v450 = vld [vmem:[%s44 + $0x650] sm:$0xff]
      %451 = vst [vmem:[%s45 + $0x650] sm:$0xff] %v450
      %v452 = vld [vmem:[%s44 + $0x658] sm:$0xff]
      %453 = vst [vmem:[%s45 + $0x658] sm:$0xff] %v452
      %v454 = vld [vmem:[%s44 + $0x660] sm:$0xff]
      %455 = vst [vmem:[%s45 + $0x660] sm:$0xff] %v454
      %v456 = vld [vmem:[%s44 + $0x668] sm:$0xff]
      %457 = vst [vmem:[%s45 + $0x668] sm:$0xff] %v456
      %v458 = vld [vmem:[%s44 + $0x670] sm:$0xff]
      %459 = vst [vmem:[%s45 + $0x670] sm:$0xff] %v458
      %v460 = vld [vmem:[%s44 + $0x678] sm:$0xff]
      %461 = vst [vmem:[%s45 + $0x678] sm:$0xff] %v460
      %v462 = vld [vmem:[%s44 + $0x680] sm:$0xff]
      %463 = vst [vmem:[%s45 + $0x680] sm:$0xff] %v462
      %v464 = vld [vmem:[%s44 + $0x688] sm:$0xff]
      %465 = vst [vmem:[%s45 + $0x688] sm:$0xff] %v464
      %v466 = vld [vmem:[%s44 + $0x690] sm:$0xff]
      %467 = vst [vmem:[%s45 + $0x690] sm:$0xff] %v466
      %v468 = vld [vmem:[%s44 + $0x698] sm:$0xff]
      %469 = vst [vmem:[%s45 + $0x698] sm:$0xff] %v468
      %v470 = vld [vmem:[%s44 + $0x6a0] sm:$0xff]
      %471 = vst [vmem:[%s45 + $0x6a0] sm:$0xff] %v470
      %v472 = vld [vmem:[%s44 + $0x6a8] sm:$0xff]
      %473 = vst [vmem:[%s45 + $0x6a8] sm:$0xff] %v472
      %v474 = vld [vmem:[%s44 + $0x6b0] sm:$0xff]
      %475 = vst [vmem:[%s45 + $0x6b0] sm:$0xff] %v474
      %v476 = vld [vmem:[%s44 + $0x6b8] sm:$0xff]
      %477 = vst [vmem:[%s45 + $0x6b8] sm:$0xff] %v476
      %v478 = vld [vmem:[%s44 + $0x6c0] sm:$0xff]
      %479 = vst [vmem:[%s45 + $0x6c0] sm:$0xff] %v478
      %v480 = vld [vmem:[%s44 + $0x6c8] sm:$0xff]
      %481 = vst [vmem:[%s45 + $0x6c8] sm:$0xff] %v480
      %v482 = vld [vmem:[%s44 + $0x6d0] sm:$0xff]
      %483 = vst [vmem:[%s45 + $0x6d0] sm:$0xff] %v482
      %v484 = vld [vmem:[%s44 + $0x6d8] sm:$0xff]
      %485 = vst [vmem:[%s45 + $0x6d8] sm:$0xff] %v484
      %v486 = vld [vmem:[%s44 + $0x6e0] sm:$0xff]
      %487 = vst [vmem:[%s45 + $0x6e0] sm:$0xff] %v486
      %v488 = vld [vmem:[%s44 + $0x6e8] sm:$0xff]
      %489 = vst [vmem:[%s45 + $0x6e8] sm:$0xff] %v488
      %v490 = vld [vmem:[%s44 + $0x6f0] sm:$0xff]
      %491 = vst [vmem:[%s45 + $0x6f0] sm:$0xff] %v490
      %v492 = vld [vmem:[%s44 + $0x6f8] sm:$0xff]
      %493 = vst [vmem:[%s45 + $0x6f8] sm:$0xff] %v492
      %v494 = vld [vmem:[%s44 + $0x700] sm:$0xff]
      %495 = vst [vmem:[%s45 + $0x700] sm:$0xff] %v494
      %v496 = vld [vmem:[%s44 + $0x708] sm:$0xff]
      %497 = vst [vmem:[%s45 + $0x708] sm:$0xff] %v496
      %v498 = vld [vmem:[%s44 + $0x710] sm:$0xff]
      %499 = vst [vmem:[%s45 + $0x710] sm:$0xff] %v498
      %v500 = vld [vmem:[%s44 + $0x718] sm:$0xff]
      %501 = vst [vmem:[%s45 + $0x718] sm:$0xff] %v500
      %v502 = vld [vmem:[%s44 + $0x720] sm:$0xff]
      %503 = vst [vmem:[%s45 + $0x720] sm:$0xff] %v502
      %v504 = vld [vmem:[%s44 + $0x728] sm:$0xff]
      %505 = vst [vmem:[%s45 + $0x728] sm:$0xff] %v504
      %v506 = vld [vmem:[%s44 + $0x730] sm:$0xff]
      %507 = vst [vmem:[%s45 + $0x730] sm:$0xff] %v506
      %v508 = vld [vmem:[%s44 + $0x738] sm:$0xff]
      %509 = vst [vmem:[%s45 + $0x738] sm:$0xff] %v508
      %v510 = vld [vmem:[%s44 + $0x740] sm:$0xff]
      %511 = vst [vmem:[%s45 + $0x740] sm:$0xff] %v510
      %v512 = vld [vmem:[%s44 + $0x748] sm:$0xff]
      %513 = vst [vmem:[%s45 + $0x748] sm:$0xff] %v512
      %v514 = vld [vmem:[%s44 + $0x750] sm:$0xff]
      %515 = vst [vmem:[%s45 + $0x750] sm:$0xff] %v514
      %v516 = vld [vmem:[%s44 + $0x758] sm:$0xff]
      %517 = vst [vmem:[%s45 + $0x758] sm:$0xff] %v516
      %v518 = vld [vmem:[%s44 + $0x760] sm:$0xff]
      %519 = vst [vmem:[%s45 + $0x760] sm:$0xff] %v518
      %v520 = vld [vmem:[%s44 + $0x768] sm:$0xff]
      %521 = vst [vmem:[%s45 + $0x768] sm:$0xff] %v520
      %v522 = vld [vmem:[%s44 + $0x770] sm:$0xff]
      %523 = vst [vmem:[%s45 + $0x770] sm:$0xff] %v522
      %v524 = vld [vmem:[%s44 + $0x778] sm:$0xff]
      %525 = vst [vmem:[%s45 + $0x778] sm:$0xff] %v524
      %v526 = vld [vmem:[%s44 + $0x780] sm:$0xff]
      %527 = vst [vmem:[%s45 + $0x780] sm:$0xff] %v526
      %v528 = vld [vmem:[%s44 + $0x788] sm:$0xff]
      %529 = vst [vmem:[%s45 + $0x788] sm:$0xff] %v528
      %v530 = vld [vmem:[%s44 + $0x790] sm:$0xff]
      %531 = vst [vmem:[%s45 + $0x790] sm:$0xff] %v530
      %v532 = vld [vmem:[%s44 + $0x798] sm:$0xff]
      %533 = vst [vmem:[%s45 + $0x798] sm:$0xff] %v532
      %v534 = vld [vmem:[%s44 + $0x7a0] sm:$0xff]
      %535 = vst [vmem:[%s45 + $0x7a0] sm:$0xff] %v534
      %v536 = vld [vmem:[%s44 + $0x7a8] sm:$0xff]
      %537 = vst [vmem:[%s45 + $0x7a8] sm:$0xff] %v536
      %v538 = vld [vmem:[%s44 + $0x7b0] sm:$0xff]
      %539 = vst [vmem:[%s45 + $0x7b0] sm:$0xff] %v538
      %v540 = vld [vmem:[%s44 + $0x7b8] sm:$0xff]
      %541 = vst [vmem:[%s45 + $0x7b8] sm:$0xff] %v540
      %v542 = vld [vmem:[%s44 + $0x7c0] sm:$0xff]
      %543 = vst [vmem:[%s45 + $0x7c0] sm:$0xff] %v542
      %v544 = vld [vmem:[%s44 + $0x7c8] sm:$0xff]
      %545 = vst [vmem:[%s45 + $0x7c8] sm:$0xff] %v544
      %v546 = vld [vmem:[%s44 + $0x7d0] sm:$0xff]
      %547 = vst [vmem:[%s45 + $0x7d0] sm:$0xff] %v546
      %v548 = vld [vmem:[%s44 + $0x7d8] sm:$0xff]
      %549 = vst [vmem:[%s45 + $0x7d8] sm:$0xff] %v548
      %v550 = vld [vmem:[%s44 + $0x7e0] sm:$0xff]
      %551 = vst [vmem:[%s45 + $0x7e0] sm:$0xff] %v550
      %v552 = vld [vmem:[%s44 + $0x7e8] sm:$0xff]
      %553 = vst [vmem:[%s45 + $0x7e8] sm:$0xff] %v552
      %v554 = vld [vmem:[%s44 + $0x7f0] sm:$0xff]
      %555 = vst [vmem:[%s45 + $0x7f0] sm:$0xff] %v554
      %v556 = vld [vmem:[%s44 + $0x7f8] sm:$0xff]
      %557 = vst [vmem:[%s45 + $0x7f8] sm:$0xff] %v556
      %v558 = vld [vmem:[%s44 + $0x800] sm:$0xff]
      %559 = vst [vmem:[%s45 + $0x800] sm:$0xff] %v558
      %v560 = vld [vmem:[%s44 + $0x808] sm:$0xff]
      %561 = vst [vmem:[%s45 + $0x808] sm:$0xff] %v560
      %v562 = vld [vmem:[%s44 + $0x810] sm:$0xff]
      %563 = vst [vmem:[%s45 + $0x810] sm:$0xff] %v562
      %v564 = vld [vmem:[%s44 + $0x818] sm:$0xff]
      %565 = vst [vmem:[%s45 + $0x818] sm:$0xff] %v564
      %v566 = vld [vmem:[%s44 + $0x820] sm:$0xff]
      %567 = vst [vmem:[%s45 + $0x820] sm:$0xff] %v566
      %v568 = vld [vmem:[%s44 + $0x828] sm:$0xff]
      %569 = vst [vmem:[%s45 + $0x828] sm:$0xff] %v568
      %v570 = vld [vmem:[%s44 + $0x830] sm:$0xff]
      %571 = vst [vmem:[%s45 + $0x830] sm:$0xff] %v570
      %v572 = vld [vmem:[%s44 + $0x838] sm:$0xff]
      %573 = vst [vmem:[%s45 + $0x838] sm:$0xff] %v572
      %v574 = vld [vmem:[%s44 + $0x840] sm:$0xff]
      %575 = vst [vmem:[%s45 + $0x840] sm:$0xff] %v574
      %v576 = vld [vmem:[%s44 + $0x848] sm:$0xff]
      %577 = vst [vmem:[%s45 + $0x848] sm:$0xff] %v576
      %v578 = vld [vmem:[%s44 + $0x850] sm:$0xff]
      %579 = vst [vmem:[%s45 + $0x850] sm:$0xff] %v578
      %v580 = vld [vmem:[%s44 + $0x858] sm:$0xff]
      %581 = vst [vmem:[%s45 + $0x858] sm:$0xff] %v580
      %v582 = vld [vmem:[%s44 + $0x860] sm:$0xff]
      %583 = vst [vmem:[%s45 + $0x860] sm:$0xff] %v582
      %v584 = vld [vmem:[%s44 + $0x868] sm:$0xff]
      %585 = vst [vmem:[%s45 + $0x868] sm:$0xff] %v584
      %v586 = vld [vmem:[%s44 + $0x870] sm:$0xff]
      %587 = vst [vmem:[%s45 + $0x870] sm:$0xff] %v586
      %v588 = vld [vmem:[%s44 + $0x878] sm:$0xff]
      %589 = vst [vmem:[%s45 + $0x878] sm:$0xff] %v588
      %v590 = vld [vmem:[%s44 + $0x880] sm:$0xff]
      %591 = vst [vmem:[%s45 + $0x880] sm:$0xff] %v590
      %v592 = vld [vmem:[%s44 + $0x888] sm:$0xff]
      %593 = vst [vmem:[%s45 + $0x888] sm:$0xff] %v592
      %v594 = vld [vmem:[%s44 + $0x890] sm:$0xff]
      %595 = vst [vmem:[%s45 + $0x890] sm:$0xff] %v594
      %v596 = vld [vmem:[%s44 + $0x898] sm:$0xff]
      %597 = vst [vmem:[%s45 + $0x898] sm:$0xff] %v596
      %v598 = vld [vmem:[%s44 + $0x8a0] sm:$0xff]
      %599 = vst [vmem:[%s45 + $0x8a0] sm:$0xff] %v598
      %v600 = vld [vmem:[%s44 + $0x8a8] sm:$0xff]
      %601 = vst [vmem:[%s45 + $0x8a8] sm:$0xff] %v600
      %v602 = vld [vmem:[%s44 + $0x8b0] sm:$0xff]
      %603 = vst [vmem:[%s45 + $0x8b0] sm:$0xff] %v602
      %v604 = vld [vmem:[%s44 + $0x8b8] sm:$0xff]
      %605 = vst [vmem:[%s45 + $0x8b8] sm:$0xff] %v604
      %v606 = vld [vmem:[%s44 + $0x8c0] sm:$0xff]
      %607 = vst [vmem:[%s45 + $0x8c0] sm:$0xff] %v606
      %v608 = vld [vmem:[%s44 + $0x8c8] sm:$0xff]
      %609 = vst [vmem:[%s45 + $0x8c8] sm:$0xff] %v608
      %v610 = vld [vmem:[%s44 + $0x8d0] sm:$0xff]
      %611 = vst [vmem:[%s45 + $0x8d0] sm:$0xff] %v610
      %v612 = vld [vmem:[%s44 + $0x8d8] sm:$0xff]
      %613 = vst [vmem:[%s45 + $0x8d8] sm:$0xff] %v612
      %v614 = vld [vmem:[%s44 + $0x8e0] sm:$0xff]
      %615 = vst [vmem:[%s45 + $0x8e0] sm:$0xff] %v614
      %v616 = vld [vmem:[%s44 + $0x8e8] sm:$0xff]
      %617 = vst [vmem:[%s45 + $0x8e8] sm:$0xff] %v616
      %v618 = vld [vmem:[%s44 + $0x8f0] sm:$0xff]
      %619 = vst [vmem:[%s45 + $0x8f0] sm:$0xff] %v618
      %v620 = vld [vmem:[%s44 + $0x8f8] sm:$0xff]
      %621 = vst [vmem:[%s45 + $0x8f8] sm:$0xff] %v620
    $region50: #{encoder_forward.1} parent=44 // loop_footer
      %s43 = sadd.s32 1, %s39
    $region51: #{encoder_forward.1} parent=44 // loop_footer_branch
      %38 = sbr.rel target = $region47
    $region52: #{encoder_forward.1} parent=44 // loop_exit
      _
  $region45: #{encoder_forward.1} parent=0 // pred_fallthru
    _
  // Predicated region
  $region53: #{encoder_forward.1} parent=0 // pred_check
    _
  $region54: #{encoder_forward.1} parent=0 // pred_check_branch
    %623 = sbr.rel target = $region56
  $region55: #{encoder_forward.1} parent=0 // pred_region
    _
  $region56: #{encoder_forward.1} parent=0 // pred_fallthru
    _
  // Predicated region
  $region57: #{encoder_forward.1} parent=0 // pred_check
    _
  $region58: #{encoder_forward.1} parent=0 // pred_check_branch
    %626 = sbr.rel (0) target = $region60
  $region59: #{encoder_forward.1} parent=0 // pred_region
    %627 = vsyncadd [#allocation7], 36864
  $region60: #{encoder_forward.1} parent=0 // pred_fallthru
    _
  %v628 = vld [vmem:[%s0] sm:$0xff]
  %v629 = vld [vmem:[%s0 + $0x8] sm:$0xff]
  %v630 = vld [vmem:[%s0 + $0x10] sm:$0xff]
  %v631 = vld [vmem:[%s0 + $0x18] sm:$0xff]
  %v632 = vld [vmem:[%s0 + $0x20] sm:$0xff]
  %v633 = vld [vmem:[%s0 + $0x28] sm:$0xff]
  %v634 = vld [vmem:[%s0 + $0x30] sm:$0xff]
  %v635 = vld [vmem:[%s0 + $0x38] sm:$0xff]
  %v636 = vld [vmem:[%s0 + $0x40] sm:$0xff]
  %v637 = vld [vmem:[%s0 + $0x48] sm:$0xff]
  %v638 = vld [vmem:[%s0 + $0x50] sm:$0xff]
  %v639 = vld [vmem:[%s0 + $0x58] sm:$0xff]
  %v640 = vld [vmem:[%s0 + $0x60] sm:$0xff]
  %v641 = vld [vmem:[%s0 + $0x68] sm:$0xff]
  %v642 = vld [vmem:[%s0 + $0x70] sm:$0xff]
  %v643 = vld [vmem:[%s0 + $0x78] sm:$0xff]
  %v644 = vld [vmem:[%s0 + $0x80] sm:$0xff]
  %v645 = vld [vmem:[%s0 + $0x88] sm:$0xff]
  %v646 = vld [vmem:[%s0 + $0x90] sm:$0xff]
  %v647 = vld [vmem:[%s0 + $0x98] sm:$0xff]
  %v648 = vld [vmem:[%s0 + $0xa0] sm:$0xff]
  %v649 = vld [vmem:[%s0 + $0xa8] sm:$0xff]
  %v650 = vld [vmem:[%s0 + $0xb0] sm:$0xff]
  %v651 = vld [vmem:[%s0 + $0xb8] sm:$0xff]
  %v652 = vld [vmem:[%s0 + $0xc0] sm:$0xff]
  %v653 = vld [vmem:[%s0 + $0xc8] sm:$0xff]
  %v654 = vld [vmem:[%s0 + $0xd0] sm:$0xff]
  %v655 = vld [vmem:[%s0 + $0xd8] sm:$0xff]
  %v656 = vld [vmem:[%s0 + $0xe0] sm:$0xff]
  %v657 = vld [vmem:[%s0 + $0xe8] sm:$0xff]
  %v658 = vld [vmem:[%s0 + $0xf0] sm:$0xff]
  %v659 = vld [vmem:[%s0 + $0xf8] sm:$0xff]
  %v660 = vld [vmem:[%s0 + $0x100] sm:$0xff]
  %v661 = vld [vmem:[%s0 + $0x108] sm:$0xff]
  %v662 = vld [vmem:[%s0 + $0x110] sm:$0xff]
  %v663 = vld [vmem:[%s0 + $0x118] sm:$0xff]
  %v664 = vld [vmem:[%s1] sm:$0xf]
  %v665 = vld [vmem:[%s1 + $0x4] sm:$0xf]
  %v666 = vld [vmem:[%s1 + $0x8] sm:$0xf]
  %v667 = vld [vmem:[%s1 + $0xc] sm:$0xf]
  %v668 = vld [vmem:[%s1 + $0x10] sm:$0xf]
  %v669 = vld [vmem:[%s1 + $0x14] sm:$0xf]
  %v670 = vld [vmem:[%s1 + $0x18] sm:$0xf]
  %v671 = vld [vmem:[%s1 + $0x1c] sm:$0xf]
  %v672 = vld [vmem:[%s1 + $0x20] sm:$0xf]
  %v673 = vld [vmem:[%s1 + $0x24] sm:$0xf]
  %v674 = vld [vmem:[%s1 + $0x28] sm:$0xf]
  %v675 = vld [vmem:[%s1 + $0x2c] sm:$0xf]
  %v676 = vld [vmem:[%s1 + $0x30] sm:$0xf]
  %v677 = vld [vmem:[%s1 + $0x34] sm:$0xf]
  %v678 = vld [vmem:[%s1 + $0x38] sm:$0xf]
  %v679 = vld [vmem:[%s1 + $0x3c] sm:$0xf]
  %v680 = vld [vmem:[%s1 + $0x40] sm:$0xf]
  %v681 = vld [vmem:[%s1 + $0x44] sm:$0xf]
  %v682 = vld [vmem:[%s1 + $0x48] sm:$0xf]
  %v683 = vld [vmem:[%s1 + $0x4c] sm:$0xf]
  %v684 = vld [vmem:[%s1 + $0x50] sm:$0xf]
  %v685 = vld [vmem:[%s1 + $0x54] sm:$0xf]
  %v686 = vld [vmem:[%s1 + $0x58] sm:$0xf]
  %v687 = vld [vmem:[%s1 + $0x5c] sm:$0xf]
  %v688 = vld [vmem:[%s1 + $0x60] sm:$0xf]
  %v689 = vld [vmem:[%s1 + $0x64] sm:$0xf]
  %v690 = vld [vmem:[%s1 + $0x68] sm:$0xf]
  %v691 = vld [vmem:[%s1 + $0x6c] sm:$0xf]
  %v692 = vld [vmem:[%s1 + $0x70] sm:$0xf]
  %v693 = vld [vmem:[%s1 + $0x74] sm:$0xf]
  %v694 = vld [vmem:[%s1 + $0x78] sm:$0xf]
  %v695 = vld [vmem:[%s1 + $0x7c] sm:$0xf]
  %v696 = vld [vmem:[%s2] sm:$0x1]
  %v698 = vperm.slane %v696, 0
  %v736 = vunpack.c.l.b16 %v628
  %v737 = vunpack.c.h.b16 %v628
  %v738 = vunpack.c.l.b16 %v629
  %v739 = vunpack.c.h.b16 %v629
  %v740 = vunpack.c.l.b16 %v630
  %v741 = vunpack.c.h.b16 %v630
  %v742 = vunpack.c.l.b16 %v631
  %v743 = vunpack.c.h.b16 %v631
  %v744 = vunpack.c.l.b16 %v632
  %v745 = vunpack.c.h.b16 %v632
  %v746 = vunpack.c.l.b16 %v633
  %v747 = vunpack.c.h.b16 %v633
  %v748 = vunpack.c.l.b16 %v634
  %v749 = vunpack.c.h.b16 %v634
  %v750 = vunpack.c.l.b16 %v635
  %v751 = vunpack.c.h.b16 %v635
  %v752 = vunpack.c.l.b16 %v636
  %v753 = vunpack.c.h.b16 %v636
  %v754 = vunpack.c.l.b16 %v637
  %v755 = vunpack.c.h.b16 %v637
  %v756 = vunpack.c.l.b16 %v638
  %v757 = vunpack.c.h.b16 %v638
  %v758 = vunpack.c.l.b16 %v639
  %v759 = vunpack.c.h.b16 %v639
  %v760 = vunpack.c.l.b16 %v640
  %v761 = vunpack.c.h.b16 %v640
  %v762 = vunpack.c.l.b16 %v641
  %v763 = vunpack.c.h.b16 %v641
  %v764 = vunpack.c.l.b16 %v642
  %v765 = vunpack.c.h.b16 %v642
  %v766 = vunpack.c.l.b16 %v643
  %v767 = vunpack.c.h.b16 %v643
  %v768 = vunpack.c.l.b16 %v644
  %v769 = vunpack.c.h.b16 %v644
  %v770 = vunpack.c.l.b16 %v645
  %v771 = vunpack.c.h.b16 %v645
  %v772 = vunpack.c.l.b16 %v646
  %v773 = vunpack.c.h.b16 %v646
  %v774 = vunpack.c.l.b16 %v647
  %v775 = vunpack.c.h.b16 %v647
  %v776 = vunpack.c.l.b16 %v648
  %v777 = vunpack.c.h.b16 %v648
  %v778 = vunpack.c.l.b16 %v649
  %v779 = vunpack.c.h.b16 %v649
  %v780 = vunpack.c.l.b16 %v650
  %v781 = vunpack.c.h.b16 %v650
  %v782 = vunpack.c.l.b16 %v651
  %v783 = vunpack.c.h.b16 %v651
  %v784 = vunpack.c.l.b16 %v652
  %v785 = vunpack.c.h.b16 %v652
  %v786 = vunpack.c.l.b16 %v653
  %v787 = vunpack.c.h.b16 %v653
  %v788 = vunpack.c.l.b16 %v654
  %v789 = vunpack.c.h.b16 %v654
  %v790 = vunpack.c.l.b16 %v655
  %v791 = vunpack.c.h.b16 %v655
  %v792 = vunpack.c.l.b16 %v656
  %v793 = vunpack.c.h.b16 %v656
  %v794 = vunpack.c.l.b16 %v657
  %v795 = vunpack.c.h.b16 %v657
  %v796 = vunpack.c.l.b16 %v658
  %v797 = vunpack.c.h.b16 %v658
  %v798 = vunpack.c.l.b16 %v659
  %v799 = vunpack.c.h.b16 %v659
  %v800 = vunpack.c.l.b16 %v660
  %v801 = vunpack.c.h.b16 %v660
  %v802 = vunpack.c.l.b16 %v661
  %v803 = vunpack.c.h.b16 %v661
  %v804 = vunpack.c.l.b16 %v662
  %v805 = vunpack.c.h.b16 %v662
  %v806 = vunpack.c.l.b16 %v663
  %v807 = vunpack.c.h.b16 %v663
  %v808 = vpack.c.b16 %v738, %v736
  %v809 = vpack.c.b16 %v739, %v737
  %v810 = vpack.c.b16 %v742, %v740
  %v811 = vpack.c.b16 %v743, %v741
  %v812 = vpack.c.b16 %v746, %v744
  %v813 = vpack.c.b16 %v747, %v745
  %v814 = vpack.c.b16 %v750, %v748
  %v815 = vpack.c.b16 %v751, %v749
  %v816 = vpack.c.b16 %v754, %v752
  %v817 = vpack.c.b16 %v755, %v753
  %v818 = vpack.c.b16 %v758, %v756
  %v819 = vpack.c.b16 %v759, %v757
  %v820 = vpack.c.b16 %v762, %v760
  %v821 = vpack.c.b16 %v763, %v761
  %v822 = vpack.c.b16 %v766, %v764
  %v823 = vpack.c.b16 %v767, %v765
  %v824 = vpack.c.b16 %v770, %v768
  %v825 = vpack.c.b16 %v771, %v769
  %v826 = vpack.c.b16 %v774, %v772
  %v827 = vpack.c.b16 %v775, %v773
  %v828 = vpack.c.b16 %v778, %v776
  %v829 = vpack.c.b16 %v779, %v777
  %v830 = vpack.c.b16 %v782, %v780
  %v831 = vpack.c.b16 %v783, %v781
  %v832 = vpack.c.b16 %v786, %v784
  %v833 = vpack.c.b16 %v787, %v785
  %v834 = vpack.c.b16 %v790, %v788
  %v835 = vpack.c.b16 %v791, %v789
  %v836 = vpack.c.b16 %v794, %v792
  %v837 = vpack.c.b16 %v795, %v793
  %v838 = vpack.c.b16 %v798, %v796
  %v839 = vpack.c.b16 %v799, %v797
  %v840 = vpack.c.b16 %v802, %v800
  %v841 = vpack.c.b16 %v803, %v801
  %v842 = vpack.c.b16 %v806, %v804
  %v843 = vpack.c.b16 %v807, %v805
  %v912 = vunpack.c.l.b16 %v664
  %v913 = vunpack.c.l.b16 %v665
  %v914 = vunpack.c.l.b16 %v666
  %v915 = vunpack.c.l.b16 %v667
  %v916 = vunpack.c.l.b16 %v668
  %v917 = vunpack.c.l.b16 %v669
  %v918 = vunpack.c.l.b16 %v670
  %v919 = vunpack.c.l.b16 %v671
  %v920 = vunpack.c.l.b16 %v672
  %v921 = vunpack.c.l.b16 %v673
  %v922 = vunpack.c.l.b16 %v674
  %v923 = vunpack.c.l.b16 %v675
  %v924 = vunpack.c.l.b16 %v676
  %v925 = vunpack.c.l.b16 %v677
  %v926 = vunpack.c.l.b16 %v678
  %v927 = vunpack.c.l.b16 %v679
  %v928 = vunpack.c.l.b16 %v680
  %v929 = vunpack.c.l.b16 %v681
  %v930 = vunpack.c.l.b16 %v682
  %v931 = vunpack.c.l.b16 %v683
  %v932 = vunpack.c.l.b16 %v684
  %v933 = vunpack.c.l.b16 %v685
  %v934 = vunpack.c.l.b16 %v686
  %v935 = vunpack.c.l.b16 %v687
  %v936 = vunpack.c.l.b16 %v688
  %v937 = vunpack.c.l.b16 %v689
  %v938 = vunpack.c.l.b16 %v690
  %v939 = vunpack.c.l.b16 %v691
  %v940 = vunpack.c.l.b16 %v692
  %v941 = vunpack.c.l.b16 %v693
  %v942 = vunpack.c.l.b16 %v694
  %v943 = vunpack.c.l.b16 %v695
  %v944 = vpack.c.b16 %v913, %v912
  %v945 = vpack.c.b16 %v915, %v914
  %v946 = vpack.c.b16 %v917, %v916
  %v947 = vpack.c.b16 %v919, %v918
  %v948 = vpack.c.b16 %v921, %v920
  %v949 = vpack.c.b16 %v923, %v922
  %v950 = vpack.c.b16 %v925, %v924
  %v951 = vpack.c.b16 %v927, %v926
  %v952 = vpack.c.b16 %v929, %v928
  %v953 = vpack.c.b16 %v931, %v930
  %v954 = vpack.c.b16 %v933, %v932
  %v955 = vpack.c.b16 %v935, %v934
  %v956 = vpack.c.b16 %v937, %v936
  %v957 = vpack.c.b16 %v939, %v938
  %v958 = vpack.c.b16 %v941, %v940
  %v959 = vpack.c.b16 %v943, %v942
  %976 = vmatpush.bf16.msra.mxu0 %v951
  %977 = vmatpush.bf16.msra.mxu0 %v950
  %978 = vmatpush.bf16.msra.mxu0 %v949
  %979 = vmatpush.bf16.msra.mxu0 %v948
  %980 = vmatpush.bf16.msra.mxu0 %v947
  %981 = vmatpush.bf16.msra.mxu0 %v946
  %982 = vmatpush.bf16.msra.mxu0 %v945
  %983 = vmatpush.bf16.msra.mxu0 %v944
  %984 = vmatmul.bf16.gmra.mxu0 %v808
  %v985 = vpop.f32.mrf.mxu0
  %v986 = vadd.f32 %v698, %v985
  %v987 = vpop.f32.mrf.mxu0
  %v988 = vadd.f32 %v698, %v987
  %989 = vmatmul.bf16.gmra.mxu0 %v810
  %v990 = vpop.f32.mrf.mxu0
  %v991 = vadd.f32 %v698, %v990
  %v992 = vpop.f32.mrf.mxu0
  %v993 = vadd.f32 %v698, %v992
  %994 = vmatmul.bf16.gmra.mxu0 %v812
  %v995 = vpop.f32.mrf.mxu0
  %v996 = vadd.f32 %v698, %v995
  %v997 = vpop.f32.mrf.mxu0
  %v998 = vadd.f32 %v698, %v997
  %999 = vmatmul.bf16.gmra.mxu0 %v814
  %v1000 = vpop.f32.mrf.mxu0
  %v1001 = vadd.f32 %v698, %v1000
  %v1002 = vpop.f32.mrf.mxu0
  %v1003 = vadd.f32 %v698, %v1002
  %1004 = vmatmul.bf16.gmra.mxu0 %v816
  %v1005 = vpop.f32.mrf.mxu0
  %v1006 = vadd.f32 %v698, %v1005
  %v1007 = vpop.f32.mrf.mxu0
  %v1008 = vadd.f32 %v698, %v1007
  %1009 = vmatmul.bf16.gmra.mxu0 %v818
  %v1010 = vpop.f32.mrf.mxu0
  %v1011 = vadd.f32 %v698, %v1010
  %v1012 = vpop.f32.mrf.mxu0
  %v1013 = vadd.f32 %v698, %v1012
  %1014 = vmatmul.bf16.gmra.mxu0 %v820
  %v1015 = vpop.f32.mrf.mxu0
  %v1016 = vadd.f32 %v698, %v1015
  %v1017 = vpop.f32.mrf.mxu0
  %v1018 = vadd.f32 %v698, %v1017
  %1019 = vmatmul.bf16.gmra.mxu0 %v822
  %v1020 = vpop.f32.mrf.mxu0
  %v1021 = vadd.f32 %v698, %v1020
  %v1022 = vpop.f32.mrf.mxu0
  %v1023 = vadd.f32 %v698, %v1022
  %1024 = vmatmul.bf16.gmra.mxu0 %v824
  %v1025 = vpop.f32.mrf.mxu0
  %v1026 = vadd.f32 %v698, %v1025
  %v1027 = vpop.f32.mrf.mxu0
  %v1028 = vadd.f32 %v698, %v1027
  %1029 = vmatmul.bf16.gmra.mxu0 %v826
  %v1030 = vpop.f32.mrf.mxu0
  %v1031 = vadd.f32 %v698, %v1030
  %v1032 = vpop.f32.mrf.mxu0
  %v1033 = vadd.f32 %v698, %v1032
  %1034 = vmatmul.bf16.gmra.mxu0 %v828
  %v1035 = vpop.f32.mrf.mxu0
  %v1036 = vadd.f32 %v698, %v1035
  %v1037 = vpop.f32.mrf.mxu0
  %v1038 = vadd.f32 %v698, %v1037
  %1039 = vmatmul.bf16.gmra.mxu0 %v830
  %v1040 = vpop.f32.mrf.mxu0
  %v1041 = vadd.f32 %v698, %v1040
  %v1042 = vpop.f32.mrf.mxu0
  %v1043 = vadd.f32 %v698, %v1042
  %1044 = vmatmul.bf16.gmra.mxu0 %v832
  %v1045 = vpop.f32.mrf.mxu0
  %v1046 = vadd.f32 %v698, %v1045
  %v1047 = vpop.f32.mrf.mxu0
  %v1048 = vadd.f32 %v698, %v1047
  %1049 = vmatmul.bf16.gmra.mxu0 %v834
  %v1050 = vpop.f32.mrf.mxu0
  %v1051 = vadd.f32 %v698, %v1050
  %v1052 = vpop.f32.mrf.mxu0
  %v1053 = vadd.f32 %v698, %v1052
  %1054 = vmatmul.bf16.gmra.mxu0 %v836
  %v1055 = vpop.f32.mrf.mxu0
  %v1056 = vadd.f32 %v698, %v1055
  %v1057 = vpop.f32.mrf.mxu0
  %v1058 = vadd.f32 %v698, %v1057
  %1059 = vmatmul.bf16.gmra.mxu0 %v838
  %v1060 = vpop.f32.mrf.mxu0
  %v1061 = vadd.f32 %v698, %v1060
  %v1062 = vpop.f32.mrf.mxu0
  %v1063 = vadd.f32 %v698, %v1062
  %1064 = vmatmul.bf16.gmra.mxu0 %v840
  %v1065 = vpop.f32.mrf.mxu0
  %v1066 = vadd.f32 %v698, %v1065
  %v1067 = vpop.f32.mrf.mxu0
  %v1068 = vadd.f32 %v698, %v1067
  %1069 = vmatmul.bf16.gmra.mxu0 %v842
  %v1070 = vpop.f32.mrf.mxu0
  %v1071 = vadd.f32 %v698, %v1070
  %v1072 = vpop.f32.mrf.mxu0
  %v1073 = vadd.f32 %v698, %v1072
  %1074 = vdwg.mxu0
  %1075 = vmatpush.bf16.msra.mxu0 %v959
  %1076 = vmatpush.bf16.msra.mxu0 %v958
  %1077 = vmatpush.bf16.msra.mxu0 %v957
  %1078 = vmatpush.bf16.msra.mxu0 %v956
  %1079 = vmatpush.bf16.msra.mxu0 %v955
  %1080 = vmatpush.bf16.msra.mxu0 %v954
  %1081 = vmatpush.bf16.msra.mxu0 %v953
  %1082 = vmatpush.bf16.msra.mxu0 %v952
  %1083 = vmatmul.bf16.gmra.mxu0 %v809
  %v1084 = vpop.f32.mrf.mxu0
  %v1085 = vadd.f32 %v986, %v1084
  %v1086 = vpop.f32.mrf.mxu0
  %v1087 = vadd.f32 %v988, %v1086
  %1088 = vmatmul.bf16.gmra.mxu0 %v811
  %v1089 = vpop.f32.mrf.mxu0
  %v1090 = vadd.f32 %v991, %v1089
  %v1091 = vpop.f32.mrf.mxu0
  %v1092 = vadd.f32 %v993, %v1091
  %1093 = vmatmul.bf16.gmra.mxu0 %v813
  %v1094 = vpop.f32.mrf.mxu0
  %v1095 = vadd.f32 %v996, %v1094
  %v1096 = vpop.f32.mrf.mxu0
  %v1097 = vadd.f32 %v998, %v1096
  %1098 = vmatmul.bf16.gmra.mxu0 %v815
  %v1099 = vpop.f32.mrf.mxu0
  %v1100 = vadd.f32 %v1001, %v1099
  %v1101 = vpop.f32.mrf.mxu0
  %v1102 = vadd.f32 %v1003, %v1101
  %1103 = vmatmul.bf16.gmra.mxu0 %v817
  %v1104 = vpop.f32.mrf.mxu0
  %v1105 = vadd.f32 %v1006, %v1104
  %v1106 = vpop.f32.mrf.mxu0
  %v1107 = vadd.f32 %v1008, %v1106
  %1108 = vmatmul.bf16.gmra.mxu0 %v819
  %v1109 = vpop.f32.mrf.mxu0
  %v1110 = vadd.f32 %v1011, %v1109
  %v1111 = vpop.f32.mrf.mxu0
  %v1112 = vadd.f32 %v1013, %v1111
  %1113 = vmatmul.bf16.gmra.mxu0 %v821
  %v1114 = vpop.f32.mrf.mxu0
  %v1115 = vadd.f32 %v1016, %v1114
  %v1116 = vpop.f32.mrf.mxu0
  %v1117 = vadd.f32 %v1018, %v1116
  %1118 = vmatmul.bf16.gmra.mxu0 %v823
  %v1119 = vpop.f32.mrf.mxu0
  %v1120 = vadd.f32 %v1021, %v1119
  %v1121 = vpop.f32.mrf.mxu0
  %v1122 = vadd.f32 %v1023, %v1121
  %1123 = vmatmul.bf16.gmra.mxu0 %v825
  %v1124 = vpop.f32.mrf.mxu0
  %v1125 = vadd.f32 %v1026, %v1124
  %v1126 = vpop.f32.mrf.mxu0
  %v1127 = vadd.f32 %v1028, %v1126
  %1128 = vmatmul.bf16.gmra.mxu0 %v827
  %v1129 = vpop.f32.mrf.mxu0
  %v1130 = vadd.f32 %v1031, %v1129
  %v1131 = vpop.f32.mrf.mxu0
  %v1132 = vadd.f32 %v1033, %v1131
  %1133 = vmatmul.bf16.gmra.mxu0 %v829
  %v1134 = vpop.f32.mrf.mxu0
  %v1135 = vadd.f32 %v1036, %v1134
  %v1136 = vpop.f32.mrf.mxu0
  %v1137 = vadd.f32 %v1038, %v1136
  %1138 = vmatmul.bf16.gmra.mxu0 %v831
  %v1139 = vpop.f32.mrf.mxu0
  %v1140 = vadd.f32 %v1041, %v1139
  %v1141 = vpop.f32.mrf.mxu0
  %v1142 = vadd.f32 %v1043, %v1141
  %1143 = vmatmul.bf16.gmra.mxu0 %v833
  %v1144 = vpop.f32.mrf.mxu0
  %v1145 = vadd.f32 %v1046, %v1144
  %v1146 = vpop.f32.mrf.mxu0
  %v1147 = vadd.f32 %v1048, %v1146
  %1148 = vmatmul.bf16.gmra.mxu0 %v835
  %v1149 = vpop.f32.mrf.mxu0
  %v1150 = vadd.f32 %v1051, %v1149
  %v1151 = vpop.f32.mrf.mxu0
  %v1152 = vadd.f32 %v1053, %v1151
  %1153 = vmatmul.bf16.gmra.mxu0 %v837
  %v1154 = vpop.f32.mrf.mxu0
  %v1155 = vadd.f32 %v1056, %v1154
  %v1156 = vpop.f32.mrf.mxu0
  %v1157 = vadd.f32 %v1058, %v1156
  %1158 = vmatmul.bf16.gmra.mxu0 %v839
  %v1159 = vpop.f32.mrf.mxu0
  %v1160 = vadd.f32 %v1061, %v1159
  %v1161 = vpop.f32.mrf.mxu0
  %v1162 = vadd.f32 %v1063, %v1161
  %1163 = vmatmul.bf16.gmra.mxu0 %v841
  %v1164 = vpop.f32.mrf.mxu0
  %v1165 = vadd.f32 %v1066, %v1164
  %v1166 = vpop.f32.mrf.mxu0
  %v1167 = vadd.f32 %v1068, %v1166
  %1168 = vmatmul.bf16.gmra.mxu0 %v843
  %v1169 = vpop.f32.mrf.mxu0
  %v1170 = vadd.f32 %v1071, %v1169
  %v1171 = vpop.f32.mrf.mxu0
  %v1172 = vadd.f32 %v1073, %v1171
  %1173 = vdwg.mxu0
  %vm1174 = vcmp.gt.f32.partialorder %v1085, 0.0
  %vm1175 = vcmp.gt.f32.partialorder %v1087, 0.0
  %vm1176 = vcmp.gt.f32.partialorder %v1090, 0.0
  %vm1177 = vcmp.gt.f32.partialorder %v1092, 0.0
  %vm1178 = vcmp.gt.f32.partialorder %v1095, 0.0
  %vm1179 = vcmp.gt.f32.partialorder %v1097, 0.0
  %vm1180 = vcmp.gt.f32.partialorder %v1100, 0.0
  %vm1181 = vcmp.gt.f32.partialorder %v1102, 0.0
  %vm1182 = vcmp.gt.f32.partialorder %v1105, 0.0
  %vm1183 = vcmp.gt.f32.partialorder %v1107, 0.0
  %vm1184 = vcmp.gt.f32.partialorder %v1110, 0.0
  %vm1185 = vcmp.gt.f32.partialorder %v1112, 0.0
  %vm1186 = vcmp.gt.f32.partialorder %v1115, 0.0
  %vm1187 = vcmp.gt.f32.partialorder %v1117, 0.0
  %vm1188 = vcmp.gt.f32.partialorder %v1120, 0.0
  %vm1189 = vcmp.gt.f32.partialorder %v1122, 0.0
  %vm1190 = vcmp.gt.f32.partialorder %v1125, 0.0
  %vm1191 = vcmp.gt.f32.partialorder %v1127, 0.0
  %vm1192 = vcmp.gt.f32.partialorder %v1130, 0.0
  %vm1193 = vcmp.gt.f32.partialorder %v1132, 0.0
  %vm1194 = vcmp.gt.f32.partialorder %v1135, 0.0
  %vm1195 = vcmp.gt.f32.partialorder %v1137, 0.0
  %vm1196 = vcmp.gt.f32.partialorder %v1140, 0.0
  %vm1197 = vcmp.gt.f32.partialorder %v1142, 0.0
  %vm1198 = vcmp.gt.f32.partialorder %v1145, 0.0
  %vm1199 = vcmp.gt.f32.partialorder %v1147, 0.0
  %vm1200 = vcmp.gt.f32.partialorder %v1150, 0.0
  %vm1201 = vcmp.gt.f32.partialorder %v1152, 0.0
  %vm1202 = vcmp.gt.f32.partialorder %v1155, 0.0
  %vm1203 = vcmp.gt.f32.partialorder %v1157, 0.0
  %vm1204 = vcmp.gt.f32.partialorder %v1160, 0.0
  %vm1205 = vcmp.gt.f32.partialorder %v1162, 0.0
  %vm1206 = vcmp.gt.f32.partialorder %v1165, 0.0
  %vm1207 = vcmp.gt.f32.partialorder %v1167, 0.0
  %vm1208 = vcmp.gt.f32.partialorder %v1170, 0.0
  %vm1209 = vcmp.gt.f32.partialorder %v1172, 0.0
  %v1210 = vmin.f32 %v1085, 0.0
  %v1211 = vmin.f32 %v1087, 0.0
  %v1212 = vmin.f32 %v1090, 0.0
  %v1213 = vmin.f32 %v1092, 0.0
  %v1214 = vmin.f32 %v1095, 0.0
  %v1215 = vmin.f32 %v1097, 0.0
  %v1216 = vmin.f32 %v1100, 0.0
  %v1217 = vmin.f32 %v1102, 0.0
  %v1218 = vmin.f32 %v1105, 0.0
  %v1219 = vmin.f32 %v1107, 0.0
  %v1220 = vmin.f32 %v1110, 0.0
  %v1221 = vmin.f32 %v1112, 0.0
  %v1222 = vmin.f32 %v1115, 0.0
  %v1223 = vmin.f32 %v1117, 0.0
  %v1224 = vmin.f32 %v1120, 0.0
  %v1225 = vmin.f32 %v1122, 0.0
  %v1226 = vmin.f32 %v1125, 0.0
  %v1227 = vmin.f32 %v1127, 0.0
  %v1228 = vmin.f32 %v1130, 0.0
  %v1229 = vmin.f32 %v1132, 0.0
  %v1230 = vmin.f32 %v1135, 0.0
  %v1231 = vmin.f32 %v1137, 0.0
  %v1232 = vmin.f32 %v1140, 0.0
  %v1233 = vmin.f32 %v1142, 0.0
  %v1234 = vmin.f32 %v1145, 0.0
  %v1235 = vmin.f32 %v1147, 0.0
  %v1236 = vmin.f32 %v1150, 0.0
  %v1237 = vmin.f32 %v1152, 0.0
  %v1238 = vmin.f32 %v1155, 0.0
  %v1239 = vmin.f32 %v1157, 0.0
  %v1240 = vmin.f32 %v1160, 0.0
  %v1241 = vmin.f32 %v1162, 0.0
  %v1242 = vmin.f32 %v1165, 0.0
  %v1243 = vmin.f32 %v1167, 0.0
  %v1244 = vmin.f32 %v1170, 0.0
  %v1245 = vmin.f32 %v1172, 0.0
  %v1246 = vmul.f32 %v1210, 1.442695
  %v1247 = vpow.pop %v1246
  %v1248 = vmul.f32 %v1211, 1.442695
  %v1249 = vpow.pop %v1248
  %v1250 = vmul.f32 %v1212, 1.442695
  %v1251 = vpow.pop %v1250
  %v1252 = vmul.f32 %v1213, 1.442695
  %v1253 = vpow.pop %v1252
  %v1254 = vmul.f32 %v1214, 1.442695
  %v1255 = vpow.pop %v1254
  %v1256 = vmul.f32 %v1215, 1.442695
  %v1257 = vpow.pop %v1256
  %v1258 = vmul.f32 %v1216, 1.442695
  %v1259 = vpow.pop %v1258
  %v1260 = vmul.f32 %v1217, 1.442695
  %v1261 = vpow.pop %v1260
  %v1262 = vmul.f32 %v1218, 1.442695
  %v1263 = vpow.pop %v1262
  %v1264 = vmul.f32 %v1219, 1.442695
  %v1265 = vpow.pop %v1264
  %v1266 = vmul.f32 %v1220, 1.442695
  %v1267 = vpow.pop %v1266
  %v1268 = vmul.f32 %v1221, 1.442695
  %v1269 = vpow.pop %v1268
  %v1270 = vmul.f32 %v1222, 1.442695
  %v1271 = vpow.pop %v1270
  %v1272 = vmul.f32 %v1223, 1.442695
  %v1273 = vpow.pop %v1272
  %v1274 = vmul.f32 %v1224, 1.442695
  %v1275 = vpow.pop %v1274
  %v1276 = vmul.f32 %v1225, 1.442695
  %v1277 = vpow.pop %v1276
  %v1278 = vmul.f32 %v1226, 1.442695
  %v1279 = vpow.pop %v1278
  %v1280 = vmul.f32 %v1227, 1.442695
  %v1281 = vpow.pop %v1280
  %v1282 = vmul.f32 %v1228, 1.442695
  %v1283 = vpow.pop %v1282
  %v1284 = vmul.f32 %v1229, 1.442695
  %v1285 = vpow.pop %v1284
  %v1286 = vmul.f32 %v1230, 1.442695
  %v1287 = vpow.pop %v1286
  %v1288 = vmul.f32 %v1231, 1.442695
  %v1289 = vpow.pop %v1288
  %v1290 = vmul.f32 %v1232, 1.442695
  %v1291 = vpow.pop %v1290
  %v1292 = vmul.f32 %v1233, 1.442695
  %v1293 = vpow.pop %v1292
  %v1294 = vmul.f32 %v1234, 1.442695
  %v1295 = vpow.pop %v1294
  %v1296 = vmul.f32 %v1235, 1.442695
  %v1297 = vpow.pop %v1296
  %v1298 = vmul.f32 %v1236, 1.442695
  %v1299 = vpow.pop %v1298
  %v1300 = vmul.f32 %v1237, 1.442695
  %v1301 = vpow.pop %v1300
  %v1302 = vmul.f32 %v1238, 1.442695
  %v1303 = vpow.pop %v1302
  %v1304 = vmul.f32 %v1239, 1.442695
  %v1305 = vpow.pop %v1304
  %v1306 = vmul.f32 %v1240, 1.442695
  %v1307 = vpow.pop %v1306
  %v1308 = vmul.f32 %v1241, 1.442695
  %v1309 = vpow.pop %v1308
  %v1310 = vmul.f32 %v1242, 1.442695
  %v1311 = vpow.pop %v1310
  %v1312 = vmul.f32 %v1243, 1.442695
  %v1313 = vpow.pop %v1312
  %v1314 = vmul.f32 %v1244, 1.442695
  %v1315 = vpow.pop %v1314
  %v1316 = vmul.f32 %v1245, 1.442695
  %v1317 = vpow.pop %v1316
  %v1318 = vsub.f32 %v1247, 1.0
  %v1319 = vsub.f32 %v1249, 1.0
  %v1320 = vsub.f32 %v1251, 1.0
  %v1321 = vsub.f32 %v1253, 1.0
  %v1322 = vsub.f32 %v1255, 1.0
  %v1323 = vsub.f32 %v1257, 1.0
  %v1324 = vsub.f32 %v1259, 1.0
  %v1325 = vsub.f32 %v1261, 1.0
  %v1326 = vsub.f32 %v1263, 1.0
  %v1327 = vsub.f32 %v1265, 1.0
  %v1328 = vsub.f32 %v1267, 1.0
  %v1329 = vsub.f32 %v1269, 1.0
  %v1330 = vsub.f32 %v1271, 1.0
  %v1331 = vsub.f32 %v1273, 1.0
  %v1332 = vsub.f32 %v1275, 1.0
  %v1333 = vsub.f32 %v1277, 1.0
  %v1334 = vsub.f32 %v1279, 1.0
  %v1335 = vsub.f32 %v1281, 1.0
  %v1336 = vsub.f32 %v1283, 1.0
  %v1337 = vsub.f32 %v1285, 1.0
  %v1338 = vsub.f32 %v1287, 1.0
  %v1339 = vsub.f32 %v1289, 1.0
  %v1340 = vsub.f32 %v1291, 1.0
  %v1341 = vsub.f32 %v1293, 1.0
  %v1342 = vsub.f32 %v1295, 1.0
  %v1343 = vsub.f32 %v1297, 1.0
  %v1344 = vsub.f32 %v1299, 1.0
  %v1345 = vsub.f32 %v1301, 1.0
  %v1346 = vsub.f32 %v1303, 1.0
  %v1347 = vsub.f32 %v1305, 1.0
  %v1348 = vsub.f32 %v1307, 1.0
  %v1349 = vsub.f32 %v1309, 1.0
  %v1350 = vsub.f32 %v1311, 1.0
  %v1351 = vsub.f32 %v1313, 1.0
  %v1352 = vsub.f32 %v1315, 1.0
  %v1353 = vsub.f32 %v1317, 1.0
  %v1354 = vsel %vm1174, %v1085, %v1318
  %v1355 = vsel %vm1175, %v1087, %v1319
  %v1356 = vsel %vm1176, %v1090, %v1320
  %v1357 = vsel %vm1177, %v1092, %v1321
  %v1358 = vsel %vm1178, %v1095, %v1322
  %v1359 = vsel %vm1179, %v1097, %v1323
  %v1360 = vsel %vm1180, %v1100, %v1324
  %v1361 = vsel %vm1181, %v1102, %v1325
  %v1362 = vsel %vm1182, %v1105, %v1326
  %v1363 = vsel %vm1183, %v1107, %v1327
  %v1364 = vsel %vm1184, %v1110, %v1328
  %v1365 = vsel %vm1185, %v1112, %v1329
  %v1366 = vsel %vm1186, %v1115, %v1330
  %v1367 = vsel %vm1187, %v1117, %v1331
  %v1368 = vsel %vm1188, %v1120, %v1332
  %v1369 = vsel %vm1189, %v1122, %v1333
  %v1370 = vsel %vm1190, %v1125, %v1334
  %v1371 = vsel %vm1191, %v1127, %v1335
  %v1372 = vsel %vm1192, %v1130, %v1336
  %v1373 = vsel %vm1193, %v1132, %v1337
  %v1374 = vsel %vm1194, %v1135, %v1338
  %v1375 = vsel %vm1195, %v1137, %v1339
  %v1376 = vsel %vm1196, %v1140, %v1340
  %v1377 = vsel %vm1197, %v1142, %v1341
  %v1378 = vsel %vm1198, %v1145, %v1342
  %v1379 = vsel %vm1199, %v1147, %v1343
  %v1380 = vsel %vm1200, %v1150, %v1344
  %v1381 = vsel %vm1201, %v1152, %v1345
  %v1382 = vsel %vm1202, %v1155, %v1346
  %v1383 = vsel %vm1203, %v1157, %v1347
  %v1384 = vsel %vm1204, %v1160, %v1348
  %v1385 = vsel %vm1205, %v1162, %v1349
  %v1386 = vsel %vm1206, %v1165, %v1350
  %v1387 = vsel %vm1207, %v1167, %v1351
  %v1388 = vsel %vm1208, %v1170, %v1352
  %v1389 = vsel %vm1209, %v1172, %v1353
  %1390 = vst [vmem:[#allocation2] sm:$0xff] %v1354
  %1391 = vst [vmem:[#allocation2 + $0x8] sm:$0xff] %v1355
  %1392 = vst [vmem:[#allocation2 + $0x10] sm:$0xff] %v1356
  %1393 = vst [vmem:[#allocation2 + $0x18] sm:$0xff] %v1357
  %1394 = vst [vmem:[#allocation2 + $0x20] sm:$0xff] %v1358
  %1395 = vst [vmem:[#allocation2 + $0x28] sm:$0xff] %v1359
  %1396 = vst [vmem:[#allocation2 + $0x30] sm:$0xff] %v1360
  %1397 = vst [vmem:[#allocation2 + $0x38] sm:$0xff] %v1361
  %1398 = vst [vmem:[#allocation2 + $0x40] sm:$0xff] %v1362
  %1399 = vst [vmem:[#allocation2 + $0x48] sm:$0xff] 0.0
  %s1400 = scalar_lea.vmem [#allocation2], 80
  %1401 = vst [vmem:[%s1400] sm:$0xff] %v1363
  %1402 = vst [vmem:[%s1400 + $0x8] sm:$0xff] %v1364
  %1403 = vst [vmem:[%s1400 + $0x10] sm:$0xff] %v1365
  %1404 = vst [vmem:[%s1400 + $0x18] sm:$0xff] %v1366
  %1405 = vst [vmem:[%s1400 + $0x20] sm:$0xff] %v1367
  %1406 = vst [vmem:[%s1400 + $0x28] sm:$0xff] %v1368
  %1407 = vst [vmem:[%s1400 + $0x30] sm:$0xff] %v1369
  %1408 = vst [vmem:[%s1400 + $0x38] sm:$0xff] %v1370
  %1409 = vst [vmem:[%s1400 + $0x40] sm:$0xff] %v1371
  %1410 = vst [vmem:[%s1400 + $0x48] sm:$0xff] 0.0
  %s1411 = scalar_lea.vmem [#allocation2], 160
  %1412 = vst [vmem:[%s1411] sm:$0xff] %v1372
  %1413 = vst [vmem:[%s1411 + $0x8] sm:$0xff] %v1373
  %1414 = vst [vmem:[%s1411 + $0x10] sm:$0xff] %v1374
  %1415 = vst [vmem:[%s1411 + $0x18] sm:$0xff] %v1375
  %1416 = vst [vmem:[%s1411 + $0x20] sm:$0xff] %v1376
  %1417 = vst [vmem:[%s1411 + $0x28] sm:$0xff] %v1377
  %1418 = vst [vmem:[%s1411 + $0x30] sm:$0xff] %v1378
  %1419 = vst [vmem:[%s1411 + $0x38] sm:$0xff] %v1379
  %1420 = vst [vmem:[%s1411 + $0x40] sm:$0xff] %v1380
  %1421 = vst [vmem:[%s1411 + $0x48] sm:$0xff] 0.0
  %s1422 = scalar_lea.vmem [#allocation2], 240
  %1423 = vst [vmem:[%s1422] sm:$0xff] %v1381
  %1424 = vst [vmem:[%s1422 + $0x8] sm:$0xff] %v1382
  %1425 = vst [vmem:[%s1422 + $0x10] sm:$0xff] %v1383
  %1426 = vst [vmem:[%s1422 + $0x18] sm:$0xff] %v1384
  %1427 = vst [vmem:[%s1422 + $0x20] sm:$0xff] %v1385
  %1428 = vst [vmem:[%s1422 + $0x28] sm:$0xff] %v1386
  %1429 = vst [vmem:[%s1422 + $0x30] sm:$0xff] %v1387
  %1430 = vst [vmem:[%s1422 + $0x38] sm:$0xff] %v1388
  %1431 = vst [vmem:[%s1422 + $0x40] sm:$0xff] %v1389
  %1432 = vst [vmem:[%s1422 + $0x48] sm:$0xff] 0.0
  %v1433 = vld [vmem:[#allocation2] sm:$0xff]
  %v1434 = vld [vmem:[#allocation2 + $0x8] sm:$0xff]
  %v1435 = vld [vmem:[#allocation2 + $0x10] sm:$0xff]
  %v1436 = vld [vmem:[#allocation2 + $0x18] sm:$0xff]
  %v1437 = vld [vmem:[#allocation2 + $0x20] sm:$0xff]
  %v1438 = vld [vmem:[#allocation2 + $0x28] sm:$0xff]
  %v1439 = vld [vmem:[#allocation2 + $0x30] sm:$0xff]
  %v1440 = vld [vmem:[#allocation2 + $0x38] sm:$0xff]
  %v1441 = vld [vmem:[#allocation2 + $0x40] sm:$0xff]
  %v1442 = vpack.c.bf16 %v1433, %v1433
  %v1443 = vpack.c.bf16 %v1434, %v1434
  %v1444 = vpack.c.bf16 %v1435, %v1435
  %v1445 = vpack.c.bf16 %v1436, %v1436
  %v1446 = vpack.c.bf16 %v1437, %v1437
  %v1447 = vpack.c.bf16 %v1438, %v1438
  %v1448 = vpack.c.bf16 %v1439, %v1439
  %v1449 = vpack.c.bf16 %v1440, %v1440
  %v1450 = vpack.c.bf16 %v1441, %v1441
  %1451 = vst [vmem:[#allocation4] sm:$0xf] %v1442
  %1452 = vst [vmem:[#allocation4 + $0x40] sm:$0xf] %v1443
  %1453 = vst [vmem:[#allocation4 + $0x80] sm:$0xf] %v1444
  %1454 = vst [vmem:[#allocation4 + $0xc0] sm:$0xf] %v1445
  %1455 = vst [vmem:[#allocation4 + $0x100] sm:$0xf] %v1446
  %1456 = vst [vmem:[#allocation4 + $0x140] sm:$0xf] %v1447
  %1457 = vst [vmem:[#allocation4 + $0x180] sm:$0xf] %v1448
  %1458 = vst [vmem:[#allocation4 + $0x1c0] sm:$0xf] %v1449
  %1459 = vst [vmem:[#allocation4 + $0x200] sm:$0xf] %v1450
  %v1460 = vld [vmem:[#allocation2 + $0x1] sm:$0xff]
  %v1461 = vld [vmem:[#allocation2 + $0x9] sm:$0xff]
  %v1462 = vld [vmem:[#allocation2 + $0x11] sm:$0xff]
  %v1463 = vld [vmem:[#allocation2 + $0x19] sm:$0xff]
  %v1464 = vld [vmem:[#allocation2 + $0x21] sm:$0xff]
  %v1465 = vld [vmem:[#allocation2 + $0x29] sm:$0xff]
  %v1466 = vld [vmem:[#allocation2 + $0x31] sm:$0xff]
  %v1467 = vld [vmem:[#allocation2 + $0x39] sm:$0xff]
  %v1468 = vld [vmem:[#allocation2 + $0x41] sm:$0xff]
  %v1469 = vpack.c.bf16 %v1460, %v1460
  %v1470 = vpack.c.bf16 %v1461, %v1461
  %v1471 = vpack.c.bf16 %v1462, %v1462
  %v1472 = vpack.c.bf16 %v1463, %v1463
  %v1473 = vpack.c.bf16 %v1464, %v1464
  %v1474 = vpack.c.bf16 %v1465, %v1465
  %v1475 = vpack.c.bf16 %v1466, %v1466
  %v1476 = vpack.c.bf16 %v1467, %v1467
  %v1477 = vpack.c.bf16 %v1468, %v1468
  %1478 = vst [vmem:[#allocation4 + $0x4] sm:$0xf] %v1469
  %1479 = vst [vmem:[#allocation4 + $0x44] sm:$0xf] %v1470
  %1480 = vst [vmem:[#allocation4 + $0x84] sm:$0xf] %v1471
  %1481 = vst [vmem:[#allocation4 + $0xc4] sm:$0xf] %v1472
  %1482 = vst [vmem:[#allocation4 + $0x104] sm:$0xf] %v1473
  %1483 = vst [vmem:[#allocation4 + $0x144] sm:$0xf] %v1474
  %1484 = vst [vmem:[#allocation4 + $0x184] sm:$0xf] %v1475
  %1485 = vst [vmem:[#allocation4 + $0x1c4] sm:$0xf] %v1476
  %1486 = vst [vmem:[#allocation4 + $0x204] sm:$0xf] %v1477
  %v1487 = vld [vmem:[#allocation2 + $0x6] sm:$0xff]
  %v1488 = vld [vmem:[#allocation2 + $0xe] sm:$0xff]
  %v1489 = vld [vmem:[#allocation2 + $0x16] sm:$0xff]
  %v1490 = vld [vmem:[#allocation2 + $0x1e] sm:$0xff]
  %v1491 = vld [vmem:[#allocation2 + $0x26] sm:$0xff]
  %v1492 = vld [vmem:[#allocation2 + $0x2e] sm:$0xff]
  %v1493 = vld [vmem:[#allocation2 + $0x36] sm:$0xff]
  %v1494 = vld [vmem:[#allocation2 + $0x3e] sm:$0xff]
  %v1495 = vld [vmem:[#allocation2 + $0x46] sm:$0xff]
  %v1496 = vpack.c.bf16 %v1487, %v1487
  %v1497 = vpack.c.bf16 %v1488, %v1488
  %v1498 = vpack.c.bf16 %v1489, %v1489
  %v1499 = vpack.c.bf16 %v1490, %v1490
  %v1500 = vpack.c.bf16 %v1491, %v1491
  %v1501 = vpack.c.bf16 %v1492, %v1492
  %v1502 = vpack.c.bf16 %v1493, %v1493
  %v1503 = vpack.c.bf16 %v1494, %v1494
  %v1504 = vpack.c.bf16 %v1495, %v1495
  %1505 = vst [vmem:[#allocation4 + $0x8] sm:$0xf] %v1496
  %1506 = vst [vmem:[#allocation4 + $0x48] sm:$0xf] %v1497
  %1507 = vst [vmem:[#allocation4 + $0x88] sm:$0xf] %v1498
  %1508 = vst [vmem:[#allocation4 + $0xc8] sm:$0xf] %v1499
  %1509 = vst [vmem:[#allocation4 + $0x108] sm:$0xf] %v1500
  %1510 = vst [vmem:[#allocation4 + $0x148] sm:$0xf] %v1501
  %1511 = vst [vmem:[#allocation4 + $0x188] sm:$0xf] %v1502
  %1512 = vst [vmem:[#allocation4 + $0x1c8] sm:$0xf] %v1503
  %1513 = vst [vmem:[#allocation4 + $0x208] sm:$0xf] %v1504
  %v1514 = vld [vmem:[#allocation2 + $0x7] sm:$0xff]
  %v1515 = vld [vmem:[#allocation2 + $0xf] sm:$0xff]
  %v1516 = vld [vmem:[#allocation2 + $0x17] sm:$0xff]
  %v1517 = vld [vmem:[#allocation2 + $0x1f] sm:$0xff]
  %v1518 = vld [vmem:[#allocation2 + $0x27] sm:$0xff]
  %v1519 = vld [vmem:[#allocation2 + $0x2f] sm:$0xff]
  %v1520 = vld [vmem:[#allocation2 + $0x37] sm:$0xff]
  %v1521 = vld [vmem:[#allocation2 + $0x3f] sm:$0xff]
  %v1522 = vld [vmem:[#allocation2 + $0x47] sm:$0xff]
  %v1523 = vpack.c.bf16 %v1514, %v1514
  %v1524 = vpack.c.bf16 %v1515, %v1515
  %v1525 = vpack.c.bf16 %v1516, %v1516
  %v1526 = vpack.c.bf16 %v1517, %v1517
  %v1527 = vpack.c.bf16 %v1518, %v1518
  %v1528 = vpack.c.bf16 %v1519, %v1519
  %v1529 = vpack.c.bf16 %v1520, %v1520
  %v1530 = vpack.c.bf16 %v1521, %v1521
  %v1531 = vpack.c.bf16 %v1522, %v1522
  %1532 = vst [vmem:[#allocation4 + $0xc] sm:$0xf] %v1523
  %1533 = vst [vmem:[#allocation4 + $0x4c] sm:$0xf] %v1524
  %1534 = vst [vmem:[#allocation4 + $0x8c] sm:$0xf] %v1525
  %1535 = vst [vmem:[#allocation4 + $0xcc] sm:$0xf] %v1526
  %1536 = vst [vmem:[#allocation4 + $0x10c] sm:$0xf] %v1527
  %1537 = vst [vmem:[#allocation4 + $0x14c] sm:$0xf] %v1528
  %1538 = vst [vmem:[#allocation4 + $0x18c] sm:$0xf] %v1529
  %1539 = vst [vmem:[#allocation4 + $0x1cc] sm:$0xf] %v1530
  %1540 = vst [vmem:[#allocation4 + $0x20c] sm:$0xf] %v1531
  %v1541 = vld [vmem:[%s1400] sm:$0xff]
  %v1542 = vld [vmem:[%s1400 + $0x8] sm:$0xff]
  %v1543 = vld [vmem:[%s1400 + $0x10] sm:$0xff]
  %v1544 = vld [vmem:[%s1400 + $0x18] sm:$0xff]
  %v1545 = vld [vmem:[%s1400 + $0x20] sm:$0xff]
  %v1546 = vld [vmem:[%s1400 + $0x28] sm:$0xff]
  %v1547 = vld [vmem:[%s1400 + $0x30] sm:$0xff]
  %v1548 = vld [vmem:[%s1400 + $0x38] sm:$0xff]
  %v1549 = vld [vmem:[%s1400 + $0x40] sm:$0xff]
  %v1550 = vpack.c.bf16 %v1541, %v1541
  %v1551 = vpack.c.bf16 %v1542, %v1542
  %v1552 = vpack.c.bf16 %v1543, %v1543
  %v1553 = vpack.c.bf16 %v1544, %v1544
  %v1554 = vpack.c.bf16 %v1545, %v1545
  %v1555 = vpack.c.bf16 %v1546, %v1546
  %v1556 = vpack.c.bf16 %v1547, %v1547
  %v1557 = vpack.c.bf16 %v1548, %v1548
  %v1558 = vpack.c.bf16 %v1549, %v1549
  %1559 = vst [vmem:[#allocation4 + $0x10] sm:$0xf] %v1550
  %1560 = vst [vmem:[#allocation4 + $0x50] sm:$0xf] %v1551
  %1561 = vst [vmem:[#allocation4 + $0x90] sm:$0xf] %v1552
  %1562 = vst [vmem:[#allocation4 + $0xd0] sm:$0xf] %v1553
  %1563 = vst [vmem:[#allocation4 + $0x110] sm:$0xf] %v1554
  %1564 = vst [vmem:[#allocation4 + $0x150] sm:$0xf] %v1555
  %1565 = vst [vmem:[#allocation4 + $0x190] sm:$0xf] %v1556
  %1566 = vst [vmem:[#allocation4 + $0x1d0] sm:$0xf] %v1557
  %1567 = vst [vmem:[#allocation4 + $0x210] sm:$0xf] %v1558
  %v1568 = vld [vmem:[%s1400 + $0x1] sm:$0xff]
  %v1569 = vld [vmem:[%s1400 + $0x9] sm:$0xff]
  %v1570 = vld [vmem:[%s1400 + $0x11] sm:$0xff]
  %v1571 = vld [vmem:[%s1400 + $0x19] sm:$0xff]
  %v1572 = vld [vmem:[%s1400 + $0x21] sm:$0xff]
  %v1573 = vld [vmem:[%s1400 + $0x29] sm:$0xff]
  %v1574 = vld [vmem:[%s1400 + $0x31] sm:$0xff]
  %v1575 = vld [vmem:[%s1400 + $0x39] sm:$0xff]
  %v1576 = vld [vmem:[%s1400 + $0x41] sm:$0xff]
  %v1577 = vpack.c.bf16 %v1568, %v1568
  %v1578 = vpack.c.bf16 %v1569, %v1569
  %v1579 = vpack.c.bf16 %v1570, %v1570
  %v1580 = vpack.c.bf16 %v1571, %v1571
  %v1581 = vpack.c.bf16 %v1572, %v1572
  %v1582 = vpack.c.bf16 %v1573, %v1573
  %v1583 = vpack.c.bf16 %v1574, %v1574
  %v1584 = vpack.c.bf16 %v1575, %v1575
  %v1585 = vpack.c.bf16 %v1576, %v1576
  %1586 = vst [vmem:[#allocation4 + $0x14] sm:$0xf] %v1577
  %1587 = vst [vmem:[#allocation4 + $0x54] sm:$0xf] %v1578
  %1588 = vst [vmem:[#allocation4 + $0x94] sm:$0xf] %v1579
  %1589 = vst [vmem:[#allocation4 + $0xd4] sm:$0xf] %v1580
  %1590 = vst [vmem:[#allocation4 + $0x114] sm:$0xf] %v1581
  %1591 = vst [vmem:[#allocation4 + $0x154] sm:$0xf] %v1582
  %1592 = vst [vmem:[#allocation4 + $0x194] sm:$0xf] %v1583
  %1593 = vst [vmem:[#allocation4 + $0x1d4] sm:$0xf] %v1584
  %1594 = vst [vmem:[#allocation4 + $0x214] sm:$0xf] %v1585
  %v1595 = vld [vmem:[%s1400 + $0x6] sm:$0xff]
  %v1596 = vld [vmem:[%s1400 + $0xe] sm:$0xff]
  %v1597 = vld [vmem:[%s1400 + $0x16] sm:$0xff]
  %v1598 = vld [vmem:[%s1400 + $0x1e] sm:$0xff]
  %v1599 = vld [vmem:[%s1400 + $0x26] sm:$0xff]
  %v1600 = vld [vmem:[%s1400 + $0x2e] sm:$0xff]
  %v1601 = vld [vmem:[%s1400 + $0x36] sm:$0xff]
  %v1602 = vld [vmem:[%s1400 + $0x3e] sm:$0xff]
  %v1603 = vld [vmem:[%s1400 + $0x46] sm:$0xff]
  %v1604 = vpack.c.bf16 %v1595, %v1595
  %v1605 = vpack.c.bf16 %v1596, %v1596
  %v1606 = vpack.c.bf16 %v1597, %v1597
  %v1607 = vpack.c.bf16 %v1598, %v1598
  %v1608 = vpack.c.bf16 %v1599, %v1599
  %v1609 = vpack.c.bf16 %v1600, %v1600
  %v1610 = vpack.c.bf16 %v1601, %v1601
  %v1611 = vpack.c.bf16 %v1602, %v1602
  %v1612 = vpack.c.bf16 %v1603, %v1603
  %1613 = vst [vmem:[#allocation4 + $0x18] sm:$0xf] %v1604
  %1614 = vst [vmem:[#allocation4 + $0x58] sm:$0xf] %v1605
  %1615 = vst [vmem:[#allocation4 + $0x98] sm:$0xf] %v1606
  %1616 = vst [vmem:[#allocation4 + $0xd8] sm:$0xf] %v1607
  %1617 = vst [vmem:[#allocation4 + $0x118] sm:$0xf] %v1608
  %1618 = vst [vmem:[#allocation4 + $0x158] sm:$0xf] %v1609
  %1619 = vst [vmem:[#allocation4 + $0x198] sm:$0xf] %v1610
  %1620 = vst [vmem:[#allocation4 + $0x1d8] sm:$0xf] %v1611
  %1621 = vst [vmem:[#allocation4 + $0x218] sm:$0xf] %v1612
  %v1622 = vld [vmem:[%s1400 + $0x7] sm:$0xff]
  %v1623 = vld [vmem:[%s1400 + $0xf] sm:$0xff]
  %v1624 = vld [vmem:[%s1400 + $0x17] sm:$0xff]
  %v1625 = vld [vmem:[%s1400 + $0x1f] sm:$0xff]
  %v1626 = vld [vmem:[%s1400 + $0x27] sm:$0xff]
  %v1627 = vld [vmem:[%s1400 + $0x2f] sm:$0xff]
  %v1628 = vld [vmem:[%s1400 + $0x37] sm:$0xff]
  %v1629 = vld [vmem:[%s1400 + $0x3f] sm:$0xff]
  %v1630 = vld [vmem:[%s1400 + $0x47] sm:$0xff]
  %v1631 = vpack.c.bf16 %v1622, %v1622
  %v1632 = vpack.c.bf16 %v1623, %v1623
  %v1633 = vpack.c.bf16 %v1624, %v1624
  %v1634 = vpack.c.bf16 %v1625, %v1625
  %v1635 = vpack.c.bf16 %v1626, %v1626
  %v1636 = vpack.c.bf16 %v1627, %v1627
  %v1637 = vpack.c.bf16 %v1628, %v1628
  %v1638 = vpack.c.bf16 %v1629, %v1629
  %v1639 = vpack.c.bf16 %v1630, %v1630
  %1640 = vst [vmem:[#allocation4 + $0x1c] sm:$0xf] %v1631
  %1641 = vst [vmem:[#allocation4 + $0x5c] sm:$0xf] %v1632
  %1642 = vst [vmem:[#allocation4 + $0x9c] sm:$0xf] %v1633
  %1643 = vst [vmem:[#allocation4 + $0xdc] sm:$0xf] %v1634
  %1644 = vst [vmem:[#allocation4 + $0x11c] sm:$0xf] %v1635
  %1645 = vst [vmem:[#allocation4 + $0x15c] sm:$0xf] %v1636
  %1646 = vst [vmem:[#allocation4 + $0x19c] sm:$0xf] %v1637
  %1647 = vst [vmem:[#allocation4 + $0x1dc] sm:$0xf] %v1638
  %1648 = vst [vmem:[#allocation4 + $0x21c] sm:$0xf] %v1639
  %v1649 = vld [vmem:[%s1411] sm:$0xff]
  %v1650 = vld [vmem:[%s1411 + $0x8] sm:$0xff]
  %v1651 = vld [vmem:[%s1411 + $0x10] sm:$0xff]
  %v1652 = vld [vmem:[%s1411 + $0x18] sm:$0xff]
  %v1653 = vld [vmem:[%s1411 + $0x20] sm:$0xff]
  %v1654 = vld [vmem:[%s1411 + $0x28] sm:$0xff]
  %v1655 = vld [vmem:[%s1411 + $0x30] sm:$0xff]
  %v1656 = vld [vmem:[%s1411 + $0x38] sm:$0xff]
  %v1657 = vld [vmem:[%s1411 + $0x40] sm:$0xff]
  %v1658 = vpack.c.bf16 %v1649, %v1649
  %v1659 = vpack.c.bf16 %v1650, %v1650
  %v1660 = vpack.c.bf16 %v1651, %v1651
  %v1661 = vpack.c.bf16 %v1652, %v1652
  %v1662 = vpack.c.bf16 %v1653, %v1653
  %v1663 = vpack.c.bf16 %v1654, %v1654
  %v1664 = vpack.c.bf16 %v1655, %v1655
  %v1665 = vpack.c.bf16 %v1656, %v1656
  %v1666 = vpack.c.bf16 %v1657, %v1657
  %1667 = vst [vmem:[#allocation4 + $0x20] sm:$0xf] %v1658
  %1668 = vst [vmem:[#allocation4 + $0x60] sm:$0xf] %v1659
  %1669 = vst [vmem:[#allocation4 + $0xa0] sm:$0xf] %v1660
  %1670 = vst [vmem:[#allocation4 + $0xe0] sm:$0xf] %v1661
  %1671 = vst [vmem:[#allocation4 + $0x120] sm:$0xf] %v1662
  %1672 = vst [vmem:[#allocation4 + $0x160] sm:$0xf] %v1663
  %1673 = vst [vmem:[#allocation4 + $0x1a0] sm:$0xf] %v1664
  %1674 = vst [vmem:[#allocation4 + $0x1e0] sm:$0xf] %v1665
  %1675 = vst [vmem:[#allocation4 + $0x220] sm:$0xf] %v1666
  %v1676 = vld [vmem:[%s1411 + $0x1] sm:$0xff]
  %v1677 = vld [vmem:[%s1411 + $0x9] sm:$0xff]
  %v1678 = vld [vmem:[%s1411 + $0x11] sm:$0xff]
  %v1679 = vld [vmem:[%s1411 + $0x19] sm:$0xff]
  %v1680 = vld [vmem:[%s1411 + $0x21] sm:$0xff]
  %v1681 = vld [vmem:[%s1411 + $0x29] sm:$0xff]
  %v1682 = vld [vmem:[%s1411 + $0x31] sm:$0xff]
  %v1683 = vld [vmem:[%s1411 + $0x39] sm:$0xff]
  %v1684 = vld [vmem:[%s1411 + $0x41] sm:$0xff]
  %v1685 = vpack.c.bf16 %v1676, %v1676
  %v1686 = vpack.c.bf16 %v1677, %v1677
  %v1687 = vpack.c.bf16 %v1678, %v1678
  %v1688 = vpack.c.bf16 %v1679, %v1679
  %v1689 = vpack.c.bf16 %v1680, %v1680
  %v1690 = vpack.c.bf16 %v1681, %v1681
  %v1691 = vpack.c.bf16 %v1682, %v1682
  %v1692 = vpack.c.bf16 %v1683, %v1683
  %v1693 = vpack.c.bf16 %v1684, %v1684
  %1694 = vst [vmem:[#allocation4 + $0x24] sm:$0xf] %v1685
  %1695 = vst [vmem:[#allocation4 + $0x64] sm:$0xf] %v1686
  %1696 = vst [vmem:[#allocation4 + $0xa4] sm:$0xf] %v1687
  %1697 = vst [vmem:[#allocation4 + $0xe4] sm:$0xf] %v1688
  %1698 = vst [vmem:[#allocation4 + $0x124] sm:$0xf] %v1689
  %1699 = vst [vmem:[#allocation4 + $0x164] sm:$0xf] %v1690
  %1700 = vst [vmem:[#allocation4 + $0x1a4] sm:$0xf] %v1691
  %1701 = vst [vmem:[#allocation4 + $0x1e4] sm:$0xf] %v1692
  %1702 = vst [vmem:[#allocation4 + $0x224] sm:$0xf] %v1693
  %v1703 = vld [vmem:[%s1411 + $0x6] sm:$0xff]
  %v1704 = vld [vmem:[%s1411 + $0xe] sm:$0xff]
  %v1705 = vld [vmem:[%s1411 + $0x16] sm:$0xff]
  %v1706 = vld [vmem:[%s1411 + $0x1e] sm:$0xff]
  %v1707 = vld [vmem:[%s1411 + $0x26] sm:$0xff]
  %v1708 = vld [vmem:[%s1411 + $0x2e] sm:$0xff]
  %v1709 = vld [vmem:[%s1411 + $0x36] sm:$0xff]
  %v1710 = vld [vmem:[%s1411 + $0x3e] sm:$0xff]
  %v1711 = vld [vmem:[%s1411 + $0x46] sm:$0xff]
  %v1712 = vpack.c.bf16 %v1703, %v1703
  %v1713 = vpack.c.bf16 %v1704, %v1704
  %v1714 = vpack.c.bf16 %v1705, %v1705
  %v1715 = vpack.c.bf16 %v1706, %v1706
  %v1716 = vpack.c.bf16 %v1707, %v1707
  %v1717 = vpack.c.bf16 %v1708, %v1708
  %v1718 = vpack.c.bf16 %v1709, %v1709
  %v1719 = vpack.c.bf16 %v1710, %v1710
  %v1720 = vpack.c.bf16 %v1711, %v1711
  %1721 = vst [vmem:[#allocation4 + $0x28] sm:$0xf] %v1712
  %1722 = vst [vmem:[#allocation4 + $0x68] sm:$0xf] %v1713
  %1723 = vst [vmem:[#allocation4 + $0xa8] sm:$0xf] %v1714
  %1724 = vst [vmem:[#allocation4 + $0xe8] sm:$0xf] %v1715
  %1725 = vst [vmem:[#allocation4 + $0x128] sm:$0xf] %v1716
  %1726 = vst [vmem:[#allocation4 + $0x168] sm:$0xf] %v1717
  %1727 = vst [vmem:[#allocation4 + $0x1a8] sm:$0xf] %v1718
  %1728 = vst [vmem:[#allocation4 + $0x1e8] sm:$0xf] %v1719
  %1729 = vst [vmem:[#allocation4 + $0x228] sm:$0xf] %v1720
  %v1730 = vld [vmem:[%s1411 + $0x7] sm:$0xff]
  %v1731 = vld [vmem:[%s1411 + $0xf] sm:$0xff]
  %v1732 = vld [vmem:[%s1411 + $0x17] sm:$0xff]
  %v1733 = vld [vmem:[%s1411 + $0x1f] sm:$0xff]
  %v1734 = vld [vmem:[%s1411 + $0x27] sm:$0xff]
  %v1735 = vld [vmem:[%s1411 + $0x2f] sm:$0xff]
  %v1736 = vld [vmem:[%s1411 + $0x37] sm:$0xff]
  %v1737 = vld [vmem:[%s1411 + $0x3f] sm:$0xff]
  %v1738 = vld [vmem:[%s1411 + $0x47] sm:$0xff]
  %v1739 = vpack.c.bf16 %v1730, %v1730
  %v1740 = vpack.c.bf16 %v1731, %v1731
  %v1741 = vpack.c.bf16 %v1732, %v1732
  %v1742 = vpack.c.bf16 %v1733, %v1733
  %v1743 = vpack.c.bf16 %v1734, %v1734
  %v1744 = vpack.c.bf16 %v1735, %v1735
  %v1745 = vpack.c.bf16 %v1736, %v1736
  %v1746 = vpack.c.bf16 %v1737, %v1737
  %v1747 = vpack.c.bf16 %v1738, %v1738
  %1748 = vst [vmem:[#allocation4 + $0x2c] sm:$0xf] %v1739
  %1749 = vst [vmem:[#allocation4 + $0x6c] sm:$0xf] %v1740
  %1750 = vst [vmem:[#allocation4 + $0xac] sm:$0xf] %v1741
  %1751 = vst [vmem:[#allocation4 + $0xec] sm:$0xf] %v1742
  %1752 = vst [vmem:[#allocation4 + $0x12c] sm:$0xf] %v1743
  %1753 = vst [vmem:[#allocation4 + $0x16c] sm:$0xf] %v1744
  %1754 = vst [vmem:[#allocation4 + $0x1ac] sm:$0xf] %v1745
  %1755 = vst [vmem:[#allocation4 + $0x1ec] sm:$0xf] %v1746
  %1756 = vst [vmem:[#allocation4 + $0x22c] sm:$0xf] %v1747
  %v1757 = vld [vmem:[%s1422] sm:$0xff]
  %v1758 = vld [vmem:[%s1422 + $0x8] sm:$0xff]
  %v1759 = vld [vmem:[%s1422 + $0x10] sm:$0xff]
  %v1760 = vld [vmem:[%s1422 + $0x18] sm:$0xff]
  %v1761 = vld [vmem:[%s1422 + $0x20] sm:$0xff]
  %v1762 = vld [vmem:[%s1422 + $0x28] sm:$0xff]
  %v1763 = vld [vmem:[%s1422 + $0x30] sm:$0xff]
  %v1764 = vld [vmem:[%s1422 + $0x38] sm:$0xff]
  %v1765 = vld [vmem:[%s1422 + $0x40] sm:$0xff]
  %v1766 = vpack.c.bf16 %v1757, %v1757
  %v1767 = vpack.c.bf16 %v1758, %v1758
  %v1768 = vpack.c.bf16 %v1759, %v1759
  %v1769 = vpack.c.bf16 %v1760, %v1760
  %v1770 = vpack.c.bf16 %v1761, %v1761
  %v1771 = vpack.c.bf16 %v1762, %v1762
  %v1772 = vpack.c.bf16 %v1763, %v1763
  %v1773 = vpack.c.bf16 %v1764, %v1764
  %v1774 = vpack.c.bf16 %v1765, %v1765
  %1775 = vst [vmem:[#allocation4 + $0x30] sm:$0xf] %v1766
  %1776 = vst [vmem:[#allocation4 + $0x70] sm:$0xf] %v1767
  %1777 = vst [vmem:[#allocation4 + $0xb0] sm:$0xf] %v1768
  %1778 = vst [vmem:[#allocation4 + $0xf0] sm:$0xf] %v1769
  %1779 = vst [vmem:[#allocation4 + $0x130] sm:$0xf] %v1770
  %1780 = vst [vmem:[#allocation4 + $0x170] sm:$0xf] %v1771
  %1781 = vst [vmem:[#allocation4 + $0x1b0] sm:$0xf] %v1772
  %1782 = vst [vmem:[#allocation4 + $0x1f0] sm:$0xf] %v1773
  %1783 = vst [vmem:[#allocation4 + $0x230] sm:$0xf] %v1774
  %v1784 = vld [vmem:[%s1422 + $0x1] sm:$0xff]
  %v1785 = vld [vmem:[%s1422 + $0x9] sm:$0xff]
  %v1786 = vld [vmem:[%s1422 + $0x11] sm:$0xff]
  %v1787 = vld [vmem:[%s1422 + $0x19] sm:$0xff]
  %v1788 = vld [vmem:[%s1422 + $0x21] sm:$0xff]
  %v1789 = vld [vmem:[%s1422 + $0x29] sm:$0xff]
  %v1790 = vld [vmem:[%s1422 + $0x31] sm:$0xff]
  %v1791 = vld [vmem:[%s1422 + $0x39] sm:$0xff]
  %v1792 = vld [vmem:[%s1422 + $0x41] sm:$0xff]
  %v1793 = vpack.c.bf16 %v1784, %v1784
  %v1794 = vpack.c.bf16 %v1785, %v1785
  %v1795 = vpack.c.bf16 %v1786, %v1786
  %v1796 = vpack.c.bf16 %v1787, %v1787
  %v1797 = vpack.c.bf16 %v1788, %v1788
  %v1798 = vpack.c.bf16 %v1789, %v1789
  %v1799 = vpack.c.bf16 %v1790, %v1790
  %v1800 = vpack.c.bf16 %v1791, %v1791
  %v1801 = vpack.c.bf16 %v1792, %v1792
  %1802 = vst [vmem:[#allocation4 + $0x34] sm:$0xf] %v1793
  %1803 = vst [vmem:[#allocation4 + $0x74] sm:$0xf] %v1794
  %1804 = vst [vmem:[#allocation4 + $0xb4] sm:$0xf] %v1795
  %1805 = vst [vmem:[#allocation4 + $0xf4] sm:$0xf] %v1796
  %1806 = vst [vmem:[#allocation4 + $0x134] sm:$0xf] %v1797
  %1807 = vst [vmem:[#allocation4 + $0x174] sm:$0xf] %v1798
  %1808 = vst [vmem:[#allocation4 + $0x1b4] sm:$0xf] %v1799
  %1809 = vst [vmem:[#allocation4 + $0x1f4] sm:$0xf] %v1800
  %1810 = vst [vmem:[#allocation4 + $0x234] sm:$0xf] %v1801
  %v1811 = vld [vmem:[%s1422 + $0x6] sm:$0xff]
  %v1812 = vld [vmem:[%s1422 + $0xe] sm:$0xff]
  %v1813 = vld [vmem:[%s1422 + $0x16] sm:$0xff]
  %v1814 = vld [vmem:[%s1422 + $0x1e] sm:$0xff]
  %v1815 = vld [vmem:[%s1422 + $0x26] sm:$0xff]
  %v1816 = vld [vmem:[%s1422 + $0x2e] sm:$0xff]
  %v1817 = vld [vmem:[%s1422 + $0x36] sm:$0xff]
  %v1818 = vld [vmem:[%s1422 + $0x3e] sm:$0xff]
  %v1819 = vld [vmem:[%s1422 + $0x46] sm:$0xff]
  %v1820 = vpack.c.bf16 %v1811, %v1811
  %v1821 = vpack.c.bf16 %v1812, %v1812
  %v1822 = vpack.c.bf16 %v1813, %v1813
  %v1823 = vpack.c.bf16 %v1814, %v1814
  %v1824 = vpack.c.bf16 %v1815, %v1815
  %v1825 = vpack.c.bf16 %v1816, %v1816
  %v1826 = vpack.c.bf16 %v1817, %v1817
  %v1827 = vpack.c.bf16 %v1818, %v1818
  %v1828 = vpack.c.bf16 %v1819, %v1819
  %1829 = vst [vmem:[#allocation4 + $0x38] sm:$0xf] %v1820
  %1830 = vst [vmem:[#allocation4 + $0x78] sm:$0xf] %v1821
  %1831 = vst [vmem:[#allocation4 + $0xb8] sm:$0xf] %v1822
  %1832 = vst [vmem:[#allocation4 + $0xf8] sm:$0xf] %v1823
  %1833 = vst [vmem:[#allocation4 + $0x138] sm:$0xf] %v1824
  %1834 = vst [vmem:[#allocation4 + $0x178] sm:$0xf] %v1825
  %1835 = vst [vmem:[#allocation4 + $0x1b8] sm:$0xf] %v1826
  %1836 = vst [vmem:[#allocation4 + $0x1f8] sm:$0xf] %v1827
  %1837 = vst [vmem:[#allocation4 + $0x238] sm:$0xf] %v1828
  %v1838 = vld [vmem:[%s1422 + $0x7] sm:$0xff]
  %v1839 = vld [vmem:[%s1422 + $0xf] sm:$0xff]
  %v1840 = vld [vmem:[%s1422 + $0x17] sm:$0xff]
  %v1841 = vld [vmem:[%s1422 + $0x1f] sm:$0xff]
  %v1842 = vld [vmem:[%s1422 + $0x27] sm:$0xff]
  %v1843 = vld [vmem:[%s1422 + $0x2f] sm:$0xff]
  %v1844 = vld [vmem:[%s1422 + $0x37] sm:$0xff]
  %v1845 = vld [vmem:[%s1422 + $0x3f] sm:$0xff]
  %v1846 = vld [vmem:[%s1422 + $0x47] sm:$0xff]
  %v1847 = vpack.c.bf16 %v1838, %v1838
  %v1848 = vpack.c.bf16 %v1839, %v1839
  %v1849 = vpack.c.bf16 %v1840, %v1840
  %v1850 = vpack.c.bf16 %v1841, %v1841
  %v1851 = vpack.c.bf16 %v1842, %v1842
  %v1852 = vpack.c.bf16 %v1843, %v1843
  %v1853 = vpack.c.bf16 %v1844, %v1844
  %v1854 = vpack.c.bf16 %v1845, %v1845
  %v1855 = vpack.c.bf16 %v1846, %v1846
  %1856 = vst [vmem:[#allocation4 + $0x3c] sm:$0xf] %v1847
  %1857 = vst [vmem:[#allocation4 + $0x7c] sm:$0xf] %v1848
  %1858 = vst [vmem:[#allocation4 + $0xbc] sm:$0xf] %v1849
  %1859 = vst [vmem:[#allocation4 + $0xfc] sm:$0xf] %v1850
  %1860 = vst [vmem:[#allocation4 + $0x13c] sm:$0xf] %v1851
  %1861 = vst [vmem:[#allocation4 + $0x17c] sm:$0xf] %v1852
  %1862 = vst [vmem:[#allocation4 + $0x1bc] sm:$0xf] %v1853
  %1863 = vst [vmem:[#allocation4 + $0x1fc] sm:$0xf] %v1854
  %1864 = vst [vmem:[#allocation4 + $0x23c] sm:$0xf] %v1855
  %v1865 = vld [vmem:[#allocation4] sm:$0xff]
  %v1866 = vld [vmem:[#allocation4 + $0x8] sm:$0xff]
  %v1867 = vld [vmem:[#allocation4 + $0x10] sm:$0xff]
  %v1868 = vld [vmem:[#allocation4 + $0x18] sm:$0xff]
  %v1869 = vld [vmem:[#allocation4 + $0x20] sm:$0xff]
  %v1870 = vld [vmem:[#allocation4 + $0x28] sm:$0xff]
  %v1871 = vld [vmem:[#allocation4 + $0x30] sm:$0xff]
  %v1872 = vld [vmem:[#allocation4 + $0x38] sm:$0xff]
  %v1873 = vld [vmem:[#allocation4 + $0x40] sm:$0xff]
  %v1874 = vld [vmem:[#allocation4 + $0x48] sm:$0xff]
  %v1875 = vld [vmem:[#allocation4 + $0x50] sm:$0xff]
  %v1876 = vld [vmem:[#allocation4 + $0x58] sm:$0xff]
  %v1877 = vld [vmem:[#allocation4 + $0x60] sm:$0xff]
  %v1878 = vld [vmem:[#allocation4 + $0x68] sm:$0xff]
  %v1879 = vld [vmem:[#allocation4 + $0x70] sm:$0xff]
  %v1880 = vld [vmem:[#allocation4 + $0x78] sm:$0xff]
  %v1881 = vld [vmem:[#allocation4 + $0x80] sm:$0xff]
  %v1882 = vld [vmem:[#allocation4 + $0x88] sm:$0xff]
  %v1883 = vld [vmem:[#allocation4 + $0x90] sm:$0xff]
  %v1884 = vld [vmem:[#allocation4 + $0x98] sm:$0xff]
  %v1885 = vld [vmem:[#allocation4 + $0xa0] sm:$0xff]
  %v1886 = vld [vmem:[#allocation4 + $0xa8] sm:$0xff]
  %v1887 = vld [vmem:[#allocation4 + $0xb0] sm:$0xff]
  %v1888 = vld [vmem:[#allocation4 + $0xb8] sm:$0xff]
  %v1889 = vld [vmem:[#allocation4 + $0xc0] sm:$0xff]
  %v1890 = vld [vmem:[#allocation4 + $0xc8] sm:$0xff]
  %v1891 = vld [vmem:[#allocation4 + $0xd0] sm:$0xff]
  %v1892 = vld [vmem:[#allocation4 + $0xd8] sm:$0xff]
  %v1893 = vld [vmem:[#allocation4 + $0xe0] sm:$0xff]
  %v1894 = vld [vmem:[#allocation4 + $0xe8] sm:$0xff]
  %v1895 = vld [vmem:[#allocation4 + $0xf0] sm:$0xff]
  %v1896 = vld [vmem:[#allocation4 + $0xf8] sm:$0xff]
  %v1897 = vld [vmem:[#allocation4 + $0x100] sm:$0xff]
  %v1898 = vld [vmem:[#allocation4 + $0x108] sm:$0xff]
  %v1899 = vld [vmem:[#allocation4 + $0x110] sm:$0xff]
  %v1900 = vld [vmem:[#allocation4 + $0x118] sm:$0xff]
  %v1901 = vld [vmem:[#allocation4 + $0x120] sm:$0xff]
  %v1902 = vld [vmem:[#allocation4 + $0x128] sm:$0xff]
  %v1903 = vld [vmem:[#allocation4 + $0x130] sm:$0xff]
  %v1904 = vld [vmem:[#allocation4 + $0x138] sm:$0xff]
  %v1905 = vld [vmem:[#allocation4 + $0x140] sm:$0xff]
  %v1906 = vld [vmem:[#allocation4 + $0x148] sm:$0xff]
  %v1907 = vld [vmem:[#allocation4 + $0x150] sm:$0xff]
  %v1908 = vld [vmem:[#allocation4 + $0x158] sm:$0xff]
  %v1909 = vld [vmem:[#allocation4 + $0x160] sm:$0xff]
  %v1910 = vld [vmem:[#allocation4 + $0x168] sm:$0xff]
  %v1911 = vld [vmem:[#allocation4 + $0x170] sm:$0xff]
  %v1912 = vld [vmem:[#allocation4 + $0x178] sm:$0xff]
  %v1913 = vld [vmem:[#allocation4 + $0x180] sm:$0xff]
  %v1914 = vld [vmem:[#allocation4 + $0x188] sm:$0xff]
  %v1915 = vld [vmem:[#allocation4 + $0x190] sm:$0xff]
  %v1916 = vld [vmem:[#allocation4 + $0x198] sm:$0xff]
  %v1917 = vld [vmem:[#allocation4 + $0x1a0] sm:$0xff]
  %v1918 = vld [vmem:[#allocation4 + $0x1a8] sm:$0xff]
  %v1919 = vld [vmem:[#allocation4 + $0x1b0] sm:$0xff]
  %v1920 = vld [vmem:[#allocation4 + $0x1b8] sm:$0xff]
  %v1921 = vld [vmem:[#allocation4 + $0x1c0] sm:$0xff]
  %v1922 = vld [vmem:[#allocation4 + $0x1c8] sm:$0xff]
  %v1923 = vld [vmem:[#allocation4 + $0x1d0] sm:$0xff]
  %v1924 = vld [vmem:[#allocation4 + $0x1d8] sm:$0xff]
  %v1925 = vld [vmem:[#allocation4 + $0x1e0] sm:$0xff]
  %v1926 = vld [vmem:[#allocation4 + $0x1e8] sm:$0xff]
  %v1927 = vld [vmem:[#allocation4 + $0x1f0] sm:$0xff]
  %v1928 = vld [vmem:[#allocation4 + $0x1f8] sm:$0xff]
  %v1929 = vld [vmem:[#allocation4 + $0x200] sm:$0xff]
  %v1930 = vld [vmem:[#allocation4 + $0x208] sm:$0xff]
  %v1931 = vld [vmem:[#allocation4 + $0x210] sm:$0xff]
  %v1932 = vld [vmem:[#allocation4 + $0x218] sm:$0xff]
  %v1933 = vld [vmem:[#allocation4 + $0x220] sm:$0xff]
  %v1934 = vld [vmem:[#allocation4 + $0x228] sm:$0xff]
  %v1935 = vld [vmem:[#allocation4 + $0x230] sm:$0xff]
  %v1936 = vld [vmem:[#allocation4 + $0x238] sm:$0xff]
  %v1937 = vld [vmem:[%s3] sm:$0xf]
  %v1938 = vld [vmem:[%s3 + $0x4] sm:$0xf]
  %v1939 = vld [vmem:[%s3 + $0x8] sm:$0xf]
  %v1940 = vld [vmem:[%s3 + $0xc] sm:$0xf]
  %v1941 = vld [vmem:[%s3 + $0x10] sm:$0xf]
  %v1942 = vld [vmem:[%s3 + $0x14] sm:$0xf]
  %v1943 = vld [vmem:[%s3 + $0x18] sm:$0xf]
  %v1944 = vld [vmem:[%s3 + $0x1c] sm:$0xf]
  %v1945 = vld [vmem:[%s3 + $0x20] sm:$0xf]
  %v1946 = vld [vmem:[%s3 + $0x24] sm:$0xf]
  %v1947 = vld [vmem:[%s3 + $0x28] sm:$0xf]
  %v1948 = vld [vmem:[%s3 + $0x2c] sm:$0xf]
  %v1949 = vld [vmem:[%s3 + $0x30] sm:$0xf]
  %v1950 = vld [vmem:[%s3 + $0x34] sm:$0xf]
  %v1951 = vld [vmem:[%s3 + $0x38] sm:$0xf]
  %v1952 = vld [vmem:[%s3 + $0x3c] sm:$0xf]
  %v1953 = vld [vmem:[%s3 + $0x40] sm:$0xf]
  %v1954 = vld [vmem:[%s3 + $0x44] sm:$0xf]
  %v1955 = vld [vmem:[%s3 + $0x48] sm:$0xf]
  %v1956 = vld [vmem:[%s3 + $0x4c] sm:$0xf]
  %v1957 = vld [vmem:[%s3 + $0x50] sm:$0xf]
  %v1958 = vld [vmem:[%s3 + $0x54] sm:$0xf]
  %v1959 = vld [vmem:[%s3 + $0x58] sm:$0xf]
  %v1960 = vld [vmem:[%s3 + $0x5c] sm:$0xf]
  %v1961 = vld [vmem:[%s3 + $0x60] sm:$0xf]
  %v1962 = vld [vmem:[%s3 + $0x64] sm:$0xf]
  %v1963 = vld [vmem:[%s3 + $0x68] sm:$0xf]
  %v1964 = vld [vmem:[%s3 + $0x6c] sm:$0xf]
  %v1965 = vld [vmem:[%s3 + $0x70] sm:$0xf]
  %v1966 = vld [vmem:[%s3 + $0x74] sm:$0xf]
  %v1967 = vld [vmem:[%s3 + $0x78] sm:$0xf]
  %v1968 = vld [vmem:[%s3 + $0x7c] sm:$0xf]
  %v1969 = vld [vmem:[%s3 + $0x80] sm:$0xf]
  %v1970 = vld [vmem:[%s3 + $0x84] sm:$0xf]
  %v1971 = vld [vmem:[%s3 + $0x88] sm:$0xf]
  %v1972 = vld [vmem:[%s3 + $0x8c] sm:$0xf]
  %v1973 = vld [vmem:[%s3 + $0x90] sm:$0xf]
  %v1974 = vld [vmem:[%s3 + $0x94] sm:$0xf]
  %v1975 = vld [vmem:[%s3 + $0x98] sm:$0xf]
  %v1976 = vld [vmem:[%s3 + $0x9c] sm:$0xf]
  %v1977 = vld [vmem:[%s3 + $0xa0] sm:$0xf]
  %v1978 = vld [vmem:[%s3 + $0xa4] sm:$0xf]
  %v1979 = vld [vmem:[%s3 + $0xa8] sm:$0xf]
  %v1980 = vld [vmem:[%s3 + $0xac] sm:$0xf]
  %v1981 = vld [vmem:[%s3 + $0xb0] sm:$0xf]
  %v1982 = vld [vmem:[%s3 + $0xb4] sm:$0xf]
  %v1983 = vld [vmem:[%s3 + $0xb8] sm:$0xf]
  %v1984 = vld [vmem:[%s3 + $0xbc] sm:$0xf]
  %v1985 = vld [vmem:[%s3 + $0xc0] sm:$0xf]
  %v1986 = vld [vmem:[%s3 + $0xc4] sm:$0xf]
  %v1987 = vld [vmem:[%s3 + $0xc8] sm:$0xf]
  %v1988 = vld [vmem:[%s3 + $0xcc] sm:$0xf]
  %v1989 = vld [vmem:[%s3 + $0xd0] sm:$0xf]
  %v1990 = vld [vmem:[%s3 + $0xd4] sm:$0xf]
  %v1991 = vld [vmem:[%s3 + $0xd8] sm:$0xf]
  %v1992 = vld [vmem:[%s3 + $0xdc] sm:$0xf]
  %v1993 = vld [vmem:[%s3 + $0xe0] sm:$0xf]
  %v1994 = vld [vmem:[%s3 + $0xe4] sm:$0xf]
  %v1995 = vld [vmem:[%s3 + $0xe8] sm:$0xf]
  %v1996 = vld [vmem:[%s3 + $0xec] sm:$0xf]
  %v1997 = vld [vmem:[%s3 + $0xf0] sm:$0xf]
  %v1998 = vld [vmem:[%s3 + $0xf4] sm:$0xf]
  %v1999 = vld [vmem:[%s3 + $0xf8] sm:$0xf]
  %v2000 = vld [vmem:[%s3 + $0xfc] sm:$0xf]
  %v2001 = vld [vmem:[%s3 + $0x100] sm:$0xf]
  %v2002 = vld [vmem:[%s3 + $0x104] sm:$0xf]
  %v2003 = vld [vmem:[%s3 + $0x108] sm:$0xf]
  %v2004 = vld [vmem:[%s3 + $0x10c] sm:$0xf]
  %v2005 = vld [vmem:[%s3 + $0x110] sm:$0xf]
  %v2006 = vld [vmem:[%s3 + $0x114] sm:$0xf]
  %v2007 = vld [vmem:[%s3 + $0x118] sm:$0xf]
  %v2008 = vld [vmem:[%s3 + $0x11c] sm:$0xf]
  %v2009 = vld [vmem:[%s3 + $0x120] sm:$0xf]
  %v2010 = vld [vmem:[%s3 + $0x124] sm:$0xf]
  %v2011 = vld [vmem:[%s3 + $0x128] sm:$0xf]
  %v2012 = vld [vmem:[%s3 + $0x12c] sm:$0xf]
  %v2013 = vld [vmem:[%s3 + $0x130] sm:$0xf]
  %v2014 = vld [vmem:[%s3 + $0x134] sm:$0xf]
  %v2015 = vld [vmem:[%s3 + $0x138] sm:$0xf]
  %v2016 = vld [vmem:[%s3 + $0x13c] sm:$0xf]
  %v2017 = vld [vmem:[%s3 + $0x140] sm:$0xf]
  %v2018 = vld [vmem:[%s3 + $0x144] sm:$0xf]
  %v2019 = vld [vmem:[%s3 + $0x148] sm:$0xf]
  %v2020 = vld [vmem:[%s3 + $0x14c] sm:$0xf]
  %v2021 = vld [vmem:[%s3 + $0x150] sm:$0xf]
  %v2022 = vld [vmem:[%s3 + $0x154] sm:$0xf]
  %v2023 = vld [vmem:[%s3 + $0x158] sm:$0xf]
  %v2024 = vld [vmem:[%s3 + $0x15c] sm:$0xf]
  %v2025 = vld [vmem:[%s3 + $0x160] sm:$0xf]
  %v2026 = vld [vmem:[%s3 + $0x164] sm:$0xf]
  %v2027 = vld [vmem:[%s3 + $0x168] sm:$0xf]
  %v2028 = vld [vmem:[%s3 + $0x16c] sm:$0xf]
  %v2029 = vld [vmem:[%s3 + $0x170] sm:$0xf]
  %v2030 = vld [vmem:[%s3 + $0x174] sm:$0xf]
  %v2031 = vld [vmem:[%s3 + $0x178] sm:$0xf]
  %v2032 = vld [vmem:[%s3 + $0x17c] sm:$0xf]
  %v2033 = vld [vmem:[%s3 + $0x180] sm:$0xf]
  %v2034 = vld [vmem:[%s3 + $0x184] sm:$0xf]
  %v2035 = vld [vmem:[%s3 + $0x188] sm:$0xf]
  %v2036 = vld [vmem:[%s3 + $0x18c] sm:$0xf]
  %v2037 = vld [vmem:[%s3 + $0x190] sm:$0xf]
  %v2038 = vld [vmem:[%s3 + $0x194] sm:$0xf]
  %v2039 = vld [vmem:[%s3 + $0x198] sm:$0xf]
  %v2040 = vld [vmem:[%s3 + $0x19c] sm:$0xf]
  %v2041 = vld [vmem:[%s3 + $0x1a0] sm:$0xf]
  %v2042 = vld [vmem:[%s3 + $0x1a4] sm:$0xf]
  %v2043 = vld [vmem:[%s3 + $0x1a8] sm:$0xf]
  %v2044 = vld [vmem:[%s3 + $0x1ac] sm:$0xf]
  %v2045 = vld [vmem:[%s3 + $0x1b0] sm:$0xf]
  %v2046 = vld [vmem:[%s3 + $0x1b4] sm:$0xf]
  %v2047 = vld [vmem:[%s3 + $0x1b8] sm:$0xf]
  %v2048 = vld [vmem:[%s3 + $0x1bc] sm:$0xf]
  %v2049 = vld [vmem:[%s3 + $0x1c0] sm:$0xf]
  %v2050 = vld [vmem:[%s3 + $0x1c4] sm:$0xf]
  %v2051 = vld [vmem:[%s3 + $0x1c8] sm:$0xf]
  %v2052 = vld [vmem:[%s3 + $0x1cc] sm:$0xf]
  %v2053 = vld [vmem:[%s3 + $0x1d0] sm:$0xf]
  %v2054 = vld [vmem:[%s3 + $0x1d4] sm:$0xf]
  %v2055 = vld [vmem:[%s3 + $0x1d8] sm:$0xf]
  %v2056 = vld [vmem:[%s3 + $0x1dc] sm:$0xf]
  %v2057 = vld [vmem:[%s3 + $0x1e0] sm:$0xf]
  %v2058 = vld [vmem:[%s3 + $0x1e4] sm:$0xf]
  %v2059 = vld [vmem:[%s3 + $0x1e8] sm:$0xf]
  %v2060 = vld [vmem:[%s3 + $0x1ec] sm:$0xf]
  %v2061 = vld [vmem:[%s3 + $0x1f0] sm:$0xf]
  %v2062 = vld [vmem:[%s3 + $0x1f4] sm:$0xf]
  %v2063 = vld [vmem:[%s3 + $0x1f8] sm:$0xf]
  %v2064 = vld [vmem:[%s3 + $0x1fc] sm:$0xf]
  %v2065 = vld [vmem:[%s3 + $0x200] sm:$0xf]
  %v2066 = vld [vmem:[%s3 + $0x204] sm:$0xf]
  %v2067 = vld [vmem:[%s3 + $0x208] sm:$0xf]
  %v2068 = vld [vmem:[%s3 + $0x20c] sm:$0xf]
  %v2069 = vld [vmem:[%s3 + $0x210] sm:$0xf]
  %v2070 = vld [vmem:[%s3 + $0x214] sm:$0xf]
  %v2071 = vld [vmem:[%s3 + $0x218] sm:$0xf]
  %v2072 = vld [vmem:[%s3 + $0x21c] sm:$0xf]
  %v2073 = vld [vmem:[%s3 + $0x220] sm:$0xf]
  %v2074 = vld [vmem:[%s3 + $0x224] sm:$0xf]
  %v2075 = vld [vmem:[%s3 + $0x228] sm:$0xf]
  %v2076 = vld [vmem:[%s3 + $0x22c] sm:$0xf]
  %v2077 = vld [vmem:[%s3 + $0x230] sm:$0xf]
  %v2078 = vld [vmem:[%s3 + $0x234] sm:$0xf]
  %v2079 = vld [vmem:[%s3 + $0x238] sm:$0xf]
  %v2080 = vld [vmem:[%s3 + $0x23c] sm:$0xf]
  %v2081 = vld [vmem:[%s3 + $0x240] sm:$0xf]
  %v2082 = vld [vmem:[%s3 + $0x244] sm:$0xf]
  %v2083 = vld [vmem:[%s3 + $0x248] sm:$0xf]
  %v2084 = vld [vmem:[%s3 + $0x24c] sm:$0xf]
  %v2085 = vld [vmem:[%s3 + $0x250] sm:$0xf]
  %v2086 = vld [vmem:[%s3 + $0x254] sm:$0xf]
  %v2087 = vld [vmem:[%s3 + $0x258] sm:$0xf]
  %v2088 = vld [vmem:[%s3 + $0x25c] sm:$0xf]
  %v2089 = vld [vmem:[%s3 + $0x260] sm:$0xf]
  %v2090 = vld [vmem:[%s3 + $0x264] sm:$0xf]
  %v2091 = vld [vmem:[%s3 + $0x268] sm:$0xf]
  %v2092 = vld [vmem:[%s3 + $0x26c] sm:$0xf]
  %v2093 = vld [vmem:[%s3 + $0x270] sm:$0xf]
  %v2094 = vld [vmem:[%s3 + $0x274] sm:$0xf]
  %v2095 = vld [vmem:[%s3 + $0x278] sm:$0xf]
  %v2096 = vld [vmem:[%s3 + $0x27c] sm:$0xf]
  %v2097 = vld [vmem:[%s3 + $0x280] sm:$0xf]
  %v2098 = vld [vmem:[%s3 + $0x284] sm:$0xf]
  %v2099 = vld [vmem:[%s3 + $0x288] sm:$0xf]
  %v2100 = vld [vmem:[%s3 + $0x28c] sm:$0xf]
  %v2101 = vld [vmem:[%s3 + $0x290] sm:$0xf]
  %v2102 = vld [vmem:[%s3 + $0x294] sm:$0xf]
  %v2103 = vld [vmem:[%s3 + $0x298] sm:$0xf]
  %v2104 = vld [vmem:[%s3 + $0x29c] sm:$0xf]
  %v2105 = vld [vmem:[%s3 + $0x2a0] sm:$0xf]
  %v2106 = vld [vmem:[%s3 + $0x2a4] sm:$0xf]
  %v2107 = vld [vmem:[%s3 + $0x2a8] sm:$0xf]
  %v2108 = vld [vmem:[%s3 + $0x2ac] sm:$0xf]
  %v2109 = vld [vmem:[%s3 + $0x2b0] sm:$0xf]
  %v2110 = vld [vmem:[%s3 + $0x2b4] sm:$0xf]
  %v2111 = vld [vmem:[%s3 + $0x2b8] sm:$0xf]
  %v2112 = vld [vmem:[%s3 + $0x2bc] sm:$0xf]
  %v2113 = vld [vmem:[%s3 + $0x2c0] sm:$0xf]
  %v2114 = vld [vmem:[%s3 + $0x2c4] sm:$0xf]
  %v2115 = vld [vmem:[%s3 + $0x2c8] sm:$0xf]
  %v2116 = vld [vmem:[%s3 + $0x2cc] sm:$0xf]
  %v2117 = vld [vmem:[%s3 + $0x2d0] sm:$0xf]
  %v2118 = vld [vmem:[%s3 + $0x2d4] sm:$0xf]
  %v2119 = vld [vmem:[%s3 + $0x2d8] sm:$0xf]
  %v2120 = vld [vmem:[%s3 + $0x2dc] sm:$0xf]
  %v2121 = vld [vmem:[%s3 + $0x2e0] sm:$0xf]
  %v2122 = vld [vmem:[%s3 + $0x2e4] sm:$0xf]
  %v2123 = vld [vmem:[%s3 + $0x2e8] sm:$0xf]
  %v2124 = vld [vmem:[%s3 + $0x2ec] sm:$0xf]
  %v2125 = vld [vmem:[%s3 + $0x2f0] sm:$0xf]
  %v2126 = vld [vmem:[%s3 + $0x2f4] sm:$0xf]
  %v2127 = vld [vmem:[%s3 + $0x2f8] sm:$0xf]
  %v2128 = vld [vmem:[%s3 + $0x2fc] sm:$0xf]
  %v2129 = vld [vmem:[%s3 + $0x300] sm:$0xf]
  %v2130 = vld [vmem:[%s3 + $0x304] sm:$0xf]
  %v2131 = vld [vmem:[%s3 + $0x308] sm:$0xf]
  %v2132 = vld [vmem:[%s3 + $0x30c] sm:$0xf]
  %v2133 = vld [vmem:[%s3 + $0x310] sm:$0xf]
  %v2134 = vld [vmem:[%s3 + $0x314] sm:$0xf]
  %v2135 = vld [vmem:[%s3 + $0x318] sm:$0xf]
  %v2136 = vld [vmem:[%s3 + $0x31c] sm:$0xf]
  %v2137 = vld [vmem:[%s3 + $0x320] sm:$0xf]
  %v2138 = vld [vmem:[%s3 + $0x324] sm:$0xf]
  %v2139 = vld [vmem:[%s3 + $0x328] sm:$0xf]
  %v2140 = vld [vmem:[%s3 + $0x32c] sm:$0xf]
  %v2141 = vld [vmem:[%s3 + $0x330] sm:$0xf]
  %v2142 = vld [vmem:[%s3 + $0x334] sm:$0xf]
  %v2143 = vld [vmem:[%s3 + $0x338] sm:$0xf]
  %v2144 = vld [vmem:[%s3 + $0x33c] sm:$0xf]
  %v2145 = vld [vmem:[%s3 + $0x340] sm:$0xf]
  %v2146 = vld [vmem:[%s3 + $0x344] sm:$0xf]
  %v2147 = vld [vmem:[%s3 + $0x348] sm:$0xf]
  %v2148 = vld [vmem:[%s3 + $0x34c] sm:$0xf]
  %v2149 = vld [vmem:[%s3 + $0x350] sm:$0xf]
  %v2150 = vld [vmem:[%s3 + $0x354] sm:$0xf]
  %v2151 = vld [vmem:[%s3 + $0x358] sm:$0xf]
  %v2152 = vld [vmem:[%s3 + $0x35c] sm:$0xf]
  %v2153 = vld [vmem:[%s3 + $0x360] sm:$0xf]
  %v2154 = vld [vmem:[%s3 + $0x364] sm:$0xf]
  %v2155 = vld [vmem:[%s3 + $0x368] sm:$0xf]
  %v2156 = vld [vmem:[%s3 + $0x36c] sm:$0xf]
  %v2157 = vld [vmem:[%s3 + $0x370] sm:$0xf]
  %v2158 = vld [vmem:[%s3 + $0x374] sm:$0xf]
  %v2159 = vld [vmem:[%s3 + $0x378] sm:$0xf]
  %v2160 = vld [vmem:[%s3 + $0x37c] sm:$0xf]
  %v2161 = vld [vmem:[%s3 + $0x380] sm:$0xf]
  %v2162 = vld [vmem:[%s3 + $0x384] sm:$0xf]
  %v2163 = vld [vmem:[%s3 + $0x388] sm:$0xf]
  %v2164 = vld [vmem:[%s3 + $0x38c] sm:$0xf]
  %v2165 = vld [vmem:[%s3 + $0x390] sm:$0xf]
  %v2166 = vld [vmem:[%s3 + $0x394] sm:$0xf]
  %v2167 = vld [vmem:[%s3 + $0x398] sm:$0xf]
  %v2168 = vld [vmem:[%s3 + $0x39c] sm:$0xf]
  %v2169 = vld [vmem:[%s3 + $0x3a0] sm:$0xf]
  %v2170 = vld [vmem:[%s3 + $0x3a4] sm:$0xf]
  %v2171 = vld [vmem:[%s3 + $0x3a8] sm:$0xf]
  %v2172 = vld [vmem:[%s3 + $0x3ac] sm:$0xf]
  %v2173 = vld [vmem:[%s3 + $0x3b0] sm:$0xf]
  %v2174 = vld [vmem:[%s3 + $0x3b4] sm:$0xf]
  %v2175 = vld [vmem:[%s3 + $0x3b8] sm:$0xf]
  %v2176 = vld [vmem:[%s3 + $0x3bc] sm:$0xf]
  %v2177 = vld [vmem:[%s3 + $0x3c0] sm:$0xf]
  %v2178 = vld [vmem:[%s3 + $0x3c4] sm:$0xf]
  %v2179 = vld [vmem:[%s3 + $0x3c8] sm:$0xf]
  %v2180 = vld [vmem:[%s3 + $0x3cc] sm:$0xf]
  %v2181 = vld [vmem:[%s3 + $0x3d0] sm:$0xf]
  %v2182 = vld [vmem:[%s3 + $0x3d4] sm:$0xf]
  %v2183 = vld [vmem:[%s3 + $0x3d8] sm:$0xf]
  %v2184 = vld [vmem:[%s3 + $0x3dc] sm:$0xf]
  %v2185 = vld [vmem:[%s3 + $0x3e0] sm:$0xf]
  %v2186 = vld [vmem:[%s3 + $0x3e4] sm:$0xf]
  %v2187 = vld [vmem:[%s3 + $0x3e8] sm:$0xf]
  %v2188 = vld [vmem:[%s3 + $0x3ec] sm:$0xf]
  %v2189 = vld [vmem:[%s3 + $0x3f0] sm:$0xf]
  %v2190 = vld [vmem:[%s3 + $0x3f4] sm:$0xf]
  %v2191 = vld [vmem:[%s3 + $0x3f8] sm:$0xf]
  %v2192 = vld [vmem:[%s3 + $0x3fc] sm:$0xf]
  %v2193 = vld [vmem:[%s4] sm:$0x1]
  %v2195 = vperm.slane %v2193, 0
  %v2269 = vunpack.c.l.b16 %v1865
  %v2270 = vunpack.c.h.b16 %v1865
  %v2271 = vunpack.c.l.b16 %v1866
  %v2272 = vunpack.c.h.b16 %v1866
  %v2273 = vunpack.c.l.b16 %v1867
  %v2274 = vunpack.c.h.b16 %v1867
  %v2275 = vunpack.c.l.b16 %v1868
  %v2276 = vunpack.c.h.b16 %v1868
  %v2277 = vunpack.c.l.b16 %v1869
  %v2278 = vunpack.c.h.b16 %v1869
  %v2279 = vunpack.c.l.b16 %v1870
  %v2280 = vunpack.c.h.b16 %v1870
  %v2281 = vunpack.c.l.b16 %v1871
  %v2282 = vunpack.c.h.b16 %v1871
  %v2283 = vunpack.c.l.b16 %v1872
  %v2284 = vunpack.c.h.b16 %v1872
  %v2285 = vunpack.c.l.b16 %v1873
  %v2286 = vunpack.c.h.b16 %v1873
  %v2287 = vunpack.c.l.b16 %v1874
  %v2288 = vunpack.c.h.b16 %v1874
  %v2289 = vunpack.c.l.b16 %v1875
  %v2290 = vunpack.c.h.b16 %v1875
  %v2291 = vunpack.c.l.b16 %v1876
  %v2292 = vunpack.c.h.b16 %v1876
  %v2293 = vunpack.c.l.b16 %v1877
  %v2294 = vunpack.c.h.b16 %v1877
  %v2295 = vunpack.c.l.b16 %v1878
  %v2296 = vunpack.c.h.b16 %v1878
  %v2297 = vunpack.c.l.b16 %v1879
  %v2298 = vunpack.c.h.b16 %v1879
  %v2299 = vunpack.c.l.b16 %v1880
  %v2300 = vunpack.c.h.b16 %v1880
  %v2301 = vunpack.c.l.b16 %v1881
  %v2302 = vunpack.c.h.b16 %v1881
  %v2303 = vunpack.c.l.b16 %v1882
  %v2304 = vunpack.c.h.b16 %v1882
  %v2305 = vunpack.c.l.b16 %v1883
  %v2306 = vunpack.c.h.b16 %v1883
  %v2307 = vunpack.c.l.b16 %v1884
  %v2308 = vunpack.c.h.b16 %v1884
  %v2309 = vunpack.c.l.b16 %v1885
  %v2310 = vunpack.c.h.b16 %v1885
  %v2311 = vunpack.c.l.b16 %v1886
  %v2312 = vunpack.c.h.b16 %v1886
  %v2313 = vunpack.c.l.b16 %v1887
  %v2314 = vunpack.c.h.b16 %v1887
  %v2315 = vunpack.c.l.b16 %v1888
  %v2316 = vunpack.c.h.b16 %v1888
  %v2317 = vunpack.c.l.b16 %v1889
  %v2318 = vunpack.c.h.b16 %v1889
  %v2319 = vunpack.c.l.b16 %v1890
  %v2320 = vunpack.c.h.b16 %v1890
  %v2321 = vunpack.c.l.b16 %v1891
  %v2322 = vunpack.c.h.b16 %v1891
  %v2323 = vunpack.c.l.b16 %v1892
  %v2324 = vunpack.c.h.b16 %v1892
  %v2325 = vunpack.c.l.b16 %v1893
  %v2326 = vunpack.c.h.b16 %v1893
  %v2327 = vunpack.c.l.b16 %v1894
  %v2328 = vunpack.c.h.b16 %v1894
  %v2329 = vunpack.c.l.b16 %v1895
  %v2330 = vunpack.c.h.b16 %v1895
  %v2331 = vunpack.c.l.b16 %v1896
  %v2332 = vunpack.c.h.b16 %v1896
  %v2333 = vunpack.c.l.b16 %v1897
  %v2334 = vunpack.c.h.b16 %v1897
  %v2335 = vunpack.c.l.b16 %v1898
  %v2336 = vunpack.c.h.b16 %v1898
  %v2337 = vunpack.c.l.b16 %v1899
  %v2338 = vunpack.c.h.b16 %v1899
  %v2339 = vunpack.c.l.b16 %v1900
  %v2340 = vunpack.c.h.b16 %v1900
  %v2341 = vunpack.c.l.b16 %v1901
  %v2342 = vunpack.c.h.b16 %v1901
  %v2343 = vunpack.c.l.b16 %v1902
  %v2344 = vunpack.c.h.b16 %v1902
  %v2345 = vunpack.c.l.b16 %v1903
  %v2346 = vunpack.c.h.b16 %v1903
  %v2347 = vunpack.c.l.b16 %v1904
  %v2348 = vunpack.c.h.b16 %v1904
  %v2349 = vunpack.c.l.b16 %v1905
  %v2350 = vunpack.c.h.b16 %v1905
  %v2351 = vunpack.c.l.b16 %v1906
  %v2352 = vunpack.c.h.b16 %v1906
  %v2353 = vunpack.c.l.b16 %v1907
  %v2354 = vunpack.c.h.b16 %v1907
  %v2355 = vunpack.c.l.b16 %v1908
  %v2356 = vunpack.c.h.b16 %v1908
  %v2357 = vunpack.c.l.b16 %v1909
  %v2358 = vunpack.c.h.b16 %v1909
  %v2359 = vunpack.c.l.b16 %v1910
  %v2360 = vunpack.c.h.b16 %v1910
  %v2361 = vunpack.c.l.b16 %v1911
  %v2362 = vunpack.c.h.b16 %v1911
  %v2363 = vunpack.c.l.b16 %v1912
  %v2364 = vunpack.c.h.b16 %v1912
  %v2365 = vunpack.c.l.b16 %v1913
  %v2366 = vunpack.c.h.b16 %v1913
  %v2367 = vunpack.c.l.b16 %v1914
  %v2368 = vunpack.c.h.b16 %v1914
  %v2369 = vunpack.c.l.b16 %v1915
  %v2370 = vunpack.c.h.b16 %v1915
  %v2371 = vunpack.c.l.b16 %v1916
  %v2372 = vunpack.c.h.b16 %v1916
  %v2373 = vunpack.c.l.b16 %v1917
  %v2374 = vunpack.c.h.b16 %v1917
  %v2375 = vunpack.c.l.b16 %v1918
  %v2376 = vunpack.c.h.b16 %v1918
  %v2377 = vunpack.c.l.b16 %v1919
  %v2378 = vunpack.c.h.b16 %v1919
  %v2379 = vunpack.c.l.b16 %v1920
  %v2380 = vunpack.c.h.b16 %v1920
  %v2381 = vunpack.c.l.b16 %v1921
  %v2382 = vunpack.c.h.b16 %v1921
  %v2383 = vunpack.c.l.b16 %v1922
  %v2384 = vunpack.c.h.b16 %v1922
  %v2385 = vunpack.c.l.b16 %v1923
  %v2386 = vunpack.c.h.b16 %v1923
  %v2387 = vunpack.c.l.b16 %v1924
  %v2388 = vunpack.c.h.b16 %v1924
  %v2389 = vunpack.c.l.b16 %v1925
  %v2390 = vunpack.c.h.b16 %v1925
  %v2391 = vunpack.c.l.b16 %v1926
  %v2392 = vunpack.c.h.b16 %v1926
  %v2393 = vunpack.c.l.b16 %v1927
  %v2394 = vunpack.c.h.b16 %v1927
  %v2395 = vunpack.c.l.b16 %v1928
  %v2396 = vunpack.c.h.b16 %v1928
  %v2397 = vunpack.c.l.b16 %v1929
  %v2398 = vunpack.c.h.b16 %v1929
  %v2399 = vunpack.c.l.b16 %v1930
  %v2400 = vunpack.c.h.b16 %v1930
  %v2401 = vunpack.c.l.b16 %v1931
  %v2402 = vunpack.c.h.b16 %v1931
  %v2403 = vunpack.c.l.b16 %v1932
  %v2404 = vunpack.c.h.b16 %v1932
  %v2405 = vunpack.c.l.b16 %v1933
  %v2406 = vunpack.c.h.b16 %v1933
  %v2407 = vunpack.c.l.b16 %v1934
  %v2408 = vunpack.c.h.b16 %v1934
  %v2409 = vunpack.c.l.b16 %v1935
  %v2410 = vunpack.c.h.b16 %v1935
  %v2411 = vunpack.c.l.b16 %v1936
  %v2412 = vunpack.c.h.b16 %v1936
  %v2413 = vpack.c.b16 %v2285, %v2269
  %v2414 = vpack.c.b16 %v2286, %v2270
  %v2415 = vpack.c.b16 %v2287, %v2271
  %v2416 = vpack.c.b16 %v2288, %v2272
  %v2417 = vpack.c.b16 %v2289, %v2273
  %v2418 = vpack.c.b16 %v2290, %v2274
  %v2419 = vpack.c.b16 %v2291, %v2275
  %v2420 = vpack.c.b16 %v2292, %v2276
  %v2421 = vpack.c.b16 %v2293, %v2277
  %v2422 = vpack.c.b16 %v2294, %v2278
  %v2423 = vpack.c.b16 %v2295, %v2279
  %v2424 = vpack.c.b16 %v2296, %v2280
  %v2425 = vpack.c.b16 %v2297, %v2281
  %v2426 = vpack.c.b16 %v2298, %v2282
  %v2427 = vpack.c.b16 %v2299, %v2283
  %v2428 = vpack.c.b16 %v2300, %v2284
  %v2429 = vpack.c.b16 %v2317, %v2301
  %v2430 = vpack.c.b16 %v2318, %v2302
  %v2431 = vpack.c.b16 %v2319, %v2303
  %v2432 = vpack.c.b16 %v2320, %v2304
  %v2433 = vpack.c.b16 %v2321, %v2305
  %v2434 = vpack.c.b16 %v2322, %v2306
  %v2435 = vpack.c.b16 %v2323, %v2307
  %v2436 = vpack.c.b16 %v2324, %v2308
  %v2437 = vpack.c.b16 %v2325, %v2309
  %v2438 = vpack.c.b16 %v2326, %v2310
  %v2439 = vpack.c.b16 %v2327, %v2311
  %v2440 = vpack.c.b16 %v2328, %v2312
  %v2441 = vpack.c.b16 %v2329, %v2313
  %v2442 = vpack.c.b16 %v2330, %v2314
  %v2443 = vpack.c.b16 %v2331, %v2315
  %v2444 = vpack.c.b16 %v2332, %v2316
  %v2445 = vpack.c.b16 %v2349, %v2333
  %v2446 = vpack.c.b16 %v2350, %v2334
  %v2447 = vpack.c.b16 %v2351, %v2335
  %v2448 = vpack.c.b16 %v2352, %v2336
  %v2449 = vpack.c.b16 %v2353, %v2337
  %v2450 = vpack.c.b16 %v2354, %v2338
  %v2451 = vpack.c.b16 %v2355, %v2339
  %v2452 = vpack.c.b16 %v2356, %v2340
  %v2453 = vpack.c.b16 %v2357, %v2341
  %v2454 = vpack.c.b16 %v2358, %v2342
  %v2455 = vpack.c.b16 %v2359, %v2343
  %v2456 = vpack.c.b16 %v2360, %v2344
  %v2457 = vpack.c.b16 %v2361, %v2345
  %v2458 = vpack.c.b16 %v2362, %v2346
  %v2459 = vpack.c.b16 %v2363, %v2347
  %v2460 = vpack.c.b16 %v2364, %v2348
  %v2461 = vpack.c.b16 %v2381, %v2365
  %v2462 = vpack.c.b16 %v2382, %v2366
  %v2463 = vpack.c.b16 %v2383, %v2367
  %v2464 = vpack.c.b16 %v2384, %v2368
  %v2465 = vpack.c.b16 %v2385, %v2369
  %v2466 = vpack.c.b16 %v2386, %v2370
  %v2467 = vpack.c.b16 %v2387, %v2371
  %v2468 = vpack.c.b16 %v2388, %v2372
  %v2469 = vpack.c.b16 %v2389, %v2373
  %v2470 = vpack.c.b16 %v2390, %v2374
  %v2471 = vpack.c.b16 %v2391, %v2375
  %v2472 = vpack.c.b16 %v2392, %v2376
  %v2473 = vpack.c.b16 %v2393, %v2377
  %v2474 = vpack.c.b16 %v2394, %v2378
  %v2475 = vpack.c.b16 %v2395, %v2379
  %v2476 = vpack.c.b16 %v2396, %v2380
  %v2477 = vpack.c.b16 %v2397, %v2397
  %v2478 = vpack.c.b16 %v2398, %v2398
  %v2479 = vpack.c.b16 %v2399, %v2399
  %v2480 = vpack.c.b16 %v2400, %v2400
  %v2481 = vpack.c.b16 %v2401, %v2401
  %v2482 = vpack.c.b16 %v2402, %v2402
  %v2483 = vpack.c.b16 %v2403, %v2403
  %v2484 = vpack.c.b16 %v2404, %v2404
  %v2485 = vpack.c.b16 %v2405, %v2405
  %v2486 = vpack.c.b16 %v2406, %v2406
  %v2487 = vpack.c.b16 %v2407, %v2407
  %v2488 = vpack.c.b16 %v2408, %v2408
  %v2489 = vpack.c.b16 %v2409, %v2409
  %v2490 = vpack.c.b16 %v2410, %v2410
  %v2491 = vpack.c.b16 %v2411, %v2411
  %v2492 = vpack.c.b16 %v2412, %v2412
  %v2829 = vunpack.c.l.b16 %v1937
  %v2830 = vunpack.c.l.b16 %v1938
  %v2831 = vunpack.c.l.b16 %v1939
  %v2832 = vunpack.c.l.b16 %v1940
  %v2833 = vunpack.c.l.b16 %v1941
  %v2834 = vunpack.c.l.b16 %v1942
  %v2835 = vunpack.c.l.b16 %v1943
  %v2836 = vunpack.c.l.b16 %v1944
  %v2837 = vunpack.c.l.b16 %v1945
  %v2838 = vunpack.c.l.b16 %v1946
  %v2839 = vunpack.c.l.b16 %v1947
  %v2840 = vunpack.c.l.b16 %v1948
  %v2841 = vunpack.c.l.b16 %v1949
  %v2842 = vunpack.c.l.b16 %v1950
  %v2843 = vunpack.c.l.b16 %v1951
  %v2844 = vunpack.c.l.b16 %v1952
  %v2845 = vunpack.c.l.b16 %v1953
  %v2846 = vunpack.c.l.b16 %v1954
  %v2847 = vunpack.c.l.b16 %v1955
  %v2848 = vunpack.c.l.b16 %v1956
  %v2849 = vunpack.c.l.b16 %v1957
  %v2850 = vunpack.c.l.b16 %v1958
  %v2851 = vunpack.c.l.b16 %v1959
  %v2852 = vunpack.c.l.b16 %v1960
  %v2853 = vunpack.c.l.b16 %v1961
  %v2854 = vunpack.c.l.b16 %v1962
  %v2855 = vunpack.c.l.b16 %v1963
  %v2856 = vunpack.c.l.b16 %v1964
  %v2857 = vunpack.c.l.b16 %v1965
  %v2858 = vunpack.c.l.b16 %v1966
  %v2859 = vunpack.c.l.b16 %v1967
  %v2860 = vunpack.c.l.b16 %v1968
  %v2861 = vunpack.c.l.b16 %v1969
  %v2862 = vunpack.c.l.b16 %v1970
  %v2863 = vunpack.c.l.b16 %v1971
  %v2864 = vunpack.c.l.b16 %v1972
  %v2865 = vunpack.c.l.b16 %v1973
  %v2866 = vunpack.c.l.b16 %v1974
  %v2867 = vunpack.c.l.b16 %v1975
  %v2868 = vunpack.c.l.b16 %v1976
  %v2869 = vunpack.c.l.b16 %v1977
  %v2870 = vunpack.c.l.b16 %v1978
  %v2871 = vunpack.c.l.b16 %v1979
  %v2872 = vunpack.c.l.b16 %v1980
  %v2873 = vunpack.c.l.b16 %v1981
  %v2874 = vunpack.c.l.b16 %v1982
  %v2875 = vunpack.c.l.b16 %v1983
  %v2876 = vunpack.c.l.b16 %v1984
  %v2877 = vunpack.c.l.b16 %v1985
  %v2878 = vunpack.c.l.b16 %v1986
  %v2879 = vunpack.c.l.b16 %v1987
  %v2880 = vunpack.c.l.b16 %v1988
  %v2881 = vunpack.c.l.b16 %v1989
  %v2882 = vunpack.c.l.b16 %v1990
  %v2883 = vunpack.c.l.b16 %v1991
  %v2884 = vunpack.c.l.b16 %v1992
  %v2885 = vunpack.c.l.b16 %v1993
  %v2886 = vunpack.c.l.b16 %v1994
  %v2887 = vunpack.c.l.b16 %v1995
  %v2888 = vunpack.c.l.b16 %v1996
  %v2889 = vunpack.c.l.b16 %v1997
  %v2890 = vunpack.c.l.b16 %v1998
  %v2891 = vunpack.c.l.b16 %v1999
  %v2892 = vunpack.c.l.b16 %v2000
  %v2893 = vunpack.c.l.b16 %v2001
  %v2894 = vunpack.c.l.b16 %v2002
  %v2895 = vunpack.c.l.b16 %v2003
  %v2896 = vunpack.c.l.b16 %v2004
  %v2897 = vunpack.c.l.b16 %v2005
  %v2898 = vunpack.c.l.b16 %v2006
  %v2899 = vunpack.c.l.b16 %v2007
  %v2900 = vunpack.c.l.b16 %v2008
  %v2901 = vunpack.c.l.b16 %v2009
  %v2902 = vunpack.c.l.b16 %v2010
  %v2903 = vunpack.c.l.b16 %v2011
  %v2904 = vunpack.c.l.b16 %v2012
  %v2905 = vunpack.c.l.b16 %v2013
  %v2906 = vunpack.c.l.b16 %v2014
  %v2907 = vunpack.c.l.b16 %v2015
  %v2908 = vunpack.c.l.b16 %v2016
  %v2909 = vunpack.c.l.b16 %v2017
  %v2910 = vunpack.c.l.b16 %v2018
  %v2911 = vunpack.c.l.b16 %v2019
  %v2912 = vunpack.c.l.b16 %v2020
  %v2913 = vunpack.c.l.b16 %v2021
  %v2914 = vunpack.c.l.b16 %v2022
  %v2915 = vunpack.c.l.b16 %v2023
  %v2916 = vunpack.c.l.b16 %v2024
  %v2917 = vunpack.c.l.b16 %v2025
  %v2918 = vunpack.c.l.b16 %v2026
  %v2919 = vunpack.c.l.b16 %v2027
  %v2920 = vunpack.c.l.b16 %v2028
  %v2921 = vunpack.c.l.b16 %v2029
  %v2922 = vunpack.c.l.b16 %v2030
  %v2923 = vunpack.c.l.b16 %v2031
  %v2924 = vunpack.c.l.b16 %v2032
  %v2925 = vunpack.c.l.b16 %v2033
  %v2926 = vunpack.c.l.b16 %v2034
  %v2927 = vunpack.c.l.b16 %v2035
  %v2928 = vunpack.c.l.b16 %v2036
  %v2929 = vunpack.c.l.b16 %v2037
  %v2930 = vunpack.c.l.b16 %v2038
  %v2931 = vunpack.c.l.b16 %v2039
  %v2932 = vunpack.c.l.b16 %v2040
  %v2933 = vunpack.c.l.b16 %v2041
  %v2934 = vunpack.c.l.b16 %v2042
  %v2935 = vunpack.c.l.b16 %v2043
  %v2936 = vunpack.c.l.b16 %v2044
  %v2937 = vunpack.c.l.b16 %v2045
  %v2938 = vunpack.c.l.b16 %v2046
  %v2939 = vunpack.c.l.b16 %v2047
  %v2940 = vunpack.c.l.b16 %v2048
  %v2941 = vunpack.c.l.b16 %v2049
  %v2942 = vunpack.c.l.b16 %v2050
  %v2943 = vunpack.c.l.b16 %v2051
  %v2944 = vunpack.c.l.b16 %v2052
  %v2945 = vunpack.c.l.b16 %v2053
  %v2946 = vunpack.c.l.b16 %v2054
  %v2947 = vunpack.c.l.b16 %v2055
  %v2948 = vunpack.c.l.b16 %v2056
  %v2949 = vunpack.c.l.b16 %v2057
  %v2950 = vunpack.c.l.b16 %v2058
  %v2951 = vunpack.c.l.b16 %v2059
  %v2952 = vunpack.c.l.b16 %v2060
  %v2953 = vunpack.c.l.b16 %v2061
  %v2954 = vunpack.c.l.b16 %v2062
  %v2955 = vunpack.c.l.b16 %v2063
  %v2956 = vunpack.c.l.b16 %v2064
  %v2957 = vunpack.c.l.b16 %v2065
  %v2958 = vunpack.c.l.b16 %v2066
  %v2959 = vunpack.c.l.b16 %v2067
  %v2960 = vunpack.c.l.b16 %v2068
  %v2961 = vunpack.c.l.b16 %v2069
  %v2962 = vunpack.c.l.b16 %v2070
  %v2963 = vunpack.c.l.b16 %v2071
  %v2964 = vunpack.c.l.b16 %v2072
  %v2965 = vunpack.c.l.b16 %v2073
  %v2966 = vunpack.c.l.b16 %v2074
  %v2967 = vunpack.c.l.b16 %v2075
  %v2968 = vunpack.c.l.b16 %v2076
  %v2969 = vunpack.c.l.b16 %v2077
  %v2970 = vunpack.c.l.b16 %v2078
  %v2971 = vunpack.c.l.b16 %v2079
  %v2972 = vunpack.c.l.b16 %v2080
  %v2973 = vunpack.c.l.b16 %v2081
  %v2974 = vunpack.c.l.b16 %v2082
  %v2975 = vunpack.c.l.b16 %v2083
  %v2976 = vunpack.c.l.b16 %v2084
  %v2977 = vunpack.c.l.b16 %v2085
  %v2978 = vunpack.c.l.b16 %v2086
  %v2979 = vunpack.c.l.b16 %v2087
  %v2980 = vunpack.c.l.b16 %v2088
  %v2981 = vunpack.c.l.b16 %v2089
  %v2982 = vunpack.c.l.b16 %v2090
  %v2983 = vunpack.c.l.b16 %v2091
  %v2984 = vunpack.c.l.b16 %v2092
  %v2985 = vunpack.c.l.b16 %v2093
  %v2986 = vunpack.c.l.b16 %v2094
  %v2987 = vunpack.c.l.b16 %v2095
  %v2988 = vunpack.c.l.b16 %v2096
  %v2989 = vunpack.c.l.b16 %v2097
  %v2990 = vunpack.c.l.b16 %v2098
  %v2991 = vunpack.c.l.b16 %v2099
  %v2992 = vunpack.c.l.b16 %v2100
  %v2993 = vunpack.c.l.b16 %v2101
  %v2994 = vunpack.c.l.b16 %v2102
  %v2995 = vunpack.c.l.b16 %v2103
  %v2996 = vunpack.c.l.b16 %v2104
  %v2997 = vunpack.c.l.b16 %v2105
  %v2998 = vunpack.c.l.b16 %v2106
  %v2999 = vunpack.c.l.b16 %v2107
  %v3000 = vunpack.c.l.b16 %v2108
  %v3001 = vunpack.c.l.b16 %v2109
  %v3002 = vunpack.c.l.b16 %v2110
  %v3003 = vunpack.c.l.b16 %v2111
  %v3004 = vunpack.c.l.b16 %v2112
  %v3005 = vunpack.c.l.b16 %v2113
  %v3006 = vunpack.c.l.b16 %v2114
  %v3007 = vunpack.c.l.b16 %v2115
  %v3008 = vunpack.c.l.b16 %v2116
  %v3009 = vunpack.c.l.b16 %v2117
  %v3010 = vunpack.c.l.b16 %v2118
  %v3011 = vunpack.c.l.b16 %v2119
  %v3012 = vunpack.c.l.b16 %v2120
  %v3013 = vunpack.c.l.b16 %v2121
  %v3014 = vunpack.c.l.b16 %v2122
  %v3015 = vunpack.c.l.b16 %v2123
  %v3016 = vunpack.c.l.b16 %v2124
  %v3017 = vunpack.c.l.b16 %v2125
  %v3018 = vunpack.c.l.b16 %v2126
  %v3019 = vunpack.c.l.b16 %v2127
  %v3020 = vunpack.c.l.b16 %v2128
  %v3021 = vunpack.c.l.b16 %v2129
  %v3022 = vunpack.c.l.b16 %v2130
  %v3023 = vunpack.c.l.b16 %v2131
  %v3024 = vunpack.c.l.b16 %v2132
  %v3025 = vunpack.c.l.b16 %v2133
  %v3026 = vunpack.c.l.b16 %v2134
  %v3027 = vunpack.c.l.b16 %v2135
  %v3028 = vunpack.c.l.b16 %v2136
  %v3029 = vunpack.c.l.b16 %v2137
  %v3030 = vunpack.c.l.b16 %v2138
  %v3031 = vunpack.c.l.b16 %v2139
  %v3032 = vunpack.c.l.b16 %v2140
  %v3033 = vunpack.c.l.b16 %v2141
  %v3034 = vunpack.c.l.b16 %v2142
  %v3035 = vunpack.c.l.b16 %v2143
  %v3036 = vunpack.c.l.b16 %v2144
  %v3037 = vunpack.c.l.b16 %v2145
  %v3038 = vunpack.c.l.b16 %v2146
  %v3039 = vunpack.c.l.b16 %v2147
  %v3040 = vunpack.c.l.b16 %v2148
  %v3041 = vunpack.c.l.b16 %v2149
  %v3042 = vunpack.c.l.b16 %v2150
  %v3043 = vunpack.c.l.b16 %v2151
  %v3044 = vunpack.c.l.b16 %v2152
  %v3045 = vunpack.c.l.b16 %v2153
  %v3046 = vunpack.c.l.b16 %v2154
  %v3047 = vunpack.c.l.b16 %v2155
  %v3048 = vunpack.c.l.b16 %v2156
  %v3049 = vunpack.c.l.b16 %v2157
  %v3050 = vunpack.c.l.b16 %v2158
  %v3051 = vunpack.c.l.b16 %v2159
  %v3052 = vunpack.c.l.b16 %v2160
  %v3053 = vunpack.c.l.b16 %v2161
  %v3054 = vunpack.c.l.b16 %v2162
  %v3055 = vunpack.c.l.b16 %v2163
  %v3056 = vunpack.c.l.b16 %v2164
  %v3057 = vunpack.c.l.b16 %v2165
  %v3058 = vunpack.c.l.b16 %v2166
  %v3059 = vunpack.c.l.b16 %v2167
  %v3060 = vunpack.c.l.b16 %v2168
  %v3061 = vunpack.c.l.b16 %v2169
  %v3062 = vunpack.c.l.b16 %v2170
  %v3063 = vunpack.c.l.b16 %v2171
  %v3064 = vunpack.c.l.b16 %v2172
  %v3065 = vunpack.c.l.b16 %v2173
  %v3066 = vunpack.c.l.b16 %v2174
  %v3067 = vunpack.c.l.b16 %v2175
  %v3068 = vunpack.c.l.b16 %v2176
  %v3069 = vunpack.c.l.b16 %v2177
  %v3070 = vunpack.c.l.b16 %v2178
  %v3071 = vunpack.c.l.b16 %v2179
  %v3072 = vunpack.c.l.b16 %v2180
  %v3073 = vunpack.c.l.b16 %v2181
  %v3074 = vunpack.c.l.b16 %v2182
  %v3075 = vunpack.c.l.b16 %v2183
  %v3076 = vunpack.c.l.b16 %v2184
  %v3077 = vunpack.c.l.b16 %v2185
  %v3078 = vunpack.c.l.b16 %v2186
  %v3079 = vunpack.c.l.b16 %v2187
  %v3080 = vunpack.c.l.b16 %v2188
  %v3081 = vunpack.c.l.b16 %v2189
  %v3082 = vunpack.c.l.b16 %v2190
  %v3083 = vunpack.c.l.b16 %v2191
  %v3084 = vunpack.c.l.b16 %v2192
  %v3085 = vpack.c.b16 %v2830, %v2829
  %v3086 = vpack.c.b16 %v2832, %v2831
  %v3087 = vpack.c.b16 %v2834, %v2833
  %v3088 = vpack.c.b16 %v2836, %v2835
  %v3089 = vpack.c.b16 %v2838, %v2837
  %v3090 = vpack.c.b16 %v2840, %v2839
  %v3091 = vpack.c.b16 %v2842, %v2841
  %v3092 = vpack.c.b16 %v2844, %v2843
  %v3093 = vpack.c.b16 %v2846, %v2845
  %v3094 = vpack.c.b16 %v2848, %v2847
  %v3095 = vpack.c.b16 %v2850, %v2849
  %v3096 = vpack.c.b16 %v2852, %v2851
  %v3097 = vpack.c.b16 %v2854, %v2853
  %v3098 = vpack.c.b16 %v2856, %v2855
  %v3099 = vpack.c.b16 %v2858, %v2857
  %v3100 = vpack.c.b16 %v2860, %v2859
  %v3101 = vpack.c.b16 %v2862, %v2861
  %v3102 = vpack.c.b16 %v2864, %v2863
  %v3103 = vpack.c.b16 %v2866, %v2865
  %v3104 = vpack.c.b16 %v2868, %v2867
  %v3105 = vpack.c.b16 %v2870, %v2869
  %v3106 = vpack.c.b16 %v2872, %v2871
  %v3107 = vpack.c.b16 %v2874, %v2873
  %v3108 = vpack.c.b16 %v2876, %v2875
  %v3109 = vpack.c.b16 %v2878, %v2877
  %v3110 = vpack.c.b16 %v2880, %v2879
  %v3111 = vpack.c.b16 %v2882, %v2881
  %v3112 = vpack.c.b16 %v2884, %v2883
  %v3113 = vpack.c.b16 %v2886, %v2885
  %v3114 = vpack.c.b16 %v2888, %v2887
  %v3115 = vpack.c.b16 %v2890, %v2889
  %v3116 = vpack.c.b16 %v2892, %v2891
  %v3117 = vpack.c.b16 %v2894, %v2893
  %v3118 = vpack.c.b16 %v2896, %v2895
  %v3119 = vpack.c.b16 %v2898, %v2897
  %v3120 = vpack.c.b16 %v2900, %v2899
  %v3121 = vpack.c.b16 %v2902, %v2901
  %v3122 = vpack.c.b16 %v2904, %v2903
  %v3123 = vpack.c.b16 %v2906, %v2905
  %v3124 = vpack.c.b16 %v2908, %v2907
  %v3125 = vpack.c.b16 %v2910, %v2909
  %v3126 = vpack.c.b16 %v2912, %v2911
  %v3127 = vpack.c.b16 %v2914, %v2913
  %v3128 = vpack.c.b16 %v2916, %v2915
  %v3129 = vpack.c.b16 %v2918, %v2917
  %v3130 = vpack.c.b16 %v2920, %v2919
  %v3131 = vpack.c.b16 %v2922, %v2921
  %v3132 = vpack.c.b16 %v2924, %v2923
  %v3133 = vpack.c.b16 %v2926, %v2925
  %v3134 = vpack.c.b16 %v2928, %v2927
  %v3135 = vpack.c.b16 %v2930, %v2929
  %v3136 = vpack.c.b16 %v2932, %v2931
  %v3137 = vpack.c.b16 %v2934, %v2933
  %v3138 = vpack.c.b16 %v2936, %v2935
  %v3139 = vpack.c.b16 %v2938, %v2937
  %v3140 = vpack.c.b16 %v2940, %v2939
  %v3141 = vpack.c.b16 %v2942, %v2941
  %v3142 = vpack.c.b16 %v2944, %v2943
  %v3143 = vpack.c.b16 %v2946, %v2945
  %v3144 = vpack.c.b16 %v2948, %v2947
  %v3145 = vpack.c.b16 %v2950, %v2949
  %v3146 = vpack.c.b16 %v2952, %v2951
  %v3147 = vpack.c.b16 %v2954, %v2953
  %v3148 = vpack.c.b16 %v2956, %v2955
  %v3149 = vpack.c.b16 %v2958, %v2957
  %v3150 = vpack.c.b16 %v2960, %v2959
  %v3151 = vpack.c.b16 %v2962, %v2961
  %v3152 = vpack.c.b16 %v2964, %v2963
  %v3153 = vpack.c.b16 %v2966, %v2965
  %v3154 = vpack.c.b16 %v2968, %v2967
  %v3155 = vpack.c.b16 %v2970, %v2969
  %v3156 = vpack.c.b16 %v2972, %v2971
  %v3157 = vpack.c.b16 %v2974, %v2973
  %v3158 = vpack.c.b16 %v2976, %v2975
  %v3159 = vpack.c.b16 %v2978, %v2977
  %v3160 = vpack.c.b16 %v2980, %v2979
  %v3161 = vpack.c.b16 %v2982, %v2981
  %v3162 = vpack.c.b16 %v2984, %v2983
  %v3163 = vpack.c.b16 %v2986, %v2985
  %v3164 = vpack.c.b16 %v2988, %v2987
  %v3165 = vpack.c.b16 %v2990, %v2989
  %v3166 = vpack.c.b16 %v2992, %v2991
  %v3167 = vpack.c.b16 %v2994, %v2993
  %v3168 = vpack.c.b16 %v2996, %v2995
  %v3169 = vpack.c.b16 %v2998, %v2997
  %v3170 = vpack.c.b16 %v3000, %v2999
  %v3171 = vpack.c.b16 %v3002, %v3001
  %v3172 = vpack.c.b16 %v3004, %v3003
  %v3173 = vpack.c.b16 %v3006, %v3005
  %v3174 = vpack.c.b16 %v3008, %v3007
  %v3175 = vpack.c.b16 %v3010, %v3009
  %v3176 = vpack.c.b16 %v3012, %v3011
  %v3177 = vpack.c.b16 %v3014, %v3013
  %v3178 = vpack.c.b16 %v3016, %v3015
  %v3179 = vpack.c.b16 %v3018, %v3017
  %v3180 = vpack.c.b16 %v3020, %v3019
  %v3181 = vpack.c.b16 %v3022, %v3021
  %v3182 = vpack.c.b16 %v3024, %v3023
  %v3183 = vpack.c.b16 %v3026, %v3025
  %v3184 = vpack.c.b16 %v3028, %v3027
  %v3185 = vpack.c.b16 %v3030, %v3029
  %v3186 = vpack.c.b16 %v3032, %v3031
  %v3187 = vpack.c.b16 %v3034, %v3033
  %v3188 = vpack.c.b16 %v3036, %v3035
  %v3189 = vpack.c.b16 %v3038, %v3037
  %v3190 = vpack.c.b16 %v3040, %v3039
  %v3191 = vpack.c.b16 %v3042, %v3041
  %v3192 = vpack.c.b16 %v3044, %v3043
  %v3193 = vpack.c.b16 %v3046, %v3045
  %v3194 = vpack.c.b16 %v3048, %v3047
  %v3195 = vpack.c.b16 %v3050, %v3049
  %v3196 = vpack.c.b16 %v3052, %v3051
  %v3197 = vpack.c.b16 %v3054, %v3053
  %v3198 = vpack.c.b16 %v3056, %v3055
  %v3199 = vpack.c.b16 %v3058, %v3057
  %v3200 = vpack.c.b16 %v3060, %v3059
  %v3201 = vpack.c.b16 %v3062, %v3061
  %v3202 = vpack.c.b16 %v3064, %v3063
  %v3203 = vpack.c.b16 %v3066, %v3065
  %v3204 = vpack.c.b16 %v3068, %v3067
  %v3205 = vpack.c.b16 %v3070, %v3069
  %v3206 = vpack.c.b16 %v3072, %v3071
  %v3207 = vpack.c.b16 %v3074, %v3073
  %v3208 = vpack.c.b16 %v3076, %v3075
  %v3209 = vpack.c.b16 %v3078, %v3077
  %v3210 = vpack.c.b16 %v3080, %v3079
  %v3211 = vpack.c.b16 %v3082, %v3081
  %v3212 = vpack.c.b16 %v3084, %v3083
  %3341 = vmatpush.bf16.msra.mxu0 %v3092
  %3342 = vmatpush.bf16.msra.mxu0 %v3091
  %3343 = vmatpush.bf16.msra.mxu0 %v3090
  %3344 = vmatpush.bf16.msra.mxu0 %v3089
  %3345 = vmatpush.bf16.msra.mxu0 %v3088
  %3346 = vmatpush.bf16.msra.mxu0 %v3087
  %3347 = vmatpush.bf16.msra.mxu0 %v3086
  %3348 = vmatpush.bf16.msra.mxu0 %v3085
  %3349 = vmatmul.bf16.gmra.mxu0 %v2413
  %v3350 = vpop.f32.mrf.mxu0
  %v3351 = vadd.f32 %v2195, %v3350
  %v3352 = vpop.f32.mrf.mxu0
  %v3353 = vadd.f32 %v2195, %v3352
  %3354 = vmatmul.bf16.gmra.mxu0 %v2429
  %v3355 = vpop.f32.mrf.mxu0
  %v3356 = vadd.f32 %v2195, %v3355
  %v3357 = vpop.f32.mrf.mxu0
  %v3358 = vadd.f32 %v2195, %v3357
  %3359 = vmatmul.bf16.gmra.mxu0 %v2445
  %v3360 = vpop.f32.mrf.mxu0
  %v3361 = vadd.f32 %v2195, %v3360
  %v3362 = vpop.f32.mrf.mxu0
  %v3363 = vadd.f32 %v2195, %v3362
  %3364 = vmatmul.bf16.gmra.mxu0 %v2461
  %v3365 = vpop.f32.mrf.mxu0
  %v3366 = vadd.f32 %v2195, %v3365
  %v3367 = vpop.f32.mrf.mxu0
  %v3368 = vadd.f32 %v2195, %v3367
  %3369 = vmatmul.bf16.gmra.mxu0 %v2477
  %v3370 = vpop.f32.mrf.mxu0
  %v3371 = vadd.f32 %v2195, %v3370
  %v3372 = vpop.f32.mrf.mxu0
  %3373 = vdwg.mxu0
  %3374 = vmatpush.bf16.msra.mxu0 %v3100
  %3375 = vmatpush.bf16.msra.mxu0 %v3099
  %3376 = vmatpush.bf16.msra.mxu0 %v3098
  %3377 = vmatpush.bf16.msra.mxu0 %v3097
  %3378 = vmatpush.bf16.msra.mxu0 %v3096
  %3379 = vmatpush.bf16.msra.mxu0 %v3095
  %3380 = vmatpush.bf16.msra.mxu0 %v3094
  %3381 = vmatpush.bf16.msra.mxu0 %v3093
  %3382 = vmatmul.bf16.gmra.mxu0 %v2414
  %v3383 = vpop.f32.mrf.mxu0
  %v3384 = vadd.f32 %v3351, %v3383
  %v3385 = vpop.f32.mrf.mxu0
  %v3386 = vadd.f32 %v3353, %v3385
  %3387 = vmatmul.bf16.gmra.mxu0 %v2430
  %v3388 = vpop.f32.mrf.mxu0
  %v3389 = vadd.f32 %v3356, %v3388
  %v3390 = vpop.f32.mrf.mxu0
  %v3391 = vadd.f32 %v3358, %v3390
  %3392 = vmatmul.bf16.gmra.mxu0 %v2446
  %v3393 = vpop.f32.mrf.mxu0
  %v3394 = vadd.f32 %v3361, %v3393
  %v3395 = vpop.f32.mrf.mxu0
  %v3396 = vadd.f32 %v3363, %v3395
  %3397 = vmatmul.bf16.gmra.mxu0 %v2462
  %v3398 = vpop.f32.mrf.mxu0
  %v3399 = vadd.f32 %v3366, %v3398
  %v3400 = vpop.f32.mrf.mxu0
  %v3401 = vadd.f32 %v3368, %v3400
  %3402 = vmatmul.bf16.gmra.mxu0 %v2478
  %v3403 = vpop.f32.mrf.mxu0
  %v3404 = vadd.f32 %v3371, %v3403
  %v3405 = vpop.f32.mrf.mxu0
  %3406 = vdwg.mxu0
  %3407 = vmatpush.bf16.msra.mxu0 %v3108
  %3408 = vmatpush.bf16.msra.mxu0 %v3107
  %3409 = vmatpush.bf16.msra.mxu0 %v3106
  %3410 = vmatpush.bf16.msra.mxu0 %v3105
  %3411 = vmatpush.bf16.msra.mxu0 %v3104
  %3412 = vmatpush.bf16.msra.mxu0 %v3103
  %3413 = vmatpush.bf16.msra.mxu0 %v3102
  %3414 = vmatpush.bf16.msra.mxu0 %v3101
  %3415 = vmatmul.bf16.gmra.mxu0 %v2415
  %v3416 = vpop.f32.mrf.mxu0
  %v3417 = vadd.f32 %v3384, %v3416
  %v3418 = vpop.f32.mrf.mxu0
  %v3419 = vadd.f32 %v3386, %v3418
  %3420 = vmatmul.bf16.gmra.mxu0 %v2431
  %v3421 = vpop.f32.mrf.mxu0
  %v3422 = vadd.f32 %v3389, %v3421
  %v3423 = vpop.f32.mrf.mxu0
  %v3424 = vadd.f32 %v3391, %v3423
  %3425 = vmatmul.bf16.gmra.mxu0 %v2447
  %v3426 = vpop.f32.mrf.mxu0
  %v3427 = vadd.f32 %v3394, %v3426
  %v3428 = vpop.f32.mrf.mxu0
  %v3429 = vadd.f32 %v3396, %v3428
  %3430 = vmatmul.bf16.gmra.mxu0 %v2463
  %v3431 = vpop.f32.mrf.mxu0
  %v3432 = vadd.f32 %v3399, %v3431
  %v3433 = vpop.f32.mrf.mxu0
  %v3434 = vadd.f32 %v3401, %v3433
  %3435 = vmatmul.bf16.gmra.mxu0 %v2479
  %v3436 = vpop.f32.mrf.mxu0
  %v3437 = vadd.f32 %v3404, %v3436
  %v3438 = vpop.f32.mrf.mxu0
  %3439 = vdwg.mxu0
  %3440 = vmatpush.bf16.msra.mxu0 %v3116
  %3441 = vmatpush.bf16.msra.mxu0 %v3115
  %3442 = vmatpush.bf16.msra.mxu0 %v3114
  %3443 = vmatpush.bf16.msra.mxu0 %v3113
  %3444 = vmatpush.bf16.msra.mxu0 %v3112
  %3445 = vmatpush.bf16.msra.mxu0 %v3111
  %3446 = vmatpush.bf16.msra.mxu0 %v3110
  %3447 = vmatpush.bf16.msra.mxu0 %v3109
  %3448 = vmatmul.bf16.gmra.mxu0 %v2416
  %v3449 = vpop.f32.mrf.mxu0
  %v3450 = vadd.f32 %v3417, %v3449
  %v3451 = vpop.f32.mrf.mxu0
  %v3452 = vadd.f32 %v3419, %v3451
  %3453 = vmatmul.bf16.gmra.mxu0 %v2432
  %v3454 = vpop.f32.mrf.mxu0
  %v3455 = vadd.f32 %v3422, %v3454
  %v3456 = vpop.f32.mrf.mxu0
  %v3457 = vadd.f32 %v3424, %v3456
  %3458 = vmatmul.bf16.gmra.mxu0 %v2448
  %v3459 = vpop.f32.mrf.mxu0
  %v3460 = vadd.f32 %v3427, %v3459
  %v3461 = vpop.f32.mrf.mxu0
  %v3462 = vadd.f32 %v3429, %v3461
  %3463 = vmatmul.bf16.gmra.mxu0 %v2464
  %v3464 = vpop.f32.mrf.mxu0
  %v3465 = vadd.f32 %v3432, %v3464
  %v3466 = vpop.f32.mrf.mxu0
  %v3467 = vadd.f32 %v3434, %v3466
  %3468 = vmatmul.bf16.gmra.mxu0 %v2480
  %v3469 = vpop.f32.mrf.mxu0
  %v3470 = vadd.f32 %v3437, %v3469
  %v3471 = vpop.f32.mrf.mxu0
  %3472 = vdwg.mxu0
  %3473 = vmatpush.bf16.msra.mxu0 %v3124
  %3474 = vmatpush.bf16.msra.mxu0 %v3123
  %3475 = vmatpush.bf16.msra.mxu0 %v3122
  %3476 = vmatpush.bf16.msra.mxu0 %v3121
  %3477 = vmatpush.bf16.msra.mxu0 %v3120
  %3478 = vmatpush.bf16.msra.mxu0 %v3119
  %3479 = vmatpush.bf16.msra.mxu0 %v3118
  %3480 = vmatpush.bf16.msra.mxu0 %v3117
  %3481 = vmatmul.bf16.gmra.mxu0 %v2417
  %v3482 = vpop.f32.mrf.mxu0
  %v3483 = vadd.f32 %v3450, %v3482
  %v3484 = vpop.f32.mrf.mxu0
  %v3485 = vadd.f32 %v3452, %v3484
  %3486 = vmatmul.bf16.gmra.mxu0 %v2433
  %v3487 = vpop.f32.mrf.mxu0
  %v3488 = vadd.f32 %v3455, %v3487
  %v3489 = vpop.f32.mrf.mxu0
  %v3490 = vadd.f32 %v3457, %v3489
  %3491 = vmatmul.bf16.gmra.mxu0 %v2449
  %v3492 = vpop.f32.mrf.mxu0
  %v3493 = vadd.f32 %v3460, %v3492
  %v3494 = vpop.f32.mrf.mxu0
  %v3495 = vadd.f32 %v3462, %v3494
  %3496 = vmatmul.bf16.gmra.mxu0 %v2465
  %v3497 = vpop.f32.mrf.mxu0
  %v3498 = vadd.f32 %v3465, %v3497
  %v3499 = vpop.f32.mrf.mxu0
  %v3500 = vadd.f32 %v3467, %v3499
  %3501 = vmatmul.bf16.gmra.mxu0 %v2481
  %v3502 = vpop.f32.mrf.mxu0
  %v3503 = vadd.f32 %v3470, %v3502
  %v3504 = vpop.f32.mrf.mxu0
  %3505 = vdwg.mxu0
  %3506 = vmatpush.bf16.msra.mxu0 %v3132
  %3507 = vmatpush.bf16.msra.mxu0 %v3131
  %3508 = vmatpush.bf16.msra.mxu0 %v3130
  %3509 = vmatpush.bf16.msra.mxu0 %v3129
  %3510 = vmatpush.bf16.msra.mxu0 %v3128
  %3511 = vmatpush.bf16.msra.mxu0 %v3127
  %3512 = vmatpush.bf16.msra.mxu0 %v3126
  %3513 = vmatpush.bf16.msra.mxu0 %v3125
  %3514 = vmatmul.bf16.gmra.mxu0 %v2418
  %v3515 = vpop.f32.mrf.mxu0
  %v3516 = vadd.f32 %v3483, %v3515
  %v3517 = vpop.f32.mrf.mxu0
  %v3518 = vadd.f32 %v3485, %v3517
  %3519 = vmatmul.bf16.gmra.mxu0 %v2434
  %v3520 = vpop.f32.mrf.mxu0
  %v3521 = vadd.f32 %v3488, %v3520
  %v3522 = vpop.f32.mrf.mxu0
  %v3523 = vadd.f32 %v3490, %v3522
  %3524 = vmatmul.bf16.gmra.mxu0 %v2450
  %v3525 = vpop.f32.mrf.mxu0
  %v3526 = vadd.f32 %v3493, %v3525
  %v3527 = vpop.f32.mrf.mxu0
  %v3528 = vadd.f32 %v3495, %v3527
  %3529 = vmatmul.bf16.gmra.mxu0 %v2466
  %v3530 = vpop.f32.mrf.mxu0
  %v3531 = vadd.f32 %v3498, %v3530
  %v3532 = vpop.f32.mrf.mxu0
  %v3533 = vadd.f32 %v3500, %v3532
  %3534 = vmatmul.bf16.gmra.mxu0 %v2482
  %v3535 = vpop.f32.mrf.mxu0
  %v3536 = vadd.f32 %v3503, %v3535
  %v3537 = vpop.f32.mrf.mxu0
  %3538 = vdwg.mxu0
  %3539 = vmatpush.bf16.msra.mxu0 %v3140
  %3540 = vmatpush.bf16.msra.mxu0 %v3139
  %3541 = vmatpush.bf16.msra.mxu0 %v3138
  %3542 = vmatpush.bf16.msra.mxu0 %v3137
  %3543 = vmatpush.bf16.msra.mxu0 %v3136
  %3544 = vmatpush.bf16.msra.mxu0 %v3135
  %3545 = vmatpush.bf16.msra.mxu0 %v3134
  %3546 = vmatpush.bf16.msra.mxu0 %v3133
  %3547 = vmatmul.bf16.gmra.mxu0 %v2419
  %v3548 = vpop.f32.mrf.mxu0
  %v3549 = vadd.f32 %v3516, %v3548
  %v3550 = vpop.f32.mrf.mxu0
  %v3551 = vadd.f32 %v3518, %v3550
  %3552 = vmatmul.bf16.gmra.mxu0 %v2435
  %v3553 = vpop.f32.mrf.mxu0
  %v3554 = vadd.f32 %v3521, %v3553
  %v3555 = vpop.f32.mrf.mxu0
  %v3556 = vadd.f32 %v3523, %v3555
  %3557 = vmatmul.bf16.gmra.mxu0 %v2451
  %v3558 = vpop.f32.mrf.mxu0
  %v3559 = vadd.f32 %v3526, %v3558
  %v3560 = vpop.f32.mrf.mxu0
  %v3561 = vadd.f32 %v3528, %v3560
  %3562 = vmatmul.bf16.gmra.mxu0 %v2467
  %v3563 = vpop.f32.mrf.mxu0
  %v3564 = vadd.f32 %v3531, %v3563
  %v3565 = vpop.f32.mrf.mxu0
  %v3566 = vadd.f32 %v3533, %v3565
  %3567 = vmatmul.bf16.gmra.mxu0 %v2483
  %v3568 = vpop.f32.mrf.mxu0
  %v3569 = vadd.f32 %v3536, %v3568
  %v3570 = vpop.f32.mrf.mxu0
  %3571 = vdwg.mxu0
  %3572 = vmatpush.bf16.msra.mxu0 %v3148
  %3573 = vmatpush.bf16.msra.mxu0 %v3147
  %3574 = vmatpush.bf16.msra.mxu0 %v3146
  %3575 = vmatpush.bf16.msra.mxu0 %v3145
  %3576 = vmatpush.bf16.msra.mxu0 %v3144
  %3577 = vmatpush.bf16.msra.mxu0 %v3143
  %3578 = vmatpush.bf16.msra.mxu0 %v3142
  %3579 = vmatpush.bf16.msra.mxu0 %v3141
  %3580 = vmatmul.bf16.gmra.mxu0 %v2420
  %v3581 = vpop.f32.mrf.mxu0
  %v3582 = vadd.f32 %v3549, %v3581
  %v3583 = vpop.f32.mrf.mxu0
  %v3584 = vadd.f32 %v3551, %v3583
  %3585 = vmatmul.bf16.gmra.mxu0 %v2436
  %v3586 = vpop.f32.mrf.mxu0
  %v3587 = vadd.f32 %v3554, %v3586
  %v3588 = vpop.f32.mrf.mxu0
  %v3589 = vadd.f32 %v3556, %v3588
  %3590 = vmatmul.bf16.gmra.mxu0 %v2452
  %v3591 = vpop.f32.mrf.mxu0
  %v3592 = vadd.f32 %v3559, %v3591
  %v3593 = vpop.f32.mrf.mxu0
  %v3594 = vadd.f32 %v3561, %v3593
  %3595 = vmatmul.bf16.gmra.mxu0 %v2468
  %v3596 = vpop.f32.mrf.mxu0
  %v3597 = vadd.f32 %v3564, %v3596
  %v3598 = vpop.f32.mrf.mxu0
  %v3599 = vadd.f32 %v3566, %v3598
  %3600 = vmatmul.bf16.gmra.mxu0 %v2484
  %v3601 = vpop.f32.mrf.mxu0
  %v3602 = vadd.f32 %v3569, %v3601
  %v3603 = vpop.f32.mrf.mxu0
  %3604 = vdwg.mxu0
  %3605 = vmatpush.bf16.msra.mxu0 %v3156
  %3606 = vmatpush.bf16.msra.mxu0 %v3155
  %3607 = vmatpush.bf16.msra.mxu0 %v3154
  %3608 = vmatpush.bf16.msra.mxu0 %v3153
  %3609 = vmatpush.bf16.msra.mxu0 %v3152
  %3610 = vmatpush.bf16.msra.mxu0 %v3151
  %3611 = vmatpush.bf16.msra.mxu0 %v3150
  %3612 = vmatpush.bf16.msra.mxu0 %v3149
  %3613 = vmatmul.bf16.gmra.mxu0 %v2421
  %v3614 = vpop.f32.mrf.mxu0
  %v3615 = vadd.f32 %v3582, %v3614
  %v3616 = vpop.f32.mrf.mxu0
  %v3617 = vadd.f32 %v3584, %v3616
  %3618 = vmatmul.bf16.gmra.mxu0 %v2437
  %v3619 = vpop.f32.mrf.mxu0
  %v3620 = vadd.f32 %v3587, %v3619
  %v3621 = vpop.f32.mrf.mxu0
  %v3622 = vadd.f32 %v3589, %v3621
  %3623 = vmatmul.bf16.gmra.mxu0 %v2453
  %v3624 = vpop.f32.mrf.mxu0
  %v3625 = vadd.f32 %v3592, %v3624
  %v3626 = vpop.f32.mrf.mxu0
  %v3627 = vadd.f32 %v3594, %v3626
  %3628 = vmatmul.bf16.gmra.mxu0 %v2469
  %v3629 = vpop.f32.mrf.mxu0
  %v3630 = vadd.f32 %v3597, %v3629
  %v3631 = vpop.f32.mrf.mxu0
  %v3632 = vadd.f32 %v3599, %v3631
  %3633 = vmatmul.bf16.gmra.mxu0 %v2485
  %v3634 = vpop.f32.mrf.mxu0
  %v3635 = vadd.f32 %v3602, %v3634
  %v3636 = vpop.f32.mrf.mxu0
  %3637 = vdwg.mxu0
  %3638 = vmatpush.bf16.msra.mxu0 %v3164
  %3639 = vmatpush.bf16.msra.mxu0 %v3163
  %3640 = vmatpush.bf16.msra.mxu0 %v3162
  %3641 = vmatpush.bf16.msra.mxu0 %v3161
  %3642 = vmatpush.bf16.msra.mxu0 %v3160
  %3643 = vmatpush.bf16.msra.mxu0 %v3159
  %3644 = vmatpush.bf16.msra.mxu0 %v3158
  %3645 = vmatpush.bf16.msra.mxu0 %v3157
  %3646 = vmatmul.bf16.gmra.mxu0 %v2422
  %v3647 = vpop.f32.mrf.mxu0
  %v3648 = vadd.f32 %v3615, %v3647
  %v3649 = vpop.f32.mrf.mxu0
  %v3650 = vadd.f32 %v3617, %v3649
  %3651 = vmatmul.bf16.gmra.mxu0 %v2438
  %v3652 = vpop.f32.mrf.mxu0
  %v3653 = vadd.f32 %v3620, %v3652
  %v3654 = vpop.f32.mrf.mxu0
  %v3655 = vadd.f32 %v3622, %v3654
  %3656 = vmatmul.bf16.gmra.mxu0 %v2454
  %v3657 = vpop.f32.mrf.mxu0
  %v3658 = vadd.f32 %v3625, %v3657
  %v3659 = vpop.f32.mrf.mxu0
  %v3660 = vadd.f32 %v3627, %v3659
  %3661 = vmatmul.bf16.gmra.mxu0 %v2470
  %v3662 = vpop.f32.mrf.mxu0
  %v3663 = vadd.f32 %v3630, %v3662
  %v3664 = vpop.f32.mrf.mxu0
  %v3665 = vadd.f32 %v3632, %v3664
  %3666 = vmatmul.bf16.gmra.mxu0 %v2486
  %v3667 = vpop.f32.mrf.mxu0
  %v3668 = vadd.f32 %v3635, %v3667
  %v3669 = vpop.f32.mrf.mxu0
  %3670 = vdwg.mxu0
  %3671 = vmatpush.bf16.msra.mxu0 %v3172
  %3672 = vmatpush.bf16.msra.mxu0 %v3171
  %3673 = vmatpush.bf16.msra.mxu0 %v3170
  %3674 = vmatpush.bf16.msra.mxu0 %v3169
  %3675 = vmatpush.bf16.msra.mxu0 %v3168
  %3676 = vmatpush.bf16.msra.mxu0 %v3167
  %3677 = vmatpush.bf16.msra.mxu0 %v3166
  %3678 = vmatpush.bf16.msra.mxu0 %v3165
  %3679 = vmatmul.bf16.gmra.mxu0 %v2423
  %v3680 = vpop.f32.mrf.mxu0
  %v3681 = vadd.f32 %v3648, %v3680
  %v3682 = vpop.f32.mrf.mxu0
  %v3683 = vadd.f32 %v3650, %v3682
  %3684 = vmatmul.bf16.gmra.mxu0 %v2439
  %v3685 = vpop.f32.mrf.mxu0
  %v3686 = vadd.f32 %v3653, %v3685
  %v3687 = vpop.f32.mrf.mxu0
  %v3688 = vadd.f32 %v3655, %v3687
  %3689 = vmatmul.bf16.gmra.mxu0 %v2455
  %v3690 = vpop.f32.mrf.mxu0
  %v3691 = vadd.f32 %v3658, %v3690
  %v3692 = vpop.f32.mrf.mxu0
  %v3693 = vadd.f32 %v3660, %v3692
  %3694 = vmatmul.bf16.gmra.mxu0 %v2471
  %v3695 = vpop.f32.mrf.mxu0
  %v3696 = vadd.f32 %v3663, %v3695
  %v3697 = vpop.f32.mrf.mxu0
  %v3698 = vadd.f32 %v3665, %v3697
  %3699 = vmatmul.bf16.gmra.mxu0 %v2487
  %v3700 = vpop.f32.mrf.mxu0
  %v3701 = vadd.f32 %v3668, %v3700
  %v3702 = vpop.f32.mrf.mxu0
  %3703 = vdwg.mxu0
  %3704 = vmatpush.bf16.msra.mxu0 %v3180
  %3705 = vmatpush.bf16.msra.mxu0 %v3179
  %3706 = vmatpush.bf16.msra.mxu0 %v3178
  %3707 = vmatpush.bf16.msra.mxu0 %v3177
  %3708 = vmatpush.bf16.msra.mxu0 %v3176
  %3709 = vmatpush.bf16.msra.mxu0 %v3175
  %3710 = vmatpush.bf16.msra.mxu0 %v3174
  %3711 = vmatpush.bf16.msra.mxu0 %v3173
  %3712 = vmatmul.bf16.gmra.mxu0 %v2424
  %v3713 = vpop.f32.mrf.mxu0
  %v3714 = vadd.f32 %v3681, %v3713
  %v3715 = vpop.f32.mrf.mxu0
  %v3716 = vadd.f32 %v3683, %v3715
  %3717 = vmatmul.bf16.gmra.mxu0 %v2440
  %v3718 = vpop.f32.mrf.mxu0
  %v3719 = vadd.f32 %v3686, %v3718
  %v3720 = vpop.f32.mrf.mxu0
  %v3721 = vadd.f32 %v3688, %v3720
  %3722 = vmatmul.bf16.gmra.mxu0 %v2456
  %v3723 = vpop.f32.mrf.mxu0
  %v3724 = vadd.f32 %v3691, %v3723
  %v3725 = vpop.f32.mrf.mxu0
  %v3726 = vadd.f32 %v3693, %v3725
  %3727 = vmatmul.bf16.gmra.mxu0 %v2472
  %v3728 = vpop.f32.mrf.mxu0
  %v3729 = vadd.f32 %v3696, %v3728
  %v3730 = vpop.f32.mrf.mxu0
  %v3731 = vadd.f32 %v3698, %v3730
  %3732 = vmatmul.bf16.gmra.mxu0 %v2488
  %v3733 = vpop.f32.mrf.mxu0
  %v3734 = vadd.f32 %v3701, %v3733
  %v3735 = vpop.f32.mrf.mxu0
  %3736 = vdwg.mxu0
  %3737 = vmatpush.bf16.msra.mxu0 %v3188
  %3738 = vmatpush.bf16.msra.mxu0 %v3187
  %3739 = vmatpush.bf16.msra.mxu0 %v3186
  %3740 = vmatpush.bf16.msra.mxu0 %v3185
  %3741 = vmatpush.bf16.msra.mxu0 %v3184
  %3742 = vmatpush.bf16.msra.mxu0 %v3183
  %3743 = vmatpush.bf16.msra.mxu0 %v3182
  %3744 = vmatpush.bf16.msra.mxu0 %v3181
  %3745 = vmatmul.bf16.gmra.mxu0 %v2425
  %v3746 = vpop.f32.mrf.mxu0
  %v3747 = vadd.f32 %v3714, %v3746
  %v3748 = vpop.f32.mrf.mxu0
  %v3749 = vadd.f32 %v3716, %v3748
  %3750 = vmatmul.bf16.gmra.mxu0 %v2441
  %v3751 = vpop.f32.mrf.mxu0
  %v3752 = vadd.f32 %v3719, %v3751
  %v3753 = vpop.f32.mrf.mxu0
  %v3754 = vadd.f32 %v3721, %v3753
  %3755 = vmatmul.bf16.gmra.mxu0 %v2457
  %v3756 = vpop.f32.mrf.mxu0
  %v3757 = vadd.f32 %v3724, %v3756
  %v3758 = vpop.f32.mrf.mxu0
  %v3759 = vadd.f32 %v3726, %v3758
  %3760 = vmatmul.bf16.gmra.mxu0 %v2473
  %v3761 = vpop.f32.mrf.mxu0
  %v3762 = vadd.f32 %v3729, %v3761
  %v3763 = vpop.f32.mrf.mxu0
  %v3764 = vadd.f32 %v3731, %v3763
  %3765 = vmatmul.bf16.gmra.mxu0 %v2489
  %v3766 = vpop.f32.mrf.mxu0
  %v3767 = vadd.f32 %v3734, %v3766
  %v3768 = vpop.f32.mrf.mxu0
  %3769 = vdwg.mxu0
  %3770 = vmatpush.bf16.msra.mxu0 %v3196
  %3771 = vmatpush.bf16.msra.mxu0 %v3195
  %3772 = vmatpush.bf16.msra.mxu0 %v3194
  %3773 = vmatpush.bf16.msra.mxu0 %v3193
  %3774 = vmatpush.bf16.msra.mxu0 %v3192
  %3775 = vmatpush.bf16.msra.mxu0 %v3191
  %3776 = vmatpush.bf16.msra.mxu0 %v3190
  %3777 = vmatpush.bf16.msra.mxu0 %v3189
  %3778 = vmatmul.bf16.gmra.mxu0 %v2426
  %v3779 = vpop.f32.mrf.mxu0
  %v3780 = vadd.f32 %v3747, %v3779
  %v3781 = vpop.f32.mrf.mxu0
  %v3782 = vadd.f32 %v3749, %v3781
  %3783 = vmatmul.bf16.gmra.mxu0 %v2442
  %v3784 = vpop.f32.mrf.mxu0
  %v3785 = vadd.f32 %v3752, %v3784
  %v3786 = vpop.f32.mrf.mxu0
  %v3787 = vadd.f32 %v3754, %v3786
  %3788 = vmatmul.bf16.gmra.mxu0 %v2458
  %v3789 = vpop.f32.mrf.mxu0
  %v3790 = vadd.f32 %v3757, %v3789
  %v3791 = vpop.f32.mrf.mxu0
  %v3792 = vadd.f32 %v3759, %v3791
  %3793 = vmatmul.bf16.gmra.mxu0 %v2474
  %v3794 = vpop.f32.mrf.mxu0
  %v3795 = vadd.f32 %v3762, %v3794
  %v3796 = vpop.f32.mrf.mxu0
  %v3797 = vadd.f32 %v3764, %v3796
  %3798 = vmatmul.bf16.gmra.mxu0 %v2490
  %v3799 = vpop.f32.mrf.mxu0
  %v3800 = vadd.f32 %v3767, %v3799
  %v3801 = vpop.f32.mrf.mxu0
  %3802 = vdwg.mxu0
  %3803 = vmatpush.bf16.msra.mxu0 %v3204
  %3804 = vmatpush.bf16.msra.mxu0 %v3203
  %3805 = vmatpush.bf16.msra.mxu0 %v3202
  %3806 = vmatpush.bf16.msra.mxu0 %v3201
  %3807 = vmatpush.bf16.msra.mxu0 %v3200
  %3808 = vmatpush.bf16.msra.mxu0 %v3199
  %3809 = vmatpush.bf16.msra.mxu0 %v3198
  %3810 = vmatpush.bf16.msra.mxu0 %v3197
  %3811 = vmatmul.bf16.gmra.mxu0 %v2427
  %v3812 = vpop.f32.mrf.mxu0
  %v3813 = vadd.f32 %v3780, %v3812
  %v3814 = vpop.f32.mrf.mxu0
  %v3815 = vadd.f32 %v3782, %v3814
  %3816 = vmatmul.bf16.gmra.mxu0 %v2443
  %v3817 = vpop.f32.mrf.mxu0
  %v3818 = vadd.f32 %v3785, %v3817
  %v3819 = vpop.f32.mrf.mxu0
  %v3820 = vadd.f32 %v3787, %v3819
  %3821 = vmatmul.bf16.gmra.mxu0 %v2459
  %v3822 = vpop.f32.mrf.mxu0
  %v3823 = vadd.f32 %v3790, %v3822
  %v3824 = vpop.f32.mrf.mxu0
  %v3825 = vadd.f32 %v3792, %v3824
  %3826 = vmatmul.bf16.gmra.mxu0 %v2475
  %v3827 = vpop.f32.mrf.mxu0
  %v3828 = vadd.f32 %v3795, %v3827
  %v3829 = vpop.f32.mrf.mxu0
  %v3830 = vadd.f32 %v3797, %v3829
  %3831 = vmatmul.bf16.gmra.mxu0 %v2491
  %v3832 = vpop.f32.mrf.mxu0
  %v3833 = vadd.f32 %v3800, %v3832
  %v3834 = vpop.f32.mrf.mxu0
  %3835 = vdwg.mxu0
  %3836 = vmatpush.bf16.msra.mxu0 %v3212
  %3837 = vmatpush.bf16.msra.mxu0 %v3211
  %3838 = vmatpush.bf16.msra.mxu0 %v3210
  %3839 = vmatpush.bf16.msra.mxu0 %v3209
  %3840 = vmatpush.bf16.msra.mxu0 %v3208
  %3841 = vmatpush.bf16.msra.mxu0 %v3207
  %3842 = vmatpush.bf16.msra.mxu0 %v3206
  %3843 = vmatpush.bf16.msra.mxu0 %v3205
  %3844 = vmatmul.bf16.gmra.mxu0 %v2428
  %v3845 = vpop.f32.mrf.mxu0
  %v3846 = vadd.f32 %v3813, %v3845
  %v3847 = vpop.f32.mrf.mxu0
  %v3848 = vadd.f32 %v3815, %v3847
  %3849 = vmatmul.bf16.gmra.mxu0 %v2444
  %v3850 = vpop.f32.mrf.mxu0
  %v3851 = vadd.f32 %v3818, %v3850
  %v3852 = vpop.f32.mrf.mxu0
  %v3853 = vadd.f32 %v3820, %v3852
  %3854 = vmatmul.bf16.gmra.mxu0 %v2460
  %v3855 = vpop.f32.mrf.mxu0
  %v3856 = vadd.f32 %v3823, %v3855
  %v3857 = vpop.f32.mrf.mxu0
  %v3858 = vadd.f32 %v3825, %v3857
  %3859 = vmatmul.bf16.gmra.mxu0 %v2476
  %v3860 = vpop.f32.mrf.mxu0
  %v3861 = vadd.f32 %v3828, %v3860
  %v3862 = vpop.f32.mrf.mxu0
  %v3863 = vadd.f32 %v3830, %v3862
  %3864 = vmatmul.bf16.gmra.mxu0 %v2492
  %v3865 = vpop.f32.mrf.mxu0
  %v3866 = vadd.f32 %v3833, %v3865
  %v3867 = vpop.f32.mrf.mxu0
  %3868 = vdwg.mxu0
  %vm3869 = vcmp.gt.f32.partialorder %v3846, 0.0
  %vm3870 = vcmp.gt.f32.partialorder %v3848, 0.0
  %vm3871 = vcmp.gt.f32.partialorder %v3851, 0.0
  %vm3872 = vcmp.gt.f32.partialorder %v3853, 0.0
  %vm3873 = vcmp.gt.f32.partialorder %v3856, 0.0
  %vm3874 = vcmp.gt.f32.partialorder %v3858, 0.0
  %vm3875 = vcmp.gt.f32.partialorder %v3861, 0.0
  %vm3876 = vcmp.gt.f32.partialorder %v3863, 0.0
  %vm3877 = vcmp.gt.f32.partialorder %v3866, 0.0
  %v3878 = vmin.f32 %v3846, 0.0
  %v3879 = vmin.f32 %v3848, 0.0
  %v3880 = vmin.f32 %v3851, 0.0
  %v3881 = vmin.f32 %v3853, 0.0
  %v3882 = vmin.f32 %v3856, 0.0
  %v3883 = vmin.f32 %v3858, 0.0
  %v3884 = vmin.f32 %v3861, 0.0
  %v3885 = vmin.f32 %v3863, 0.0
  %v3886 = vmin.f32 %v3866, 0.0
  %v3887 = vmul.f32 %v3878, 1.442695
  %v3888 = vpow.pop %v3887
  %v3889 = vmul.f32 %v3879, 1.442695
  %v3890 = vpow.pop %v3889
  %v3891 = vmul.f32 %v3880, 1.442695
  %v3892 = vpow.pop %v3891
  %v3893 = vmul.f32 %v3881, 1.442695
  %v3894 = vpow.pop %v3893
  %v3895 = vmul.f32 %v3882, 1.442695
  %v3896 = vpow.pop %v3895
  %v3897 = vmul.f32 %v3883, 1.442695
  %v3898 = vpow.pop %v3897
  %v3899 = vmul.f32 %v3884, 1.442695
  %v3900 = vpow.pop %v3899
  %v3901 = vmul.f32 %v3885, 1.442695
  %v3902 = vpow.pop %v3901
  %v3903 = vmul.f32 %v3886, 1.442695
  %v3904 = vpow.pop %v3903
  %v3905 = vsub.f32 %v3888, 1.0
  %v3906 = vsub.f32 %v3890, 1.0
  %v3907 = vsub.f32 %v3892, 1.0
  %v3908 = vsub.f32 %v3894, 1.0
  %v3909 = vsub.f32 %v3896, 1.0
  %v3910 = vsub.f32 %v3898, 1.0
  %v3911 = vsub.f32 %v3900, 1.0
  %v3912 = vsub.f32 %v3902, 1.0
  %v3913 = vsub.f32 %v3904, 1.0
  %v3914 = vsel %vm3869, %v3846, %v3905
  %v3915 = vsel %vm3870, %v3848, %v3906
  %v3916 = vsel %vm3871, %v3851, %v3907
  %v3917 = vsel %vm3872, %v3853, %v3908
  %v3918 = vsel %vm3873, %v3856, %v3909
  %v3919 = vsel %vm3874, %v3858, %v3910
  %v3920 = vsel %vm3875, %v3861, %v3911
  %v3921 = vsel %vm3876, %v3863, %v3912
  %v3922 = vsel %vm3877, %v3866, %v3913
  %3923 = vst [vmem:[#allocation3] sm:$0xff] %v3914
  %3924 = vst [vmem:[#allocation3 + $0x8] sm:$0xff] %v3915
  %3925 = vst [vmem:[#allocation3 + $0x10] sm:$0xff] %v3916
  %3926 = vst [vmem:[#allocation3 + $0x18] sm:$0xff] %v3917
  %3927 = vst [vmem:[#allocation3 + $0x20] sm:$0xff] %v3918
  %3928 = vst [vmem:[#allocation3 + $0x28] sm:$0xff] %v3919
  %3929 = vst [vmem:[#allocation3 + $0x30] sm:$0xff] %v3920
  %3930 = vst [vmem:[#allocation3 + $0x38] sm:$0xff] %v3921
  %3931 = vst [vmem:[#allocation3 + $0x40] sm:$0xff] %v3922
  %3932 = vst [vmem:[#allocation3 + $0x48] sm:$0xff] 0.0
  %3933 = vst [vmem:[#allocation3 + $0x50] sm:$0xff] 0.0
  %v3934 = vld [vmem:[#allocation3] sm:$0xff]
  %v3935 = vld [vmem:[#allocation3 + $0x8] sm:$0xff]
  %v3936 = vld [vmem:[#allocation3 + $0x10] sm:$0xff]
  %v3937 = vld [vmem:[#allocation3 + $0x18] sm:$0xff]
  %v3938 = vld [vmem:[#allocation3 + $0x20] sm:$0xff]
  %v3939 = vld [vmem:[#allocation3 + $0x28] sm:$0xff]
  %v3940 = vld [vmem:[#allocation3 + $0x30] sm:$0xff]
  %v3941 = vld [vmem:[#allocation3 + $0x38] sm:$0xff]
  %v3942 = vld [vmem:[#allocation3 + $0x40] sm:$0xff]
  %v3943 = vpack.c.bf16 %v3934, %v3934
  %v3944 = vpack.c.bf16 %v3935, %v3935
  %v3945 = vpack.c.bf16 %v3936, %v3936
  %v3946 = vpack.c.bf16 %v3937, %v3937
  %v3947 = vpack.c.bf16 %v3938, %v3938
  %v3948 = vpack.c.bf16 %v3939, %v3939
  %v3949 = vpack.c.bf16 %v3940, %v3940
  %v3950 = vpack.c.bf16 %v3941, %v3941
  %v3951 = vpack.c.bf16 %v3942, %v3942
  %3952 = vst [vmem:[#allocation5] sm:$0xf] %v3943
  %3953 = vst [vmem:[#allocation5 + $0x24] sm:$0xf] %v3944
  %3954 = vst [vmem:[#allocation5 + $0x48] sm:$0xf] %v3945
  %3955 = vst [vmem:[#allocation5 + $0x6c] sm:$0xf] %v3946
  %3956 = vst [vmem:[#allocation5 + $0x90] sm:$0xf] %v3947
  %3957 = vst [vmem:[#allocation5 + $0xb4] sm:$0xf] %v3948
  %3958 = vst [vmem:[#allocation5 + $0xd8] sm:$0xf] %v3949
  %3959 = vst [vmem:[#allocation5 + $0xfc] sm:$0xf] %v3950
  %3960 = vst [vmem:[#allocation5 + $0x120] sm:$0xf] %v3951
  %v3961 = vld [vmem:[#allocation3 + $0x1] sm:$0xff]
  %v3962 = vld [vmem:[#allocation3 + $0x9] sm:$0xff]
  %v3963 = vld [vmem:[#allocation3 + $0x11] sm:$0xff]
  %v3964 = vld [vmem:[#allocation3 + $0x19] sm:$0xff]
  %v3965 = vld [vmem:[#allocation3 + $0x21] sm:$0xff]
  %v3966 = vld [vmem:[#allocation3 + $0x29] sm:$0xff]
  %v3967 = vld [vmem:[#allocation3 + $0x31] sm:$0xff]
  %v3968 = vld [vmem:[#allocation3 + $0x39] sm:$0xff]
  %v3969 = vld [vmem:[#allocation3 + $0x41] sm:$0xff]
  %v3970 = vpack.c.bf16 %v3961, %v3961
  %v3971 = vpack.c.bf16 %v3962, %v3962
  %v3972 = vpack.c.bf16 %v3963, %v3963
  %v3973 = vpack.c.bf16 %v3964, %v3964
  %v3974 = vpack.c.bf16 %v3965, %v3965
  %v3975 = vpack.c.bf16 %v3966, %v3966
  %v3976 = vpack.c.bf16 %v3967, %v3967
  %v3977 = vpack.c.bf16 %v3968, %v3968
  %v3978 = vpack.c.bf16 %v3969, %v3969
  %3979 = vst [vmem:[#allocation5 + $0x4] sm:$0xf] %v3970
  %3980 = vst [vmem:[#allocation5 + $0x28] sm:$0xf] %v3971
  %3981 = vst [vmem:[#allocation5 + $0x4c] sm:$0xf] %v3972
  %3982 = vst [vmem:[#allocation5 + $0x70] sm:$0xf] %v3973
  %3983 = vst [vmem:[#allocation5 + $0x94] sm:$0xf] %v3974
  %3984 = vst [vmem:[#allocation5 + $0xb8] sm:$0xf] %v3975
  %3985 = vst [vmem:[#allocation5 + $0xdc] sm:$0xf] %v3976
  %3986 = vst [vmem:[#allocation5 + $0x100] sm:$0xf] %v3977
  %3987 = vst [vmem:[#allocation5 + $0x124] sm:$0xf] %v3978
  %v3988 = vld [vmem:[#allocation3 + $0x2] sm:$0xff]
  %v3989 = vld [vmem:[#allocation3 + $0xa] sm:$0xff]
  %v3990 = vld [vmem:[#allocation3 + $0x12] sm:$0xff]
  %v3991 = vld [vmem:[#allocation3 + $0x1a] sm:$0xff]
  %v3992 = vld [vmem:[#allocation3 + $0x22] sm:$0xff]
  %v3993 = vld [vmem:[#allocation3 + $0x2a] sm:$0xff]
  %v3994 = vld [vmem:[#allocation3 + $0x32] sm:$0xff]
  %v3995 = vld [vmem:[#allocation3 + $0x3a] sm:$0xff]
  %v3996 = vld [vmem:[#allocation3 + $0x42] sm:$0xff]
  %v3997 = vpack.c.bf16 %v3988, %v3988
  %v3998 = vpack.c.bf16 %v3989, %v3989
  %v3999 = vpack.c.bf16 %v3990, %v3990
  %v4000 = vpack.c.bf16 %v3991, %v3991
  %v4001 = vpack.c.bf16 %v3992, %v3992
  %v4002 = vpack.c.bf16 %v3993, %v3993
  %v4003 = vpack.c.bf16 %v3994, %v3994
  %v4004 = vpack.c.bf16 %v3995, %v3995
  %v4005 = vpack.c.bf16 %v3996, %v3996
  %4006 = vst [vmem:[#allocation5 + $0x8] sm:$0xf] %v3997
  %4007 = vst [vmem:[#allocation5 + $0x2c] sm:$0xf] %v3998
  %4008 = vst [vmem:[#allocation5 + $0x50] sm:$0xf] %v3999
  %4009 = vst [vmem:[#allocation5 + $0x74] sm:$0xf] %v4000
  %4010 = vst [vmem:[#allocation5 + $0x98] sm:$0xf] %v4001
  %4011 = vst [vmem:[#allocation5 + $0xbc] sm:$0xf] %v4002
  %4012 = vst [vmem:[#allocation5 + $0xe0] sm:$0xf] %v4003
  %4013 = vst [vmem:[#allocation5 + $0x104] sm:$0xf] %v4004
  %4014 = vst [vmem:[#allocation5 + $0x128] sm:$0xf] %v4005
  %v4015 = vld [vmem:[#allocation3 + $0x6] sm:$0xff]
  %v4016 = vld [vmem:[#allocation3 + $0xe] sm:$0xff]
  %v4017 = vld [vmem:[#allocation3 + $0x16] sm:$0xff]
  %v4018 = vld [vmem:[#allocation3 + $0x1e] sm:$0xff]
  %v4019 = vld [vmem:[#allocation3 + $0x26] sm:$0xff]
  %v4020 = vld [vmem:[#allocation3 + $0x2e] sm:$0xff]
  %v4021 = vld [vmem:[#allocation3 + $0x36] sm:$0xff]
  %v4022 = vld [vmem:[#allocation3 + $0x3e] sm:$0xff]
  %v4023 = vld [vmem:[#allocation3 + $0x46] sm:$0xff]
  %v4024 = vpack.c.bf16 %v4015, %v4015
  %v4025 = vpack.c.bf16 %v4016, %v4016
  %v4026 = vpack.c.bf16 %v4017, %v4017
  %v4027 = vpack.c.bf16 %v4018, %v4018
  %v4028 = vpack.c.bf16 %v4019, %v4019
  %v4029 = vpack.c.bf16 %v4020, %v4020
  %v4030 = vpack.c.bf16 %v4021, %v4021
  %v4031 = vpack.c.bf16 %v4022, %v4022
  %v4032 = vpack.c.bf16 %v4023, %v4023
  %4033 = vst [vmem:[#allocation5 + $0xc] sm:$0xf] %v4024
  %4034 = vst [vmem:[#allocation5 + $0x30] sm:$0xf] %v4025
  %4035 = vst [vmem:[#allocation5 + $0x54] sm:$0xf] %v4026
  %4036 = vst [vmem:[#allocation5 + $0x78] sm:$0xf] %v4027
  %4037 = vst [vmem:[#allocation5 + $0x9c] sm:$0xf] %v4028
  %4038 = vst [vmem:[#allocation5 + $0xc0] sm:$0xf] %v4029
  %4039 = vst [vmem:[#allocation5 + $0xe4] sm:$0xf] %v4030
  %4040 = vst [vmem:[#allocation5 + $0x108] sm:$0xf] %v4031
  %4041 = vst [vmem:[#allocation5 + $0x12c] sm:$0xf] %v4032
  %v4042 = vld [vmem:[#allocation3 + $0x7] sm:$0xff]
  %v4043 = vld [vmem:[#allocation3 + $0xf] sm:$0xff]
  %v4044 = vld [vmem:[#allocation3 + $0x17] sm:$0xff]
  %v4045 = vld [vmem:[#allocation3 + $0x1f] sm:$0xff]
  %v4046 = vld [vmem:[#allocation3 + $0x27] sm:$0xff]
  %v4047 = vld [vmem:[#allocation3 + $0x2f] sm:$0xff]
  %v4048 = vld [vmem:[#allocation3 + $0x37] sm:$0xff]
  %v4049 = vld [vmem:[#allocation3 + $0x3f] sm:$0xff]
  %v4050 = vld [vmem:[#allocation3 + $0x47] sm:$0xff]
  %v4051 = vpack.c.bf16 %v4042, %v4042
  %v4052 = vpack.c.bf16 %v4043, %v4043
  %v4053 = vpack.c.bf16 %v4044, %v4044
  %v4054 = vpack.c.bf16 %v4045, %v4045
  %v4055 = vpack.c.bf16 %v4046, %v4046
  %v4056 = vpack.c.bf16 %v4047, %v4047
  %v4057 = vpack.c.bf16 %v4048, %v4048
  %v4058 = vpack.c.bf16 %v4049, %v4049
  %v4059 = vpack.c.bf16 %v4050, %v4050
  %4060 = vst [vmem:[#allocation5 + $0x10] sm:$0xf] %v4051
  %4061 = vst [vmem:[#allocation5 + $0x34] sm:$0xf] %v4052
  %4062 = vst [vmem:[#allocation5 + $0x58] sm:$0xf] %v4053
  %4063 = vst [vmem:[#allocation5 + $0x7c] sm:$0xf] %v4054
  %4064 = vst [vmem:[#allocation5 + $0xa0] sm:$0xf] %v4055
  %4065 = vst [vmem:[#allocation5 + $0xc4] sm:$0xf] %v4056
  %4066 = vst [vmem:[#allocation5 + $0xe8] sm:$0xf] %v4057
  %4067 = vst [vmem:[#allocation5 + $0x10c] sm:$0xf] %v4058
  %4068 = vst [vmem:[#allocation5 + $0x130] sm:$0xf] %v4059
  %v4069 = vld [vmem:[#allocation3 + $0x8] sm:$0xff]
  %v4070 = vld [vmem:[#allocation3 + $0x10] sm:$0xff]
  %v4071 = vld [vmem:[#allocation3 + $0x18] sm:$0xff]
  %v4072 = vld [vmem:[#allocation3 + $0x20] sm:$0xff]
  %v4073 = vld [vmem:[#allocation3 + $0x28] sm:$0xff]
  %v4074 = vld [vmem:[#allocation3 + $0x30] sm:$0xff]
  %v4075 = vld [vmem:[#allocation3 + $0x38] sm:$0xff]
  %v4076 = vld [vmem:[#allocation3 + $0x40] sm:$0xff]
  %v4077 = vld [vmem:[#allocation3 + $0x48] sm:$0xff]
  %v4078 = vpack.c.bf16 %v4069, %v4069
  %v4079 = vpack.c.bf16 %v4070, %v4070
  %v4080 = vpack.c.bf16 %v4071, %v4071
  %v4081 = vpack.c.bf16 %v4072, %v4072
  %v4082 = vpack.c.bf16 %v4073, %v4073
  %v4083 = vpack.c.bf16 %v4074, %v4074
  %v4084 = vpack.c.bf16 %v4075, %v4075
  %v4085 = vpack.c.bf16 %v4076, %v4076
  %v4086 = vpack.c.bf16 %v4077, %v4077
  %4087 = vst [vmem:[#allocation5 + $0x14] sm:$0xf] %v4078
  %4088 = vst [vmem:[#allocation5 + $0x38] sm:$0xf] %v4079
  %4089 = vst [vmem:[#allocation5 + $0x5c] sm:$0xf] %v4080
  %4090 = vst [vmem:[#allocation5 + $0x80] sm:$0xf] %v4081
  %4091 = vst [vmem:[#allocation5 + $0xa4] sm:$0xf] %v4082
  %4092 = vst [vmem:[#allocation5 + $0xc8] sm:$0xf] %v4083
  %4093 = vst [vmem:[#allocation5 + $0xec] sm:$0xf] %v4084
  %4094 = vst [vmem:[#allocation5 + $0x110] sm:$0xf] %v4085
  %4095 = vst [vmem:[#allocation5 + $0x134] sm:$0xf] %v4086
  %v4096 = vld [vmem:[#allocation3 + $0xc] sm:$0xff]
  %v4097 = vld [vmem:[#allocation3 + $0x14] sm:$0xff]
  %v4098 = vld [vmem:[#allocation3 + $0x1c] sm:$0xff]
  %v4099 = vld [vmem:[#allocation3 + $0x24] sm:$0xff]
  %v4100 = vld [vmem:[#allocation3 + $0x2c] sm:$0xff]
  %v4101 = vld [vmem:[#allocation3 + $0x34] sm:$0xff]
  %v4102 = vld [vmem:[#allocation3 + $0x3c] sm:$0xff]
  %v4103 = vld [vmem:[#allocation3 + $0x44] sm:$0xff]
  %v4104 = vld [vmem:[#allocation3 + $0x4c] sm:$0xff]
  %v4105 = vpack.c.bf16 %v4096, %v4096
  %v4106 = vpack.c.bf16 %v4097, %v4097
  %v4107 = vpack.c.bf16 %v4098, %v4098
  %v4108 = vpack.c.bf16 %v4099, %v4099
  %v4109 = vpack.c.bf16 %v4100, %v4100
  %v4110 = vpack.c.bf16 %v4101, %v4101
  %v4111 = vpack.c.bf16 %v4102, %v4102
  %v4112 = vpack.c.bf16 %v4103, %v4103
  %v4113 = vpack.c.bf16 %v4104, %v4104
  %4114 = vst [vmem:[#allocation5 + $0x18] sm:$0xf] %v4105
  %4115 = vst [vmem:[#allocation5 + $0x3c] sm:$0xf] %v4106
  %4116 = vst [vmem:[#allocation5 + $0x60] sm:$0xf] %v4107
  %4117 = vst [vmem:[#allocation5 + $0x84] sm:$0xf] %v4108
  %4118 = vst [vmem:[#allocation5 + $0xa8] sm:$0xf] %v4109
  %4119 = vst [vmem:[#allocation5 + $0xcc] sm:$0xf] %v4110
  %4120 = vst [vmem:[#allocation5 + $0xf0] sm:$0xf] %v4111
  %4121 = vst [vmem:[#allocation5 + $0x114] sm:$0xf] %v4112
  %4122 = vst [vmem:[#allocation5 + $0x138] sm:$0xf] %v4113
  %v4123 = vld [vmem:[#allocation3 + $0xd] sm:$0xff]
  %v4124 = vld [vmem:[#allocation3 + $0x15] sm:$0xff]
  %v4125 = vld [vmem:[#allocation3 + $0x1d] sm:$0xff]
  %v4126 = vld [vmem:[#allocation3 + $0x25] sm:$0xff]
  %v4127 = vld [vmem:[#allocation3 + $0x2d] sm:$0xff]
  %v4128 = vld [vmem:[#allocation3 + $0x35] sm:$0xff]
  %v4129 = vld [vmem:[#allocation3 + $0x3d] sm:$0xff]
  %v4130 = vld [vmem:[#allocation3 + $0x45] sm:$0xff]
  %v4131 = vld [vmem:[#allocation3 + $0x4d] sm:$0xff]
  %v4132 = vpack.c.bf16 %v4123, %v4123
  %v4133 = vpack.c.bf16 %v4124, %v4124
  %v4134 = vpack.c.bf16 %v4125, %v4125
  %v4135 = vpack.c.bf16 %v4126, %v4126
  %v4136 = vpack.c.bf16 %v4127, %v4127
  %v4137 = vpack.c.bf16 %v4128, %v4128
  %v4138 = vpack.c.bf16 %v4129, %v4129
  %v4139 = vpack.c.bf16 %v4130, %v4130
  %v4140 = vpack.c.bf16 %v4131, %v4131
  %4141 = vst [vmem:[#allocation5 + $0x1c] sm:$0xf] %v4132
  %4142 = vst [vmem:[#allocation5 + $0x40] sm:$0xf] %v4133
  %4143 = vst [vmem:[#allocation5 + $0x64] sm:$0xf] %v4134
  %4144 = vst [vmem:[#allocation5 + $0x88] sm:$0xf] %v4135
  %4145 = vst [vmem:[#allocation5 + $0xac] sm:$0xf] %v4136
  %4146 = vst [vmem:[#allocation5 + $0xd0] sm:$0xf] %v4137
  %4147 = vst [vmem:[#allocation5 + $0xf4] sm:$0xf] %v4138
  %4148 = vst [vmem:[#allocation5 + $0x118] sm:$0xf] %v4139
  %4149 = vst [vmem:[#allocation5 + $0x13c] sm:$0xf] %v4140
  %v4150 = vld [vmem:[#allocation3 + $0xe] sm:$0xff]
  %v4151 = vld [vmem:[#allocation3 + $0x16] sm:$0xff]
  %v4152 = vld [vmem:[#allocation3 + $0x1e] sm:$0xff]
  %v4153 = vld [vmem:[#allocation3 + $0x26] sm:$0xff]
  %v4154 = vld [vmem:[#allocation3 + $0x2e] sm:$0xff]
  %v4155 = vld [vmem:[#allocation3 + $0x36] sm:$0xff]
  %v4156 = vld [vmem:[#allocation3 + $0x3e] sm:$0xff]
  %v4157 = vld [vmem:[#allocation3 + $0x46] sm:$0xff]
  %v4158 = vld [vmem:[#allocation3 + $0x4e] sm:$0xff]
  %v4159 = vpack.c.bf16 %v4150, %v4150
  %v4160 = vpack.c.bf16 %v4151, %v4151
  %v4161 = vpack.c.bf16 %v4152, %v4152
  %v4162 = vpack.c.bf16 %v4153, %v4153
  %v4163 = vpack.c.bf16 %v4154, %v4154
  %v4164 = vpack.c.bf16 %v4155, %v4155
  %v4165 = vpack.c.bf16 %v4156, %v4156
  %v4166 = vpack.c.bf16 %v4157, %v4157
  %v4167 = vpack.c.bf16 %v4158, %v4158
  %4168 = vst [vmem:[#allocation5 + $0x20] sm:$0xf] %v4159
  %4169 = vst [vmem:[#allocation5 + $0x44] sm:$0xf] %v4160
  %4170 = vst [vmem:[#allocation5 + $0x68] sm:$0xf] %v4161
  %4171 = vst [vmem:[#allocation5 + $0x8c] sm:$0xf] %v4162
  %4172 = vst [vmem:[#allocation5 + $0xb0] sm:$0xf] %v4163
  %4173 = vst [vmem:[#allocation5 + $0xd4] sm:$0xf] %v4164
  %4174 = vst [vmem:[#allocation5 + $0xf8] sm:$0xf] %v4165
  %4175 = vst [vmem:[#allocation5 + $0x11c] sm:$0xf] %v4166
  %4176 = vst [vmem:[#allocation5 + $0x140] sm:$0xf] %v4167
  %v4177 = vld [vmem:[#allocation5] sm:$0xff]
  %v4178 = vld [vmem:[#allocation5 + $0x8] sm:$0xff]
  %v4179 = vld [vmem:[#allocation5 + $0x10] sm:$0xff]
  %v4180 = vld [vmem:[#allocation5 + $0x18] sm:$0xff]
  %v4181 = vld [vmem:[#allocation5 + $0x20] sm:$0xf]
  %v4182 = vld [vmem:[#allocation5 + $0x24] sm:$0xff]
  %v4183 = vld [vmem:[#allocation5 + $0x2c] sm:$0xff]
  %v4184 = vld [vmem:[#allocation5 + $0x34] sm:$0xff]
  %v4185 = vld [vmem:[#allocation5 + $0x3c] sm:$0xff]
  %v4186 = vld [vmem:[#allocation5 + $0x44] sm:$0xf]
  %v4187 = vld [vmem:[#allocation5 + $0x48] sm:$0xff]
  %v4188 = vld [vmem:[#allocation5 + $0x50] sm:$0xff]
  %v4189 = vld [vmem:[#allocation5 + $0x58] sm:$0xff]
  %v4190 = vld [vmem:[#allocation5 + $0x60] sm:$0xff]
  %v4191 = vld [vmem:[#allocation5 + $0x68] sm:$0xf]
  %v4192 = vld [vmem:[#allocation5 + $0x6c] sm:$0xff]
  %v4193 = vld [vmem:[#allocation5 + $0x74] sm:$0xff]
  %v4194 = vld [vmem:[#allocation5 + $0x7c] sm:$0xff]
  %v4195 = vld [vmem:[#allocation5 + $0x84] sm:$0xff]
  %v4196 = vld [vmem:[#allocation5 + $0x8c] sm:$0xf]
  %v4197 = vld [vmem:[#allocation5 + $0x90] sm:$0xff]
  %v4198 = vld [vmem:[#allocation5 + $0x98] sm:$0xff]
  %v4199 = vld [vmem:[#allocation5 + $0xa0] sm:$0xff]
  %v4200 = vld [vmem:[#allocation5 + $0xa8] sm:$0xff]
  %v4201 = vld [vmem:[#allocation5 + $0xb0] sm:$0xf]
  %v4202 = vld [vmem:[#allocation5 + $0xb4] sm:$0xff]
  %v4203 = vld [vmem:[#allocation5 + $0xbc] sm:$0xff]
  %v4204 = vld [vmem:[#allocation5 + $0xc4] sm:$0xff]
  %v4205 = vld [vmem:[#allocation5 + $0xcc] sm:$0xff]
  %v4206 = vld [vmem:[#allocation5 + $0xd4] sm:$0xf]
  %v4207 = vld [vmem:[#allocation5 + $0xd8] sm:$0xff]
  %v4208 = vld [vmem:[#allocation5 + $0xe0] sm:$0xff]
  %v4209 = vld [vmem:[#allocation5 + $0xe8] sm:$0xff]
  %v4210 = vld [vmem:[#allocation5 + $0xf0] sm:$0xff]
  %v4211 = vld [vmem:[#allocation5 + $0xf8] sm:$0xf]
  %v4212 = vld [vmem:[#allocation5 + $0xfc] sm:$0xff]
  %v4213 = vld [vmem:[#allocation5 + $0x104] sm:$0xff]
  %v4214 = vld [vmem:[#allocation5 + $0x10c] sm:$0xff]
  %v4215 = vld [vmem:[#allocation5 + $0x114] sm:$0xff]
  %v4216 = vld [vmem:[#allocation5 + $0x11c] sm:$0xf]
  %v4217 = vld [vmem:[#allocation5 + $0x120] sm:$0xff]
  %v4218 = vld [vmem:[#allocation5 + $0x128] sm:$0xff]
  %v4219 = vld [vmem:[#allocation5 + $0x130] sm:$0xff]
  %v4220 = vld [vmem:[#allocation5 + $0x138] sm:$0xff]
  %v4221 = vld [vmem:[#allocation5 + $0x140] sm:$0xf]
  %v4222 = vld [vmem:[%s5] sm:$0xf]
  %v4223 = vld [vmem:[%s5 + $0x4] sm:$0xf]
  %v4224 = vld [vmem:[%s5 + $0x8] sm:$0xf]
  %v4225 = vld [vmem:[%s5 + $0xc] sm:$0xf]
  %v4226 = vld [vmem:[%s5 + $0x10] sm:$0xf]
  %v4227 = vld [vmem:[%s5 + $0x14] sm:$0xf]
  %v4228 = vld [vmem:[%s5 + $0x18] sm:$0xf]
  %v4229 = vld [vmem:[%s5 + $0x1c] sm:$0xf]
  %v4230 = vld [vmem:[%s5 + $0x20] sm:$0xf]
  %v4231 = vld [vmem:[%s5 + $0x24] sm:$0xf]
  %v4232 = vld [vmem:[%s5 + $0x28] sm:$0xf]
  %v4233 = vld [vmem:[%s5 + $0x2c] sm:$0xf]
  %v4234 = vld [vmem:[%s5 + $0x30] sm:$0xf]
  %v4235 = vld [vmem:[%s5 + $0x34] sm:$0xf]
  %v4236 = vld [vmem:[%s5 + $0x38] sm:$0xf]
  %v4237 = vld [vmem:[%s5 + $0x3c] sm:$0xf]
  %v4238 = vld [vmem:[%s5 + $0x40] sm:$0xf]
  %v4239 = vld [vmem:[%s5 + $0x44] sm:$0xf]
  %v4240 = vld [vmem:[%s5 + $0x48] sm:$0xf]
  %v4241 = vld [vmem:[%s5 + $0x4c] sm:$0xf]
  %v4242 = vld [vmem:[%s5 + $0x50] sm:$0xf]
  %v4243 = vld [vmem:[%s5 + $0x54] sm:$0xf]
  %v4244 = vld [vmem:[%s5 + $0x58] sm:$0xf]
  %v4245 = vld [vmem:[%s5 + $0x5c] sm:$0xf]
  %v4246 = vld [vmem:[%s5 + $0x60] sm:$0xf]
  %v4247 = vld [vmem:[%s5 + $0x64] sm:$0xf]
  %v4248 = vld [vmem:[%s5 + $0x68] sm:$0xf]
  %v4249 = vld [vmem:[%s5 + $0x6c] sm:$0xf]
  %v4250 = vld [vmem:[%s5 + $0x70] sm:$0xf]
  %v4251 = vld [vmem:[%s5 + $0x74] sm:$0xf]
  %v4252 = vld [vmem:[%s5 + $0x78] sm:$0xf]
  %v4253 = vld [vmem:[%s5 + $0x7c] sm:$0xf]
  %v4254 = vld [vmem:[%s5 + $0x80] sm:$0xf]
  %v4255 = vld [vmem:[%s5 + $0x84] sm:$0xf]
  %v4256 = vld [vmem:[%s5 + $0x88] sm:$0xf]
  %v4257 = vld [vmem:[%s5 + $0x8c] sm:$0xf]
  %v4258 = vld [vmem:[%s5 + $0x90] sm:$0xf]
  %v4259 = vld [vmem:[%s5 + $0x94] sm:$0xf]
  %v4260 = vld [vmem:[%s5 + $0x98] sm:$0xf]
  %v4261 = vld [vmem:[%s5 + $0x9c] sm:$0xf]
  %v4262 = vld [vmem:[%s5 + $0xa0] sm:$0xf]
  %v4263 = vld [vmem:[%s5 + $0xa4] sm:$0xf]
  %v4264 = vld [vmem:[%s5 + $0xa8] sm:$0xf]
  %v4265 = vld [vmem:[%s5 + $0xac] sm:$0xf]
  %v4266 = vld [vmem:[%s5 + $0xb0] sm:$0xf]
  %v4267 = vld [vmem:[%s5 + $0xb4] sm:$0xf]
  %v4268 = vld [vmem:[%s5 + $0xb8] sm:$0xf]
  %v4269 = vld [vmem:[%s5 + $0xbc] sm:$0xf]
  %v4270 = vld [vmem:[%s5 + $0xc0] sm:$0xf]
  %v4271 = vld [vmem:[%s5 + $0xc4] sm:$0xf]
  %v4272 = vld [vmem:[%s5 + $0xc8] sm:$0xf]
  %v4273 = vld [vmem:[%s5 + $0xcc] sm:$0xf]
  %v4274 = vld [vmem:[%s5 + $0xd0] sm:$0xf]
  %v4275 = vld [vmem:[%s5 + $0xd4] sm:$0xf]
  %v4276 = vld [vmem:[%s5 + $0xd8] sm:$0xf]
  %v4277 = vld [vmem:[%s5 + $0xdc] sm:$0xf]
  %v4278 = vld [vmem:[%s5 + $0xe0] sm:$0xf]
  %v4279 = vld [vmem:[%s5 + $0xe4] sm:$0xf]
  %v4280 = vld [vmem:[%s5 + $0xe8] sm:$0xf]
  %v4281 = vld [vmem:[%s5 + $0xec] sm:$0xf]
  %v4282 = vld [vmem:[%s5 + $0xf0] sm:$0xf]
  %v4283 = vld [vmem:[%s5 + $0xf4] sm:$0xf]
  %v4284 = vld [vmem:[%s5 + $0xf8] sm:$0xf]
  %v4285 = vld [vmem:[%s5 + $0xfc] sm:$0xf]
  %v4286 = vld [vmem:[%s5 + $0x100] sm:$0xf]
  %v4287 = vld [vmem:[%s5 + $0x104] sm:$0xf]
  %v4288 = vld [vmem:[%s5 + $0x108] sm:$0xf]
  %v4289 = vld [vmem:[%s5 + $0x10c] sm:$0xf]
  %v4290 = vld [vmem:[%s5 + $0x110] sm:$0xf]
  %v4291 = vld [vmem:[%s5 + $0x114] sm:$0xf]
  %v4292 = vld [vmem:[%s5 + $0x118] sm:$0xf]
  %v4293 = vld [vmem:[%s5 + $0x11c] sm:$0xf]
  %v4294 = vld [vmem:[%s5 + $0x120] sm:$0xf]
  %v4295 = vld [vmem:[%s5 + $0x124] sm:$0xf]
  %v4296 = vld [vmem:[%s5 + $0x128] sm:$0xf]
  %v4297 = vld [vmem:[%s5 + $0x12c] sm:$0xf]
  %v4298 = vld [vmem:[%s5 + $0x130] sm:$0xf]
  %v4299 = vld [vmem:[%s5 + $0x134] sm:$0xf]
  %v4300 = vld [vmem:[%s5 + $0x138] sm:$0xf]
  %v4301 = vld [vmem:[%s5 + $0x13c] sm:$0xf]
  %v4302 = vld [vmem:[%s5 + $0x140] sm:$0xf]
  %v4303 = vld [vmem:[%s5 + $0x144] sm:$0xf]
  %v4304 = vld [vmem:[%s5 + $0x148] sm:$0xf]
  %v4305 = vld [vmem:[%s5 + $0x14c] sm:$0xf]
  %v4306 = vld [vmem:[%s5 + $0x150] sm:$0xf]
  %v4307 = vld [vmem:[%s5 + $0x154] sm:$0xf]
  %v4308 = vld [vmem:[%s5 + $0x158] sm:$0xf]
  %v4309 = vld [vmem:[%s5 + $0x15c] sm:$0xf]
  %v4310 = vld [vmem:[%s5 + $0x160] sm:$0xf]
  %v4311 = vld [vmem:[%s5 + $0x164] sm:$0xf]
  %v4312 = vld [vmem:[%s5 + $0x168] sm:$0xf]
  %v4313 = vld [vmem:[%s5 + $0x16c] sm:$0xf]
  %v4314 = vld [vmem:[%s5 + $0x170] sm:$0xf]
  %v4315 = vld [vmem:[%s5 + $0x174] sm:$0xf]
  %v4316 = vld [vmem:[%s5 + $0x178] sm:$0xf]
  %v4317 = vld [vmem:[%s5 + $0x17c] sm:$0xf]
  %v4318 = vld [vmem:[%s5 + $0x180] sm:$0xf]
  %v4319 = vld [vmem:[%s5 + $0x184] sm:$0xf]
  %v4320 = vld [vmem:[%s5 + $0x188] sm:$0xf]
  %v4321 = vld [vmem:[%s5 + $0x18c] sm:$0xf]
  %v4322 = vld [vmem:[%s5 + $0x190] sm:$0xf]
  %v4323 = vld [vmem:[%s5 + $0x194] sm:$0xf]
  %v4324 = vld [vmem:[%s5 + $0x198] sm:$0xf]
  %v4325 = vld [vmem:[%s5 + $0x19c] sm:$0xf]
  %v4326 = vld [vmem:[%s5 + $0x1a0] sm:$0xf]
  %v4327 = vld [vmem:[%s5 + $0x1a4] sm:$0xf]
  %v4328 = vld [vmem:[%s5 + $0x1a8] sm:$0xf]
  %v4329 = vld [vmem:[%s5 + $0x1ac] sm:$0xf]
  %v4330 = vld [vmem:[%s5 + $0x1b0] sm:$0xf]
  %v4331 = vld [vmem:[%s5 + $0x1b4] sm:$0xf]
  %v4332 = vld [vmem:[%s5 + $0x1b8] sm:$0xf]
  %v4333 = vld [vmem:[%s5 + $0x1bc] sm:$0xf]
  %v4334 = vld [vmem:[%s5 + $0x1c0] sm:$0xf]
  %v4335 = vld [vmem:[%s5 + $0x1c4] sm:$0xf]
  %v4336 = vld [vmem:[%s5 + $0x1c8] sm:$0xf]
  %v4337 = vld [vmem:[%s5 + $0x1cc] sm:$0xf]
  %v4338 = vld [vmem:[%s5 + $0x1d0] sm:$0xf]
  %v4339 = vld [vmem:[%s5 + $0x1d4] sm:$0xf]
  %v4340 = vld [vmem:[%s5 + $0x1d8] sm:$0xf]
  %v4341 = vld [vmem:[%s5 + $0x1dc] sm:$0xf]
  %v4342 = vld [vmem:[%s5 + $0x1e0] sm:$0xf]
  %v4343 = vld [vmem:[%s5 + $0x1e4] sm:$0xf]
  %v4344 = vld [vmem:[%s5 + $0x1e8] sm:$0xf]
  %v4345 = vld [vmem:[%s5 + $0x1ec] sm:$0xf]
  %v4346 = vld [vmem:[%s5 + $0x1f0] sm:$0xf]
  %v4347 = vld [vmem:[%s5 + $0x1f4] sm:$0xf]
  %v4348 = vld [vmem:[%s5 + $0x1f8] sm:$0xf]
  %v4349 = vld [vmem:[%s5 + $0x1fc] sm:$0xf]
  %v4350 = vld [vmem:[%s5 + $0x200] sm:$0xf]
  %v4351 = vld [vmem:[%s5 + $0x204] sm:$0xf]
  %v4352 = vld [vmem:[%s5 + $0x208] sm:$0xf]
  %v4353 = vld [vmem:[%s5 + $0x20c] sm:$0xf]
  %v4354 = vld [vmem:[%s5 + $0x210] sm:$0xf]
  %v4355 = vld [vmem:[%s5 + $0x214] sm:$0xf]
  %v4356 = vld [vmem:[%s5 + $0x218] sm:$0xf]
  %v4357 = vld [vmem:[%s5 + $0x21c] sm:$0xf]
  %v4358 = vld [vmem:[%s5 + $0x220] sm:$0xf]
  %v4359 = vld [vmem:[%s5 + $0x224] sm:$0xf]
  %v4360 = vld [vmem:[%s5 + $0x228] sm:$0xf]
  %v4361 = vld [vmem:[%s5 + $0x22c] sm:$0xf]
  %v4362 = vld [vmem:[%s5 + $0x230] sm:$0xf]
  %v4363 = vld [vmem:[%s5 + $0x234] sm:$0xf]
  %v4364 = vld [vmem:[%s5 + $0x238] sm:$0xf]
  %v4365 = vld [vmem:[%s5 + $0x23c] sm:$0xf]
  %v4366 = vld [vmem:[%s6] sm:$0x1]
  %v4368 = vperm.slane %v4366, 0
  %v4415 = vunpack.c.l.b16 %v4177
  %v4416 = vunpack.c.h.b16 %v4177
  %v4417 = vunpack.c.l.b16 %v4178
  %v4418 = vunpack.c.h.b16 %v4178
  %v4419 = vunpack.c.l.b16 %v4179
  %v4420 = vunpack.c.h.b16 %v4179
  %v4421 = vunpack.c.l.b16 %v4180
  %v4422 = vunpack.c.h.b16 %v4180
  %v4423 = vunpack.c.l.b16 %v4181
  %v4424 = vunpack.c.l.b16 %v4182
  %v4425 = vunpack.c.h.b16 %v4182
  %v4426 = vunpack.c.l.b16 %v4183
  %v4427 = vunpack.c.h.b16 %v4183
  %v4428 = vunpack.c.l.b16 %v4184
  %v4429 = vunpack.c.h.b16 %v4184
  %v4430 = vunpack.c.l.b16 %v4185
  %v4431 = vunpack.c.h.b16 %v4185
  %v4432 = vunpack.c.l.b16 %v4186
  %v4433 = vunpack.c.l.b16 %v4187
  %v4434 = vunpack.c.h.b16 %v4187
  %v4435 = vunpack.c.l.b16 %v4188
  %v4436 = vunpack.c.h.b16 %v4188
  %v4437 = vunpack.c.l.b16 %v4189
  %v4438 = vunpack.c.h.b16 %v4189
  %v4439 = vunpack.c.l.b16 %v4190
  %v4440 = vunpack.c.h.b16 %v4190
  %v4441 = vunpack.c.l.b16 %v4191
  %v4442 = vunpack.c.l.b16 %v4192
  %v4443 = vunpack.c.h.b16 %v4192
  %v4444 = vunpack.c.l.b16 %v4193
  %v4445 = vunpack.c.h.b16 %v4193
  %v4446 = vunpack.c.l.b16 %v4194
  %v4447 = vunpack.c.h.b16 %v4194
  %v4448 = vunpack.c.l.b16 %v4195
  %v4449 = vunpack.c.h.b16 %v4195
  %v4450 = vunpack.c.l.b16 %v4196
  %v4451 = vunpack.c.l.b16 %v4197
  %v4452 = vunpack.c.h.b16 %v4197
  %v4453 = vunpack.c.l.b16 %v4198
  %v4454 = vunpack.c.h.b16 %v4198
  %v4455 = vunpack.c.l.b16 %v4199
  %v4456 = vunpack.c.h.b16 %v4199
  %v4457 = vunpack.c.l.b16 %v4200
  %v4458 = vunpack.c.h.b16 %v4200
  %v4459 = vunpack.c.l.b16 %v4201
  %v4460 = vunpack.c.l.b16 %v4202
  %v4461 = vunpack.c.h.b16 %v4202
  %v4462 = vunpack.c.l.b16 %v4203
  %v4463 = vunpack.c.h.b16 %v4203
  %v4464 = vunpack.c.l.b16 %v4204
  %v4465 = vunpack.c.h.b16 %v4204
  %v4466 = vunpack.c.l.b16 %v4205
  %v4467 = vunpack.c.h.b16 %v4205
  %v4468 = vunpack.c.l.b16 %v4206
  %v4469 = vunpack.c.l.b16 %v4207
  %v4470 = vunpack.c.h.b16 %v4207
  %v4471 = vunpack.c.l.b16 %v4208
  %v4472 = vunpack.c.h.b16 %v4208
  %v4473 = vunpack.c.l.b16 %v4209
  %v4474 = vunpack.c.h.b16 %v4209
  %v4475 = vunpack.c.l.b16 %v4210
  %v4476 = vunpack.c.h.b16 %v4210
  %v4477 = vunpack.c.l.b16 %v4211
  %v4478 = vunpack.c.l.b16 %v4212
  %v4479 = vunpack.c.h.b16 %v4212
  %v4480 = vunpack.c.l.b16 %v4213
  %v4481 = vunpack.c.h.b16 %v4213
  %v4482 = vunpack.c.l.b16 %v4214
  %v4483 = vunpack.c.h.b16 %v4214
  %v4484 = vunpack.c.l.b16 %v4215
  %v4485 = vunpack.c.h.b16 %v4215
  %v4486 = vunpack.c.l.b16 %v4216
  %v4487 = vunpack.c.l.b16 %v4217
  %v4488 = vunpack.c.h.b16 %v4217
  %v4489 = vunpack.c.l.b16 %v4218
  %v4490 = vunpack.c.h.b16 %v4218
  %v4491 = vunpack.c.l.b16 %v4219
  %v4492 = vunpack.c.h.b16 %v4219
  %v4493 = vunpack.c.l.b16 %v4220
  %v4494 = vunpack.c.h.b16 %v4220
  %v4495 = vunpack.c.l.b16 %v4221
  %v4496 = vpack.c.b16 %v4424, %v4415
  %v4497 = vpack.c.b16 %v4425, %v4416
  %v4498 = vpack.c.b16 %v4426, %v4417
  %v4499 = vpack.c.b16 %v4427, %v4418
  %v4500 = vpack.c.b16 %v4428, %v4419
  %v4501 = vpack.c.b16 %v4429, %v4420
  %v4502 = vpack.c.b16 %v4430, %v4421
  %v4503 = vpack.c.b16 %v4431, %v4422
  %v4504 = vpack.c.b16 %v4432, %v4423
  %v4505 = vpack.c.b16 %v4442, %v4433
  %v4506 = vpack.c.b16 %v4443, %v4434
  %v4507 = vpack.c.b16 %v4444, %v4435
  %v4508 = vpack.c.b16 %v4445, %v4436
  %v4509 = vpack.c.b16 %v4446, %v4437
  %v4510 = vpack.c.b16 %v4447, %v4438
  %v4511 = vpack.c.b16 %v4448, %v4439
  %v4512 = vpack.c.b16 %v4449, %v4440
  %v4513 = vpack.c.b16 %v4450, %v4441
  %v4514 = vpack.c.b16 %v4460, %v4451
  %v4515 = vpack.c.b16 %v4461, %v4452
  %v4516 = vpack.c.b16 %v4462, %v4453
  %v4517 = vpack.c.b16 %v4463, %v4454
  %v4518 = vpack.c.b16 %v4464, %v4455
  %v4519 = vpack.c.b16 %v4465, %v4456
  %v4520 = vpack.c.b16 %v4466, %v4457
  %v4521 = vpack.c.b16 %v4467, %v4458
  %v4522 = vpack.c.b16 %v4468, %v4459
  %v4523 = vpack.c.b16 %v4478, %v4469
  %v4524 = vpack.c.b16 %v4479, %v4470
  %v4525 = vpack.c.b16 %v4480, %v4471
  %v4526 = vpack.c.b16 %v4481, %v4472
  %v4527 = vpack.c.b16 %v4482, %v4473
  %v4528 = vpack.c.b16 %v4483, %v4474
  %v4529 = vpack.c.b16 %v4484, %v4475
  %v4530 = vpack.c.b16 %v4485, %v4476
  %v4531 = vpack.c.b16 %v4486, %v4477
  %v4532 = vpack.c.b16 %v4487, %v4487
  %v4533 = vpack.c.b16 %v4488, %v4488
  %v4534 = vpack.c.b16 %v4489, %v4489
  %v4535 = vpack.c.b16 %v4490, %v4490
  %v4536 = vpack.c.b16 %v4491, %v4491
  %v4537 = vpack.c.b16 %v4492, %v4492
  %v4538 = vpack.c.b16 %v4493, %v4493
  %v4539 = vpack.c.b16 %v4494, %v4494
  %v4540 = vpack.c.b16 %v4495, %v4495
  %v4730 = vunpack.c.l.b16 %v4222
  %v4731 = vunpack.c.l.b16 %v4223
  %v4732 = vunpack.c.l.b16 %v4224
  %v4733 = vunpack.c.l.b16 %v4225
  %v4734 = vunpack.c.l.b16 %v4226
  %v4735 = vunpack.c.l.b16 %v4227
  %v4736 = vunpack.c.l.b16 %v4228
  %v4737 = vunpack.c.l.b16 %v4229
  %v4738 = vunpack.c.l.b16 %v4230
  %v4739 = vunpack.c.l.b16 %v4231
  %v4740 = vunpack.c.l.b16 %v4232
  %v4741 = vunpack.c.l.b16 %v4233
  %v4742 = vunpack.c.l.b16 %v4234
  %v4743 = vunpack.c.l.b16 %v4235
  %v4744 = vunpack.c.l.b16 %v4236
  %v4745 = vunpack.c.l.b16 %v4237
  %v4746 = vunpack.c.l.b16 %v4238
  %v4747 = vunpack.c.l.b16 %v4239
  %v4748 = vunpack.c.l.b16 %v4240
  %v4749 = vunpack.c.l.b16 %v4241
  %v4750 = vunpack.c.l.b16 %v4242
  %v4751 = vunpack.c.l.b16 %v4243
  %v4752 = vunpack.c.l.b16 %v4244
  %v4753 = vunpack.c.l.b16 %v4245
  %v4754 = vunpack.c.l.b16 %v4246
  %v4755 = vunpack.c.l.b16 %v4247
  %v4756 = vunpack.c.l.b16 %v4248
  %v4757 = vunpack.c.l.b16 %v4249
  %v4758 = vunpack.c.l.b16 %v4250
  %v4759 = vunpack.c.l.b16 %v4251
  %v4760 = vunpack.c.l.b16 %v4252
  %v4761 = vunpack.c.l.b16 %v4253
  %v4762 = vunpack.c.l.b16 %v4254
  %v4763 = vunpack.c.l.b16 %v4255
  %v4764 = vunpack.c.l.b16 %v4256
  %v4765 = vunpack.c.l.b16 %v4257
  %v4766 = vunpack.c.l.b16 %v4258
  %v4767 = vunpack.c.l.b16 %v4259
  %v4768 = vunpack.c.l.b16 %v4260
  %v4769 = vunpack.c.l.b16 %v4261
  %v4770 = vunpack.c.l.b16 %v4262
  %v4771 = vunpack.c.l.b16 %v4263
  %v4772 = vunpack.c.l.b16 %v4264
  %v4773 = vunpack.c.l.b16 %v4265
  %v4774 = vunpack.c.l.b16 %v4266
  %v4775 = vunpack.c.l.b16 %v4267
  %v4776 = vunpack.c.l.b16 %v4268
  %v4777 = vunpack.c.l.b16 %v4269
  %v4778 = vunpack.c.l.b16 %v4270
  %v4779 = vunpack.c.l.b16 %v4271
  %v4780 = vunpack.c.l.b16 %v4272
  %v4781 = vunpack.c.l.b16 %v4273
  %v4782 = vunpack.c.l.b16 %v4274
  %v4783 = vunpack.c.l.b16 %v4275
  %v4784 = vunpack.c.l.b16 %v4276
  %v4785 = vunpack.c.l.b16 %v4277
  %v4786 = vunpack.c.l.b16 %v4278
  %v4787 = vunpack.c.l.b16 %v4279
  %v4788 = vunpack.c.l.b16 %v4280
  %v4789 = vunpack.c.l.b16 %v4281
  %v4790 = vunpack.c.l.b16 %v4282
  %v4791 = vunpack.c.l.b16 %v4283
  %v4792 = vunpack.c.l.b16 %v4284
  %v4793 = vunpack.c.l.b16 %v4285
  %v4794 = vunpack.c.l.b16 %v4286
  %v4795 = vunpack.c.l.b16 %v4287
  %v4796 = vunpack.c.l.b16 %v4288
  %v4797 = vunpack.c.l.b16 %v4289
  %v4798 = vunpack.c.l.b16 %v4290
  %v4799 = vunpack.c.l.b16 %v4291
  %v4800 = vunpack.c.l.b16 %v4292
  %v4801 = vunpack.c.l.b16 %v4293
  %v4802 = vunpack.c.l.b16 %v4294
  %v4803 = vunpack.c.l.b16 %v4295
  %v4804 = vunpack.c.l.b16 %v4296
  %v4805 = vunpack.c.l.b16 %v4297
  %v4806 = vunpack.c.l.b16 %v4298
  %v4807 = vunpack.c.l.b16 %v4299
  %v4808 = vunpack.c.l.b16 %v4300
  %v4809 = vunpack.c.l.b16 %v4301
  %v4810 = vunpack.c.l.b16 %v4302
  %v4811 = vunpack.c.l.b16 %v4303
  %v4812 = vunpack.c.l.b16 %v4304
  %v4813 = vunpack.c.l.b16 %v4305
  %v4814 = vunpack.c.l.b16 %v4306
  %v4815 = vunpack.c.l.b16 %v4307
  %v4816 = vunpack.c.l.b16 %v4308
  %v4817 = vunpack.c.l.b16 %v4309
  %v4818 = vunpack.c.l.b16 %v4310
  %v4819 = vunpack.c.l.b16 %v4311
  %v4820 = vunpack.c.l.b16 %v4312
  %v4821 = vunpack.c.l.b16 %v4313
  %v4822 = vunpack.c.l.b16 %v4314
  %v4823 = vunpack.c.l.b16 %v4315
  %v4824 = vunpack.c.l.b16 %v4316
  %v4825 = vunpack.c.l.b16 %v4317
  %v4826 = vunpack.c.l.b16 %v4318
  %v4827 = vunpack.c.l.b16 %v4319
  %v4828 = vunpack.c.l.b16 %v4320
  %v4829 = vunpack.c.l.b16 %v4321
  %v4830 = vunpack.c.l.b16 %v4322
  %v4831 = vunpack.c.l.b16 %v4323
  %v4832 = vunpack.c.l.b16 %v4324
  %v4833 = vunpack.c.l.b16 %v4325
  %v4834 = vunpack.c.l.b16 %v4326
  %v4835 = vunpack.c.l.b16 %v4327
  %v4836 = vunpack.c.l.b16 %v4328
  %v4837 = vunpack.c.l.b16 %v4329
  %v4838 = vunpack.c.l.b16 %v4330
  %v4839 = vunpack.c.l.b16 %v4331
  %v4840 = vunpack.c.l.b16 %v4332
  %v4841 = vunpack.c.l.b16 %v4333
  %v4842 = vunpack.c.l.b16 %v4334
  %v4843 = vunpack.c.l.b16 %v4335
  %v4844 = vunpack.c.l.b16 %v4336
  %v4845 = vunpack.c.l.b16 %v4337
  %v4846 = vunpack.c.l.b16 %v4338
  %v4847 = vunpack.c.l.b16 %v4339
  %v4848 = vunpack.c.l.b16 %v4340
  %v4849 = vunpack.c.l.b16 %v4341
  %v4850 = vunpack.c.l.b16 %v4342
  %v4851 = vunpack.c.l.b16 %v4343
  %v4852 = vunpack.c.l.b16 %v4344
  %v4853 = vunpack.c.l.b16 %v4345
  %v4854 = vunpack.c.l.b16 %v4346
  %v4855 = vunpack.c.l.b16 %v4347
  %v4856 = vunpack.c.l.b16 %v4348
  %v4857 = vunpack.c.l.b16 %v4349
  %v4858 = vunpack.c.l.b16 %v4350
  %v4859 = vunpack.c.l.b16 %v4351
  %v4860 = vunpack.c.l.b16 %v4352
  %v4861 = vunpack.c.l.b16 %v4353
  %v4862 = vunpack.c.l.b16 %v4354
  %v4863 = vunpack.c.l.b16 %v4355
  %v4864 = vunpack.c.l.b16 %v4356
  %v4865 = vunpack.c.l.b16 %v4357
  %v4866 = vunpack.c.l.b16 %v4358
  %v4867 = vunpack.c.l.b16 %v4359
  %v4868 = vunpack.c.l.b16 %v4360
  %v4869 = vunpack.c.l.b16 %v4361
  %v4870 = vunpack.c.l.b16 %v4362
  %v4871 = vunpack.c.l.b16 %v4363
  %v4872 = vunpack.c.l.b16 %v4364
  %v4873 = vunpack.c.l.b16 %v4365
  %v4874 = vpack.c.b16 %v4731, %v4730
  %v4875 = vpack.c.b16 %v4733, %v4732
  %v4876 = vpack.c.b16 %v4735, %v4734
  %v4877 = vpack.c.b16 %v4737, %v4736
  %v4878 = vpack.c.b16 %v4739, %v4738
  %v4879 = vpack.c.b16 %v4741, %v4740
  %v4880 = vpack.c.b16 %v4743, %v4742
  %v4881 = vpack.c.b16 %v4745, %v4744
  %v4882 = vpack.c.b16 %v4747, %v4746
  %v4883 = vpack.c.b16 %v4749, %v4748
  %v4884 = vpack.c.b16 %v4751, %v4750
  %v4885 = vpack.c.b16 %v4753, %v4752
  %v4886 = vpack.c.b16 %v4755, %v4754
  %v4887 = vpack.c.b16 %v4757, %v4756
  %v4888 = vpack.c.b16 %v4759, %v4758
  %v4889 = vpack.c.b16 %v4761, %v4760
  %v4890 = vpack.c.b16 %v4763, %v4762
  %v4891 = vpack.c.b16 %v4765, %v4764
  %v4892 = vpack.c.b16 %v4767, %v4766
  %v4893 = vpack.c.b16 %v4769, %v4768
  %v4894 = vpack.c.b16 %v4771, %v4770
  %v4895 = vpack.c.b16 %v4773, %v4772
  %v4896 = vpack.c.b16 %v4775, %v4774
  %v4897 = vpack.c.b16 %v4777, %v4776
  %v4898 = vpack.c.b16 %v4779, %v4778
  %v4899 = vpack.c.b16 %v4781, %v4780
  %v4900 = vpack.c.b16 %v4783, %v4782
  %v4901 = vpack.c.b16 %v4785, %v4784
  %v4902 = vpack.c.b16 %v4787, %v4786
  %v4903 = vpack.c.b16 %v4789, %v4788
  %v4904 = vpack.c.b16 %v4791, %v4790
  %v4905 = vpack.c.b16 %v4793, %v4792
  %v4906 = vpack.c.b16 %v4795, %v4794
  %v4907 = vpack.c.b16 %v4797, %v4796
  %v4908 = vpack.c.b16 %v4799, %v4798
  %v4909 = vpack.c.b16 %v4801, %v4800
  %v4910 = vpack.c.b16 %v4803, %v4802
  %v4911 = vpack.c.b16 %v4805, %v4804
  %v4912 = vpack.c.b16 %v4807, %v4806
  %v4913 = vpack.c.b16 %v4809, %v4808
  %v4914 = vpack.c.b16 %v4811, %v4810
  %v4915 = vpack.c.b16 %v4813, %v4812
  %v4916 = vpack.c.b16 %v4815, %v4814
  %v4917 = vpack.c.b16 %v4817, %v4816
  %v4918 = vpack.c.b16 %v4819, %v4818
  %v4919 = vpack.c.b16 %v4821, %v4820
  %v4920 = vpack.c.b16 %v4823, %v4822
  %v4921 = vpack.c.b16 %v4825, %v4824
  %v4922 = vpack.c.b16 %v4827, %v4826
  %v4923 = vpack.c.b16 %v4829, %v4828
  %v4924 = vpack.c.b16 %v4831, %v4830
  %v4925 = vpack.c.b16 %v4833, %v4832
  %v4926 = vpack.c.b16 %v4835, %v4834
  %v4927 = vpack.c.b16 %v4837, %v4836
  %v4928 = vpack.c.b16 %v4839, %v4838
  %v4929 = vpack.c.b16 %v4841, %v4840
  %v4930 = vpack.c.b16 %v4843, %v4842
  %v4931 = vpack.c.b16 %v4845, %v4844
  %v4932 = vpack.c.b16 %v4847, %v4846
  %v4933 = vpack.c.b16 %v4849, %v4848
  %v4934 = vpack.c.b16 %v4851, %v4850
  %v4935 = vpack.c.b16 %v4853, %v4852
  %v4936 = vpack.c.b16 %v4855, %v4854
  %v4937 = vpack.c.b16 %v4857, %v4856
  %v4938 = vpack.c.b16 %v4859, %v4858
  %v4939 = vpack.c.b16 %v4861, %v4860
  %v4940 = vpack.c.b16 %v4863, %v4862
  %v4941 = vpack.c.b16 %v4865, %v4864
  %v4942 = vpack.c.b16 %v4867, %v4866
  %v4943 = vpack.c.b16 %v4869, %v4868
  %v4944 = vpack.c.b16 %v4871, %v4870
  %v4945 = vpack.c.b16 %v4873, %v4872
  %5018 = vmatpush.bf16.msra.mxu0 %v4881
  %5019 = vmatpush.bf16.msra.mxu0 %v4880
  %5020 = vmatpush.bf16.msra.mxu0 %v4879
  %5021 = vmatpush.bf16.msra.mxu0 %v4878
  %5022 = vmatpush.bf16.msra.mxu0 %v4877
  %5023 = vmatpush.bf16.msra.mxu0 %v4876
  %5024 = vmatpush.bf16.msra.mxu0 %v4875
  %5025 = vmatpush.bf16.msra.mxu0 %v4874
  %5026 = vmatmul.bf16.gmra.mxu0 %v4496
  %v5027 = vpop.f32.mrf.mxu0
  %v5028 = vadd.f32 %v4368, %v5027
  %v5029 = vpop.f32.mrf.mxu0
  %v5030 = vadd.f32 %v4368, %v5029
  %5031 = vmatmul.bf16.gmra.mxu0 %v4505
  %v5032 = vpop.f32.mrf.mxu0
  %v5033 = vpop.f32.mrf.mxu0
  %5034 = vmatmul.bf16.gmra.mxu0 %v4514
  %v5035 = vpop.f32.mrf.mxu0
  %v5036 = vadd.f32 %v4368, %v5035
  %v5037 = vpop.f32.mrf.mxu0
  %v5038 = vadd.f32 %v4368, %v5037
  %5039 = vmatmul.bf16.gmra.mxu0 %v4523
  %v5040 = vpop.f32.mrf.mxu0
  %v5041 = vadd.f32 %v4368, %v5040
  %v5042 = vpop.f32.mrf.mxu0
  %5043 = vmatmul.bf16.gmra.mxu0 %v4532
  %v5044 = vpop.f32.mrf.mxu0
  %v5045 = vpop.f32.mrf.mxu0
  %5046 = vdwg.mxu0
  %5047 = vmatpush.bf16.msra.mxu0 %v4889
  %5048 = vmatpush.bf16.msra.mxu0 %v4888
  %5049 = vmatpush.bf16.msra.mxu0 %v4887
  %5050 = vmatpush.bf16.msra.mxu0 %v4886
  %5051 = vmatpush.bf16.msra.mxu0 %v4885
  %5052 = vmatpush.bf16.msra.mxu0 %v4884
  %5053 = vmatpush.bf16.msra.mxu0 %v4883
  %5054 = vmatpush.bf16.msra.mxu0 %v4882
  %5055 = vmatmul.bf16.gmra.mxu0 %v4497
  %v5056 = vpop.f32.mrf.mxu0
  %v5057 = vadd.f32 %v5028, %v5056
  %v5058 = vpop.f32.mrf.mxu0
  %v5059 = vadd.f32 %v5030, %v5058
  %5060 = vmatmul.bf16.gmra.mxu0 %v4506
  %v5061 = vpop.f32.mrf.mxu0
  %v5062 = vpop.f32.mrf.mxu0
  %5063 = vmatmul.bf16.gmra.mxu0 %v4515
  %v5064 = vpop.f32.mrf.mxu0
  %v5065 = vadd.f32 %v5036, %v5064
  %v5066 = vpop.f32.mrf.mxu0
  %v5067 = vadd.f32 %v5038, %v5066
  %5068 = vmatmul.bf16.gmra.mxu0 %v4524
  %v5069 = vpop.f32.mrf.mxu0
  %v5070 = vadd.f32 %v5041, %v5069
  %v5071 = vpop.f32.mrf.mxu0
  %5072 = vmatmul.bf16.gmra.mxu0 %v4533
  %v5073 = vpop.f32.mrf.mxu0
  %v5074 = vpop.f32.mrf.mxu0
  %5075 = vdwg.mxu0
  %5076 = vmatpush.bf16.msra.mxu0 %v4897
  %5077 = vmatpush.bf16.msra.mxu0 %v4896
  %5078 = vmatpush.bf16.msra.mxu0 %v4895
  %5079 = vmatpush.bf16.msra.mxu0 %v4894
  %5080 = vmatpush.bf16.msra.mxu0 %v4893
  %5081 = vmatpush.bf16.msra.mxu0 %v4892
  %5082 = vmatpush.bf16.msra.mxu0 %v4891
  %5083 = vmatpush.bf16.msra.mxu0 %v4890
  %5084 = vmatmul.bf16.gmra.mxu0 %v4498
  %v5085 = vpop.f32.mrf.mxu0
  %v5086 = vadd.f32 %v5057, %v5085
  %v5087 = vpop.f32.mrf.mxu0
  %v5088 = vadd.f32 %v5059, %v5087
  %5089 = vmatmul.bf16.gmra.mxu0 %v4507
  %v5090 = vpop.f32.mrf.mxu0
  %v5091 = vpop.f32.mrf.mxu0
  %5092 = vmatmul.bf16.gmra.mxu0 %v4516
  %v5093 = vpop.f32.mrf.mxu0
  %v5094 = vadd.f32 %v5065, %v5093
  %v5095 = vpop.f32.mrf.mxu0
  %v5096 = vadd.f32 %v5067, %v5095
  %5097 = vmatmul.bf16.gmra.mxu0 %v4525
  %v5098 = vpop.f32.mrf.mxu0
  %v5099 = vadd.f32 %v5070, %v5098
  %v5100 = vpop.f32.mrf.mxu0
  %5101 = vmatmul.bf16.gmra.mxu0 %v4534
  %v5102 = vpop.f32.mrf.mxu0
  %v5103 = vpop.f32.mrf.mxu0
  %5104 = vdwg.mxu0
  %5105 = vmatpush.bf16.msra.mxu0 %v4905
  %5106 = vmatpush.bf16.msra.mxu0 %v4904
  %5107 = vmatpush.bf16.msra.mxu0 %v4903
  %5108 = vmatpush.bf16.msra.mxu0 %v4902
  %5109 = vmatpush.bf16.msra.mxu0 %v4901
  %5110 = vmatpush.bf16.msra.mxu0 %v4900
  %5111 = vmatpush.bf16.msra.mxu0 %v4899
  %5112 = vmatpush.bf16.msra.mxu0 %v4898
  %5113 = vmatmul.bf16.gmra.mxu0 %v4499
  %v5114 = vpop.f32.mrf.mxu0
  %v5115 = vadd.f32 %v5086, %v5114
  %v5116 = vpop.f32.mrf.mxu0
  %v5117 = vadd.f32 %v5088, %v5116
  %5118 = vmatmul.bf16.gmra.mxu0 %v4508
  %v5119 = vpop.f32.mrf.mxu0
  %v5120 = vpop.f32.mrf.mxu0
  %5121 = vmatmul.bf16.gmra.mxu0 %v4517
  %v5122 = vpop.f32.mrf.mxu0
  %v5123 = vadd.f32 %v5094, %v5122
  %v5124 = vpop.f32.mrf.mxu0
  %v5125 = vadd.f32 %v5096, %v5124
  %5126 = vmatmul.bf16.gmra.mxu0 %v4526
  %v5127 = vpop.f32.mrf.mxu0
  %v5128 = vadd.f32 %v5099, %v5127
  %v5129 = vpop.f32.mrf.mxu0
  %5130 = vmatmul.bf16.gmra.mxu0 %v4535
  %v5131 = vpop.f32.mrf.mxu0
  %v5132 = vpop.f32.mrf.mxu0
  %5133 = vdwg.mxu0
  %5134 = vmatpush.bf16.msra.mxu0 %v4913
  %5135 = vmatpush.bf16.msra.mxu0 %v4912
  %5136 = vmatpush.bf16.msra.mxu0 %v4911
  %5137 = vmatpush.bf16.msra.mxu0 %v4910
  %5138 = vmatpush.bf16.msra.mxu0 %v4909
  %5139 = vmatpush.bf16.msra.mxu0 %v4908
  %5140 = vmatpush.bf16.msra.mxu0 %v4907
  %5141 = vmatpush.bf16.msra.mxu0 %v4906
  %5142 = vmatmul.bf16.gmra.mxu0 %v4500
  %v5143 = vpop.f32.mrf.mxu0
  %v5144 = vadd.f32 %v5115, %v5143
  %v5145 = vpop.f32.mrf.mxu0
  %v5146 = vadd.f32 %v5117, %v5145
  %5147 = vmatmul.bf16.gmra.mxu0 %v4509
  %v5148 = vpop.f32.mrf.mxu0
  %v5149 = vpop.f32.mrf.mxu0
  %5150 = vmatmul.bf16.gmra.mxu0 %v4518
  %v5151 = vpop.f32.mrf.mxu0
  %v5152 = vadd.f32 %v5123, %v5151
  %v5153 = vpop.f32.mrf.mxu0
  %v5154 = vadd.f32 %v5125, %v5153
  %5155 = vmatmul.bf16.gmra.mxu0 %v4527
  %v5156 = vpop.f32.mrf.mxu0
  %v5157 = vadd.f32 %v5128, %v5156
  %v5158 = vpop.f32.mrf.mxu0
  %5159 = vmatmul.bf16.gmra.mxu0 %v4536
  %v5160 = vpop.f32.mrf.mxu0
  %v5161 = vpop.f32.mrf.mxu0
  %5162 = vdwg.mxu0
  %5163 = vmatpush.bf16.msra.mxu0 %v4921
  %5164 = vmatpush.bf16.msra.mxu0 %v4920
  %5165 = vmatpush.bf16.msra.mxu0 %v4919
  %5166 = vmatpush.bf16.msra.mxu0 %v4918
  %5167 = vmatpush.bf16.msra.mxu0 %v4917
  %5168 = vmatpush.bf16.msra.mxu0 %v4916
  %5169 = vmatpush.bf16.msra.mxu0 %v4915
  %5170 = vmatpush.bf16.msra.mxu0 %v4914
  %5171 = vmatmul.bf16.gmra.mxu0 %v4501
  %v5172 = vpop.f32.mrf.mxu0
  %v5173 = vadd.f32 %v5144, %v5172
  %v5174 = vpop.f32.mrf.mxu0
  %v5175 = vadd.f32 %v5146, %v5174
  %5176 = vmatmul.bf16.gmra.mxu0 %v4510
  %v5177 = vpop.f32.mrf.mxu0
  %v5178 = vpop.f32.mrf.mxu0
  %5179 = vmatmul.bf16.gmra.mxu0 %v4519
  %v5180 = vpop.f32.mrf.mxu0
  %v5181 = vadd.f32 %v5152, %v5180
  %v5182 = vpop.f32.mrf.mxu0
  %v5183 = vadd.f32 %v5154, %v5182
  %5184 = vmatmul.bf16.gmra.mxu0 %v4528
  %v5185 = vpop.f32.mrf.mxu0
  %v5186 = vadd.f32 %v5157, %v5185
  %v5187 = vpop.f32.mrf.mxu0
  %5188 = vmatmul.bf16.gmra.mxu0 %v4537
  %v5189 = vpop.f32.mrf.mxu0
  %v5190 = vpop.f32.mrf.mxu0
  %5191 = vdwg.mxu0
  %5192 = vmatpush.bf16.msra.mxu0 %v4929
  %5193 = vmatpush.bf16.msra.mxu0 %v4928
  %5194 = vmatpush.bf16.msra.mxu0 %v4927
  %5195 = vmatpush.bf16.msra.mxu0 %v4926
  %5196 = vmatpush.bf16.msra.mxu0 %v4925
  %5197 = vmatpush.bf16.msra.mxu0 %v4924
  %5198 = vmatpush.bf16.msra.mxu0 %v4923
  %5199 = vmatpush.bf16.msra.mxu0 %v4922
  %5200 = vmatmul.bf16.gmra.mxu0 %v4502
  %v5201 = vpop.f32.mrf.mxu0
  %v5202 = vadd.f32 %v5173, %v5201
  %v5203 = vpop.f32.mrf.mxu0
  %v5204 = vadd.f32 %v5175, %v5203
  %5205 = vmatmul.bf16.gmra.mxu0 %v4511
  %v5206 = vpop.f32.mrf.mxu0
  %v5207 = vpop.f32.mrf.mxu0
  %5208 = vmatmul.bf16.gmra.mxu0 %v4520
  %v5209 = vpop.f32.mrf.mxu0
  %v5210 = vadd.f32 %v5181, %v5209
  %v5211 = vpop.f32.mrf.mxu0
  %v5212 = vadd.f32 %v5183, %v5211
  %5213 = vmatmul.bf16.gmra.mxu0 %v4529
  %v5214 = vpop.f32.mrf.mxu0
  %v5215 = vadd.f32 %v5186, %v5214
  %v5216 = vpop.f32.mrf.mxu0
  %5217 = vmatmul.bf16.gmra.mxu0 %v4538
  %v5218 = vpop.f32.mrf.mxu0
  %v5219 = vpop.f32.mrf.mxu0
  %5220 = vdwg.mxu0
  %5221 = vmatpush.bf16.msra.mxu0 %v4937
  %5222 = vmatpush.bf16.msra.mxu0 %v4936
  %5223 = vmatpush.bf16.msra.mxu0 %v4935
  %5224 = vmatpush.bf16.msra.mxu0 %v4934
  %5225 = vmatpush.bf16.msra.mxu0 %v4933
  %5226 = vmatpush.bf16.msra.mxu0 %v4932
  %5227 = vmatpush.bf16.msra.mxu0 %v4931
  %5228 = vmatpush.bf16.msra.mxu0 %v4930
  %5229 = vmatmul.bf16.gmra.mxu0 %v4503
  %v5230 = vpop.f32.mrf.mxu0
  %v5231 = vadd.f32 %v5202, %v5230
  %v5232 = vpop.f32.mrf.mxu0
  %v5233 = vadd.f32 %v5204, %v5232
  %5234 = vmatmul.bf16.gmra.mxu0 %v4512
  %v5235 = vpop.f32.mrf.mxu0
  %v5236 = vpop.f32.mrf.mxu0
  %5237 = vmatmul.bf16.gmra.mxu0 %v4521
  %v5238 = vpop.f32.mrf.mxu0
  %v5239 = vadd.f32 %v5210, %v5238
  %v5240 = vpop.f32.mrf.mxu0
  %v5241 = vadd.f32 %v5212, %v5240
  %5242 = vmatmul.bf16.gmra.mxu0 %v4530
  %v5243 = vpop.f32.mrf.mxu0
  %v5244 = vadd.f32 %v5215, %v5243
  %v5245 = vpop.f32.mrf.mxu0
  %5246 = vmatmul.bf16.gmra.mxu0 %v4539
  %v5247 = vpop.f32.mrf.mxu0
  %v5248 = vpop.f32.mrf.mxu0
  %5249 = vdwg.mxu0
  %5250 = vmatpush.bf16.msra.mxu0 %v4945
  %5251 = vmatpush.bf16.msra.mxu0 %v4944
  %5252 = vmatpush.bf16.msra.mxu0 %v4943
  %5253 = vmatpush.bf16.msra.mxu0 %v4942
  %5254 = vmatpush.bf16.msra.mxu0 %v4941
  %5255 = vmatpush.bf16.msra.mxu0 %v4940
  %5256 = vmatpush.bf16.msra.mxu0 %v4939
  %5257 = vmatpush.bf16.msra.mxu0 %v4938
  %5258 = vmatmul.bf16.gmra.mxu0 %v4504
  %v5259 = vpop.f32.mrf.mxu0
  %v5260 = vadd.f32 %v5231, %v5259
  %v5261 = vpop.f32.mrf.mxu0
  %v5262 = vadd.f32 %v5233, %v5261
  %5263 = vmatmul.bf16.gmra.mxu0 %v4513
  %v5264 = vpop.f32.mrf.mxu0
  %v5265 = vpop.f32.mrf.mxu0
  %5266 = vmatmul.bf16.gmra.mxu0 %v4522
  %v5267 = vpop.f32.mrf.mxu0
  %v5268 = vadd.f32 %v5239, %v5267
  %v5269 = vpop.f32.mrf.mxu0
  %v5270 = vadd.f32 %v5241, %v5269
  %5271 = vmatmul.bf16.gmra.mxu0 %v4531
  %v5272 = vpop.f32.mrf.mxu0
  %v5273 = vadd.f32 %v5244, %v5272
  %v5274 = vpop.f32.mrf.mxu0
  %5275 = vmatmul.bf16.gmra.mxu0 %v4540
  %v5276 = vpop.f32.mrf.mxu0
  %v5277 = vpop.f32.mrf.mxu0
  %5278 = vdwg.mxu0
  %vm5279 = vcmp.gt.f32.partialorder %v5260, 0.0
  %vm5280 = vcmp.gt.f32.partialorder %v5262, 0.0
  %vm5281 = vcmp.gt.f32.partialorder %v5268, 0.0
  %vm5282 = vcmp.gt.f32.partialorder %v5270, 0.0
  %vm5283 = vcmp.gt.f32.partialorder %v5273, 0.0
  %v5284 = vmin.f32 %v5260, 0.0
  %v5285 = vmin.f32 %v5262, 0.0
  %v5286 = vmin.f32 %v5268, 0.0
  %v5287 = vmin.f32 %v5270, 0.0
  %v5288 = vmin.f32 %v5273, 0.0
  %v5289 = vmul.f32 %v5284, 1.442695
  %v5290 = vpow.pop %v5289
  %v5291 = vmul.f32 %v5285, 1.442695
  %v5292 = vpow.pop %v5291
  %v5293 = vmul.f32 %v5286, 1.442695
  %v5294 = vpow.pop %v5293
  %v5295 = vmul.f32 %v5287, 1.442695
  %v5296 = vpow.pop %v5295
  %v5297 = vmul.f32 %v5288, 1.442695
  %v5298 = vpow.pop %v5297
  %v5299 = vsub.f32 %v5290, 1.0
  %v5300 = vsub.f32 %v5292, 1.0
  %v5301 = vsub.f32 %v5294, 1.0
  %v5302 = vsub.f32 %v5296, 1.0
  %v5303 = vsub.f32 %v5298, 1.0
  %v5304 = vsel %vm5279, %v5260, %v5299
  %v5305 = vsel %vm5280, %v5262, %v5300
  %v5306 = vsel %vm5281, %v5268, %v5301
  %v5307 = vsel %vm5282, %v5270, %v5302
  %v5308 = vsel %vm5283, %v5273, %v5303
  %v5310 = vrot.slane %v5306, 3
  %vm5312 = vcmask 1040384
  %v5313 = vsel %vm5312, %v5304, %v5310
  %vm5314 = vcmask 1041408
  %v5315 = vsel %vm5314, %v5313, 0.0
  %v5317 = vrot.slane %v5304, 1
  %v5319 = vrot.slane %v5306, 4
  %v5321 = vsel %vm5312, %v5317, %v5319
  %v5322 = vsel %vm5314, %v5321, 0.0
  %v5323 = vrot.slane %v5304, 2
  %v5325 = vrot.slane %v5306, 5
  %v5327 = vsel %vm5312, %v5323, %v5325
  %v5328 = vsel %vm5314, %v5327, 0.0
  %v5329 = vrot.slane %v5304, 6
  %v5332 = vrot.slane %v5307, 1
  %v5334 = vsel %vm5312, %v5329, %v5332
  %v5335 = vsel %vm5314, %v5334, 0.0
  %v5336 = vrot.slane %v5304, 7
  %v5338 = vrot.slane %v5307, 2
  %v5340 = vsel %vm5312, %v5336, %v5338
  %v5341 = vsel %vm5314, %v5340, 0.0
  %v5342 = vrot.slane %v5307, 3
  %v5344 = vsel %vm5312, %v5305, %v5342
  %v5345 = vsel %vm5314, %v5344, 0.0
  %v5347 = vrot.slane %v5305, 4
  %v5350 = vrot.slane %v5308, 7
  %v5352 = vsel %vm5312, %v5347, %v5350
  %v5353 = vsel %vm5314, %v5352, 0.0
  %v5354 = vrot.slane %v5305, 5
  %v5356 = vsel %vm5312, %v5354, %v5308
  %v5357 = vsel %vm5314, %v5356, 0.0
  %v5358 = vrot.slane %v5305, 6
  %v5360 = vrot.slane %v5308, 1
  %v5362 = vsel %vm5312, %v5358, %v5360
  %v5363 = vsel %vm5314, %v5362, 0.0
  %v5364 = vpack.c.bf16 %v5315, %v5315
  %v5365 = vpack.c.bf16 %v5322, %v5322
  %v5366 = vpack.c.bf16 %v5328, %v5328
  %v5367 = vpack.c.bf16 %v5335, %v5335
  %v5368 = vpack.c.bf16 %v5341, %v5341
  %v5369 = vpack.c.bf16 %v5345, %v5345
  %v5370 = vpack.c.bf16 %v5353, %v5353
  %v5371 = vpack.c.bf16 %v5357, %v5357
  %v5372 = vpack.c.bf16 %v5363, %v5363
  %s5373 = smul.u32 4, 144
  %s5374 = smul.u32 %s5373, 4
  %s5375 = sshll.u32 %s5374, 4
  %5376 = dma.done [#allocation7], %s5375
  %v5377 = vld [vmem:[#allocation6] sm:$0xff]
  %v5378 = vld [vmem:[#allocation6 + $0x8] sm:$0xff]
  %v5379 = vld [vmem:[#allocation6 + $0x10] sm:$0xff]
  %v5380 = vld [vmem:[#allocation6 + $0x18] sm:$0xff]
  %v5381 = vld [vmem:[#allocation6 + $0x20] sm:$0xff]
  %v5382 = vld [vmem:[#allocation6 + $0x28] sm:$0xff]
  %v5383 = vld [vmem:[#allocation6 + $0x30] sm:$0xff]
  %v5384 = vld [vmem:[#allocation6 + $0x38] sm:$0xff]
  %v5385 = vld [vmem:[#allocation6 + $0x40] sm:$0xff]
  %v5386 = vld [vmem:[#allocation6 + $0x48] sm:$0xff]
  %v5387 = vld [vmem:[#allocation6 + $0x50] sm:$0xff]
  %v5388 = vld [vmem:[#allocation6 + $0x58] sm:$0xff]
  %v5389 = vld [vmem:[#allocation6 + $0x60] sm:$0xff]
  %v5390 = vld [vmem:[#allocation6 + $0x68] sm:$0xff]
  %v5391 = vld [vmem:[#allocation6 + $0x70] sm:$0xff]
  %v5392 = vld [vmem:[#allocation6 + $0x78] sm:$0xff]
  %v5393 = vld [vmem:[#allocation6 + $0x80] sm:$0xff]
  %v5394 = vld [vmem:[#allocation6 + $0x88] sm:$0xff]
  %v5395 = vld [vmem:[#allocation6 + $0x90] sm:$0xff]
  %v5396 = vld [vmem:[#allocation6 + $0x98] sm:$0xff]
  %v5397 = vld [vmem:[#allocation6 + $0xa0] sm:$0xff]
  %v5398 = vld [vmem:[#allocation6 + $0xa8] sm:$0xff]
  %v5399 = vld [vmem:[#allocation6 + $0xb0] sm:$0xff]
  %v5400 = vld [vmem:[#allocation6 + $0xb8] sm:$0xff]
  %v5401 = vld [vmem:[#allocation6 + $0xc0] sm:$0xff]
  %v5402 = vld [vmem:[#allocation6 + $0xc8] sm:$0xff]
  %v5403 = vld [vmem:[#allocation6 + $0xd0] sm:$0xff]
  %v5404 = vld [vmem:[#allocation6 + $0xd8] sm:$0xff]
  %v5405 = vld [vmem:[#allocation6 + $0xe0] sm:$0xff]
  %v5406 = vld [vmem:[#allocation6 + $0xe8] sm:$0xff]
  %v5407 = vld [vmem:[#allocation6 + $0xf0] sm:$0xff]
  %v5408 = vld [vmem:[#allocation6 + $0xf8] sm:$0xff]
  %v5409 = vld [vmem:[#allocation6 + $0x100] sm:$0xff]
  %v5410 = vld [vmem:[#allocation6 + $0x108] sm:$0xff]
  %v5411 = vld [vmem:[#allocation6 + $0x110] sm:$0xff]
  %v5412 = vld [vmem:[#allocation6 + $0x118] sm:$0xff]
  %v5413 = vld [vmem:[#allocation6 + $0x120] sm:$0xff]
  %v5414 = vld [vmem:[#allocation6 + $0x128] sm:$0xff]
  %v5415 = vld [vmem:[#allocation6 + $0x130] sm:$0xff]
  %v5416 = vld [vmem:[#allocation6 + $0x138] sm:$0xff]
  %v5417 = vld [vmem:[#allocation6 + $0x140] sm:$0xff]
  %v5418 = vld [vmem:[#allocation6 + $0x148] sm:$0xff]
  %v5419 = vld [vmem:[#allocation6 + $0x150] sm:$0xff]
  %v5420 = vld [vmem:[#allocation6 + $0x158] sm:$0xff]
  %v5421 = vld [vmem:[#allocation6 + $0x160] sm:$0xff]
  %v5422 = vld [vmem:[#allocation6 + $0x168] sm:$0xff]
  %v5423 = vld [vmem:[#allocation6 + $0x170] sm:$0xff]
  %v5424 = vld [vmem:[#allocation6 + $0x178] sm:$0xff]
  %v5425 = vld [vmem:[#allocation6 + $0x180] sm:$0xff]
  %v5426 = vld [vmem:[#allocation6 + $0x188] sm:$0xff]
  %v5427 = vld [vmem:[#allocation6 + $0x190] sm:$0xff]
  %v5428 = vld [vmem:[#allocation6 + $0x198] sm:$0xff]
  %v5429 = vld [vmem:[#allocation6 + $0x1a0] sm:$0xff]
  %v5430 = vld [vmem:[#allocation6 + $0x1a8] sm:$0xff]
  %v5431 = vld [vmem:[#allocation6 + $0x1b0] sm:$0xff]
  %v5432 = vld [vmem:[#allocation6 + $0x1b8] sm:$0xff]
  %v5433 = vld [vmem:[#allocation6 + $0x1c0] sm:$0xff]
  %v5434 = vld [vmem:[#allocation6 + $0x1c8] sm:$0xff]
  %v5435 = vld [vmem:[#allocation6 + $0x1d0] sm:$0xff]
  %v5436 = vld [vmem:[#allocation6 + $0x1d8] sm:$0xff]
  %v5437 = vld [vmem:[#allocation6 + $0x1e0] sm:$0xff]
  %v5438 = vld [vmem:[#allocation6 + $0x1e8] sm:$0xff]
  %v5439 = vld [vmem:[#allocation6 + $0x1f0] sm:$0xff]
  %v5440 = vld [vmem:[#allocation6 + $0x1f8] sm:$0xff]
  %v5441 = vld [vmem:[#allocation6 + $0x200] sm:$0xff]
  %v5442 = vld [vmem:[#allocation6 + $0x208] sm:$0xff]
  %v5443 = vld [vmem:[#allocation6 + $0x210] sm:$0xff]
  %v5444 = vld [vmem:[#allocation6 + $0x218] sm:$0xff]
  %v5445 = vld [vmem:[#allocation6 + $0x220] sm:$0xff]
  %v5446 = vld [vmem:[#allocation6 + $0x228] sm:$0xff]
  %v5447 = vld [vmem:[#allocation6 + $0x230] sm:$0xff]
  %v5448 = vld [vmem:[#allocation6 + $0x238] sm:$0xff]
  %v5449 = vld [vmem:[#allocation6 + $0x240] sm:$0xff]
  %v5450 = vld [vmem:[#allocation6 + $0x248] sm:$0xff]
  %v5451 = vld [vmem:[#allocation6 + $0x250] sm:$0xff]
  %v5452 = vld [vmem:[#allocation6 + $0x258] sm:$0xff]
  %v5453 = vld [vmem:[#allocation6 + $0x260] sm:$0xff]
  %v5454 = vld [vmem:[#allocation6 + $0x268] sm:$0xff]
  %v5455 = vld [vmem:[#allocation6 + $0x270] sm:$0xff]
  %v5456 = vld [vmem:[#allocation6 + $0x278] sm:$0xff]
  %v5457 = vld [vmem:[#allocation6 + $0x280] sm:$0xff]
  %v5458 = vld [vmem:[#allocation6 + $0x288] sm:$0xff]
  %v5459 = vld [vmem:[#allocation6 + $0x290] sm:$0xff]
  %v5460 = vld [vmem:[#allocation6 + $0x298] sm:$0xff]
  %v5461 = vld [vmem:[#allocation6 + $0x2a0] sm:$0xff]
  %v5462 = vld [vmem:[#allocation6 + $0x2a8] sm:$0xff]
  %v5463 = vld [vmem:[#allocation6 + $0x2b0] sm:$0xff]
  %v5464 = vld [vmem:[#allocation6 + $0x2b8] sm:$0xff]
  %v5465 = vld [vmem:[#allocation6 + $0x2c0] sm:$0xff]
  %v5466 = vld [vmem:[#allocation6 + $0x2c8] sm:$0xff]
  %v5467 = vld [vmem:[#allocation6 + $0x2d0] sm:$0xff]
  %v5468 = vld [vmem:[#allocation6 + $0x2d8] sm:$0xff]
  %v5469 = vld [vmem:[#allocation6 + $0x2e0] sm:$0xff]
  %v5470 = vld [vmem:[#allocation6 + $0x2e8] sm:$0xff]
  %v5471 = vld [vmem:[#allocation6 + $0x2f0] sm:$0xff]
  %v5472 = vld [vmem:[#allocation6 + $0x2f8] sm:$0xff]
  %v5473 = vld [vmem:[#allocation6 + $0x300] sm:$0xff]
  %v5474 = vld [vmem:[#allocation6 + $0x308] sm:$0xff]
  %v5475 = vld [vmem:[#allocation6 + $0x310] sm:$0xff]
  %v5476 = vld [vmem:[#allocation6 + $0x318] sm:$0xff]
  %v5477 = vld [vmem:[#allocation6 + $0x320] sm:$0xff]
  %v5478 = vld [vmem:[#allocation6 + $0x328] sm:$0xff]
  %v5479 = vld [vmem:[#allocation6 + $0x330] sm:$0xff]
  %v5480 = vld [vmem:[#allocation6 + $0x338] sm:$0xff]
  %v5481 = vld [vmem:[#allocation6 + $0x340] sm:$0xff]
  %v5482 = vld [vmem:[#allocation6 + $0x348] sm:$0xff]
  %v5483 = vld [vmem:[#allocation6 + $0x350] sm:$0xff]
  %v5484 = vld [vmem:[#allocation6 + $0x358] sm:$0xff]
  %v5485 = vld [vmem:[#allocation6 + $0x360] sm:$0xff]
  %v5486 = vld [vmem:[#allocation6 + $0x368] sm:$0xff]
  %v5487 = vld [vmem:[#allocation6 + $0x370] sm:$0xff]
  %v5488 = vld [vmem:[#allocation6 + $0x378] sm:$0xff]
  %v5489 = vld [vmem:[#allocation6 + $0x380] sm:$0xff]
  %v5490 = vld [vmem:[#allocation6 + $0x388] sm:$0xff]
  %v5491 = vld [vmem:[#allocation6 + $0x390] sm:$0xff]
  %v5492 = vld [vmem:[#allocation6 + $0x398] sm:$0xff]
  %v5493 = vld [vmem:[#allocation6 + $0x3a0] sm:$0xff]
  %v5494 = vld [vmem:[#allocation6 + $0x3a8] sm:$0xff]
  %v5495 = vld [vmem:[#allocation6 + $0x3b0] sm:$0xff]
  %v5496 = vld [vmem:[#allocation6 + $0x3b8] sm:$0xff]
  %v5497 = vld [vmem:[#allocation6 + $0x3c0] sm:$0xff]
  %v5498 = vld [vmem:[#allocation6 + $0x3c8] sm:$0xff]
  %v5499 = vld [vmem:[#allocation6 + $0x3d0] sm:$0xff]
  %v5500 = vld [vmem:[#allocation6 + $0x3d8] sm:$0xff]
  %v5501 = vld [vmem:[#allocation6 + $0x3e0] sm:$0xff]
  %v5502 = vld [vmem:[#allocation6 + $0x3e8] sm:$0xff]
  %v5503 = vld [vmem:[#allocation6 + $0x3f0] sm:$0xff]
  %v5504 = vld [vmem:[#allocation6 + $0x3f8] sm:$0xff]
  %v5505 = vld [vmem:[#allocation6 + $0x400] sm:$0xff]
  %v5506 = vld [vmem:[#allocation6 + $0x408] sm:$0xff]
  %v5507 = vld [vmem:[#allocation6 + $0x410] sm:$0xff]
  %v5508 = vld [vmem:[#allocation6 + $0x418] sm:$0xff]
  %v5509 = vld [vmem:[#allocation6 + $0x420] sm:$0xff]
  %v5510 = vld [vmem:[#allocation6 + $0x428] sm:$0xff]
  %v5511 = vld [vmem:[#allocation6 + $0x430] sm:$0xff]
  %v5512 = vld [vmem:[#allocation6 + $0x438] sm:$0xff]
  %v5513 = vld [vmem:[#allocation6 + $0x440] sm:$0xff]
  %v5514 = vld [vmem:[#allocation6 + $0x448] sm:$0xff]
  %v5515 = vld [vmem:[#allocation6 + $0x450] sm:$0xff]
  %v5516 = vld [vmem:[#allocation6 + $0x458] sm:$0xff]
  %v5517 = vld [vmem:[#allocation6 + $0x460] sm:$0xff]
  %v5518 = vld [vmem:[#allocation6 + $0x468] sm:$0xff]
  %v5519 = vld [vmem:[#allocation6 + $0x470] sm:$0xff]
  %v5520 = vld [vmem:[#allocation6 + $0x478] sm:$0xff]
  %v5521 = vld [vmem:[#allocation6 + $0x480] sm:$0xff]
  %v5522 = vld [vmem:[#allocation6 + $0x488] sm:$0xff]
  %v5523 = vld [vmem:[#allocation6 + $0x490] sm:$0xff]
  %v5524 = vld [vmem:[#allocation6 + $0x498] sm:$0xff]
  %v5525 = vld [vmem:[#allocation6 + $0x4a0] sm:$0xff]
  %v5526 = vld [vmem:[#allocation6 + $0x4a8] sm:$0xff]
  %v5527 = vld [vmem:[#allocation6 + $0x4b0] sm:$0xff]
  %v5528 = vld [vmem:[#allocation6 + $0x4b8] sm:$0xff]
  %v5529 = vld [vmem:[#allocation6 + $0x4c0] sm:$0xff]
  %v5530 = vld [vmem:[#allocation6 + $0x4c8] sm:$0xff]
  %v5531 = vld [vmem:[#allocation6 + $0x4d0] sm:$0xff]
  %v5532 = vld [vmem:[#allocation6 + $0x4d8] sm:$0xff]
  %v5533 = vld [vmem:[#allocation6 + $0x4e0] sm:$0xff]
  %v5534 = vld [vmem:[#allocation6 + $0x4e8] sm:$0xff]
  %v5535 = vld [vmem:[#allocation6 + $0x4f0] sm:$0xff]
  %v5536 = vld [vmem:[#allocation6 + $0x4f8] sm:$0xff]
  %v5537 = vld [vmem:[#allocation6 + $0x500] sm:$0xff]
  %v5538 = vld [vmem:[#allocation6 + $0x508] sm:$0xff]
  %v5539 = vld [vmem:[#allocation6 + $0x510] sm:$0xff]
  %v5540 = vld [vmem:[#allocation6 + $0x518] sm:$0xff]
  %v5541 = vld [vmem:[#allocation6 + $0x520] sm:$0xff]
  %v5542 = vld [vmem:[#allocation6 + $0x528] sm:$0xff]
  %v5543 = vld [vmem:[#allocation6 + $0x530] sm:$0xff]
  %v5544 = vld [vmem:[#allocation6 + $0x538] sm:$0xff]
  %v5545 = vld [vmem:[#allocation6 + $0x540] sm:$0xff]
  %v5546 = vld [vmem:[#allocation6 + $0x548] sm:$0xff]
  %v5547 = vld [vmem:[#allocation6 + $0x550] sm:$0xff]
  %v5548 = vld [vmem:[#allocation6 + $0x558] sm:$0xff]
  %v5549 = vld [vmem:[#allocation6 + $0x560] sm:$0xff]
  %v5550 = vld [vmem:[#allocation6 + $0x568] sm:$0xff]
  %v5551 = vld [vmem:[#allocation6 + $0x570] sm:$0xff]
  %v5552 = vld [vmem:[#allocation6 + $0x578] sm:$0xff]
  %v5553 = vld [vmem:[#allocation6 + $0x580] sm:$0xff]
  %v5554 = vld [vmem:[#allocation6 + $0x588] sm:$0xff]
  %v5555 = vld [vmem:[#allocation6 + $0x590] sm:$0xff]
  %v5556 = vld [vmem:[#allocation6 + $0x598] sm:$0xff]
  %v5557 = vld [vmem:[#allocation6 + $0x5a0] sm:$0xff]
  %v5558 = vld [vmem:[#allocation6 + $0x5a8] sm:$0xff]
  %v5559 = vld [vmem:[#allocation6 + $0x5b0] sm:$0xff]
  %v5560 = vld [vmem:[#allocation6 + $0x5b8] sm:$0xff]
  %v5561 = vld [vmem:[#allocation6 + $0x5c0] sm:$0xff]
  %v5562 = vld [vmem:[#allocation6 + $0x5c8] sm:$0xff]
  %v5563 = vld [vmem:[#allocation6 + $0x5d0] sm:$0xff]
  %v5564 = vld [vmem:[#allocation6 + $0x5d8] sm:$0xff]
  %v5565 = vld [vmem:[#allocation6 + $0x5e0] sm:$0xff]
  %v5566 = vld [vmem:[#allocation6 + $0x5e8] sm:$0xff]
  %v5567 = vld [vmem:[#allocation6 + $0x5f0] sm:$0xff]
  %v5568 = vld [vmem:[#allocation6 + $0x5f8] sm:$0xff]
  %v5569 = vld [vmem:[#allocation6 + $0x600] sm:$0xff]
  %v5570 = vld [vmem:[#allocation6 + $0x608] sm:$0xff]
  %v5571 = vld [vmem:[#allocation6 + $0x610] sm:$0xff]
  %v5572 = vld [vmem:[#allocation6 + $0x618] sm:$0xff]
  %v5573 = vld [vmem:[#allocation6 + $0x620] sm:$0xff]
  %v5574 = vld [vmem:[#allocation6 + $0x628] sm:$0xff]
  %v5575 = vld [vmem:[#allocation6 + $0x630] sm:$0xff]
  %v5576 = vld [vmem:[#allocation6 + $0x638] sm:$0xff]
  %v5577 = vld [vmem:[#allocation6 + $0x640] sm:$0xff]
  %v5578 = vld [vmem:[#allocation6 + $0x648] sm:$0xff]
  %v5579 = vld [vmem:[#allocation6 + $0x650] sm:$0xff]
  %v5580 = vld [vmem:[#allocation6 + $0x658] sm:$0xff]
  %v5581 = vld [vmem:[#allocation6 + $0x660] sm:$0xff]
  %v5582 = vld [vmem:[#allocation6 + $0x668] sm:$0xff]
  %v5583 = vld [vmem:[#allocation6 + $0x670] sm:$0xff]
  %v5584 = vld [vmem:[#allocation6 + $0x678] sm:$0xff]
  %v5585 = vld [vmem:[#allocation6 + $0x680] sm:$0xff]
  %v5586 = vld [vmem:[#allocation6 + $0x688] sm:$0xff]
  %v5587 = vld [vmem:[#allocation6 + $0x690] sm:$0xff]
  %v5588 = vld [vmem:[#allocation6 + $0x698] sm:$0xff]
  %v5589 = vld [vmem:[#allocation6 + $0x6a0] sm:$0xff]
  %v5590 = vld [vmem:[#allocation6 + $0x6a8] sm:$0xff]
  %v5591 = vld [vmem:[#allocation6 + $0x6b0] sm:$0xff]
  %v5592 = vld [vmem:[#allocation6 + $0x6b8] sm:$0xff]
  %v5593 = vld [vmem:[#allocation6 + $0x6c0] sm:$0xff]
  %v5594 = vld [vmem:[#allocation6 + $0x6c8] sm:$0xff]
  %v5595 = vld [vmem:[#allocation6 + $0x6d0] sm:$0xff]
  %v5596 = vld [vmem:[#allocation6 + $0x6d8] sm:$0xff]
  %v5597 = vld [vmem:[#allocation6 + $0x6e0] sm:$0xff]
  %v5598 = vld [vmem:[#allocation6 + $0x6e8] sm:$0xff]
  %v5599 = vld [vmem:[#allocation6 + $0x6f0] sm:$0xff]
  %v5600 = vld [vmem:[#allocation6 + $0x6f8] sm:$0xff]
  %v5601 = vld [vmem:[#allocation6 + $0x700] sm:$0xff]
  %v5602 = vld [vmem:[#allocation6 + $0x708] sm:$0xff]
  %v5603 = vld [vmem:[#allocation6 + $0x710] sm:$0xff]
  %v5604 = vld [vmem:[#allocation6 + $0x718] sm:$0xff]
  %v5605 = vld [vmem:[#allocation6 + $0x720] sm:$0xff]
  %v5606 = vld [vmem:[#allocation6 + $0x728] sm:$0xff]
  %v5607 = vld [vmem:[#allocation6 + $0x730] sm:$0xff]
  %v5608 = vld [vmem:[#allocation6 + $0x738] sm:$0xff]
  %v5609 = vld [vmem:[#allocation6 + $0x740] sm:$0xff]
  %v5610 = vld [vmem:[#allocation6 + $0x748] sm:$0xff]
  %v5611 = vld [vmem:[#allocation6 + $0x750] sm:$0xff]
  %v5612 = vld [vmem:[#allocation6 + $0x758] sm:$0xff]
  %v5613 = vld [vmem:[#allocation6 + $0x760] sm:$0xff]
  %v5614 = vld [vmem:[#allocation6 + $0x768] sm:$0xff]
  %v5615 = vld [vmem:[#allocation6 + $0x770] sm:$0xff]
  %v5616 = vld [vmem:[#allocation6 + $0x778] sm:$0xff]
  %v5617 = vld [vmem:[#allocation6 + $0x780] sm:$0xff]
  %v5618 = vld [vmem:[#allocation6 + $0x788] sm:$0xff]
  %v5619 = vld [vmem:[#allocation6 + $0x790] sm:$0xff]
  %v5620 = vld [vmem:[#allocation6 + $0x798] sm:$0xff]
  %v5621 = vld [vmem:[#allocation6 + $0x7a0] sm:$0xff]
  %v5622 = vld [vmem:[#allocation6 + $0x7a8] sm:$0xff]
  %v5623 = vld [vmem:[#allocation6 + $0x7b0] sm:$0xff]
  %v5624 = vld [vmem:[#allocation6 + $0x7b8] sm:$0xff]
  %v5625 = vld [vmem:[#allocation6 + $0x7c0] sm:$0xff]
  %v5626 = vld [vmem:[#allocation6 + $0x7c8] sm:$0xff]
  %v5627 = vld [vmem:[#allocation6 + $0x7d0] sm:$0xff]
  %v5628 = vld [vmem:[#allocation6 + $0x7d8] sm:$0xff]
  %v5629 = vld [vmem:[#allocation6 + $0x7e0] sm:$0xff]
  %v5630 = vld [vmem:[#allocation6 + $0x7e8] sm:$0xff]
  %v5631 = vld [vmem:[#allocation6 + $0x7f0] sm:$0xff]
  %v5632 = vld [vmem:[#allocation6 + $0x7f8] sm:$0xff]
  %v5633 = vld [vmem:[#allocation6 + $0x800] sm:$0xff]
  %v5634 = vld [vmem:[#allocation6 + $0x808] sm:$0xff]
  %v5635 = vld [vmem:[#allocation6 + $0x810] sm:$0xff]
  %v5636 = vld [vmem:[#allocation6 + $0x818] sm:$0xff]
  %v5637 = vld [vmem:[#allocation6 + $0x820] sm:$0xff]
  %v5638 = vld [vmem:[#allocation6 + $0x828] sm:$0xff]
  %v5639 = vld [vmem:[#allocation6 + $0x830] sm:$0xff]
  %v5640 = vld [vmem:[#allocation6 + $0x838] sm:$0xff]
  %v5641 = vld [vmem:[#allocation6 + $0x840] sm:$0xff]
  %v5642 = vld [vmem:[#allocation6 + $0x848] sm:$0xff]
  %v5643 = vld [vmem:[#allocation6 + $0x850] sm:$0xff]
  %v5644 = vld [vmem:[#allocation6 + $0x858] sm:$0xff]
  %v5645 = vld [vmem:[#allocation6 + $0x860] sm:$0xff]
  %v5646 = vld [vmem:[#allocation6 + $0x868] sm:$0xff]
  %v5647 = vld [vmem:[#allocation6 + $0x870] sm:$0xff]
  %v5648 = vld [vmem:[#allocation6 + $0x878] sm:$0xff]
  %v5649 = vld [vmem:[#allocation6 + $0x880] sm:$0xff]
  %v5650 = vld [vmem:[#allocation6 + $0x888] sm:$0xff]
  %v5651 = vld [vmem:[#allocation6 + $0x890] sm:$0xff]
  %v5652 = vld [vmem:[#allocation6 + $0x898] sm:$0xff]
  %v5653 = vld [vmem:[#allocation6 + $0x8a0] sm:$0xff]
  %v5654 = vld [vmem:[#allocation6 + $0x8a8] sm:$0xff]
  %v5655 = vld [vmem:[#allocation6 + $0x8b0] sm:$0xff]
  %v5656 = vld [vmem:[#allocation6 + $0x8b8] sm:$0xff]
  %v5657 = vld [vmem:[#allocation6 + $0x8c0] sm:$0xff]
  %v5658 = vld [vmem:[#allocation6 + $0x8c8] sm:$0xff]
  %v5659 = vld [vmem:[#allocation6 + $0x8d0] sm:$0xff]
  %v5660 = vld [vmem:[#allocation6 + $0x8d8] sm:$0xff]
  %v5661 = vld [vmem:[#allocation6 + $0x8e0] sm:$0xff]
  %v5662 = vld [vmem:[#allocation6 + $0x8e8] sm:$0xff]
  %v5663 = vld [vmem:[#allocation6 + $0x8f0] sm:$0xff]
  %v5664 = vld [vmem:[#allocation6 + $0x8f8] sm:$0xff]
  %v5665 = vld [vmem:[%s8] sm:$0xf]
  %v5667 = vperm.slane %v5665, 0
  %v5668 = vperm.slane %v5665, 1
  %v5669 = vperm.slane %v5665, 2
  %v5670 = vperm.slane %v5665, 3
  %v5963 = vunpack.c.l.b16 %v5377
  %v5964 = vunpack.c.h.b16 %v5377
  %v5965 = vunpack.c.l.b16 %v5378
  %v5966 = vunpack.c.h.b16 %v5378
  %v5967 = vunpack.c.l.b16 %v5379
  %v5968 = vunpack.c.h.b16 %v5379
  %v5969 = vunpack.c.l.b16 %v5380
  %v5970 = vunpack.c.h.b16 %v5380
  %v5971 = vunpack.c.l.b16 %v5381
  %v5972 = vunpack.c.h.b16 %v5381
  %v5973 = vunpack.c.l.b16 %v5382
  %v5974 = vunpack.c.h.b16 %v5382
  %v5975 = vunpack.c.l.b16 %v5383
  %v5976 = vunpack.c.h.b16 %v5383
  %v5977 = vunpack.c.l.b16 %v5384
  %v5978 = vunpack.c.h.b16 %v5384
  %v5979 = vunpack.c.l.b16 %v5385
  %v5980 = vunpack.c.h.b16 %v5385
  %v5981 = vunpack.c.l.b16 %v5386
  %v5982 = vunpack.c.h.b16 %v5386
  %v5983 = vunpack.c.l.b16 %v5387
  %v5984 = vunpack.c.h.b16 %v5387
  %v5985 = vunpack.c.l.b16 %v5388
  %v5986 = vunpack.c.h.b16 %v5388
  %v5987 = vunpack.c.l.b16 %v5389
  %v5988 = vunpack.c.h.b16 %v5389
  %v5989 = vunpack.c.l.b16 %v5390
  %v5990 = vunpack.c.h.b16 %v5390
  %v5991 = vunpack.c.l.b16 %v5391
  %v5992 = vunpack.c.h.b16 %v5391
  %v5993 = vunpack.c.l.b16 %v5392
  %v5994 = vunpack.c.h.b16 %v5392
  %v5995 = vunpack.c.l.b16 %v5393
  %v5996 = vunpack.c.h.b16 %v5393
  %v5997 = vunpack.c.l.b16 %v5394
  %v5998 = vunpack.c.h.b16 %v5394
  %v5999 = vunpack.c.l.b16 %v5395
  %v6000 = vunpack.c.h.b16 %v5395
  %v6001 = vunpack.c.l.b16 %v5396
  %v6002 = vunpack.c.h.b16 %v5396
  %v6003 = vunpack.c.l.b16 %v5397
  %v6004 = vunpack.c.h.b16 %v5397
  %v6005 = vunpack.c.l.b16 %v5398
  %v6006 = vunpack.c.h.b16 %v5398
  %v6007 = vunpack.c.l.b16 %v5399
  %v6008 = vunpack.c.h.b16 %v5399
  %v6009 = vunpack.c.l.b16 %v5400
  %v6010 = vunpack.c.h.b16 %v5400
  %v6011 = vunpack.c.l.b16 %v5401
  %v6012 = vunpack.c.h.b16 %v5401
  %v6013 = vunpack.c.l.b16 %v5402
  %v6014 = vunpack.c.h.b16 %v5402
  %v6015 = vunpack.c.l.b16 %v5403
  %v6016 = vunpack.c.h.b16 %v5403
  %v6017 = vunpack.c.l.b16 %v5404
  %v6018 = vunpack.c.h.b16 %v5404
  %v6019 = vunpack.c.l.b16 %v5405
  %v6020 = vunpack.c.h.b16 %v5405
  %v6021 = vunpack.c.l.b16 %v5406
  %v6022 = vunpack.c.h.b16 %v5406
  %v6023 = vunpack.c.l.b16 %v5407
  %v6024 = vunpack.c.h.b16 %v5407
  %v6025 = vunpack.c.l.b16 %v5408
  %v6026 = vunpack.c.h.b16 %v5408
  %v6027 = vunpack.c.l.b16 %v5409
  %v6028 = vunpack.c.h.b16 %v5409
  %v6029 = vunpack.c.l.b16 %v5410
  %v6030 = vunpack.c.h.b16 %v5410
  %v6031 = vunpack.c.l.b16 %v5411
  %v6032 = vunpack.c.h.b16 %v5411
  %v6033 = vunpack.c.l.b16 %v5412
  %v6034 = vunpack.c.h.b16 %v5412
  %v6035 = vunpack.c.l.b16 %v5413
  %v6036 = vunpack.c.h.b16 %v5413
  %v6037 = vunpack.c.l.b16 %v5414
  %v6038 = vunpack.c.h.b16 %v5414
  %v6039 = vunpack.c.l.b16 %v5415
  %v6040 = vunpack.c.h.b16 %v5415
  %v6041 = vunpack.c.l.b16 %v5416
  %v6042 = vunpack.c.h.b16 %v5416
  %v6043 = vunpack.c.l.b16 %v5417
  %v6044 = vunpack.c.h.b16 %v5417
  %v6045 = vunpack.c.l.b16 %v5418
  %v6046 = vunpack.c.h.b16 %v5418
  %v6047 = vunpack.c.l.b16 %v5419
  %v6048 = vunpack.c.h.b16 %v5419
  %v6049 = vunpack.c.l.b16 %v5420
  %v6050 = vunpack.c.h.b16 %v5420
  %v6051 = vunpack.c.l.b16 %v5421
  %v6052 = vunpack.c.h.b16 %v5421
  %v6053 = vunpack.c.l.b16 %v5422
  %v6054 = vunpack.c.h.b16 %v5422
  %v6055 = vunpack.c.l.b16 %v5423
  %v6056 = vunpack.c.h.b16 %v5423
  %v6057 = vunpack.c.l.b16 %v5424
  %v6058 = vunpack.c.h.b16 %v5424
  %v6059 = vunpack.c.l.b16 %v5425
  %v6060 = vunpack.c.h.b16 %v5425
  %v6061 = vunpack.c.l.b16 %v5426
  %v6062 = vunpack.c.h.b16 %v5426
  %v6063 = vunpack.c.l.b16 %v5427
  %v6064 = vunpack.c.h.b16 %v5427
  %v6065 = vunpack.c.l.b16 %v5428
  %v6066 = vunpack.c.h.b16 %v5428
  %v6067 = vunpack.c.l.b16 %v5429
  %v6068 = vunpack.c.h.b16 %v5429
  %v6069 = vunpack.c.l.b16 %v5430
  %v6070 = vunpack.c.h.b16 %v5430
  %v6071 = vunpack.c.l.b16 %v5431
  %v6072 = vunpack.c.h.b16 %v5431
  %v6073 = vunpack.c.l.b16 %v5432
  %v6074 = vunpack.c.h.b16 %v5432
  %v6075 = vunpack.c.l.b16 %v5433
  %v6076 = vunpack.c.h.b16 %v5433
  %v6077 = vunpack.c.l.b16 %v5434
  %v6078 = vunpack.c.h.b16 %v5434
  %v6079 = vunpack.c.l.b16 %v5435
  %v6080 = vunpack.c.h.b16 %v5435
  %v6081 = vunpack.c.l.b16 %v5436
  %v6082 = vunpack.c.h.b16 %v5436
  %v6083 = vunpack.c.l.b16 %v5437
  %v6084 = vunpack.c.h.b16 %v5437
  %v6085 = vunpack.c.l.b16 %v5438
  %v6086 = vunpack.c.h.b16 %v5438
  %v6087 = vunpack.c.l.b16 %v5439
  %v6088 = vunpack.c.h.b16 %v5439
  %v6089 = vunpack.c.l.b16 %v5440
  %v6090 = vunpack.c.h.b16 %v5440
  %v6091 = vunpack.c.l.b16 %v5441
  %v6092 = vunpack.c.h.b16 %v5441
  %v6093 = vunpack.c.l.b16 %v5442
  %v6094 = vunpack.c.h.b16 %v5442
  %v6095 = vunpack.c.l.b16 %v5443
  %v6096 = vunpack.c.h.b16 %v5443
  %v6097 = vunpack.c.l.b16 %v5444
  %v6098 = vunpack.c.h.b16 %v5444
  %v6099 = vunpack.c.l.b16 %v5445
  %v6100 = vunpack.c.h.b16 %v5445
  %v6101 = vunpack.c.l.b16 %v5446
  %v6102 = vunpack.c.h.b16 %v5446
  %v6103 = vunpack.c.l.b16 %v5447
  %v6104 = vunpack.c.h.b16 %v5447
  %v6105 = vunpack.c.l.b16 %v5448
  %v6106 = vunpack.c.h.b16 %v5448
  %v6107 = vunpack.c.l.b16 %v5449
  %v6108 = vunpack.c.h.b16 %v5449
  %v6109 = vunpack.c.l.b16 %v5450
  %v6110 = vunpack.c.h.b16 %v5450
  %v6111 = vunpack.c.l.b16 %v5451
  %v6112 = vunpack.c.h.b16 %v5451
  %v6113 = vunpack.c.l.b16 %v5452
  %v6114 = vunpack.c.h.b16 %v5452
  %v6115 = vunpack.c.l.b16 %v5453
  %v6116 = vunpack.c.h.b16 %v5453
  %v6117 = vunpack.c.l.b16 %v5454
  %v6118 = vunpack.c.h.b16 %v5454
  %v6119 = vunpack.c.l.b16 %v5455
  %v6120 = vunpack.c.h.b16 %v5455
  %v6121 = vunpack.c.l.b16 %v5456
  %v6122 = vunpack.c.h.b16 %v5456
  %v6123 = vunpack.c.l.b16 %v5457
  %v6124 = vunpack.c.h.b16 %v5457
  %v6125 = vunpack.c.l.b16 %v5458
  %v6126 = vunpack.c.h.b16 %v5458
  %v6127 = vunpack.c.l.b16 %v5459
  %v6128 = vunpack.c.h.b16 %v5459
  %v6129 = vunpack.c.l.b16 %v5460
  %v6130 = vunpack.c.h.b16 %v5460
  %v6131 = vunpack.c.l.b16 %v5461
  %v6132 = vunpack.c.h.b16 %v5461
  %v6133 = vunpack.c.l.b16 %v5462
  %v6134 = vunpack.c.h.b16 %v5462
  %v6135 = vunpack.c.l.b16 %v5463
  %v6136 = vunpack.c.h.b16 %v5463
  %v6137 = vunpack.c.l.b16 %v5464
  %v6138 = vunpack.c.h.b16 %v5464
  %v6139 = vunpack.c.l.b16 %v5465
  %v6140 = vunpack.c.h.b16 %v5465
  %v6141 = vunpack.c.l.b16 %v5466
  %v6142 = vunpack.c.h.b16 %v5466
  %v6143 = vunpack.c.l.b16 %v5467
  %v6144 = vunpack.c.h.b16 %v5467
  %v6145 = vunpack.c.l.b16 %v5468
  %v6146 = vunpack.c.h.b16 %v5468
  %v6147 = vunpack.c.l.b16 %v5469
  %v6148 = vunpack.c.h.b16 %v5469
  %v6149 = vunpack.c.l.b16 %v5470
  %v6150 = vunpack.c.h.b16 %v5470
  %v6151 = vunpack.c.l.b16 %v5471
  %v6152 = vunpack.c.h.b16 %v5471
  %v6153 = vunpack.c.l.b16 %v5472
  %v6154 = vunpack.c.h.b16 %v5472
  %v6155 = vunpack.c.l.b16 %v5473
  %v6156 = vunpack.c.h.b16 %v5473
  %v6157 = vunpack.c.l.b16 %v5474
  %v6158 = vunpack.c.h.b16 %v5474
  %v6159 = vunpack.c.l.b16 %v5475
  %v6160 = vunpack.c.h.b16 %v5475
  %v6161 = vunpack.c.l.b16 %v5476
  %v6162 = vunpack.c.h.b16 %v5476
  %v6163 = vunpack.c.l.b16 %v5477
  %v6164 = vunpack.c.h.b16 %v5477
  %v6165 = vunpack.c.l.b16 %v5478
  %v6166 = vunpack.c.h.b16 %v5478
  %v6167 = vunpack.c.l.b16 %v5479
  %v6168 = vunpack.c.h.b16 %v5479
  %v6169 = vunpack.c.l.b16 %v5480
  %v6170 = vunpack.c.h.b16 %v5480
  %v6171 = vunpack.c.l.b16 %v5481
  %v6172 = vunpack.c.h.b16 %v5481
  %v6173 = vunpack.c.l.b16 %v5482
  %v6174 = vunpack.c.h.b16 %v5482
  %v6175 = vunpack.c.l.b16 %v5483
  %v6176 = vunpack.c.h.b16 %v5483
  %v6177 = vunpack.c.l.b16 %v5484
  %v6178 = vunpack.c.h.b16 %v5484
  %v6179 = vunpack.c.l.b16 %v5485
  %v6180 = vunpack.c.h.b16 %v5485
  %v6181 = vunpack.c.l.b16 %v5486
  %v6182 = vunpack.c.h.b16 %v5486
  %v6183 = vunpack.c.l.b16 %v5487
  %v6184 = vunpack.c.h.b16 %v5487
  %v6185 = vunpack.c.l.b16 %v5488
  %v6186 = vunpack.c.h.b16 %v5488
  %v6187 = vunpack.c.l.b16 %v5489
  %v6188 = vunpack.c.h.b16 %v5489
  %v6189 = vunpack.c.l.b16 %v5490
  %v6190 = vunpack.c.h.b16 %v5490
  %v6191 = vunpack.c.l.b16 %v5491
  %v6192 = vunpack.c.h.b16 %v5491
  %v6193 = vunpack.c.l.b16 %v5492
  %v6194 = vunpack.c.h.b16 %v5492
  %v6195 = vunpack.c.l.b16 %v5493
  %v6196 = vunpack.c.h.b16 %v5493
  %v6197 = vunpack.c.l.b16 %v5494
  %v6198 = vunpack.c.h.b16 %v5494
  %v6199 = vunpack.c.l.b16 %v5495
  %v6200 = vunpack.c.h.b16 %v5495
  %v6201 = vunpack.c.l.b16 %v5496
  %v6202 = vunpack.c.h.b16 %v5496
  %v6203 = vunpack.c.l.b16 %v5497
  %v6204 = vunpack.c.h.b16 %v5497
  %v6205 = vunpack.c.l.b16 %v5498
  %v6206 = vunpack.c.h.b16 %v5498
  %v6207 = vunpack.c.l.b16 %v5499
  %v6208 = vunpack.c.h.b16 %v5499
  %v6209 = vunpack.c.l.b16 %v5500
  %v6210 = vunpack.c.h.b16 %v5500
  %v6211 = vunpack.c.l.b16 %v5501
  %v6212 = vunpack.c.h.b16 %v5501
  %v6213 = vunpack.c.l.b16 %v5502
  %v6214 = vunpack.c.h.b16 %v5502
  %v6215 = vunpack.c.l.b16 %v5503
  %v6216 = vunpack.c.h.b16 %v5503
  %v6217 = vunpack.c.l.b16 %v5504
  %v6218 = vunpack.c.h.b16 %v5504
  %v6219 = vunpack.c.l.b16 %v5505
  %v6220 = vunpack.c.h.b16 %v5505
  %v6221 = vunpack.c.l.b16 %v5506
  %v6222 = vunpack.c.h.b16 %v5506
  %v6223 = vunpack.c.l.b16 %v5507
  %v6224 = vunpack.c.h.b16 %v5507
  %v6225 = vunpack.c.l.b16 %v5508
  %v6226 = vunpack.c.h.b16 %v5508
  %v6227 = vunpack.c.l.b16 %v5509
  %v6228 = vunpack.c.h.b16 %v5509
  %v6229 = vunpack.c.l.b16 %v5510
  %v6230 = vunpack.c.h.b16 %v5510
  %v6231 = vunpack.c.l.b16 %v5511
  %v6232 = vunpack.c.h.b16 %v5511
  %v6233 = vunpack.c.l.b16 %v5512
  %v6234 = vunpack.c.h.b16 %v5512
  %v6235 = vunpack.c.l.b16 %v5513
  %v6236 = vunpack.c.h.b16 %v5513
  %v6237 = vunpack.c.l.b16 %v5514
  %v6238 = vunpack.c.h.b16 %v5514
  %v6239 = vunpack.c.l.b16 %v5515
  %v6240 = vunpack.c.h.b16 %v5515
  %v6241 = vunpack.c.l.b16 %v5516
  %v6242 = vunpack.c.h.b16 %v5516
  %v6243 = vunpack.c.l.b16 %v5517
  %v6244 = vunpack.c.h.b16 %v5517
  %v6245 = vunpack.c.l.b16 %v5518
  %v6246 = vunpack.c.h.b16 %v5518
  %v6247 = vunpack.c.l.b16 %v5519
  %v6248 = vunpack.c.h.b16 %v5519
  %v6249 = vunpack.c.l.b16 %v5520
  %v6250 = vunpack.c.h.b16 %v5520
  %v6251 = vunpack.c.l.b16 %v5521
  %v6252 = vunpack.c.h.b16 %v5521
  %v6253 = vunpack.c.l.b16 %v5522
  %v6254 = vunpack.c.h.b16 %v5522
  %v6255 = vunpack.c.l.b16 %v5523
  %v6256 = vunpack.c.h.b16 %v5523
  %v6257 = vunpack.c.l.b16 %v5524
  %v6258 = vunpack.c.h.b16 %v5524
  %v6259 = vunpack.c.l.b16 %v5525
  %v6260 = vunpack.c.h.b16 %v5525
  %v6261 = vunpack.c.l.b16 %v5526
  %v6262 = vunpack.c.h.b16 %v5526
  %v6263 = vunpack.c.l.b16 %v5527
  %v6264 = vunpack.c.h.b16 %v5527
  %v6265 = vunpack.c.l.b16 %v5528
  %v6266 = vunpack.c.h.b16 %v5528
  %v6267 = vunpack.c.l.b16 %v5529
  %v6268 = vunpack.c.h.b16 %v5529
  %v6269 = vunpack.c.l.b16 %v5530
  %v6270 = vunpack.c.h.b16 %v5530
  %v6271 = vunpack.c.l.b16 %v5531
  %v6272 = vunpack.c.h.b16 %v5531
  %v6273 = vunpack.c.l.b16 %v5532
  %v6274 = vunpack.c.h.b16 %v5532
  %v6275 = vunpack.c.l.b16 %v5533
  %v6276 = vunpack.c.h.b16 %v5533
  %v6277 = vunpack.c.l.b16 %v5534
  %v6278 = vunpack.c.h.b16 %v5534
  %v6279 = vunpack.c.l.b16 %v5535
  %v6280 = vunpack.c.h.b16 %v5535
  %v6281 = vunpack.c.l.b16 %v5536
  %v6282 = vunpack.c.h.b16 %v5536
  %v6283 = vunpack.c.l.b16 %v5537
  %v6284 = vunpack.c.h.b16 %v5537
  %v6285 = vunpack.c.l.b16 %v5538
  %v6286 = vunpack.c.h.b16 %v5538
  %v6287 = vunpack.c.l.b16 %v5539
  %v6288 = vunpack.c.h.b16 %v5539
  %v6289 = vunpack.c.l.b16 %v5540
  %v6290 = vunpack.c.h.b16 %v5540
  %v6291 = vunpack.c.l.b16 %v5541
  %v6292 = vunpack.c.h.b16 %v5541
  %v6293 = vunpack.c.l.b16 %v5542
  %v6294 = vunpack.c.h.b16 %v5542
  %v6295 = vunpack.c.l.b16 %v5543
  %v6296 = vunpack.c.h.b16 %v5543
  %v6297 = vunpack.c.l.b16 %v5544
  %v6298 = vunpack.c.h.b16 %v5544
  %v6299 = vunpack.c.l.b16 %v5545
  %v6300 = vunpack.c.h.b16 %v5545
  %v6301 = vunpack.c.l.b16 %v5546
  %v6302 = vunpack.c.h.b16 %v5546
  %v6303 = vunpack.c.l.b16 %v5547
  %v6304 = vunpack.c.h.b16 %v5547
  %v6305 = vunpack.c.l.b16 %v5548
  %v6306 = vunpack.c.h.b16 %v5548
  %v6307 = vunpack.c.l.b16 %v5549
  %v6308 = vunpack.c.h.b16 %v5549
  %v6309 = vunpack.c.l.b16 %v5550
  %v6310 = vunpack.c.h.b16 %v5550
  %v6311 = vunpack.c.l.b16 %v5551
  %v6312 = vunpack.c.h.b16 %v5551
  %v6313 = vunpack.c.l.b16 %v5552
  %v6314 = vunpack.c.h.b16 %v5552
  %v6315 = vunpack.c.l.b16 %v5553
  %v6316 = vunpack.c.h.b16 %v5553
  %v6317 = vunpack.c.l.b16 %v5554
  %v6318 = vunpack.c.h.b16 %v5554
  %v6319 = vunpack.c.l.b16 %v5555
  %v6320 = vunpack.c.h.b16 %v5555
  %v6321 = vunpack.c.l.b16 %v5556
  %v6322 = vunpack.c.h.b16 %v5556
  %v6323 = vunpack.c.l.b16 %v5557
  %v6324 = vunpack.c.h.b16 %v5557
  %v6325 = vunpack.c.l.b16 %v5558
  %v6326 = vunpack.c.h.b16 %v5558
  %v6327 = vunpack.c.l.b16 %v5559
  %v6328 = vunpack.c.h.b16 %v5559
  %v6329 = vunpack.c.l.b16 %v5560
  %v6330 = vunpack.c.h.b16 %v5560
  %v6331 = vunpack.c.l.b16 %v5561
  %v6332 = vunpack.c.h.b16 %v5561
  %v6333 = vunpack.c.l.b16 %v5562
  %v6334 = vunpack.c.h.b16 %v5562
  %v6335 = vunpack.c.l.b16 %v5563
  %v6336 = vunpack.c.h.b16 %v5563
  %v6337 = vunpack.c.l.b16 %v5564
  %v6338 = vunpack.c.h.b16 %v5564
  %v6339 = vunpack.c.l.b16 %v5565
  %v6340 = vunpack.c.h.b16 %v5565
  %v6341 = vunpack.c.l.b16 %v5566
  %v6342 = vunpack.c.h.b16 %v5566
  %v6343 = vunpack.c.l.b16 %v5567
  %v6344 = vunpack.c.h.b16 %v5567
  %v6345 = vunpack.c.l.b16 %v5568
  %v6346 = vunpack.c.h.b16 %v5568
  %v6347 = vunpack.c.l.b16 %v5569
  %v6348 = vunpack.c.h.b16 %v5569
  %v6349 = vunpack.c.l.b16 %v5570
  %v6350 = vunpack.c.h.b16 %v5570
  %v6351 = vunpack.c.l.b16 %v5571
  %v6352 = vunpack.c.h.b16 %v5571
  %v6353 = vunpack.c.l.b16 %v5572
  %v6354 = vunpack.c.h.b16 %v5572
  %v6355 = vunpack.c.l.b16 %v5573
  %v6356 = vunpack.c.h.b16 %v5573
  %v6357 = vunpack.c.l.b16 %v5574
  %v6358 = vunpack.c.h.b16 %v5574
  %v6359 = vunpack.c.l.b16 %v5575
  %v6360 = vunpack.c.h.b16 %v5575
  %v6361 = vunpack.c.l.b16 %v5576
  %v6362 = vunpack.c.h.b16 %v5576
  %v6363 = vunpack.c.l.b16 %v5577
  %v6364 = vunpack.c.h.b16 %v5577
  %v6365 = vunpack.c.l.b16 %v5578
  %v6366 = vunpack.c.h.b16 %v5578
  %v6367 = vunpack.c.l.b16 %v5579
  %v6368 = vunpack.c.h.b16 %v5579
  %v6369 = vunpack.c.l.b16 %v5580
  %v6370 = vunpack.c.h.b16 %v5580
  %v6371 = vunpack.c.l.b16 %v5581
  %v6372 = vunpack.c.h.b16 %v5581
  %v6373 = vunpack.c.l.b16 %v5582
  %v6374 = vunpack.c.h.b16 %v5582
  %v6375 = vunpack.c.l.b16 %v5583
  %v6376 = vunpack.c.h.b16 %v5583
  %v6377 = vunpack.c.l.b16 %v5584
  %v6378 = vunpack.c.h.b16 %v5584
  %v6379 = vunpack.c.l.b16 %v5585
  %v6380 = vunpack.c.h.b16 %v5585
  %v6381 = vunpack.c.l.b16 %v5586
  %v6382 = vunpack.c.h.b16 %v5586
  %v6383 = vunpack.c.l.b16 %v5587
  %v6384 = vunpack.c.h.b16 %v5587
  %v6385 = vunpack.c.l.b16 %v5588
  %v6386 = vunpack.c.h.b16 %v5588
  %v6387 = vunpack.c.l.b16 %v5589
  %v6388 = vunpack.c.h.b16 %v5589
  %v6389 = vunpack.c.l.b16 %v5590
  %v6390 = vunpack.c.h.b16 %v5590
  %v6391 = vunpack.c.l.b16 %v5591
  %v6392 = vunpack.c.h.b16 %v5591
  %v6393 = vunpack.c.l.b16 %v5592
  %v6394 = vunpack.c.h.b16 %v5592
  %v6395 = vunpack.c.l.b16 %v5593
  %v6396 = vunpack.c.h.b16 %v5593
  %v6397 = vunpack.c.l.b16 %v5594
  %v6398 = vunpack.c.h.b16 %v5594
  %v6399 = vunpack.c.l.b16 %v5595
  %v6400 = vunpack.c.h.b16 %v5595
  %v6401 = vunpack.c.l.b16 %v5596
  %v6402 = vunpack.c.h.b16 %v5596
  %v6403 = vunpack.c.l.b16 %v5597
  %v6404 = vunpack.c.h.b16 %v5597
  %v6405 = vunpack.c.l.b16 %v5598
  %v6406 = vunpack.c.h.b16 %v5598
  %v6407 = vunpack.c.l.b16 %v5599
  %v6408 = vunpack.c.h.b16 %v5599
  %v6409 = vunpack.c.l.b16 %v5600
  %v6410 = vunpack.c.h.b16 %v5600
  %v6411 = vunpack.c.l.b16 %v5601
  %v6412 = vunpack.c.h.b16 %v5601
  %v6413 = vunpack.c.l.b16 %v5602
  %v6414 = vunpack.c.h.b16 %v5602
  %v6415 = vunpack.c.l.b16 %v5603
  %v6416 = vunpack.c.h.b16 %v5603
  %v6417 = vunpack.c.l.b16 %v5604
  %v6418 = vunpack.c.h.b16 %v5604
  %v6419 = vunpack.c.l.b16 %v5605
  %v6420 = vunpack.c.h.b16 %v5605
  %v6421 = vunpack.c.l.b16 %v5606
  %v6422 = vunpack.c.h.b16 %v5606
  %v6423 = vunpack.c.l.b16 %v5607
  %v6424 = vunpack.c.h.b16 %v5607
  %v6425 = vunpack.c.l.b16 %v5608
  %v6426 = vunpack.c.h.b16 %v5608
  %v6427 = vunpack.c.l.b16 %v5609
  %v6428 = vunpack.c.h.b16 %v5609
  %v6429 = vunpack.c.l.b16 %v5610
  %v6430 = vunpack.c.h.b16 %v5610
  %v6431 = vunpack.c.l.b16 %v5611
  %v6432 = vunpack.c.h.b16 %v5611
  %v6433 = vunpack.c.l.b16 %v5612
  %v6434 = vunpack.c.h.b16 %v5612
  %v6435 = vunpack.c.l.b16 %v5613
  %v6436 = vunpack.c.h.b16 %v5613
  %v6437 = vunpack.c.l.b16 %v5614
  %v6438 = vunpack.c.h.b16 %v5614
  %v6439 = vunpack.c.l.b16 %v5615
  %v6440 = vunpack.c.h.b16 %v5615
  %v6441 = vunpack.c.l.b16 %v5616
  %v6442 = vunpack.c.h.b16 %v5616
  %v6443 = vunpack.c.l.b16 %v5617
  %v6444 = vunpack.c.h.b16 %v5617
  %v6445 = vunpack.c.l.b16 %v5618
  %v6446 = vunpack.c.h.b16 %v5618
  %v6447 = vunpack.c.l.b16 %v5619
  %v6448 = vunpack.c.h.b16 %v5619
  %v6449 = vunpack.c.l.b16 %v5620
  %v6450 = vunpack.c.h.b16 %v5620
  %v6451 = vunpack.c.l.b16 %v5621
  %v6452 = vunpack.c.h.b16 %v5621
  %v6453 = vunpack.c.l.b16 %v5622
  %v6454 = vunpack.c.h.b16 %v5622
  %v6455 = vunpack.c.l.b16 %v5623
  %v6456 = vunpack.c.h.b16 %v5623
  %v6457 = vunpack.c.l.b16 %v5624
  %v6458 = vunpack.c.h.b16 %v5624
  %v6459 = vunpack.c.l.b16 %v5625
  %v6460 = vunpack.c.h.b16 %v5625
  %v6461 = vunpack.c.l.b16 %v5626
  %v6462 = vunpack.c.h.b16 %v5626
  %v6463 = vunpack.c.l.b16 %v5627
  %v6464 = vunpack.c.h.b16 %v5627
  %v6465 = vunpack.c.l.b16 %v5628
  %v6466 = vunpack.c.h.b16 %v5628
  %v6467 = vunpack.c.l.b16 %v5629
  %v6468 = vunpack.c.h.b16 %v5629
  %v6469 = vunpack.c.l.b16 %v5630
  %v6470 = vunpack.c.h.b16 %v5630
  %v6471 = vunpack.c.l.b16 %v5631
  %v6472 = vunpack.c.h.b16 %v5631
  %v6473 = vunpack.c.l.b16 %v5632
  %v6474 = vunpack.c.h.b16 %v5632
  %v6475 = vunpack.c.l.b16 %v5633
  %v6476 = vunpack.c.h.b16 %v5633
  %v6477 = vunpack.c.l.b16 %v5634
  %v6478 = vunpack.c.h.b16 %v5634
  %v6479 = vunpack.c.l.b16 %v5635
  %v6480 = vunpack.c.h.b16 %v5635
  %v6481 = vunpack.c.l.b16 %v5636
  %v6482 = vunpack.c.h.b16 %v5636
  %v6483 = vunpack.c.l.b16 %v5637
  %v6484 = vunpack.c.h.b16 %v5637
  %v6485 = vunpack.c.l.b16 %v5638
  %v6486 = vunpack.c.h.b16 %v5638
  %v6487 = vunpack.c.l.b16 %v5639
  %v6488 = vunpack.c.h.b16 %v5639
  %v6489 = vunpack.c.l.b16 %v5640
  %v6490 = vunpack.c.h.b16 %v5640
  %v6491 = vunpack.c.l.b16 %v5641
  %v6492 = vunpack.c.h.b16 %v5641
  %v6493 = vunpack.c.l.b16 %v5642
  %v6494 = vunpack.c.h.b16 %v5642
  %v6495 = vunpack.c.l.b16 %v5643
  %v6496 = vunpack.c.h.b16 %v5643
  %v6497 = vunpack.c.l.b16 %v5644
  %v6498 = vunpack.c.h.b16 %v5644
  %v6499 = vunpack.c.l.b16 %v5645
  %v6500 = vunpack.c.h.b16 %v5645
  %v6501 = vunpack.c.l.b16 %v5646
  %v6502 = vunpack.c.h.b16 %v5646
  %v6503 = vunpack.c.l.b16 %v5647
  %v6504 = vunpack.c.h.b16 %v5647
  %v6505 = vunpack.c.l.b16 %v5648
  %v6506 = vunpack.c.h.b16 %v5648
  %v6507 = vunpack.c.l.b16 %v5649
  %v6508 = vunpack.c.h.b16 %v5649
  %v6509 = vunpack.c.l.b16 %v5650
  %v6510 = vunpack.c.h.b16 %v5650
  %v6511 = vunpack.c.l.b16 %v5651
  %v6512 = vunpack.c.h.b16 %v5651
  %v6513 = vunpack.c.l.b16 %v5652
  %v6514 = vunpack.c.h.b16 %v5652
  %v6515 = vunpack.c.l.b16 %v5653
  %v6516 = vunpack.c.h.b16 %v5653
  %v6517 = vunpack.c.l.b16 %v5654
  %v6518 = vunpack.c.h.b16 %v5654
  %v6519 = vunpack.c.l.b16 %v5655
  %v6520 = vunpack.c.h.b16 %v5655
  %v6521 = vunpack.c.l.b16 %v5656
  %v6522 = vunpack.c.h.b16 %v5656
  %v6523 = vunpack.c.l.b16 %v5657
  %v6524 = vunpack.c.h.b16 %v5657
  %v6525 = vunpack.c.l.b16 %v5658
  %v6526 = vunpack.c.h.b16 %v5658
  %v6527 = vunpack.c.l.b16 %v5659
  %v6528 = vunpack.c.h.b16 %v5659
  %v6529 = vunpack.c.l.b16 %v5660
  %v6530 = vunpack.c.h.b16 %v5660
  %v6531 = vunpack.c.l.b16 %v5661
  %v6532 = vunpack.c.h.b16 %v5661
  %v6533 = vunpack.c.l.b16 %v5662
  %v6534 = vunpack.c.h.b16 %v5662
  %v6535 = vunpack.c.l.b16 %v5663
  %v6536 = vunpack.c.h.b16 %v5663
  %v6537 = vunpack.c.l.b16 %v5664
  %v6538 = vunpack.c.h.b16 %v5664
  %v6539 = vpack.c.b16 %v5967, %v5963
  %v6540 = vpack.c.b16 %v5968, %v5964
  %v6541 = vpack.c.b16 %v5969, %v5965
  %v6542 = vpack.c.b16 %v5970, %v5966
  %v6543 = vpack.c.b16 %v5975, %v5971
  %v6544 = vpack.c.b16 %v5976, %v5972
  %v6545 = vpack.c.b16 %v5977, %v5973
  %v6546 = vpack.c.b16 %v5978, %v5974
  %v6547 = vpack.c.b16 %v5983, %v5979
  %v6548 = vpack.c.b16 %v5984, %v5980
  %v6549 = vpack.c.b16 %v5985, %v5981
  %v6550 = vpack.c.b16 %v5986, %v5982
  %v6551 = vpack.c.b16 %v5991, %v5987
  %v6552 = vpack.c.b16 %v5992, %v5988
  %v6553 = vpack.c.b16 %v5993, %v5989
  %v6554 = vpack.c.b16 %v5994, %v5990
  %v6555 = vpack.c.b16 %v5999, %v5995
  %v6556 = vpack.c.b16 %v6000, %v5996
  %v6557 = vpack.c.b16 %v6001, %v5997
  %v6558 = vpack.c.b16 %v6002, %v5998
  %v6559 = vpack.c.b16 %v6007, %v6003
  %v6560 = vpack.c.b16 %v6008, %v6004
  %v6561 = vpack.c.b16 %v6009, %v6005
  %v6562 = vpack.c.b16 %v6010, %v6006
  %v6563 = vpack.c.b16 %v6015, %v6011
  %v6564 = vpack.c.b16 %v6016, %v6012
  %v6565 = vpack.c.b16 %v6017, %v6013
  %v6566 = vpack.c.b16 %v6018, %v6014
  %v6567 = vpack.c.b16 %v6023, %v6019
  %v6568 = vpack.c.b16 %v6024, %v6020
  %v6569 = vpack.c.b16 %v6025, %v6021
  %v6570 = vpack.c.b16 %v6026, %v6022
  %v6571 = vpack.c.b16 %v6031, %v6027
  %v6572 = vpack.c.b16 %v6032, %v6028
  %v6573 = vpack.c.b16 %v6033, %v6029
  %v6574 = vpack.c.b16 %v6034, %v6030
  %v6575 = vpack.c.b16 %v6039, %v6035
  %v6576 = vpack.c.b16 %v6040, %v6036
  %v6577 = vpack.c.b16 %v6041, %v6037
  %v6578 = vpack.c.b16 %v6042, %v6038
  %v6579 = vpack.c.b16 %v6047, %v6043
  %v6580 = vpack.c.b16 %v6048, %v6044
  %v6581 = vpack.c.b16 %v6049, %v6045
  %v6582 = vpack.c.b16 %v6050, %v6046
  %v6583 = vpack.c.b16 %v6055, %v6051
  %v6584 = vpack.c.b16 %v6056, %v6052
  %v6585 = vpack.c.b16 %v6057, %v6053
  %v6586 = vpack.c.b16 %v6058, %v6054
  %v6587 = vpack.c.b16 %v6063, %v6059
  %v6588 = vpack.c.b16 %v6064, %v6060
  %v6589 = vpack.c.b16 %v6065, %v6061
  %v6590 = vpack.c.b16 %v6066, %v6062
  %v6591 = vpack.c.b16 %v6071, %v6067
  %v6592 = vpack.c.b16 %v6072, %v6068
  %v6593 = vpack.c.b16 %v6073, %v6069
  %v6594 = vpack.c.b16 %v6074, %v6070
  %v6595 = vpack.c.b16 %v6079, %v6075
  %v6596 = vpack.c.b16 %v6080, %v6076
  %v6597 = vpack.c.b16 %v6081, %v6077
  %v6598 = vpack.c.b16 %v6082, %v6078
  %v6599 = vpack.c.b16 %v6087, %v6083
  %v6600 = vpack.c.b16 %v6088, %v6084
  %v6601 = vpack.c.b16 %v6089, %v6085
  %v6602 = vpack.c.b16 %v6090, %v6086
  %v6603 = vpack.c.b16 %v6095, %v6091
  %v6604 = vpack.c.b16 %v6096, %v6092
  %v6605 = vpack.c.b16 %v6097, %v6093
  %v6606 = vpack.c.b16 %v6098, %v6094
  %v6607 = vpack.c.b16 %v6103, %v6099
  %v6608 = vpack.c.b16 %v6104, %v6100
  %v6609 = vpack.c.b16 %v6105, %v6101
  %v6610 = vpack.c.b16 %v6106, %v6102
  %v6611 = vpack.c.b16 %v6111, %v6107
  %v6612 = vpack.c.b16 %v6112, %v6108
  %v6613 = vpack.c.b16 %v6113, %v6109
  %v6614 = vpack.c.b16 %v6114, %v6110
  %v6615 = vpack.c.b16 %v6119, %v6115
  %v6616 = vpack.c.b16 %v6120, %v6116
  %v6617 = vpack.c.b16 %v6121, %v6117
  %v6618 = vpack.c.b16 %v6122, %v6118
  %v6619 = vpack.c.b16 %v6127, %v6123
  %v6620 = vpack.c.b16 %v6128, %v6124
  %v6621 = vpack.c.b16 %v6129, %v6125
  %v6622 = vpack.c.b16 %v6130, %v6126
  %v6623 = vpack.c.b16 %v6135, %v6131
  %v6624 = vpack.c.b16 %v6136, %v6132
  %v6625 = vpack.c.b16 %v6137, %v6133
  %v6626 = vpack.c.b16 %v6138, %v6134
  %v6627 = vpack.c.b16 %v6143, %v6139
  %v6628 = vpack.c.b16 %v6144, %v6140
  %v6629 = vpack.c.b16 %v6145, %v6141
  %v6630 = vpack.c.b16 %v6146, %v6142
  %v6631 = vpack.c.b16 %v6151, %v6147
  %v6632 = vpack.c.b16 %v6152, %v6148
  %v6633 = vpack.c.b16 %v6153, %v6149
  %v6634 = vpack.c.b16 %v6154, %v6150
  %v6635 = vpack.c.b16 %v6159, %v6155
  %v6636 = vpack.c.b16 %v6160, %v6156
  %v6637 = vpack.c.b16 %v6161, %v6157
  %v6638 = vpack.c.b16 %v6162, %v6158
  %v6639 = vpack.c.b16 %v6167, %v6163
  %v6640 = vpack.c.b16 %v6168, %v6164
  %v6641 = vpack.c.b16 %v6169, %v6165
  %v6642 = vpack.c.b16 %v6170, %v6166
  %v6643 = vpack.c.b16 %v6175, %v6171
  %v6644 = vpack.c.b16 %v6176, %v6172
  %v6645 = vpack.c.b16 %v6177, %v6173
  %v6646 = vpack.c.b16 %v6178, %v6174
  %v6647 = vpack.c.b16 %v6183, %v6179
  %v6648 = vpack.c.b16 %v6184, %v6180
  %v6649 = vpack.c.b16 %v6185, %v6181
  %v6650 = vpack.c.b16 %v6186, %v6182
  %v6651 = vpack.c.b16 %v6191, %v6187
  %v6652 = vpack.c.b16 %v6192, %v6188
  %v6653 = vpack.c.b16 %v6193, %v6189
  %v6654 = vpack.c.b16 %v6194, %v6190
  %v6655 = vpack.c.b16 %v6199, %v6195
  %v6656 = vpack.c.b16 %v6200, %v6196
  %v6657 = vpack.c.b16 %v6201, %v6197
  %v6658 = vpack.c.b16 %v6202, %v6198
  %v6659 = vpack.c.b16 %v6207, %v6203
  %v6660 = vpack.c.b16 %v6208, %v6204
  %v6661 = vpack.c.b16 %v6209, %v6205
  %v6662 = vpack.c.b16 %v6210, %v6206
  %v6663 = vpack.c.b16 %v6215, %v6211
  %v6664 = vpack.c.b16 %v6216, %v6212
  %v6665 = vpack.c.b16 %v6217, %v6213
  %v6666 = vpack.c.b16 %v6218, %v6214
  %v6667 = vpack.c.b16 %v6223, %v6219
  %v6668 = vpack.c.b16 %v6224, %v6220
  %v6669 = vpack.c.b16 %v6225, %v6221
  %v6670 = vpack.c.b16 %v6226, %v6222
  %v6671 = vpack.c.b16 %v6231, %v6227
  %v6672 = vpack.c.b16 %v6232, %v6228
  %v6673 = vpack.c.b16 %v6233, %v6229
  %v6674 = vpack.c.b16 %v6234, %v6230
  %v6675 = vpack.c.b16 %v6239, %v6235
  %v6676 = vpack.c.b16 %v6240, %v6236
  %v6677 = vpack.c.b16 %v6241, %v6237
  %v6678 = vpack.c.b16 %v6242, %v6238
  %v6679 = vpack.c.b16 %v6247, %v6243
  %v6680 = vpack.c.b16 %v6248, %v6244
  %v6681 = vpack.c.b16 %v6249, %v6245
  %v6682 = vpack.c.b16 %v6250, %v6246
  %v6683 = vpack.c.b16 %v6255, %v6251
  %v6684 = vpack.c.b16 %v6256, %v6252
  %v6685 = vpack.c.b16 %v6257, %v6253
  %v6686 = vpack.c.b16 %v6258, %v6254
  %v6687 = vpack.c.b16 %v6263, %v6259
  %v6688 = vpack.c.b16 %v6264, %v6260
  %v6689 = vpack.c.b16 %v6265, %v6261
  %v6690 = vpack.c.b16 %v6266, %v6262
  %v6691 = vpack.c.b16 %v6271, %v6267
  %v6692 = vpack.c.b16 %v6272, %v6268
  %v6693 = vpack.c.b16 %v6273, %v6269
  %v6694 = vpack.c.b16 %v6274, %v6270
  %v6695 = vpack.c.b16 %v6279, %v6275
  %v6696 = vpack.c.b16 %v6280, %v6276
  %v6697 = vpack.c.b16 %v6281, %v6277
  %v6698 = vpack.c.b16 %v6282, %v6278
  %v6699 = vpack.c.b16 %v6287, %v6283
  %v6700 = vpack.c.b16 %v6288, %v6284
  %v6701 = vpack.c.b16 %v6289, %v6285
  %v6702 = vpack.c.b16 %v6290, %v6286
  %v6703 = vpack.c.b16 %v6295, %v6291
  %v6704 = vpack.c.b16 %v6296, %v6292
  %v6705 = vpack.c.b16 %v6297, %v6293
  %v6706 = vpack.c.b16 %v6298, %v6294
  %v6707 = vpack.c.b16 %v6303, %v6299
  %v6708 = vpack.c.b16 %v6304, %v6300
  %v6709 = vpack.c.b16 %v6305, %v6301
  %v6710 = vpack.c.b16 %v6306, %v6302
  %v6711 = vpack.c.b16 %v6311, %v6307
  %v6712 = vpack.c.b16 %v6312, %v6308
  %v6713 = vpack.c.b16 %v6313, %v6309
  %v6714 = vpack.c.b16 %v6314, %v6310
  %v6715 = vpack.c.b16 %v6319, %v6315
  %v6716 = vpack.c.b16 %v6320, %v6316
  %v6717 = vpack.c.b16 %v6321, %v6317
  %v6718 = vpack.c.b16 %v6322, %v6318
  %v6719 = vpack.c.b16 %v6327, %v6323
  %v6720 = vpack.c.b16 %v6328, %v6324
  %v6721 = vpack.c.b16 %v6329, %v6325
  %v6722 = vpack.c.b16 %v6330, %v6326
  %v6723 = vpack.c.b16 %v6335, %v6331
  %v6724 = vpack.c.b16 %v6336, %v6332
  %v6725 = vpack.c.b16 %v6337, %v6333
  %v6726 = vpack.c.b16 %v6338, %v6334
  %v6727 = vpack.c.b16 %v6343, %v6339
  %v6728 = vpack.c.b16 %v6344, %v6340
  %v6729 = vpack.c.b16 %v6345, %v6341
  %v6730 = vpack.c.b16 %v6346, %v6342
  %v6731 = vpack.c.b16 %v6351, %v6347
  %v6732 = vpack.c.b16 %v6352, %v6348
  %v6733 = vpack.c.b16 %v6353, %v6349
  %v6734 = vpack.c.b16 %v6354, %v6350
  %v6735 = vpack.c.b16 %v6359, %v6355
  %v6736 = vpack.c.b16 %v6360, %v6356
  %v6737 = vpack.c.b16 %v6361, %v6357
  %v6738 = vpack.c.b16 %v6362, %v6358
  %v6739 = vpack.c.b16 %v6367, %v6363
  %v6740 = vpack.c.b16 %v6368, %v6364
  %v6741 = vpack.c.b16 %v6369, %v6365
  %v6742 = vpack.c.b16 %v6370, %v6366
  %v6743 = vpack.c.b16 %v6375, %v6371
  %v6744 = vpack.c.b16 %v6376, %v6372
  %v6745 = vpack.c.b16 %v6377, %v6373
  %v6746 = vpack.c.b16 %v6378, %v6374
  %v6747 = vpack.c.b16 %v6383, %v6379
  %v6748 = vpack.c.b16 %v6384, %v6380
  %v6749 = vpack.c.b16 %v6385, %v6381
  %v6750 = vpack.c.b16 %v6386, %v6382
  %v6751 = vpack.c.b16 %v6391, %v6387
  %v6752 = vpack.c.b16 %v6392, %v6388
  %v6753 = vpack.c.b16 %v6393, %v6389
  %v6754 = vpack.c.b16 %v6394, %v6390
  %v6755 = vpack.c.b16 %v6399, %v6395
  %v6756 = vpack.c.b16 %v6400, %v6396
  %v6757 = vpack.c.b16 %v6401, %v6397
  %v6758 = vpack.c.b16 %v6402, %v6398
  %v6759 = vpack.c.b16 %v6407, %v6403
  %v6760 = vpack.c.b16 %v6408, %v6404
  %v6761 = vpack.c.b16 %v6409, %v6405
  %v6762 = vpack.c.b16 %v6410, %v6406
  %v6763 = vpack.c.b16 %v6415, %v6411
  %v6764 = vpack.c.b16 %v6416, %v6412
  %v6765 = vpack.c.b16 %v6417, %v6413
  %v6766 = vpack.c.b16 %v6418, %v6414
  %v6767 = vpack.c.b16 %v6423, %v6419
  %v6768 = vpack.c.b16 %v6424, %v6420
  %v6769 = vpack.c.b16 %v6425, %v6421
  %v6770 = vpack.c.b16 %v6426, %v6422
  %v6771 = vpack.c.b16 %v6431, %v6427
  %v6772 = vpack.c.b16 %v6432, %v6428
  %v6773 = vpack.c.b16 %v6433, %v6429
  %v6774 = vpack.c.b16 %v6434, %v6430
  %v6775 = vpack.c.b16 %v6439, %v6435
  %v6776 = vpack.c.b16 %v6440, %v6436
  %v6777 = vpack.c.b16 %v6441, %v6437
  %v6778 = vpack.c.b16 %v6442, %v6438
  %v6779 = vpack.c.b16 %v6447, %v6443
  %v6780 = vpack.c.b16 %v6448, %v6444
  %v6781 = vpack.c.b16 %v6449, %v6445
  %v6782 = vpack.c.b16 %v6450, %v6446
  %v6783 = vpack.c.b16 %v6455, %v6451
  %v6784 = vpack.c.b16 %v6456, %v6452
  %v6785 = vpack.c.b16 %v6457, %v6453
  %v6786 = vpack.c.b16 %v6458, %v6454
  %v6787 = vpack.c.b16 %v6463, %v6459
  %v6788 = vpack.c.b16 %v6464, %v6460
  %v6789 = vpack.c.b16 %v6465, %v6461
  %v6790 = vpack.c.b16 %v6466, %v6462
  %v6791 = vpack.c.b16 %v6471, %v6467
  %v6792 = vpack.c.b16 %v6472, %v6468
  %v6793 = vpack.c.b16 %v6473, %v6469
  %v6794 = vpack.c.b16 %v6474, %v6470
  %v6795 = vpack.c.b16 %v6479, %v6475
  %v6796 = vpack.c.b16 %v6480, %v6476
  %v6797 = vpack.c.b16 %v6481, %v6477
  %v6798 = vpack.c.b16 %v6482, %v6478
  %v6799 = vpack.c.b16 %v6487, %v6483
  %v6800 = vpack.c.b16 %v6488, %v6484
  %v6801 = vpack.c.b16 %v6489, %v6485
  %v6802 = vpack.c.b16 %v6490, %v6486
  %v6803 = vpack.c.b16 %v6495, %v6491
  %v6804 = vpack.c.b16 %v6496, %v6492
  %v6805 = vpack.c.b16 %v6497, %v6493
  %v6806 = vpack.c.b16 %v6498, %v6494
  %v6807 = vpack.c.b16 %v6503, %v6499
  %v6808 = vpack.c.b16 %v6504, %v6500
  %v6809 = vpack.c.b16 %v6505, %v6501
  %v6810 = vpack.c.b16 %v6506, %v6502
  %v6811 = vpack.c.b16 %v6511, %v6507
  %v6812 = vpack.c.b16 %v6512, %v6508
  %v6813 = vpack.c.b16 %v6513, %v6509
  %v6814 = vpack.c.b16 %v6514, %v6510
  %v6815 = vpack.c.b16 %v6519, %v6515
  %v6816 = vpack.c.b16 %v6520, %v6516
  %v6817 = vpack.c.b16 %v6521, %v6517
  %v6818 = vpack.c.b16 %v6522, %v6518
  %v6819 = vpack.c.b16 %v6527, %v6523
  %v6820 = vpack.c.b16 %v6528, %v6524
  %v6821 = vpack.c.b16 %v6529, %v6525
  %v6822 = vpack.c.b16 %v6530, %v6526
  %v6823 = vpack.c.b16 %v6535, %v6531
  %v6824 = vpack.c.b16 %v6536, %v6532
  %v6825 = vpack.c.b16 %v6537, %v6533
  %v6826 = vpack.c.b16 %v6538, %v6534
  %7115 = vmatpush.bf16.msra.mxu0 %v6567
  %7116 = vmatpush.bf16.msra.mxu0 %v6563
  %7117 = vmatpush.bf16.msra.mxu0 %v6559
  %7118 = vmatpush.bf16.msra.mxu0 %v6555
  %7119 = vmatpush.bf16.msra.mxu0 %v6551
  %7120 = vmatpush.bf16.msra.mxu0 %v6547
  %7121 = vmatpush.bf16.msra.mxu0 %v6543
  %7122 = vmatpush.bf16.msra.mxu0 %v6539
  %7123 = vmatmul.bf16.gmra.mxu0 %v5364
  %v7124 = vpop.f32.mrf.mxu0
  %v7125 = vadd.f32 %v5667, %v7124
  %v7126 = vpop.f32.mrf.mxu0
  %7127 = vdwg.mxu0
  %7128 = vmatpush.bf16.msra.mxu0 %v6599
  %7129 = vmatpush.bf16.msra.mxu0 %v6595
  %7130 = vmatpush.bf16.msra.mxu0 %v6591
  %7131 = vmatpush.bf16.msra.mxu0 %v6587
  %7132 = vmatpush.bf16.msra.mxu0 %v6583
  %7133 = vmatpush.bf16.msra.mxu0 %v6579
  %7134 = vmatpush.bf16.msra.mxu0 %v6575
  %7135 = vmatpush.bf16.msra.mxu0 %v6571
  %7136 = vmatmul.bf16.gmra.mxu0 %v5365
  %v7137 = vpop.f32.mrf.mxu0
  %v7138 = vadd.f32 %v7125, %v7137
  %v7139 = vpop.f32.mrf.mxu0
  %7140 = vdwg.mxu0
  %7141 = vmatpush.bf16.msra.mxu0 %v6631
  %7142 = vmatpush.bf16.msra.mxu0 %v6627
  %7143 = vmatpush.bf16.msra.mxu0 %v6623
  %7144 = vmatpush.bf16.msra.mxu0 %v6619
  %7145 = vmatpush.bf16.msra.mxu0 %v6615
  %7146 = vmatpush.bf16.msra.mxu0 %v6611
  %7147 = vmatpush.bf16.msra.mxu0 %v6607
  %7148 = vmatpush.bf16.msra.mxu0 %v6603
  %7149 = vmatmul.bf16.gmra.mxu0 %v5366
  %v7150 = vpop.f32.mrf.mxu0
  %v7151 = vadd.f32 %v7138, %v7150
  %v7152 = vpop.f32.mrf.mxu0
  %7153 = vdwg.mxu0
  %7154 = vmatpush.bf16.msra.mxu0 %v6663
  %7155 = vmatpush.bf16.msra.mxu0 %v6659
  %7156 = vmatpush.bf16.msra.mxu0 %v6655
  %7157 = vmatpush.bf16.msra.mxu0 %v6651
  %7158 = vmatpush.bf16.msra.mxu0 %v6647
  %7159 = vmatpush.bf16.msra.mxu0 %v6643
  %7160 = vmatpush.bf16.msra.mxu0 %v6639
  %7161 = vmatpush.bf16.msra.mxu0 %v6635
  %7162 = vmatmul.bf16.gmra.mxu0 %v5367
  %v7163 = vpop.f32.mrf.mxu0
  %v7164 = vadd.f32 %v7151, %v7163
  %v7165 = vpop.f32.mrf.mxu0
  %7166 = vdwg.mxu0
  %7167 = vmatpush.bf16.msra.mxu0 %v6695
  %7168 = vmatpush.bf16.msra.mxu0 %v6691
  %7169 = vmatpush.bf16.msra.mxu0 %v6687
  %7170 = vmatpush.bf16.msra.mxu0 %v6683
  %7171 = vmatpush.bf16.msra.mxu0 %v6679
  %7172 = vmatpush.bf16.msra.mxu0 %v6675
  %7173 = vmatpush.bf16.msra.mxu0 %v6671
  %7174 = vmatpush.bf16.msra.mxu0 %v6667
  %7175 = vmatmul.bf16.gmra.mxu0 %v5368
  %v7176 = vpop.f32.mrf.mxu0
  %v7177 = vadd.f32 %v7164, %v7176
  %v7178 = vpop.f32.mrf.mxu0
  %7179 = vdwg.mxu0
  %7180 = vmatpush.bf16.msra.mxu0 %v6727
  %7181 = vmatpush.bf16.msra.mxu0 %v6723
  %7182 = vmatpush.bf16.msra.mxu0 %v6719
  %7183 = vmatpush.bf16.msra.mxu0 %v6715
  %7184 = vmatpush.bf16.msra.mxu0 %v6711
  %7185 = vmatpush.bf16.msra.mxu0 %v6707
  %7186 = vmatpush.bf16.msra.mxu0 %v6703
  %7187 = vmatpush.bf16.msra.mxu0 %v6699
  %7188 = vmatmul.bf16.gmra.mxu0 %v5369
  %v7189 = vpop.f32.mrf.mxu0
  %v7190 = vadd.f32 %v7177, %v7189
  %v7191 = vpop.f32.mrf.mxu0
  %7192 = vdwg.mxu0
  %7193 = vmatpush.bf16.msra.mxu0 %v6759
  %7194 = vmatpush.bf16.msra.mxu0 %v6755
  %7195 = vmatpush.bf16.msra.mxu0 %v6751
  %7196 = vmatpush.bf16.msra.mxu0 %v6747
  %7197 = vmatpush.bf16.msra.mxu0 %v6743
  %7198 = vmatpush.bf16.msra.mxu0 %v6739
  %7199 = vmatpush.bf16.msra.mxu0 %v6735
  %7200 = vmatpush.bf16.msra.mxu0 %v6731
  %7201 = vmatmul.bf16.gmra.mxu0 %v5370
  %v7202 = vpop.f32.mrf.mxu0
  %v7203 = vadd.f32 %v7190, %v7202
  %v7204 = vpop.f32.mrf.mxu0
  %7205 = vdwg.mxu0
  %7206 = vmatpush.bf16.msra.mxu0 %v6791
  %7207 = vmatpush.bf16.msra.mxu0 %v6787
  %7208 = vmatpush.bf16.msra.mxu0 %v6783
  %7209 = vmatpush.bf16.msra.mxu0 %v6779
  %7210 = vmatpush.bf16.msra.mxu0 %v6775
  %7211 = vmatpush.bf16.msra.mxu0 %v6771
  %7212 = vmatpush.bf16.msra.mxu0 %v6767
  %7213 = vmatpush.bf16.msra.mxu0 %v6763
  %7214 = vmatmul.bf16.gmra.mxu0 %v5371
  %v7215 = vpop.f32.mrf.mxu0
  %v7216 = vadd.f32 %v7203, %v7215
  %v7217 = vpop.f32.mrf.mxu0
  %7218 = vdwg.mxu0
  %7219 = vmatpush.bf16.msra.mxu0 %v6823
  %7220 = vmatpush.bf16.msra.mxu0 %v6819
  %7221 = vmatpush.bf16.msra.mxu0 %v6815
  %7222 = vmatpush.bf16.msra.mxu0 %v6811
  %7223 = vmatpush.bf16.msra.mxu0 %v6807
  %7224 = vmatpush.bf16.msra.mxu0 %v6803
  %7225 = vmatpush.bf16.msra.mxu0 %v6799
  %7226 = vmatpush.bf16.msra.mxu0 %v6795
  %7227 = vmatmul.bf16.gmra.mxu0 %v5372
  %v7228 = vpop.f32.mrf.mxu0
  %v7229 = vadd.f32 %v7216, %v7228
  %v7230 = vpop.f32.mrf.mxu0
  %7231 = vdwg.mxu0
  %7232 = vmatpush.bf16.msra.mxu0 %v6568
  %7233 = vmatpush.bf16.msra.mxu0 %v6564
  %7234 = vmatpush.bf16.msra.mxu0 %v6560
  %7235 = vmatpush.bf16.msra.mxu0 %v6556
  %7236 = vmatpush.bf16.msra.mxu0 %v6552
  %7237 = vmatpush.bf16.msra.mxu0 %v6548
  %7238 = vmatpush.bf16.msra.mxu0 %v6544
  %7239 = vmatpush.bf16.msra.mxu0 %v6540
  %7240 = vmatmul.bf16.gmra.mxu0 %v5364
  %v7241 = vpop.f32.mrf.mxu0
  %v7242 = vadd.f32 %v5668, %v7241
  %v7243 = vpop.f32.mrf.mxu0
  %7244 = vdwg.mxu0
  %7245 = vmatpush.bf16.msra.mxu0 %v6600
  %7246 = vmatpush.bf16.msra.mxu0 %v6596
  %7247 = vmatpush.bf16.msra.mxu0 %v6592
  %7248 = vmatpush.bf16.msra.mxu0 %v6588
  %7249 = vmatpush.bf16.msra.mxu0 %v6584
  %7250 = vmatpush.bf16.msra.mxu0 %v6580
  %7251 = vmatpush.bf16.msra.mxu0 %v6576
  %7252 = vmatpush.bf16.msra.mxu0 %v6572
  %7253 = vmatmul.bf16.gmra.mxu0 %v5365
  %v7254 = vpop.f32.mrf.mxu0
  %v7255 = vadd.f32 %v7242, %v7254
  %v7256 = vpop.f32.mrf.mxu0
  %7257 = vdwg.mxu0
  %7258 = vmatpush.bf16.msra.mxu0 %v6632
  %7259 = vmatpush.bf16.msra.mxu0 %v6628
  %7260 = vmatpush.bf16.msra.mxu0 %v6624
  %7261 = vmatpush.bf16.msra.mxu0 %v6620
  %7262 = vmatpush.bf16.msra.mxu0 %v6616
  %7263 = vmatpush.bf16.msra.mxu0 %v6612
  %7264 = vmatpush.bf16.msra.mxu0 %v6608
  %7265 = vmatpush.bf16.msra.mxu0 %v6604
  %7266 = vmatmul.bf16.gmra.mxu0 %v5366
  %v7267 = vpop.f32.mrf.mxu0
  %v7268 = vadd.f32 %v7255, %v7267
  %v7269 = vpop.f32.mrf.mxu0
  %7270 = vdwg.mxu0
  %7271 = vmatpush.bf16.msra.mxu0 %v6664
  %7272 = vmatpush.bf16.msra.mxu0 %v6660
  %7273 = vmatpush.bf16.msra.mxu0 %v6656
  %7274 = vmatpush.bf16.msra.mxu0 %v6652
  %7275 = vmatpush.bf16.msra.mxu0 %v6648
  %7276 = vmatpush.bf16.msra.mxu0 %v6644
  %7277 = vmatpush.bf16.msra.mxu0 %v6640
  %7278 = vmatpush.bf16.msra.mxu0 %v6636
  %7279 = vmatmul.bf16.gmra.mxu0 %v5367
  %v7280 = vpop.f32.mrf.mxu0
  %v7281 = vadd.f32 %v7268, %v7280
  %v7282 = vpop.f32.mrf.mxu0
  %7283 = vdwg.mxu0
  %7284 = vmatpush.bf16.msra.mxu0 %v6696
  %7285 = vmatpush.bf16.msra.mxu0 %v6692
  %7286 = vmatpush.bf16.msra.mxu0 %v6688
  %7287 = vmatpush.bf16.msra.mxu0 %v6684
  %7288 = vmatpush.bf16.msra.mxu0 %v6680
  %7289 = vmatpush.bf16.msra.mxu0 %v6676
  %7290 = vmatpush.bf16.msra.mxu0 %v6672
  %7291 = vmatpush.bf16.msra.mxu0 %v6668
  %7292 = vmatmul.bf16.gmra.mxu0 %v5368
  %v7293 = vpop.f32.mrf.mxu0
  %v7294 = vadd.f32 %v7281, %v7293
  %v7295 = vpop.f32.mrf.mxu0
  %7296 = vdwg.mxu0
  %7297 = vmatpush.bf16.msra.mxu0 %v6728
  %7298 = vmatpush.bf16.msra.mxu0 %v6724
  %7299 = vmatpush.bf16.msra.mxu0 %v6720
  %7300 = vmatpush.bf16.msra.mxu0 %v6716
  %7301 = vmatpush.bf16.msra.mxu0 %v6712
  %7302 = vmatpush.bf16.msra.mxu0 %v6708
  %7303 = vmatpush.bf16.msra.mxu0 %v6704
  %7304 = vmatpush.bf16.msra.mxu0 %v6700
  %7305 = vmatmul.bf16.gmra.mxu0 %v5369
  %v7306 = vpop.f32.mrf.mxu0
  %v7307 = vadd.f32 %v7294, %v7306
  %v7308 = vpop.f32.mrf.mxu0
  %7309 = vdwg.mxu0
  %7310 = vmatpush.bf16.msra.mxu0 %v6760
  %7311 = vmatpush.bf16.msra.mxu0 %v6756
  %7312 = vmatpush.bf16.msra.mxu0 %v6752
  %7313 = vmatpush.bf16.msra.mxu0 %v6748
  %7314 = vmatpush.bf16.msra.mxu0 %v6744
  %7315 = vmatpush.bf16.msra.mxu0 %v6740
  %7316 = vmatpush.bf16.msra.mxu0 %v6736
  %7317 = vmatpush.bf16.msra.mxu0 %v6732
  %7318 = vmatmul.bf16.gmra.mxu0 %v5370
  %v7319 = vpop.f32.mrf.mxu0
  %v7320 = vadd.f32 %v7307, %v7319
  %v7321 = vpop.f32.mrf.mxu0
  %7322 = vdwg.mxu0
  %7323 = vmatpush.bf16.msra.mxu0 %v6792
  %7324 = vmatpush.bf16.msra.mxu0 %v6788
  %7325 = vmatpush.bf16.msra.mxu0 %v6784
  %7326 = vmatpush.bf16.msra.mxu0 %v6780
  %7327 = vmatpush.bf16.msra.mxu0 %v6776
  %7328 = vmatpush.bf16.msra.mxu0 %v6772
  %7329 = vmatpush.bf16.msra.mxu0 %v6768
  %7330 = vmatpush.bf16.msra.mxu0 %v6764
  %7331 = vmatmul.bf16.gmra.mxu0 %v5371
  %v7332 = vpop.f32.mrf.mxu0
  %v7333 = vadd.f32 %v7320, %v7332
  %v7334 = vpop.f32.mrf.mxu0
  %7335 = vdwg.mxu0
  %7336 = vmatpush.bf16.msra.mxu0 %v6824
  %7337 = vmatpush.bf16.msra.mxu0 %v6820
  %7338 = vmatpush.bf16.msra.mxu0 %v6816
  %7339 = vmatpush.bf16.msra.mxu0 %v6812
  %7340 = vmatpush.bf16.msra.mxu0 %v6808
  %7341 = vmatpush.bf16.msra.mxu0 %v6804
  %7342 = vmatpush.bf16.msra.mxu0 %v6800
  %7343 = vmatpush.bf16.msra.mxu0 %v6796
  %7344 = vmatmul.bf16.gmra.mxu0 %v5372
  %v7345 = vpop.f32.mrf.mxu0
  %v7346 = vadd.f32 %v7333, %v7345
  %v7347 = vpop.f32.mrf.mxu0
  %7348 = vdwg.mxu0
  %7349 = vmatpush.bf16.msra.mxu0 %v6569
  %7350 = vmatpush.bf16.msra.mxu0 %v6565
  %7351 = vmatpush.bf16.msra.mxu0 %v6561
  %7352 = vmatpush.bf16.msra.mxu0 %v6557
  %7353 = vmatpush.bf16.msra.mxu0 %v6553
  %7354 = vmatpush.bf16.msra.mxu0 %v6549
  %7355 = vmatpush.bf16.msra.mxu0 %v6545
  %7356 = vmatpush.bf16.msra.mxu0 %v6541
  %7357 = vmatmul.bf16.gmra.mxu0 %v5364
  %v7358 = vpop.f32.mrf.mxu0
  %v7359 = vadd.f32 %v5669, %v7358
  %v7360 = vpop.f32.mrf.mxu0
  %7361 = vdwg.mxu0
  %7362 = vmatpush.bf16.msra.mxu0 %v6601
  %7363 = vmatpush.bf16.msra.mxu0 %v6597
  %7364 = vmatpush.bf16.msra.mxu0 %v6593
  %7365 = vmatpush.bf16.msra.mxu0 %v6589
  %7366 = vmatpush.bf16.msra.mxu0 %v6585
  %7367 = vmatpush.bf16.msra.mxu0 %v6581
  %7368 = vmatpush.bf16.msra.mxu0 %v6577
  %7369 = vmatpush.bf16.msra.mxu0 %v6573
  %7370 = vmatmul.bf16.gmra.mxu0 %v5365
  %v7371 = vpop.f32.mrf.mxu0
  %v7372 = vadd.f32 %v7359, %v7371
  %v7373 = vpop.f32.mrf.mxu0
  %7374 = vdwg.mxu0
  %7375 = vmatpush.bf16.msra.mxu0 %v6633
  %7376 = vmatpush.bf16.msra.mxu0 %v6629
  %7377 = vmatpush.bf16.msra.mxu0 %v6625
  %7378 = vmatpush.bf16.msra.mxu0 %v6621
  %7379 = vmatpush.bf16.msra.mxu0 %v6617
  %7380 = vmatpush.bf16.msra.mxu0 %v6613
  %7381 = vmatpush.bf16.msra.mxu0 %v6609
  %7382 = vmatpush.bf16.msra.mxu0 %v6605
  %7383 = vmatmul.bf16.gmra.mxu0 %v5366
  %v7384 = vpop.f32.mrf.mxu0
  %v7385 = vadd.f32 %v7372, %v7384
  %v7386 = vpop.f32.mrf.mxu0
  %7387 = vdwg.mxu0
  %7388 = vmatpush.bf16.msra.mxu0 %v6665
  %7389 = vmatpush.bf16.msra.mxu0 %v6661
  %7390 = vmatpush.bf16.msra.mxu0 %v6657
  %7391 = vmatpush.bf16.msra.mxu0 %v6653
  %7392 = vmatpush.bf16.msra.mxu0 %v6649
  %7393 = vmatpush.bf16.msra.mxu0 %v6645
  %7394 = vmatpush.bf16.msra.mxu0 %v6641
  %7395 = vmatpush.bf16.msra.mxu0 %v6637
  %7396 = vmatmul.bf16.gmra.mxu0 %v5367
  %v7397 = vpop.f32.mrf.mxu0
  %v7398 = vadd.f32 %v7385, %v7397
  %v7399 = vpop.f32.mrf.mxu0
  %7400 = vdwg.mxu0
  %7401 = vmatpush.bf16.msra.mxu0 %v6697
  %7402 = vmatpush.bf16.msra.mxu0 %v6693
  %7403 = vmatpush.bf16.msra.mxu0 %v6689
  %7404 = vmatpush.bf16.msra.mxu0 %v6685
  %7405 = vmatpush.bf16.msra.mxu0 %v6681
  %7406 = vmatpush.bf16.msra.mxu0 %v6677
  %7407 = vmatpush.bf16.msra.mxu0 %v6673
  %7408 = vmatpush.bf16.msra.mxu0 %v6669
  %7409 = vmatmul.bf16.gmra.mxu0 %v5368
  %v7410 = vpop.f32.mrf.mxu0
  %v7411 = vadd.f32 %v7398, %v7410
  %v7412 = vpop.f32.mrf.mxu0
  %7413 = vdwg.mxu0
  %7414 = vmatpush.bf16.msra.mxu0 %v6729
  %7415 = vmatpush.bf16.msra.mxu0 %v6725
  %7416 = vmatpush.bf16.msra.mxu0 %v6721
  %7417 = vmatpush.bf16.msra.mxu0 %v6717
  %7418 = vmatpush.bf16.msra.mxu0 %v6713
  %7419 = vmatpush.bf16.msra.mxu0 %v6709
  %7420 = vmatpush.bf16.msra.mxu0 %v6705
  %7421 = vmatpush.bf16.msra.mxu0 %v6701
  %7422 = vmatmul.bf16.gmra.mxu0 %v5369
  %v7423 = vpop.f32.mrf.mxu0
  %v7424 = vadd.f32 %v7411, %v7423
  %v7425 = vpop.f32.mrf.mxu0
  %7426 = vdwg.mxu0
  %7427 = vmatpush.bf16.msra.mxu0 %v6761
  %7428 = vmatpush.bf16.msra.mxu0 %v6757
  %7429 = vmatpush.bf16.msra.mxu0 %v6753
  %7430 = vmatpush.bf16.msra.mxu0 %v6749
  %7431 = vmatpush.bf16.msra.mxu0 %v6745
  %7432 = vmatpush.bf16.msra.mxu0 %v6741
  %7433 = vmatpush.bf16.msra.mxu0 %v6737
  %7434 = vmatpush.bf16.msra.mxu0 %v6733
  %7435 = vmatmul.bf16.gmra.mxu0 %v5370
  %v7436 = vpop.f32.mrf.mxu0
  %v7437 = vadd.f32 %v7424, %v7436
  %v7438 = vpop.f32.mrf.mxu0
  %7439 = vdwg.mxu0
  %7440 = vmatpush.bf16.msra.mxu0 %v6793
  %7441 = vmatpush.bf16.msra.mxu0 %v6789
  %7442 = vmatpush.bf16.msra.mxu0 %v6785
  %7443 = vmatpush.bf16.msra.mxu0 %v6781
  %7444 = vmatpush.bf16.msra.mxu0 %v6777
  %7445 = vmatpush.bf16.msra.mxu0 %v6773
  %7446 = vmatpush.bf16.msra.mxu0 %v6769
  %7447 = vmatpush.bf16.msra.mxu0 %v6765
  %7448 = vmatmul.bf16.gmra.mxu0 %v5371
  %v7449 = vpop.f32.mrf.mxu0
  %v7450 = vadd.f32 %v7437, %v7449
  %v7451 = vpop.f32.mrf.mxu0
  %7452 = vdwg.mxu0
  %7453 = vmatpush.bf16.msra.mxu0 %v6825
  %7454 = vmatpush.bf16.msra.mxu0 %v6821
  %7455 = vmatpush.bf16.msra.mxu0 %v6817
  %7456 = vmatpush.bf16.msra.mxu0 %v6813
  %7457 = vmatpush.bf16.msra.mxu0 %v6809
  %7458 = vmatpush.bf16.msra.mxu0 %v6805
  %7459 = vmatpush.bf16.msra.mxu0 %v6801
  %7460 = vmatpush.bf16.msra.mxu0 %v6797
  %7461 = vmatmul.bf16.gmra.mxu0 %v5372
  %v7462 = vpop.f32.mrf.mxu0
  %v7463 = vadd.f32 %v7450, %v7462
  %v7464 = vpop.f32.mrf.mxu0
  %7465 = vdwg.mxu0
  %7466 = vmatpush.bf16.msra.mxu0 %v6570
  %7467 = vmatpush.bf16.msra.mxu0 %v6566
  %7468 = vmatpush.bf16.msra.mxu0 %v6562
  %7469 = vmatpush.bf16.msra.mxu0 %v6558
  %7470 = vmatpush.bf16.msra.mxu0 %v6554
  %7471 = vmatpush.bf16.msra.mxu0 %v6550
  %7472 = vmatpush.bf16.msra.mxu0 %v6546
  %7473 = vmatpush.bf16.msra.mxu0 %v6542
  %7474 = vmatmul.bf16.gmra.mxu0 %v5364
  %v7475 = vpop.f32.mrf.mxu0
  %v7476 = vadd.f32 %v5670, %v7475
  %v7477 = vpop.f32.mrf.mxu0
  %7478 = vdwg.mxu0
  %7479 = vmatpush.bf16.msra.mxu0 %v6602
  %7480 = vmatpush.bf16.msra.mxu0 %v6598
  %7481 = vmatpush.bf16.msra.mxu0 %v6594
  %7482 = vmatpush.bf16.msra.mxu0 %v6590
  %7483 = vmatpush.bf16.msra.mxu0 %v6586
  %7484 = vmatpush.bf16.msra.mxu0 %v6582
  %7485 = vmatpush.bf16.msra.mxu0 %v6578
  %7486 = vmatpush.bf16.msra.mxu0 %v6574
  %7487 = vmatmul.bf16.gmra.mxu0 %v5365
  %v7488 = vpop.f32.mrf.mxu0
  %v7489 = vadd.f32 %v7476, %v7488
  %v7490 = vpop.f32.mrf.mxu0
  %7491 = vdwg.mxu0
  %7492 = vmatpush.bf16.msra.mxu0 %v6634
  %7493 = vmatpush.bf16.msra.mxu0 %v6630
  %7494 = vmatpush.bf16.msra.mxu0 %v6626
  %7495 = vmatpush.bf16.msra.mxu0 %v6622
  %7496 = vmatpush.bf16.msra.mxu0 %v6618
  %7497 = vmatpush.bf16.msra.mxu0 %v6614
  %7498 = vmatpush.bf16.msra.mxu0 %v6610
  %7499 = vmatpush.bf16.msra.mxu0 %v6606
  %7500 = vmatmul.bf16.gmra.mxu0 %v5366
  %v7501 = vpop.f32.mrf.mxu0
  %v7502 = vadd.f32 %v7489, %v7501
  %v7503 = vpop.f32.mrf.mxu0
  %7504 = vdwg.mxu0
  %7505 = vmatpush.bf16.msra.mxu0 %v6666
  %7506 = vmatpush.bf16.msra.mxu0 %v6662
  %7507 = vmatpush.bf16.msra.mxu0 %v6658
  %7508 = vmatpush.bf16.msra.mxu0 %v6654
  %7509 = vmatpush.bf16.msra.mxu0 %v6650
  %7510 = vmatpush.bf16.msra.mxu0 %v6646
  %7511 = vmatpush.bf16.msra.mxu0 %v6642
  %7512 = vmatpush.bf16.msra.mxu0 %v6638
  %7513 = vmatmul.bf16.gmra.mxu0 %v5367
  %v7514 = vpop.f32.mrf.mxu0
  %v7515 = vadd.f32 %v7502, %v7514
  %v7516 = vpop.f32.mrf.mxu0
  %7517 = vdwg.mxu0
  %7518 = vmatpush.bf16.msra.mxu0 %v6698
  %7519 = vmatpush.bf16.msra.mxu0 %v6694
  %7520 = vmatpush.bf16.msra.mxu0 %v6690
  %7521 = vmatpush.bf16.msra.mxu0 %v6686
  %7522 = vmatpush.bf16.msra.mxu0 %v6682
  %7523 = vmatpush.bf16.msra.mxu0 %v6678
  %7524 = vmatpush.bf16.msra.mxu0 %v6674
  %7525 = vmatpush.bf16.msra.mxu0 %v6670
  %7526 = vmatmul.bf16.gmra.mxu0 %v5368
  %v7527 = vpop.f32.mrf.mxu0
  %v7528 = vadd.f32 %v7515, %v7527
  %v7529 = vpop.f32.mrf.mxu0
  %7530 = vdwg.mxu0
  %7531 = vmatpush.bf16.msra.mxu0 %v6730
  %7532 = vmatpush.bf16.msra.mxu0 %v6726
  %7533 = vmatpush.bf16.msra.mxu0 %v6722
  %7534 = vmatpush.bf16.msra.mxu0 %v6718
  %7535 = vmatpush.bf16.msra.mxu0 %v6714
  %7536 = vmatpush.bf16.msra.mxu0 %v6710
  %7537 = vmatpush.bf16.msra.mxu0 %v6706
  %7538 = vmatpush.bf16.msra.mxu0 %v6702
  %7539 = vmatmul.bf16.gmra.mxu0 %v5369
  %v7540 = vpop.f32.mrf.mxu0
  %v7541 = vadd.f32 %v7528, %v7540
  %v7542 = vpop.f32.mrf.mxu0
  %7543 = vdwg.mxu0
  %7544 = vmatpush.bf16.msra.mxu0 %v6762
  %7545 = vmatpush.bf16.msra.mxu0 %v6758
  %7546 = vmatpush.bf16.msra.mxu0 %v6754
  %7547 = vmatpush.bf16.msra.mxu0 %v6750
  %7548 = vmatpush.bf16.msra.mxu0 %v6746
  %7549 = vmatpush.bf16.msra.mxu0 %v6742
  %7550 = vmatpush.bf16.msra.mxu0 %v6738
  %7551 = vmatpush.bf16.msra.mxu0 %v6734
  %7552 = vmatmul.bf16.gmra.mxu0 %v5370
  %v7553 = vpop.f32.mrf.mxu0
  %v7554 = vadd.f32 %v7541, %v7553
  %v7555 = vpop.f32.mrf.mxu0
  %7556 = vdwg.mxu0
  %7557 = vmatpush.bf16.msra.mxu0 %v6794
  %7558 = vmatpush.bf16.msra.mxu0 %v6790
  %7559 = vmatpush.bf16.msra.mxu0 %v6786
  %7560 = vmatpush.bf16.msra.mxu0 %v6782
  %7561 = vmatpush.bf16.msra.mxu0 %v6778
  %7562 = vmatpush.bf16.msra.mxu0 %v6774
  %7563 = vmatpush.bf16.msra.mxu0 %v6770
  %7564 = vmatpush.bf16.msra.mxu0 %v6766
  %7565 = vmatmul.bf16.gmra.mxu0 %v5371
  %v7566 = vpop.f32.mrf.mxu0
  %v7567 = vadd.f32 %v7554, %v7566
  %v7568 = vpop.f32.mrf.mxu0
  %7569 = vdwg.mxu0
  %7570 = vmatpush.bf16.msra.mxu0 %v6826
  %7571 = vmatpush.bf16.msra.mxu0 %v6822
  %7572 = vmatpush.bf16.msra.mxu0 %v6818
  %7573 = vmatpush.bf16.msra.mxu0 %v6814
  %7574 = vmatpush.bf16.msra.mxu0 %v6810
  %7575 = vmatpush.bf16.msra.mxu0 %v6806
  %7576 = vmatpush.bf16.msra.mxu0 %v6802
  %7577 = vmatpush.bf16.msra.mxu0 %v6798
  %7578 = vmatmul.bf16.gmra.mxu0 %v5372
  %v7579 = vpop.f32.mrf.mxu0
  %v7580 = vadd.f32 %v7567, %v7579
  %v7581 = vpop.f32.mrf.mxu0
  %7582 = vdwg.mxu0
  %vm7583 = vcmp.gt.f32.partialorder %v7229, 0.0
  %vm7584 = vcmp.gt.f32.partialorder %v7346, 0.0
  %vm7585 = vcmp.gt.f32.partialorder %v7463, 0.0
  %vm7586 = vcmp.gt.f32.partialorder %v7580, 0.0
  %v7587 = vmin.f32 %v7229, 0.0
  %v7588 = vmin.f32 %v7346, 0.0
  %v7589 = vmin.f32 %v7463, 0.0
  %v7590 = vmin.f32 %v7580, 0.0
  %v7591 = vmul.f32 %v7587, 1.442695
  %v7592 = vpow.pop %v7591
  %v7593 = vmul.f32 %v7588, 1.442695
  %v7594 = vpow.pop %v7593
  %v7595 = vmul.f32 %v7589, 1.442695
  %v7596 = vpow.pop %v7595
  %v7597 = vmul.f32 %v7590, 1.442695
  %v7598 = vpow.pop %v7597
  %v7599 = vsub.f32 %v7592, 1.0
  %v7600 = vsub.f32 %v7594, 1.0
  %v7601 = vsub.f32 %v7596, 1.0
  %v7602 = vsub.f32 %v7598, 1.0
  %v7603 = vsel %vm7583, %v7229, %v7599
  %v7604 = vsel %vm7584, %v7346, %v7600
  %v7605 = vsel %vm7585, %v7463, %v7601
  %v7606 = vsel %vm7586, %v7580, %v7602
  %v7607 = vpack.c.bf16 %v7603, %v7603
  %v7608 = vpack.c.bf16 %v7604, %v7604
  %v7609 = vpack.c.bf16 %v7605, %v7605
  %v7610 = vpack.c.bf16 %v7606, %v7606
  %v7611 = vld [vmem:[%s9] sm:$0xf]
  %v7612 = vld [vmem:[%s9 + $0x4] sm:$0xf]
  %v7613 = vld [vmem:[%s9 + $0x8] sm:$0xf]
  %v7614 = vld [vmem:[%s9 + $0xc] sm:$0xf]
  %v7615 = vld [vmem:[%s9 + $0x10] sm:$0xf]
  %v7616 = vld [vmem:[%s9 + $0x14] sm:$0xf]
  %v7617 = vld [vmem:[%s9 + $0x18] sm:$0xf]
  %v7618 = vld [vmem:[%s9 + $0x1c] sm:$0xf]
  %v7619 = vld [vmem:[%s9 + $0x20] sm:$0xf]
  %v7620 = vld [vmem:[%s9 + $0x24] sm:$0xf]
  %v7621 = vld [vmem:[%s9 + $0x28] sm:$0xf]
  %v7622 = vld [vmem:[%s9 + $0x2c] sm:$0xf]
  %v7623 = vld [vmem:[%s9 + $0x30] sm:$0xf]
  %v7624 = vld [vmem:[%s9 + $0x34] sm:$0xf]
  %v7625 = vld [vmem:[%s9 + $0x38] sm:$0xf]
  %v7626 = vld [vmem:[%s9 + $0x3c] sm:$0xf]
  %v7627 = vld [vmem:[%s9 + $0x40] sm:$0xf]
  %v7628 = vld [vmem:[%s9 + $0x44] sm:$0xf]
  %v7629 = vld [vmem:[%s9 + $0x48] sm:$0xf]
  %v7630 = vld [vmem:[%s9 + $0x4c] sm:$0xf]
  %v7631 = vld [vmem:[%s9 + $0x50] sm:$0xf]
  %v7632 = vld [vmem:[%s9 + $0x54] sm:$0xf]
  %v7633 = vld [vmem:[%s9 + $0x58] sm:$0xf]
  %v7634 = vld [vmem:[%s9 + $0x5c] sm:$0xf]
  %v7635 = vld [vmem:[%s9 + $0x60] sm:$0xf]
  %v7636 = vld [vmem:[%s9 + $0x64] sm:$0xf]
  %v7637 = vld [vmem:[%s9 + $0x68] sm:$0xf]
  %v7638 = vld [vmem:[%s9 + $0x6c] sm:$0xf]
  %v7639 = vld [vmem:[%s9 + $0x70] sm:$0xf]
  %v7640 = vld [vmem:[%s9 + $0x74] sm:$0xf]
  %v7641 = vld [vmem:[%s9 + $0x78] sm:$0xf]
  %v7642 = vld [vmem:[%s9 + $0x7c] sm:$0xf]
  %v7643 = vld [vmem:[%s9 + $0x80] sm:$0xf]
  %v7644 = vld [vmem:[%s9 + $0x84] sm:$0xf]
  %v7645 = vld [vmem:[%s9 + $0x88] sm:$0xf]
  %v7646 = vld [vmem:[%s9 + $0x8c] sm:$0xf]
  %v7647 = vld [vmem:[%s9 + $0x90] sm:$0xf]
  %v7648 = vld [vmem:[%s9 + $0x94] sm:$0xf]
  %v7649 = vld [vmem:[%s9 + $0x98] sm:$0xf]
  %v7650 = vld [vmem:[%s9 + $0x9c] sm:$0xf]
  %v7651 = vld [vmem:[%s9 + $0xa0] sm:$0xf]
  %v7652 = vld [vmem:[%s9 + $0xa4] sm:$0xf]
  %v7653 = vld [vmem:[%s9 + $0xa8] sm:$0xf]
  %v7654 = vld [vmem:[%s9 + $0xac] sm:$0xf]
  %v7655 = vld [vmem:[%s9 + $0xb0] sm:$0xf]
  %v7656 = vld [vmem:[%s9 + $0xb4] sm:$0xf]
  %v7657 = vld [vmem:[%s9 + $0xb8] sm:$0xf]
  %v7658 = vld [vmem:[%s9 + $0xbc] sm:$0xf]
  %v7659 = vld [vmem:[%s9 + $0xc0] sm:$0xf]
  %v7660 = vld [vmem:[%s9 + $0xc4] sm:$0xf]
  %v7661 = vld [vmem:[%s9 + $0xc8] sm:$0xf]
  %v7662 = vld [vmem:[%s9 + $0xcc] sm:$0xf]
  %v7663 = vld [vmem:[%s9 + $0xd0] sm:$0xf]
  %v7664 = vld [vmem:[%s9 + $0xd4] sm:$0xf]
  %v7665 = vld [vmem:[%s9 + $0xd8] sm:$0xf]
  %v7666 = vld [vmem:[%s9 + $0xdc] sm:$0xf]
  %v7667 = vld [vmem:[%s9 + $0xe0] sm:$0xf]
  %v7668 = vld [vmem:[%s9 + $0xe4] sm:$0xf]
  %v7669 = vld [vmem:[%s9 + $0xe8] sm:$0xf]
  %v7670 = vld [vmem:[%s9 + $0xec] sm:$0xf]
  %v7671 = vld [vmem:[%s9 + $0xf0] sm:$0xf]
  %v7672 = vld [vmem:[%s9 + $0xf4] sm:$0xf]
  %v7673 = vld [vmem:[%s9 + $0xf8] sm:$0xf]
  %v7674 = vld [vmem:[%s9 + $0xfc] sm:$0xf]
  %v7675 = vld [vmem:[%s10] sm:$0x1]
  %v7677 = vperm.slane %v7675, 0
  %v7743 = vunpack.c.l.b16 %v7611
  %v7744 = vunpack.c.l.b16 %v7612
  %v7745 = vunpack.c.l.b16 %v7613
  %v7746 = vunpack.c.l.b16 %v7614
  %v7747 = vunpack.c.l.b16 %v7615
  %v7748 = vunpack.c.l.b16 %v7616
  %v7749 = vunpack.c.l.b16 %v7617
  %v7750 = vunpack.c.l.b16 %v7618
  %v7751 = vunpack.c.l.b16 %v7619
  %v7752 = vunpack.c.l.b16 %v7620
  %v7753 = vunpack.c.l.b16 %v7621
  %v7754 = vunpack.c.l.b16 %v7622
  %v7755 = vunpack.c.l.b16 %v7623
  %v7756 = vunpack.c.l.b16 %v7624
  %v7757 = vunpack.c.l.b16 %v7625
  %v7758 = vunpack.c.l.b16 %v7626
  %v7759 = vunpack.c.l.b16 %v7627
  %v7760 = vunpack.c.l.b16 %v7628
  %v7761 = vunpack.c.l.b16 %v7629
  %v7762 = vunpack.c.l.b16 %v7630
  %v7763 = vunpack.c.l.b16 %v7631
  %v7764 = vunpack.c.l.b16 %v7632
  %v7765 = vunpack.c.l.b16 %v7633
  %v7766 = vunpack.c.l.b16 %v7634
  %v7767 = vunpack.c.l.b16 %v7635
  %v7768 = vunpack.c.l.b16 %v7636
  %v7769 = vunpack.c.l.b16 %v7637
  %v7770 = vunpack.c.l.b16 %v7638
  %v7771 = vunpack.c.l.b16 %v7639
  %v7772 = vunpack.c.l.b16 %v7640
  %v7773 = vunpack.c.l.b16 %v7641
  %v7774 = vunpack.c.l.b16 %v7642
  %v7775 = vunpack.c.l.b16 %v7643
  %v7776 = vunpack.c.l.b16 %v7644
  %v7777 = vunpack.c.l.b16 %v7645
  %v7778 = vunpack.c.l.b16 %v7646
  %v7779 = vunpack.c.l.b16 %v7647
  %v7780 = vunpack.c.l.b16 %v7648
  %v7781 = vunpack.c.l.b16 %v7649
  %v7782 = vunpack.c.l.b16 %v7650
  %v7783 = vunpack.c.l.b16 %v7651
  %v7784 = vunpack.c.l.b16 %v7652
  %v7785 = vunpack.c.l.b16 %v7653
  %v7786 = vunpack.c.l.b16 %v7654
  %v7787 = vunpack.c.l.b16 %v7655
  %v7788 = vunpack.c.l.b16 %v7656
  %v7789 = vunpack.c.l.b16 %v7657
  %v7790 = vunpack.c.l.b16 %v7658
  %v7791 = vunpack.c.l.b16 %v7659
  %v7792 = vunpack.c.l.b16 %v7660
  %v7793 = vunpack.c.l.b16 %v7661
  %v7794 = vunpack.c.l.b16 %v7662
  %v7795 = vunpack.c.l.b16 %v7663
  %v7796 = vunpack.c.l.b16 %v7664
  %v7797 = vunpack.c.l.b16 %v7665
  %v7798 = vunpack.c.l.b16 %v7666
  %v7799 = vunpack.c.l.b16 %v7667
  %v7800 = vunpack.c.l.b16 %v7668
  %v7801 = vunpack.c.l.b16 %v7669
  %v7802 = vunpack.c.l.b16 %v7670
  %v7803 = vunpack.c.l.b16 %v7671
  %v7804 = vunpack.c.l.b16 %v7672
  %v7805 = vunpack.c.l.b16 %v7673
  %v7806 = vunpack.c.l.b16 %v7674
  %v7807 = vpack.c.b16 %v7744, %v7743
  %v7808 = vpack.c.b16 %v7746, %v7745
  %v7809 = vpack.c.b16 %v7748, %v7747
  %v7810 = vpack.c.b16 %v7750, %v7749
  %v7811 = vpack.c.b16 %v7752, %v7751
  %v7812 = vpack.c.b16 %v7754, %v7753
  %v7813 = vpack.c.b16 %v7756, %v7755
  %v7814 = vpack.c.b16 %v7758, %v7757
  %v7815 = vpack.c.b16 %v7760, %v7759
  %v7816 = vpack.c.b16 %v7762, %v7761
  %v7817 = vpack.c.b16 %v7764, %v7763
  %v7818 = vpack.c.b16 %v7766, %v7765
  %v7819 = vpack.c.b16 %v7768, %v7767
  %v7820 = vpack.c.b16 %v7770, %v7769
  %v7821 = vpack.c.b16 %v7772, %v7771
  %v7822 = vpack.c.b16 %v7774, %v7773
  %v7823 = vpack.c.b16 %v7776, %v7775
  %v7824 = vpack.c.b16 %v7778, %v7777
  %v7825 = vpack.c.b16 %v7780, %v7779
  %v7826 = vpack.c.b16 %v7782, %v7781
  %v7827 = vpack.c.b16 %v7784, %v7783
  %v7828 = vpack.c.b16 %v7786, %v7785
  %v7829 = vpack.c.b16 %v7788, %v7787
  %v7830 = vpack.c.b16 %v7790, %v7789
  %v7831 = vpack.c.b16 %v7792, %v7791
  %v7832 = vpack.c.b16 %v7794, %v7793
  %v7833 = vpack.c.b16 %v7796, %v7795
  %v7834 = vpack.c.b16 %v7798, %v7797
  %v7835 = vpack.c.b16 %v7800, %v7799
  %v7836 = vpack.c.b16 %v7802, %v7801
  %v7837 = vpack.c.b16 %v7804, %v7803
  %v7838 = vpack.c.b16 %v7806, %v7805
  %7871 = vmatpush.bf16.msra.mxu0 %v7814
  %7872 = vmatpush.bf16.msra.mxu0 %v7813
  %7873 = vmatpush.bf16.msra.mxu0 %v7812
  %7874 = vmatpush.bf16.msra.mxu0 %v7811
  %7875 = vmatpush.bf16.msra.mxu0 %v7810
  %7876 = vmatpush.bf16.msra.mxu0 %v7809
  %7877 = vmatpush.bf16.msra.mxu0 %v7808
  %7878 = vmatpush.bf16.msra.mxu0 %v7807
  %7879 = vmatmul.bf16.gmra.mxu0 %v7607
  %v7880 = vpop.f32.mrf.mxu0
  %v7881 = vadd.f32 %v7677, %v7880
  %v7882 = vpop.f32.mrf.mxu0
  %7883 = vdwg.mxu0
  %7884 = vmatpush.bf16.msra.mxu0 %v7822
  %7885 = vmatpush.bf16.msra.mxu0 %v7821
  %7886 = vmatpush.bf16.msra.mxu0 %v7820
  %7887 = vmatpush.bf16.msra.mxu0 %v7819
  %7888 = vmatpush.bf16.msra.mxu0 %v7818
  %7889 = vmatpush.bf16.msra.mxu0 %v7817
  %7890 = vmatpush.bf16.msra.mxu0 %v7816
  %7891 = vmatpush.bf16.msra.mxu0 %v7815
  %7892 = vmatmul.bf16.gmra.mxu0 %v7608
  %v7893 = vpop.f32.mrf.mxu0
  %v7894 = vadd.f32 %v7881, %v7893
  %v7895 = vpop.f32.mrf.mxu0
  %7896 = vdwg.mxu0
  %7897 = vmatpush.bf16.msra.mxu0 %v7830
  %7898 = vmatpush.bf16.msra.mxu0 %v7829
  %7899 = vmatpush.bf16.msra.mxu0 %v7828
  %7900 = vmatpush.bf16.msra.mxu0 %v7827
  %7901 = vmatpush.bf16.msra.mxu0 %v7826
  %7902 = vmatpush.bf16.msra.mxu0 %v7825
  %7903 = vmatpush.bf16.msra.mxu0 %v7824
  %7904 = vmatpush.bf16.msra.mxu0 %v7823
  %7905 = vmatmul.bf16.gmra.mxu0 %v7609
  %v7906 = vpop.f32.mrf.mxu0
  %v7907 = vadd.f32 %v7894, %v7906
  %v7908 = vpop.f32.mrf.mxu0
  %7909 = vdwg.mxu0
  %7910 = vmatpush.bf16.msra.mxu0 %v7838
  %7911 = vmatpush.bf16.msra.mxu0 %v7837
  %7912 = vmatpush.bf16.msra.mxu0 %v7836
  %7913 = vmatpush.bf16.msra.mxu0 %v7835
  %7914 = vmatpush.bf16.msra.mxu0 %v7834
  %7915 = vmatpush.bf16.msra.mxu0 %v7833
  %7916 = vmatpush.bf16.msra.mxu0 %v7832
  %7917 = vmatpush.bf16.msra.mxu0 %v7831
  %7918 = vmatmul.bf16.gmra.mxu0 %v7610
  %v7919 = vpop.f32.mrf.mxu0
  %v7920 = vadd.f32 %v7907, %v7919
  %v7921 = vpop.f32.mrf.mxu0
  %7922 = vdwg.mxu0
  %7923 = vst [vmem:[%s11] sm:$0xff] %v7920
  // Predicated region
  $region61: #{encoder_forward.1} parent=0 // pred_check
    _
  $region62: #{encoder_forward.1} parent=0 // pred_check_branch
    %7925 = sbr.rel (0) target = $region64
  $region63: #{encoder_forward.1} parent=0 // pred_region
    _
  $region64: #{encoder_forward.1} parent=0 // pred_fallthru
    _
  // Predicated region
  $region65: #{encoder_forward.1} parent=0 // pred_check
    _
  $region66: #{encoder_forward.1} parent=0 // pred_check_branch
    %7927 = sbr.rel (0) target = $region68
  $region67: #{encoder_forward.1} parent=0 // pred_region
    _
  $region68: #{encoder_forward.1} parent=0 // pred_fallthru
    _
  %7928 = vsyncmov [#allocation7]
  %s7929 = vpop.sfrf %7928
  %p7930 = scmp.eq.s32.totalorder %s7929, 0
  %p7931 = pneg %p7930
  %7933 = shalt.err (%p7931)

</llo_original>
